<compile_context>
chip_gen: v7x
topology: tpu7x:2x2x1
jax: 0.10.0
libtpu: 0.0.40
codegen_flags: <defaults>
</compile_context>

<pallas_src>
import functools

import jax
import jax.numpy as jnp
from jax import lax
from jax.experimental import pallas as pl
from jax.experimental.pallas import tpu as pltpu


# ----------------------------------------------------------------------------
# Fused kernel: whole forward pass for B_TILE images per grid step
# ----------------------------------------------------------------------------
def _pet_kernel(x_ref, m1_ref, m2_ref,
                w1_ref, b1_ref, w2_ref, b2_ref, w3_ref, b3_ref,
                fc1_ref, fb1_ref, fc2_ref, fb2_ref, e_ref,
                o_ref, *, w_img, n_img):
    """Activations are (C, n_img * w_img^2): batch folded onto lanes."""
    f32 = jnp.float32
    L = w_img * w_img
    LT = n_img * L
    p = w_img // 4                       # compacted spatial side (4 for 16x16)

    def shift(v, s):
        # out[:, j] = v[:, j + s]; wrap-around only hits mask-zeroed positions.
        sh = (-s) % LT
        return v if sh == 0 else pltpu.roll(v, sh, axis=1)

    def conv3x3(act, wk_ref, b_ref, m, dil):
        # act: (C_in, LT); wk_ref: (C_out, 9*C_in); m: (9, LT) per-image masks.
        taps = []
        for kh in range(3):
            for kw in range(3):
                t = kh * 3 + kw
                s = dil * ((kh - 1) * w_img + (kw - 1))
                taps.append(m[t:t + 1, :] * shift(act, s))     # masked input tap
        stacked = jnp.concatenate(taps, axis=0)                # (9*C_in, LT)
        return jnp.dot(wk_ref[...], stacked,
                       preferred_element_type=f32) + b_ref[...]

    def pool2x2_relu(act, dil):
        # 2x2 stride-2 max-pool on the dil-dilated grid, fused with ReLU.
        mx = jnp.maximum(jnp.maximum(act, shift(act, dil)),
                         jnp.maximum(shift(act, dil * w_img),
                                     shift(act, dil * (w_img + 1))))
        return jnp.maximum(mx, 0.0)

    m1 = m1_ref[...]
    m2 = m2_ref[...]
    x = x_ref[...]                                   # (C_in_pad, LT)

    a = conv3x3(x, w1_ref, b1_ref, m1, dil=1)        # conv1
    a = pool2x2_relu(a, dil=1)                       # maxpool + relu (stride-2)
    a = conv3x3(a, w2_ref, b2_ref, m2, dil=2)        # conv2
    a = jnp.maximum(a, 0.0)                          # relu
    a = conv3x3(a, w3_ref, b3_ref, m2, dil=2)        # conv3
    a = pool2x2_relu(a, dil=2)                       # maxpool + relu (stride-4)
    # a: (C3, LT); valid features live at lanes i*L + src[q], q in [0, p*p)

    # Classifier, fused.  The (C3,4,4)->flat compaction is folded into fc1 by
    # K-stacking one roll per compact pixel q (row layout q*C3 + c, matching
    # the pre-packed fc1 weight).  No in-kernel relayout/transpose needed.
    qs = []
    for q in range(p * p):
        src = (q // p) * (4 * w_img) + (q % p) * 4
        qs.append(shift(a, src))
    kc = jnp.concatenate(qs, axis=0)                             # (p*p*C3, LT)
    h_d = jnp.dot(fc1_ref[...], kc,
                  preferred_element_type=f32) + fb1_ref[...]     # (hd, LT)
    # Extract one lane per image (lane i*L) and apply ReLU.
    hc = jnp.maximum(jnp.dot(h_d, e_ref[...],
                             preferred_element_type=f32), 0.0)   # (hd, n_img)
    # fc2 in (types, batch) orientation; wrapper transposes the tiny result.
    o_ref[0] = jnp.dot(fc2_ref[...], hc,
                       preferred_element_type=f32) + fb2_ref[...]


# ----------------------------------------------------------------------------
# One-time repack of PyTorch-layout parameters
# ----------------------------------------------------------------------------
def prepare_params(params, input_size):
    w = input_size
    f32 = jnp.float32

    def conv_k(w_oihw, ci_pad=None):
        c_out, c_in = w_oihw.shape[0], w_oihw.shape[1]
        if ci_pad is not None and ci_pad != c_in:
            w_oihw = jnp.pad(w_oihw, ((0, 0), (0, ci_pad - c_in), (0, 0), (0, 0)))
            c_in = ci_pad
        # (O, I, kh, kw) -> (O, kh, kw, I) -> (O, 9*I); col = (kh*3+kw)*I + i
        return jnp.transpose(w_oihw, (0, 2, 3, 1)).reshape(c_out, 9 * c_in).astype(f32)

    def tap_masks(dil):
        flat = jnp.arange(w * w)
        hh, ww = flat // w, flat % w
        rows = []
        for kh in range(3):
            for kw in range(3):
                hs = hh + dil * (kh - 1)
                ws = ww + dil * (kw - 1)
                rows.append(((hs >= 0) & (hs < w) & (ws >= 0) & (ws < w)).astype(f32))
        return jnp.stack(rows, axis=0)                 # (9, w*w)

    p = w // 4
    c_in = params["conv1_w"].shape[1]
    ci_pad = ((c_in + 7) // 8) * 8                     # sublane-align conv1 K blocks
    c3 = params["conv3_w"].shape[0]
    hd_fc = params["fc1_w"].shape[0]

    # fc1 (hd, c3*p*p) with PyTorch flatten order c*p*p + q  ->  (hd, p*p*c3)
    # matching the kernel's K-stack row order q*C3 + c.
    fc1k = jnp.transpose(params["fc1_w"].reshape(hd_fc, c3, p * p), (0, 2, 1))
    fc1k = fc1k.reshape(hd_fc, p * p * c3).astype(f32)

    return {
        "m1": tap_masks(1), "m2": tap_masks(2),
        "w1k": conv_k(params["conv1_w"], ci_pad),
        "b1": params["conv1_b"].reshape(-1, 1).astype(f32),
        "w2k": conv_k(params["conv2_w"]),
        "b2": params["conv2_b"].reshape(-1, 1).astype(f32),
        "w3k": conv_k(params["conv3_w"]),
        "b3": params["conv3_b"].reshape(-1, 1).astype(f32),
        "fc1k": fc1k,
        "fb1": params["fc1_b"].reshape(-1, 1).astype(f32),
        "fw2": params["fc2_w"].astype(f32),            # (types, hd), as-is
        "fb2": params["fc2_b"].reshape(-1, 1).astype(f32),
    }


# ----------------------------------------------------------------------------
# Forward pass wrapper
# ----------------------------------------------------------------------------
def pet_recognizer_forward(x_nchw, pp, *, b_tile=8):
    n, c_in, h, w = x_nchw.shape
    assert h == w and w % 4 == 0
    L = h * w
    n_steps = max(1, -(-n // b_tile))
    n_pad = n_steps * b_tile
    c_in_pad = pp["w1k"].shape[1] // 9

    # (N, C, H, W) -> zero-pad batch/channels -> fold batch onto lanes (C, N*L).
    x_f = x_nchw.astype(jnp.float32).reshape(n, c_in, L)
    x_f = jnp.pad(x_f, ((0, n_pad - n), (0, c_in_pad - c_in), (0, 0)))
    x_lanes = jnp.transpose(x_f, (1, 0, 2)).reshape(c_in_pad, n_pad * L)

    # Per-image zero-pad masks tiled across the B_TILE images of one step
    # (keeps pltpu.roll wrap-around from leaking between adjacent images).
    m1 = jnp.tile(pp["m1"], (1, b_tile))
    m2 = jnp.tile(pp["m2"], (1, b_tile))

    # Extraction matrix: lane i*L of the dilated fc1 output -> column i.
    e = jnp.zeros((b_tile * L, b_tile), jnp.float32)
    e = e.at[jnp.arange(b_tile) * L, jnp.arange(b_tile)].set(1.0)

    types = pp["fw2"].shape[0]
    lt = b_tile * L

    def full_spec(arr):
        nd = arr.ndim
        return pl.BlockSpec(arr.shape, lambda b, nd=nd: (0,) * nd)

    kernel = functools.partial(_pet_kernel, w_img=w, n_img=b_tile)

    out3 = pl.pallas_call(
        kernel,
        out_shape=jax.ShapeDtypeStruct((n_steps, types, b_tile), jnp.float32),
        grid=(n_steps,),
        in_specs=[
            pl.BlockSpec((c_in_pad, lt), lambda b: (0, b)),   # B_TILE images
            full_spec(m1), full_spec(m2),
            full_spec(pp["w1k"]), full_spec(pp["b1"]),
            full_spec(pp["w2k"]), full_spec(pp["b2"]),
            full_spec(pp["w3k"]), full_spec(pp["b3"]),
            full_spec(pp["fc1k"]), full_spec(pp["fb1"]),
            full_spec(pp["fw2"]), full_spec(pp["fb2"]),
            full_spec(e),
        ],
        out_specs=pl.BlockSpec((1, types, b_tile), lambda b: (b, 0, 0)),
        compiler_params=pltpu.CompilerParams(
            dimension_semantics=("parallel",),        # batch tiles across TCs (v7x)
            vmem_limit_bytes=32 * 1024 * 1024),
    )(x_lanes, m1, m2, pp["w1k"], pp["b1"], pp["w2k"], pp["b2"],
      pp["w3k"], pp["b3"], pp["fc1k"], pp["fb1"], pp["fw2"], pp["fb2"], e)

    # (steps, types, B_TILE) -> (N, types): tiny wrapper-side layout fixup.
    logits = jnp.transpose(out3, (0, 2, 1)).reshape(n_pad, types)
    return logits[:n]


# ----------------------------------------------------------------------------
# Parameters + pure-JAX reference (numerical sanity check)
# ----------------------------------------------------------------------------
def init_params(key, input_size=16, hidden_dim=8, types=37):
    fc_in_dim = input_size * input_size * hidden_dim * 2 // 16
    ks = jax.random.split(key, 10)

    def rnd(k, shape, fan_in):
        return jax.random.normal(k, shape, jnp.float32) / jnp.sqrt(float(fan_in))

    hd = hidden_dim
    params = {
        "conv1_w": rnd(ks[0], (hd, 3, 3, 3), 27),
        "conv1_b": rnd(ks[1], (hd,), 27),
        "conv2_w": rnd(ks[2], (2 * hd, hd, 3, 3), 9 * hd),
        "conv2_b": rnd(ks[3], (2 * hd,), 9 * hd),
        "conv3_w": rnd(ks[4], (2 * hd, 2 * hd, 3, 3), 18 * hd),
        "conv3_b": rnd(ks[5], (2 * hd,), 18 * hd),
        "fc1_w": rnd(ks[6], (hd, fc_in_dim), fc_in_dim),   # PyTorch Linear: (out, in)
        "fc1_b": rnd(ks[7], (hd,), fc_in_dim),
        "fc2_w": rnd(ks[8], (types, hd), hd),
        "fc2_b": rnd(ks[9], (types,), hd),
    }
    return params, fc_in_dim


def reference_forward(x_nchw, params):
    dn = ("NCHW", "OIHW", "NCHW")
    hp = lax.Precision.HIGHEST

    def conv(x, w_, b_):
        y = lax.conv_general_dilated(x, w_, (1, 1), ((1, 1), (1, 1)),
                                     dimension_numbers=dn, precision=hp)
        return y + b_[None, :, None, None]

    def pool_relu(x):
        y = lax.reduce_window(x, -jnp.inf, lax.max,
                              (1, 1, 2, 2), (1, 1, 2, 2), "VALID")
        return jnp.maximum(y, 0.0)

    y = pool_relu(conv(x_nchw, params["conv1_w"], params["conv1_b"]))
    y = jnp.maximum(conv(y, params["conv2_w"], params["conv2_b"]), 0.0)
    y = pool_relu(conv(y, params["conv3_w"], params["conv3_b"]))
    y = y.reshape(y.shape[0], -1)
    y = jnp.maximum(jnp.dot(y, params["fc1_w"].T, precision=hp) + params["fc1_b"], 0.0)
    return jnp.dot(y, params["fc2_w"].T, precision=hp) + params["fc2_b"]


if __name__ == "__main__":
    # Shapes consistent with the module: 3 input channels, input_size=16,
    # hidden_dim=8, types=37.  batch=16 with B_TILE=8 => grid of 2 parallel
    # steps (keeps both v7x TensorCores busy while exercising batching).
    input_size, hidden_dim, types = 16, 8, 37
    batch, b_tile = 16, 8

    key = jax.random.PRNGKey(0)
    k_params, k_x = jax.random.split(key)
    params, fc_in_dim = init_params(k_params, input_size, hidden_dim, types)
    x = jax.random.normal(k_x, (batch, 3, input_size, input_size), dtype=jnp.float32)

    pp = prepare_params(params, input_size)            # one-time repack
    assert pp["fc1k"].shape == (hidden_dim, fc_in_dim)

    fwd = jax.jit(functools.partial(pet_recognizer_forward, b_tile=b_tile))
    out = fwd(x, pp)
    jax.block_until_ready(out)

    assert out.shape == (batch, types), out.shape
    assert out.dtype == jnp.float32

    ref = reference_forward(x, params)
    max_err = float(jnp.max(jnp.abs(out - ref)))
    assert max_err < 5e-2, f"mismatch vs reference: max |diff| = {max_err}"

    print("KERNEL_OK")
</pallas_src>

<mosaic_0001>
module attributes {stable_mosaic.version = 11 : i64} {
  func.func @_pet_kernel(%arg0: i32, %arg1: memref<8x2048xf32, #tpu.memory_space<vmem>>, %arg2: memref<9x2048xf32, #tpu.memory_space<vmem>>, %arg3: memref<9x2048xf32, #tpu.memory_space<vmem>>, %arg4: memref<8x72xf32, #tpu.memory_space<vmem>>, %arg5: memref<8x1xf32, #tpu.memory_space<vmem>>, %arg6: memref<16x72xf32, #tpu.memory_space<vmem>>, %arg7: memref<16x1xf32, #tpu.memory_space<vmem>>, %arg8: memref<16x144xf32, #tpu.memory_space<vmem>>, %arg9: memref<16x1xf32, #tpu.memory_space<vmem>>, %arg10: memref<8x256xf32, #tpu.memory_space<vmem>>, %arg11: memref<8x1xf32, #tpu.memory_space<vmem>>, %arg12: memref<37x8xf32, #tpu.memory_space<vmem>>, %arg13: memref<37x1xf32, #tpu.memory_space<vmem>>, %arg14: memref<2048x8xf32, #tpu.memory_space<vmem>>, %arg15: memref<1x37x8xf32, #tpu.memory_space<vmem>>) attributes {dimension_semantics = [#tpu.dimension_semantics<parallel>], iteration_bounds = array<i64: 2>, scalar_prefetch = 0 : i64, scratch_operands = 0 : i64, tpu.core_type = #tpu.core_type<tc>, window_params = [{transform_indices = @transform_0, window_bounds = array<i64: 8, 2048>}, {pipeline_mode = #tpu.pipeline_mode<synchronous>, transform_indices = @transform_1, window_bounds = array<i64: 9, 2048>}, {pipeline_mode = #tpu.pipeline_mode<synchronous>, transform_indices = @transform_2, window_bounds = array<i64: 9, 2048>}, {pipeline_mode = #tpu.pipeline_mode<synchronous>, transform_indices = @transform_3, window_bounds = array<i64: 8, 72>}, {pipeline_mode = #tpu.pipeline_mode<synchronous>, transform_indices = @transform_4, window_bounds = array<i64: 8, 1>}, {pipeline_mode = #tpu.pipeline_mode<synchronous>, transform_indices = @transform_5, window_bounds = array<i64: 16, 72>}, {pipeline_mode = #tpu.pipeline_mode<synchronous>, transform_indices = @transform_6, window_bounds = array<i64: 16, 1>}, {pipeline_mode = #tpu.pipeline_mode<synchronous>, transform_indices = @transform_7, window_bounds = array<i64: 16, 144>}, {pipeline_mode = #tpu.pipeline_mode<synchronous>, transform_indices = @transform_8, window_bounds = array<i64: 16, 1>}, {pipeline_mode = #tpu.pipeline_mode<synchronous>, transform_indices = @transform_9, window_bounds = array<i64: 8, 256>}, {pipeline_mode = #tpu.pipeline_mode<synchronous>, transform_indices = @transform_10, window_bounds = array<i64: 8, 1>}, {pipeline_mode = #tpu.pipeline_mode<synchronous>, transform_indices = @transform_11, window_bounds = array<i64: 37, 8>}, {pipeline_mode = #tpu.pipeline_mode<synchronous>, transform_indices = @transform_12, window_bounds = array<i64: 37, 1>}, {pipeline_mode = #tpu.pipeline_mode<synchronous>, transform_indices = @transform_13, window_bounds = array<i64: 2048, 8>}, {transform_indices = @transform_14, window_bounds = array<i64: 1, 37, 8>}]} {
    %c0 = arith.constant 0 : index
    %c0_0 = arith.constant 0 : index
    %0 = vector.load %arg2[%c0, %c0_0] : memref<9x2048xf32, #tpu.memory_space<vmem>>, vector<9x2048xf32>
    %c0_1 = arith.constant 0 : index
    %c0_2 = arith.constant 0 : index
    %1 = vector.load %arg3[%c0_1, %c0_2] : memref<9x2048xf32, #tpu.memory_space<vmem>>, vector<9x2048xf32>
    %c0_3 = arith.constant 0 : index
    %c0_4 = arith.constant 0 : index
    %2 = vector.load %arg1[%c0_3, %c0_4] : memref<8x2048xf32, #tpu.memory_space<vmem>>, vector<8x2048xf32>
    %3 = vector.extract_strided_slice %0 {offsets = [0, 0], sizes = [1, 2048], strides = [1, 1]} : vector<9x2048xf32> to vector<1x2048xf32>
    %c17_i32 = arith.constant 17 : i32
    %4 = tpu.dynamic_rotate %2 by %c17_i32 dim 1 : vector<8x2048xf32>, i32 -> vector<8x2048xf32>
    %5 = vector.broadcast %3 : vector<1x2048xf32> to vector<8x2048xf32>
    %6 = arith.mulf %5, %4 : vector<8x2048xf32>
    %7 = vector.extract_strided_slice %0 {offsets = [1, 0], sizes = [1, 2048], strides = [1, 1]} : vector<9x2048xf32> to vector<1x2048xf32>
    %c16_i32 = arith.constant 16 : i32
    %8 = tpu.dynamic_rotate %2 by %c16_i32 dim 1 : vector<8x2048xf32>, i32 -> vector<8x2048xf32>
    %9 = vector.broadcast %7 : vector<1x2048xf32> to vector<8x2048xf32>
    %10 = arith.mulf %9, %8 : vector<8x2048xf32>
    %11 = vector.extract_strided_slice %0 {offsets = [2, 0], sizes = [1, 2048], strides = [1, 1]} : vector<9x2048xf32> to vector<1x2048xf32>
    %c15_i32 = arith.constant 15 : i32
    %12 = tpu.dynamic_rotate %2 by %c15_i32 dim 1 : vector<8x2048xf32>, i32 -> vector<8x2048xf32>
    %13 = vector.broadcast %11 : vector<1x2048xf32> to vector<8x2048xf32>
    %14 = arith.mulf %13, %12 : vector<8x2048xf32>
    %15 = vector.extract_strided_slice %0 {offsets = [3, 0], sizes = [1, 2048], strides = [1, 1]} : vector<9x2048xf32> to vector<1x2048xf32>
    %c1_i32 = arith.constant 1 : i32
    %16 = tpu.dynamic_rotate %2 by %c1_i32 dim 1 : vector<8x2048xf32>, i32 -> vector<8x2048xf32>
    %17 = vector.broadcast %15 : vector<1x2048xf32> to vector<8x2048xf32>
    %18 = arith.mulf %17, %16 : vector<8x2048xf32>
    %19 = vector.extract_strided_slice %0 {offsets = [4, 0], sizes = [1, 2048], strides = [1, 1]} : vector<9x2048xf32> to vector<1x2048xf32>
    %20 = vector.broadcast %19 : vector<1x2048xf32> to vector<8x2048xf32>
    %21 = arith.mulf %20, %2 : vector<8x2048xf32>
    %22 = vector.extract_strided_slice %0 {offsets = [5, 0], sizes = [1, 2048], strides = [1, 1]} : vector<9x2048xf32> to vector<1x2048xf32>
    %c2047_i32 = arith.constant 2047 : i32
    %23 = tpu.dynamic_rotate %2 by %c2047_i32 dim 1 : vector<8x2048xf32>, i32 -> vector<8x2048xf32>
    %24 = vector.broadcast %22 : vector<1x2048xf32> to vector<8x2048xf32>
    %25 = arith.mulf %24, %23 : vector<8x2048xf32>
    %26 = vector.extract_strided_slice %0 {offsets = [6, 0], sizes = [1, 2048], strides = [1, 1]} : vector<9x2048xf32> to vector<1x2048xf32>
    %c2033_i32 = arith.constant 2033 : i32
    %27 = tpu.dynamic_rotate %2 by %c2033_i32 dim 1 : vector<8x2048xf32>, i32 -> vector<8x2048xf32>
    %28 = vector.broadcast %26 : vector<1x2048xf32> to vector<8x2048xf32>
    %29 = arith.mulf %28, %27 : vector<8x2048xf32>
    %30 = vector.extract_strided_slice %0 {offsets = [7, 0], sizes = [1, 2048], strides = [1, 1]} : vector<9x2048xf32> to vector<1x2048xf32>
    %c2032_i32 = arith.constant 2032 : i32
    %31 = tpu.dynamic_rotate %2 by %c2032_i32 dim 1 : vector<8x2048xf32>, i32 -> vector<8x2048xf32>
    %32 = vector.broadcast %30 : vector<1x2048xf32> to vector<8x2048xf32>
    %33 = arith.mulf %32, %31 : vector<8x2048xf32>
    %34 = vector.extract_strided_slice %0 {offsets = [8, 0], sizes = [1, 2048], strides = [1, 1]} : vector<9x2048xf32> to vector<1x2048xf32>
    %c2031_i32 = arith.constant 2031 : i32
    %35 = tpu.dynamic_rotate %2 by %c2031_i32 dim 1 : vector<8x2048xf32>, i32 -> vector<8x2048xf32>
    %36 = vector.broadcast %34 : vector<1x2048xf32> to vector<8x2048xf32>
    %37 = arith.mulf %36, %35 : vector<8x2048xf32>
    %38 = tpu.concatenate %6, %10, %14, %18, %21, %25, %29, %33, %37 in 0 : vector<8x2048xf32>, vector<8x2048xf32>, vector<8x2048xf32>, vector<8x2048xf32>, vector<8x2048xf32>, vector<8x2048xf32>, vector<8x2048xf32>, vector<8x2048xf32>, vector<8x2048xf32> -> vector<72x2048xf32>
    %c0_5 = arith.constant 0 : index
    %c0_6 = arith.constant 0 : index
    %39 = vector.load %arg4[%c0_5, %c0_6] : memref<8x72xf32, #tpu.memory_space<vmem>>, vector<8x72xf32>
    %cst = arith.constant dense<0.000000e+00> : vector<8x2048xf32>
    %40 = tpu.matmul %39, %38, %cst {dimension_numbers = #tpu.dot_dimension_numbers<[1], [0], [0], [1], [0, 0, 1, 1], [], []>} : vector<8x72xf32>, vector<72x2048xf32>, vector<8x2048xf32> -> vector<8x2048xf32>
    %c0_7 = arith.constant 0 : index
    %c0_8 = arith.constant 0 : index
    %41 = vector.load %arg5[%c0_7, %c0_8] : memref<8x1xf32, #tpu.memory_space<vmem>>, vector<8x1xf32>
    %42 = vector.broadcast %41 : vector<8x1xf32> to vector<8x2048xf32>
    %43 = arith.addf %40, %42 : vector<8x2048xf32>
    %c2047_i32_9 = arith.constant 2047 : i32
    %44 = tpu.dynamic_rotate %43 by %c2047_i32_9 dim 1 : vector<8x2048xf32>, i32 -> vector<8x2048xf32>
    %45 = arith.maximumf %43, %44 : vector<8x2048xf32>
    %c2032_i32_10 = arith.constant 2032 : i32
    %46 = tpu.dynamic_rotate %43 by %c2032_i32_10 dim 1 : vector<8x2048xf32>, i32 -> vector<8x2048xf32>
    %c2031_i32_11 = arith.constant 2031 : i32
    %47 = tpu.dynamic_rotate %43 by %c2031_i32_11 dim 1 : vector<8x2048xf32>, i32 -> vector<8x2048xf32>
    %48 = arith.maximumf %46, %47 : vector<8x2048xf32>
    %49 = arith.maximumf %45, %48 : vector<8x2048xf32>
    %cst_12 = arith.constant 0.000000e+00 : f32
    %50 = vector.broadcast %cst_12 : f32 to vector<8x2048xf32>
    %51 = arith.maximumf %49, %50 : vector<8x2048xf32>
    %52 = vector.extract_strided_slice %1 {offsets = [0, 0], sizes = [1, 2048], strides = [1, 1]} : vector<9x2048xf32> to vector<1x2048xf32>
    %c34_i32 = arith.constant 34 : i32
    %53 = tpu.dynamic_rotate %51 by %c34_i32 dim 1 : vector<8x2048xf32>, i32 -> vector<8x2048xf32>
    %54 = vector.broadcast %52 : vector<1x2048xf32> to vector<8x2048xf32>
    %55 = arith.mulf %54, %53 : vector<8x2048xf32>
    %56 = vector.extract_strided_slice %1 {offsets = [1, 0], sizes = [1, 2048], strides = [1, 1]} : vector<9x2048xf32> to vector<1x2048xf32>
    %c32_i32 = arith.constant 32 : i32
    %57 = tpu.dynamic_rotate %51 by %c32_i32 dim 1 : vector<8x2048xf32>, i32 -> vector<8x2048xf32>
    %58 = vector.broadcast %56 : vector<1x2048xf32> to vector<8x2048xf32>
    %59 = arith.mulf %58, %57 : vector<8x2048xf32>
    %60 = vector.extract_strided_slice %1 {offsets = [2, 0], sizes = [1, 2048], strides = [1, 1]} : vector<9x2048xf32> to vector<1x2048xf32>
    %c30_i32 = arith.constant 30 : i32
    %61 = tpu.dynamic_rotate %51 by %c30_i32 dim 1 : vector<8x2048xf32>, i32 -> vector<8x2048xf32>
    %62 = vector.broadcast %60 : vector<1x2048xf32> to vector<8x2048xf32>
    %63 = arith.mulf %62, %61 : vector<8x2048xf32>
    %64 = vector.extract_strided_slice %1 {offsets = [3, 0], sizes = [1, 2048], strides = [1, 1]} : vector<9x2048xf32> to vector<1x2048xf32>
    %c2_i32 = arith.constant 2 : i32
    %65 = tpu.dynamic_rotate %51 by %c2_i32 dim 1 : vector<8x2048xf32>, i32 -> vector<8x2048xf32>
    %66 = vector.broadcast %64 : vector<1x2048xf32> to vector<8x2048xf32>
    %67 = arith.mulf %66, %65 : vector<8x2048xf32>
    %68 = vector.extract_strided_slice %1 {offsets = [4, 0], sizes = [1, 2048], strides = [1, 1]} : vector<9x2048xf32> to vector<1x2048xf32>
    %69 = vector.broadcast %68 : vector<1x2048xf32> to vector<8x2048xf32>
    %70 = arith.mulf %69, %51 : vector<8x2048xf32>
    %71 = vector.extract_strided_slice %1 {offsets = [5, 0], sizes = [1, 2048], strides = [1, 1]} : vector<9x2048xf32> to vector<1x2048xf32>
    %c2046_i32 = arith.constant 2046 : i32
    %72 = tpu.dynamic_rotate %51 by %c2046_i32 dim 1 : vector<8x2048xf32>, i32 -> vector<8x2048xf32>
    %73 = vector.broadcast %71 : vector<1x2048xf32> to vector<8x2048xf32>
    %74 = arith.mulf %73, %72 : vector<8x2048xf32>
    %75 = vector.extract_strided_slice %1 {offsets = [6, 0], sizes = [1, 2048], strides = [1, 1]} : vector<9x2048xf32> to vector<1x2048xf32>
    %c2018_i32 = arith.constant 2018 : i32
    %76 = tpu.dynamic_rotate %51 by %c2018_i32 dim 1 : vector<8x2048xf32>, i32 -> vector<8x2048xf32>
    %77 = vector.broadcast %75 : vector<1x2048xf32> to vector<8x2048xf32>
    %78 = arith.mulf %77, %76 : vector<8x2048xf32>
    %79 = vector.extract_strided_slice %1 {offsets = [7, 0], sizes = [1, 2048], strides = [1, 1]} : vector<9x2048xf32> to vector<1x2048xf32>
    %c2016_i32 = arith.constant 2016 : i32
    %80 = tpu.dynamic_rotate %51 by %c2016_i32 dim 1 : vector<8x2048xf32>, i32 -> vector<8x2048xf32>
    %81 = vector.broadcast %79 : vector<1x2048xf32> to vector<8x2048xf32>
    %82 = arith.mulf %81, %80 : vector<8x2048xf32>
    %83 = vector.extract_strided_slice %1 {offsets = [8, 0], sizes = [1, 2048], strides = [1, 1]} : vector<9x2048xf32> to vector<1x2048xf32>
    %c2014_i32 = arith.constant 2014 : i32
    %84 = tpu.dynamic_rotate %51 by %c2014_i32 dim 1 : vector<8x2048xf32>, i32 -> vector<8x2048xf32>
    %85 = vector.broadcast %83 : vector<1x2048xf32> to vector<8x2048xf32>
    %86 = arith.mulf %85, %84 : vector<8x2048xf32>
    %87 = tpu.concatenate %55, %59, %63, %67, %70, %74, %78, %82, %86 in 0 : vector<8x2048xf32>, vector<8x2048xf32>, vector<8x2048xf32>, vector<8x2048xf32>, vector<8x2048xf32>, vector<8x2048xf32>, vector<8x2048xf32>, vector<8x2048xf32>, vector<8x2048xf32> -> vector<72x2048xf32>
    %c0_13 = arith.constant 0 : index
    %c0_14 = arith.constant 0 : index
    %88 = vector.load %arg6[%c0_13, %c0_14] : memref<16x72xf32, #tpu.memory_space<vmem>>, vector<16x72xf32>
    %cst_15 = arith.constant dense<0.000000e+00> : vector<16x2048xf32>
    %89 = tpu.matmul %88, %87, %cst_15 {dimension_numbers = #tpu.dot_dimension_numbers<[1], [0], [0], [1], [0, 0, 1, 1], [], []>} : vector<16x72xf32>, vector<72x2048xf32>, vector<16x2048xf32> -> vector<16x2048xf32>
    %c0_16 = arith.constant 0 : index
    %c0_17 = arith.constant 0 : index
    %90 = vector.load %arg7[%c0_16, %c0_17] : memref<16x1xf32, #tpu.memory_space<vmem>>, vector<16x1xf32>
    %91 = vector.broadcast %90 : vector<16x1xf32> to vector<16x2048xf32>
    %92 = arith.addf %89, %91 : vector<16x2048xf32>
    %cst_18 = arith.constant 0.000000e+00 : f32
    %93 = vector.broadcast %cst_18 : f32 to vector<16x2048xf32>
    %94 = arith.maximumf %92, %93 : vector<16x2048xf32>
    %95 = vector.extract_strided_slice %1 {offsets = [0, 0], sizes = [1, 2048], strides = [1, 1]} : vector<9x2048xf32> to vector<1x2048xf32>
    %c34_i32_19 = arith.constant 34 : i32
    %96 = tpu.dynamic_rotate %94 by %c34_i32_19 dim 1 : vector<16x2048xf32>, i32 -> vector<16x2048xf32>
    %97 = vector.broadcast %95 : vector<1x2048xf32> to vector<16x2048xf32>
    %98 = arith.mulf %97, %96 : vector<16x2048xf32>
    %99 = vector.extract_strided_slice %1 {offsets = [1, 0], sizes = [1, 2048], strides = [1, 1]} : vector<9x2048xf32> to vector<1x2048xf32>
    %c32_i32_20 = arith.constant 32 : i32
    %100 = tpu.dynamic_rotate %94 by %c32_i32_20 dim 1 : vector<16x2048xf32>, i32 -> vector<16x2048xf32>
    %101 = vector.broadcast %99 : vector<1x2048xf32> to vector<16x2048xf32>
    %102 = arith.mulf %101, %100 : vector<16x2048xf32>
    %103 = vector.extract_strided_slice %1 {offsets = [2, 0], sizes = [1, 2048], strides = [1, 1]} : vector<9x2048xf32> to vector<1x2048xf32>
    %c30_i32_21 = arith.constant 30 : i32
    %104 = tpu.dynamic_rotate %94 by %c30_i32_21 dim 1 : vector<16x2048xf32>, i32 -> vector<16x2048xf32>
    %105 = vector.broadcast %103 : vector<1x2048xf32> to vector<16x2048xf32>
    %106 = arith.mulf %105, %104 : vector<16x2048xf32>
    %107 = vector.extract_strided_slice %1 {offsets = [3, 0], sizes = [1, 2048], strides = [1, 1]} : vector<9x2048xf32> to vector<1x2048xf32>
    %c2_i32_22 = arith.constant 2 : i32
    %108 = tpu.dynamic_rotate %94 by %c2_i32_22 dim 1 : vector<16x2048xf32>, i32 -> vector<16x2048xf32>
    %109 = vector.broadcast %107 : vector<1x2048xf32> to vector<16x2048xf32>
    %110 = arith.mulf %109, %108 : vector<16x2048xf32>
    %111 = vector.extract_strided_slice %1 {offsets = [4, 0], sizes = [1, 2048], strides = [1, 1]} : vector<9x2048xf32> to vector<1x2048xf32>
    %112 = vector.broadcast %111 : vector<1x2048xf32> to vector<16x2048xf32>
    %113 = arith.mulf %112, %94 : vector<16x2048xf32>
    %114 = vector.extract_strided_slice %1 {offsets = [5, 0], sizes = [1, 2048], strides = [1, 1]} : vector<9x2048xf32> to vector<1x2048xf32>
    %c2046_i32_23 = arith.constant 2046 : i32
    %115 = tpu.dynamic_rotate %94 by %c2046_i32_23 dim 1 : vector<16x2048xf32>, i32 -> vector<16x2048xf32>
    %116 = vector.broadcast %114 : vector<1x2048xf32> to vector<16x2048xf32>
    %117 = arith.mulf %116, %115 : vector<16x2048xf32>
    %118 = vector.extract_strided_slice %1 {offsets = [6, 0], sizes = [1, 2048], strides = [1, 1]} : vector<9x2048xf32> to vector<1x2048xf32>
    %c2018_i32_24 = arith.constant 2018 : i32
    %119 = tpu.dynamic_rotate %94 by %c2018_i32_24 dim 1 : vector<16x2048xf32>, i32 -> vector<16x2048xf32>
    %120 = vector.broadcast %118 : vector<1x2048xf32> to vector<16x2048xf32>
    %121 = arith.mulf %120, %119 : vector<16x2048xf32>
    %122 = vector.extract_strided_slice %1 {offsets = [7, 0], sizes = [1, 2048], strides = [1, 1]} : vector<9x2048xf32> to vector<1x2048xf32>
    %c2016_i32_25 = arith.constant 2016 : i32
    %123 = tpu.dynamic_rotate %94 by %c2016_i32_25 dim 1 : vector<16x2048xf32>, i32 -> vector<16x2048xf32>
    %124 = vector.broadcast %122 : vector<1x2048xf32> to vector<16x2048xf32>
    %125 = arith.mulf %124, %123 : vector<16x2048xf32>
    %126 = vector.extract_strided_slice %1 {offsets = [8, 0], sizes = [1, 2048], strides = [1, 1]} : vector<9x2048xf32> to vector<1x2048xf32>
    %c2014_i32_26 = arith.constant 2014 : i32
    %127 = tpu.dynamic_rotate %94 by %c2014_i32_26 dim 1 : vector<16x2048xf32>, i32 -> vector<16x2048xf32>
    %128 = vector.broadcast %126 : vector<1x2048xf32> to vector<16x2048xf32>
    %129 = arith.mulf %128, %127 : vector<16x2048xf32>
    %130 = tpu.concatenate %98, %102, %106, %110, %113, %117, %121, %125, %129 in 0 : vector<16x2048xf32>, vector<16x2048xf32>, vector<16x2048xf32>, vector<16x2048xf32>, vector<16x2048xf32>, vector<16x2048xf32>, vector<16x2048xf32>, vector<16x2048xf32>, vector<16x2048xf32> -> vector<144x2048xf32>
    %c0_27 = arith.constant 0 : index
    %c0_28 = arith.constant 0 : index
    %131 = vector.load %arg8[%c0_27, %c0_28] : memref<16x144xf32, #tpu.memory_space<vmem>>, vector<16x144xf32>
    %cst_29 = arith.constant dense<0.000000e+00> : vector<16x2048xf32>
    %132 = tpu.matmul %131, %130, %cst_29 {dimension_numbers = #tpu.dot_dimension_numbers<[1], [0], [0], [1], [0, 0, 1, 1], [], []>} : vector<16x144xf32>, vector<144x2048xf32>, vector<16x2048xf32> -> vector<16x2048xf32>
    %c0_30 = arith.constant 0 : index
    %c0_31 = arith.constant 0 : index
    %133 = vector.load %arg9[%c0_30, %c0_31] : memref<16x1xf32, #tpu.memory_space<vmem>>, vector<16x1xf32>
    %134 = vector.broadcast %133 : vector<16x1xf32> to vector<16x2048xf32>
    %135 = arith.addf %132, %134 : vector<16x2048xf32>
    %c2046_i32_32 = arith.constant 2046 : i32
    %136 = tpu.dynamic_rotate %135 by %c2046_i32_32 dim 1 : vector<16x2048xf32>, i32 -> vector<16x2048xf32>
    %137 = arith.maximumf %135, %136 : vector<16x2048xf32>
    %c2016_i32_33 = arith.constant 2016 : i32
    %138 = tpu.dynamic_rotate %135 by %c2016_i32_33 dim 1 : vector<16x2048xf32>, i32 -> vector<16x2048xf32>
    %c2014_i32_34 = arith.constant 2014 : i32
    %139 = tpu.dynamic_rotate %135 by %c2014_i32_34 dim 1 : vector<16x2048xf32>, i32 -> vector<16x2048xf32>
    %140 = arith.maximumf %138, %139 : vector<16x2048xf32>
    %141 = arith.maximumf %137, %140 : vector<16x2048xf32>
    %cst_35 = arith.constant 0.000000e+00 : f32
    %142 = vector.broadcast %cst_35 : f32 to vector<16x2048xf32>
    %143 = arith.maximumf %141, %142 : vector<16x2048xf32>
    %c2044_i32 = arith.constant 2044 : i32
    %144 = tpu.dynamic_rotate %143 by %c2044_i32 dim 1 : vector<16x2048xf32>, i32 -> vector<16x2048xf32>
    %c2040_i32 = arith.constant 2040 : i32
    %145 = tpu.dynamic_rotate %143 by %c2040_i32 dim 1 : vector<16x2048xf32>, i32 -> vector<16x2048xf32>
    %c2036_i32 = arith.constant 2036 : i32
    %146 = tpu.dynamic_rotate %143 by %c2036_i32 dim 1 : vector<16x2048xf32>, i32 -> vector<16x2048xf32>
    %c1984_i32 = arith.constant 1984 : i32
    %147 = tpu.dynamic_rotate %143 by %c1984_i32 dim 1 : vector<16x2048xf32>, i32 -> vector<16x2048xf32>
    %c1980_i32 = arith.constant 1980 : i32
    %148 = tpu.dynamic_rotate %143 by %c1980_i32 dim 1 : vector<16x2048xf32>, i32 -> vector<16x2048xf32>
    %c1976_i32 = arith.constant 1976 : i32
    %149 = tpu.dynamic_rotate %143 by %c1976_i32 dim 1 : vector<16x2048xf32>, i32 -> vector<16x2048xf32>
    %c1972_i32 = arith.constant 1972 : i32
    %150 = tpu.dynamic_rotate %143 by %c1972_i32 dim 1 : vector<16x2048xf32>, i32 -> vector<16x2048xf32>
    %c1920_i32 = arith.constant 1920 : i32
    %151 = tpu.dynamic_rotate %143 by %c1920_i32 dim 1 : vector<16x2048xf32>, i32 -> vector<16x2048xf32>
    %c1916_i32 = arith.constant 1916 : i32
    %152 = tpu.dynamic_rotate %143 by %c1916_i32 dim 1 : vector<16x2048xf32>, i32 -> vector<16x2048xf32>
    %c1912_i32 = arith.constant 1912 : i32
    %153 = tpu.dynamic_rotate %143 by %c1912_i32 dim 1 : vector<16x2048xf32>, i32 -> vector<16x2048xf32>
    %c1908_i32 = arith.constant 1908 : i32
    %154 = tpu.dynamic_rotate %143 by %c1908_i32 dim 1 : vector<16x2048xf32>, i32 -> vector<16x2048xf32>
    %c1856_i32 = arith.constant 1856 : i32
    %155 = tpu.dynamic_rotate %143 by %c1856_i32 dim 1 : vector<16x2048xf32>, i32 -> vector<16x2048xf32>
    %c1852_i32 = arith.constant 1852 : i32
    %156 = tpu.dynamic_rotate %143 by %c1852_i32 dim 1 : vector<16x2048xf32>, i32 -> vector<16x2048xf32>
    %c1848_i32 = arith.constant 1848 : i32
    %157 = tpu.dynamic_rotate %143 by %c1848_i32 dim 1 : vector<16x2048xf32>, i32 -> vector<16x2048xf32>
    %c1844_i32 = arith.constant 1844 : i32
    %158 = tpu.dynamic_rotate %143 by %c1844_i32 dim 1 : vector<16x2048xf32>, i32 -> vector<16x2048xf32>
    %159 = tpu.concatenate %143, %144, %145, %146, %147, %148, %149, %150, %151, %152, %153, %154, %155, %156, %157, %158 in 0 : vector<16x2048xf32>, vector<16x2048xf32>, vector<16x2048xf32>, vector<16x2048xf32>, vector<16x2048xf32>, vector<16x2048xf32>, vector<16x2048xf32>, vector<16x2048xf32>, vector<16x2048xf32>, vector<16x2048xf32>, vector<16x2048xf32>, vector<16x2048xf32>, vector<16x2048xf32>, vector<16x2048xf32>, vector<16x2048xf32>, vector<16x2048xf32> -> vector<256x2048xf32>
    %c0_36 = arith.constant 0 : index
    %c0_37 = arith.constant 0 : index
    %160 = vector.load %arg10[%c0_36, %c0_37] : memref<8x256xf32, #tpu.memory_space<vmem>>, vector<8x256xf32>
    %cst_38 = arith.constant dense<0.000000e+00> : vector<8x2048xf32>
    %161 = tpu.matmul %160, %159, %cst_38 {dimension_numbers = #tpu.dot_dimension_numbers<[1], [0], [0], [1], [0, 0, 1, 1], [], []>} : vector<8x256xf32>, vector<256x2048xf32>, vector<8x2048xf32> -> vector<8x2048xf32>
    %c0_39 = arith.constant 0 : index
    %c0_40 = arith.constant 0 : index
    %162 = vector.load %arg11[%c0_39, %c0_40] : memref<8x1xf32, #tpu.memory_space<vmem>>, vector<8x1xf32>
    %163 = vector.broadcast %162 : vector<8x1xf32> to vector<8x2048xf32>
    %164 = arith.addf %161, %163 : vector<8x2048xf32>
    %c0_41 = arith.constant 0 : index
    %c0_42 = arith.constant 0 : index
    %165 = vector.load %arg14[%c0_41, %c0_42] : memref<2048x8xf32, #tpu.memory_space<vmem>>, vector<2048x8xf32>
    %cst_43 = arith.constant dense<0.000000e+00> : vector<8x8xf32>
    %166 = tpu.matmul %164, %165, %cst_43 {dimension_numbers = #tpu.dot_dimension_numbers<[1], [0], [0], [1], [0, 0, 1, 1], [], []>} : vector<8x2048xf32>, vector<2048x8xf32>, vector<8x8xf32> -> vector<8x8xf32>
    %cst_44 = arith.constant 0.000000e+00 : f32
    %167 = vector.broadcast %cst_44 : f32 to vector<8x8xf32>
    %168 = arith.maximumf %166, %167 : vector<8x8xf32>
    %c0_45 = arith.constant 0 : index
    %c0_46 = arith.constant 0 : index
    %169 = vector.load %arg12[%c0_45, %c0_46] : memref<37x8xf32, #tpu.memory_space<vmem>>, vector<37x8xf32>
    %cst_47 = arith.constant dense<0.000000e+00> : vector<37x8xf32>
    %170 = tpu.matmul %169, %168, %cst_47 {dimension_numbers = #tpu.dot_dimension_numbers<[1], [0], [0], [1], [0, 0, 1, 1], [], []>} : vector<37x8xf32>, vector<8x8xf32>, vector<37x8xf32> -> vector<37x8xf32>
    %c0_48 = arith.constant 0 : index
    %c0_49 = arith.constant 0 : index
    %171 = vector.load %arg13[%c0_48, %c0_49] : memref<37x1xf32, #tpu.memory_space<vmem>>, vector<37x1xf32>
    %172 = vector.broadcast %171 : vector<37x1xf32> to vector<37x8xf32>
    %173 = arith.addf %170, %172 : vector<37x8xf32>
    %c0_50 = arith.constant 0 : index
    %c0_51 = arith.constant 0 : index
    %c0_52 = arith.constant 0 : index
    %174 = vector.load %arg15[%c0_50, %c0_51, %c0_52] : memref<1x37x8xf32, #tpu.memory_space<vmem>>, vector<1x37x8xf32>
    %175 = vector.shape_cast %174 : vector<1x37x8xf32> to vector<37x8xf32>
    %176 = vector.shape_cast %173 : vector<37x8xf32> to vector<1x37x8xf32>
    tpu.vector_store %arg15[%c0_50, %c0_51, %c0_52], %176 {strides = array<i32>} : memref<1x37x8xf32, #tpu.memory_space<vmem>>, vector<1x37x8xf32>,
    return
  }
  func.func @transform_0(%arg0: i32) -> (i32, i32) {
    %c0_i32 = arith.constant 0 : i32
    %c0_i32_0 = arith.constant 0 : i32
    return %c0_i32, %arg0 : i32, i32
  }
  func.func @transform_1(%arg0: i32) -> (i32, i32) {
    %c0_i32 = arith.constant 0 : i32
    %c0_i32_0 = arith.constant 0 : i32
    %c0_i32_1 = arith.constant 0 : i32
    return %c0_i32, %c0_i32_0 : i32, i32
  }
  func.func @transform_2(%arg0: i32) -> (i32, i32) {
    %c0_i32 = arith.constant 0 : i32
    %c0_i32_0 = arith.constant 0 : i32
    %c0_i32_1 = arith.constant 0 : i32
    return %c0_i32, %c0_i32_0 : i32, i32
  }
  func.func @transform_3(%arg0: i32) -> (i32, i32) {
    %c0_i32 = arith.constant 0 : i32
    %c0_i32_0 = arith.constant 0 : i32
    %c0_i32_1 = arith.constant 0 : i32
    return %c0_i32, %c0_i32_0 : i32, i32
  }
  func.func @transform_4(%arg0: i32) -> (i32, i32) {
    %c0_i32 = arith.constant 0 : i32
    %c0_i32_0 = arith.constant 0 : i32
    %c0_i32_1 = arith.constant 0 : i32
    return %c0_i32, %c0_i32_0 : i32, i32
  }
  func.func @transform_5(%arg0: i32) -> (i32, i32) {
    %c0_i32 = arith.constant 0 : i32
    %c0_i32_0 = arith.constant 0 : i32
    %c0_i32_1 = arith.constant 0 : i32
    return %c0_i32, %c0_i32_0 : i32, i32
  }
  func.func @transform_6(%arg0: i32) -> (i32, i32) {
    %c0_i32 = arith.constant 0 : i32
    %c0_i32_0 = arith.constant 0 : i32
    %c0_i32_1 = arith.constant 0 : i32
    return %c0_i32, %c0_i32_0 : i32, i32
  }
  func.func @transform_7(%arg0: i32) -> (i32, i32) {
    %c0_i32 = arith.constant 0 : i32
    %c0_i32_0 = arith.constant 0 : i32
    %c0_i32_1 = arith.constant 0 : i32
    return %c0_i32, %c0_i32_0 : i32, i32
  }
  func.func @transform_8(%arg0: i32) -> (i32, i32) {
    %c0_i32 = arith.constant 0 : i32
    %c0_i32_0 = arith.constant 0 : i32
    %c0_i32_1 = arith.constant 0 : i32
    return %c0_i32, %c0_i32_0 : i32, i32
  }
  func.func @transform_9(%arg0: i32) -> (i32, i32) {
    %c0_i32 = arith.constant 0 : i32
    %c0_i32_0 = arith.constant 0 : i32
    %c0_i32_1 = arith.constant 0 : i32
    return %c0_i32, %c0_i32_0 : i32, i32
  }
  func.func @transform_10(%arg0: i32) -> (i32, i32) {
    %c0_i32 = arith.constant 0 : i32
    %c0_i32_0 = arith.constant 0 : i32
    %c0_i32_1 = arith.constant 0 : i32
    return %c0_i32, %c0_i32_0 : i32, i32
  }
  func.func @transform_11(%arg0: i32) -> (i32, i32) {
    %c0_i32 = arith.constant 0 : i32
    %c0_i32_0 = arith.constant 0 : i32
    %c0_i32_1 = arith.constant 0 : i32
    return %c0_i32, %c0_i32_0 : i32, i32
  }
  func.func @transform_12(%arg0: i32) -> (i32, i32) {
    %c0_i32 = arith.constant 0 : i32
    %c0_i32_0 = arith.constant 0 : i32
    %c0_i32_1 = arith.constant 0 : i32
    return %c0_i32, %c0_i32_0 : i32, i32
  }
  func.func @transform_13(%arg0: i32) -> (i32, i32) {
    %c0_i32 = arith.constant 0 : i32
    %c0_i32_0 = arith.constant 0 : i32
    %c0_i32_1 = arith.constant 0 : i32
    return %c0_i32, %c0_i32_0 : i32, i32
  }
  func.func @transform_14(%arg0: i32) -> (i32, i32, i32) {
    %c0_i32 = arith.constant 0 : i32
    %c0_i32_0 = arith.constant 0 : i32
    %c0_i32_1 = arith.constant 0 : i32
    return %arg0, %c0_i32, %c0_i32_0 : i32, i32, i32
  }
}

</mosaic_0001>

<llo_original>
// kernel: pet_recognizer_forward.1
$region0: #{pet_recognizer_forward.1}
  #allocation0 [shape = 'u32[]', space=smem, size = 0x4, offset = 0x4, fixed_abs, tag = 'smem constant byte address 0x4 - core index']
  #allocation1 [shape = 'u32[144,128]{1,0:T(1,128)}', space=vmem, size = 0x12000, scoped, tag = 'internal scratch']
  %s0 = inlined_call_operand.vmem [shape: f32[8,4096], index: 0, kind: input, shape index: {}]
  %s1 = inlined_call_operand.vmem [shape: f32[9,2048], index: 1, kind: input, shape index: {}]
  %s2 = inlined_call_operand.vmem [shape: f32[9,2048], index: 2, kind: input, shape index: {}]
  %s3 = inlined_call_operand.vmem [shape: f32[8,72], index: 3, kind: input, shape index: {}]
  %s4 = inlined_call_operand.vmem [shape: f32[8,1], index: 4, kind: input, shape index: {}]
  %s5 = inlined_call_operand.vmem [shape: f32[16,72], index: 5, kind: input, shape index: {}]
  %s6 = inlined_call_operand.vmem [shape: f32[16,1], index: 6, kind: input, shape index: {}]
  %s7 = inlined_call_operand.vmem [shape: f32[16,144], index: 7, kind: input, shape index: {}]
  %s8 = inlined_call_operand.vmem [shape: f32[16,1], index: 8, kind: input, shape index: {}]
  %s9 = inlined_call_operand.vmem [shape: f32[8,256], index: 9, kind: input, shape index: {}]
  %s10 = inlined_call_operand.vmem [shape: f32[8,1], index: 10, kind: input, shape index: {}]
  %s11 = inlined_call_operand.vmem [shape: f32[37,8], index: 11, kind: input, shape index: {}]
  %s12 = inlined_call_operand.vmem [shape: f32[37,1], index: 12, kind: input, shape index: {}]
  %s13 = inlined_call_operand.vmem [shape: f32[2048,8], index: 13, kind: input, shape index: {}]
  %s14 = inlined_call_operand.vmem [shape: f32[2,37,8], index: 14, kind: output, shape index: {}]
  %s15 = sld [smem:[#allocation0]]
  $region89: #{pet_recognizer_forward.1} parent=0
    _
  %s17 = ssub.s32 1, %s15
  %s18 = scalar_select 0, %s17, %s15
  loop: start=0, step=1, limit=4
  $region2: #{pet_recognizer_forward.1} parent=0 // loop_pre_header
    _
  $region3: #{pet_recognizer_forward.1} parent=0 // loop_header
    %s20 = sphi 0, %s24
    %p21 = scmp.ge.s32.totalorder %s20, 4
    %s30 = sphi 0, %s32
    %s33 = sphi 0, %s30
    %s34 = sphi 0, %s33
    %s50 = sphi 0, %s34
    %s54 = sphi 0, %s54
    %s56 = sphi 0, %s54
    %s57 = sphi 0, %s56
    %s71 = sphi 0, %s57
    %s75 = sphi 0, %s75
    %s77 = sphi 0, %s75
    %s78 = sphi 0, %s77
    %s92 = sphi 0, %s78
    %s96 = sphi 0, %s96
    %s98 = sphi 0, %s96
    %s99 = sphi 0, %s98
    %s113 = sphi 0, %s99
    %s117 = sphi 0, %s117
    %s119 = sphi 0, %s117
    %s120 = sphi 0, %s119
    %s134 = sphi 0, %s120
    %s138 = sphi 0, %s138
    %s140 = sphi 0, %s138
    %s141 = sphi 0, %s140
    %s155 = sphi 0, %s141
    %s159 = sphi 0, %s159
    %s161 = sphi 0, %s159
    %s162 = sphi 0, %s161
    %s176 = sphi 0, %s162
    %s180 = sphi 0, %s180
    %s182 = sphi 0, %s180
    %s183 = sphi 0, %s182
    %s197 = sphi 0, %s183
    %s201 = sphi 0, %s201
    %s203 = sphi 0, %s201
    %s204 = sphi 0, %s203
    %s218 = sphi 0, %s204
    %s222 = sphi 0, %s222
    %s224 = sphi 0, %s222
    %s225 = sphi 0, %s224
    %s239 = sphi 0, %s225
    %s243 = sphi 0, %s243
    %s245 = sphi 0, %s243
    %s246 = sphi 0, %s245
    %s260 = sphi 0, %s246
    %s264 = sphi 0, %s264
    %s266 = sphi 0, %s264
    %s267 = sphi 0, %s266
    %s281 = sphi 0, %s267
    %s285 = sphi 0, %s285
    %s287 = sphi 0, %s285
    %s288 = sphi 0, %s287
    %s302 = sphi 0, %s288
    %s306 = sphi 0, %s306
    %s308 = sphi 0, %s306
    %s309 = sphi 0, %s308
    %s323 = sphi 0, %s309
    %s329 = sphi 0, %s331
    %s332 = sphi 0, %s329
    %s333 = sphi 0, %s332
    %s349 = sphi 0, %s333
  $region4: #{pet_recognizer_forward.1} parent=0 // loop_header_branch
    %23 = sbr.rel (%p21) target = $region8
  $region5: #{pet_recognizer_forward.1} parent=0 // loop_body
    %s25 = ssub.s32 %s20, 1
    %s26 = ssub.s32 %s20, 2
    %s27 = sadd.s32 %s20, 1
    %s28 = ssub.s32 %s20, %s27
    %p29 = scmp.eq.s32.totalorder %s28, 0
    %s31 = sadd.s32 %s30, 1
    %s32 = scalar_select %p29, %s30, %s31
    %p35 = pneg %p29
    %p36 = scmp.eq.s32.totalorder %s20, 1
    %p37 = por %p35, %p36
    %p38 = scmp.ne.s32.totalorder %s30, %s33
    %p39 = scmp.eq.s32.totalorder %s20, 0
    %p40 = por %p38, %p39
    %p41 = scmp.ne.s32.totalorder %s30, %s33
    %p42 = scmp.eq.s32.totalorder %s25, 1
    %p43 = por %p41, %p42
    %p44 = scmp.ne.s32.totalorder %s33, %s34
    %p45 = scmp.eq.s32.totalorder %s25, 0
    %p46 = por %p44, %p45
    %p47 = scmp.ne.s32.totalorder %s33, %s34
    %p48 = scmp.eq.s32.totalorder %s26, 1
    %p49 = por %p47, %p48
    %p51 = scmp.ne.s32.totalorder %s34, %s50
    %p52 = scmp.eq.s32.totalorder %s26, 0
    %p53 = por %p51, %p52
    %s55 = sadd.s32 %s54, 1
    %p58 = scmp.eq.s32.totalorder %s20, 1
    %p59 = scmp.ne.s32.totalorder %s54, %s56
    %p60 = scmp.eq.s32.totalorder %s20, 0
    %p61 = por %p59, %p60
    %p62 = scmp.ne.s32.totalorder %s54, %s56
    %p63 = scmp.eq.s32.totalorder %s25, 1
    %p64 = por %p62, %p63
    %p65 = scmp.ne.s32.totalorder %s56, %s57
    %p66 = scmp.eq.s32.totalorder %s25, 0
    %p67 = por %p65, %p66
    %p68 = scmp.ne.s32.totalorder %s56, %s57
    %p69 = scmp.eq.s32.totalorder %s26, 1
    %p70 = por %p68, %p69
    %p72 = scmp.ne.s32.totalorder %s57, %s71
    %p73 = scmp.eq.s32.totalorder %s26, 0
    %p74 = por %p72, %p73
    %s76 = sadd.s32 %s75, 1
    %p79 = scmp.eq.s32.totalorder %s20, 1
    %p80 = scmp.ne.s32.totalorder %s75, %s77
    %p81 = scmp.eq.s32.totalorder %s20, 0
    %p82 = por %p80, %p81
    %p83 = scmp.ne.s32.totalorder %s75, %s77
    %p84 = scmp.eq.s32.totalorder %s25, 1
    %p85 = por %p83, %p84
    %p86 = scmp.ne.s32.totalorder %s77, %s78
    %p87 = scmp.eq.s32.totalorder %s25, 0
    %p88 = por %p86, %p87
    %p89 = scmp.ne.s32.totalorder %s77, %s78
    %p90 = scmp.eq.s32.totalorder %s26, 1
    %p91 = por %p89, %p90
    %p93 = scmp.ne.s32.totalorder %s78, %s92
    %p94 = scmp.eq.s32.totalorder %s26, 0
    %p95 = por %p93, %p94
    %s97 = sadd.s32 %s96, 1
    %p100 = scmp.eq.s32.totalorder %s20, 1
    %p101 = scmp.ne.s32.totalorder %s96, %s98
    %p102 = scmp.eq.s32.totalorder %s20, 0
    %p103 = por %p101, %p102
    %p104 = scmp.ne.s32.totalorder %s96, %s98
    %p105 = scmp.eq.s32.totalorder %s25, 1
    %p106 = por %p104, %p105
    %p107 = scmp.ne.s32.totalorder %s98, %s99
    %p108 = scmp.eq.s32.totalorder %s25, 0
    %p109 = por %p107, %p108
    %p110 = scmp.ne.s32.totalorder %s98, %s99
    %p111 = scmp.eq.s32.totalorder %s26, 1
    %p112 = por %p110, %p111
    %p114 = scmp.ne.s32.totalorder %s99, %s113
    %p115 = scmp.eq.s32.totalorder %s26, 0
    %p116 = por %p114, %p115
    %s118 = sadd.s32 %s117, 1
    %p121 = scmp.eq.s32.totalorder %s20, 1
    %p122 = scmp.ne.s32.totalorder %s117, %s119
    %p123 = scmp.eq.s32.totalorder %s20, 0
    %p124 = por %p122, %p123
    %p125 = scmp.ne.s32.totalorder %s117, %s119
    %p126 = scmp.eq.s32.totalorder %s25, 1
    %p127 = por %p125, %p126
    %p128 = scmp.ne.s32.totalorder %s119, %s120
    %p129 = scmp.eq.s32.totalorder %s25, 0
    %p130 = por %p128, %p129
    %p131 = scmp.ne.s32.totalorder %s119, %s120
    %p132 = scmp.eq.s32.totalorder %s26, 1
    %p133 = por %p131, %p132
    %p135 = scmp.ne.s32.totalorder %s120, %s134
    %p136 = scmp.eq.s32.totalorder %s26, 0
    %p137 = por %p135, %p136
    %s139 = sadd.s32 %s138, 1
    %p142 = scmp.eq.s32.totalorder %s20, 1
    %p143 = scmp.ne.s32.totalorder %s138, %s140
    %p144 = scmp.eq.s32.totalorder %s20, 0
    %p145 = por %p143, %p144
    %p146 = scmp.ne.s32.totalorder %s138, %s140
    %p147 = scmp.eq.s32.totalorder %s25, 1
    %p148 = por %p146, %p147
    %p149 = scmp.ne.s32.totalorder %s140, %s141
    %p150 = scmp.eq.s32.totalorder %s25, 0
    %p151 = por %p149, %p150
    %p152 = scmp.ne.s32.totalorder %s140, %s141
    %p153 = scmp.eq.s32.totalorder %s26, 1
    %p154 = por %p152, %p153
    %p156 = scmp.ne.s32.totalorder %s141, %s155
    %p157 = scmp.eq.s32.totalorder %s26, 0
    %p158 = por %p156, %p157
    %s160 = sadd.s32 %s159, 1
    %p163 = scmp.eq.s32.totalorder %s20, 1
    %p164 = scmp.ne.s32.totalorder %s159, %s161
    %p165 = scmp.eq.s32.totalorder %s20, 0
    %p166 = por %p164, %p165
    %p167 = scmp.ne.s32.totalorder %s159, %s161
    %p168 = scmp.eq.s32.totalorder %s25, 1
    %p169 = por %p167, %p168
    %p170 = scmp.ne.s32.totalorder %s161, %s162
    %p171 = scmp.eq.s32.totalorder %s25, 0
    %p172 = por %p170, %p171
    %p173 = scmp.ne.s32.totalorder %s161, %s162
    %p174 = scmp.eq.s32.totalorder %s26, 1
    %p175 = por %p173, %p174
    %p177 = scmp.ne.s32.totalorder %s162, %s176
    %p178 = scmp.eq.s32.totalorder %s26, 0
    %p179 = por %p177, %p178
    %s181 = sadd.s32 %s180, 1
    %p184 = scmp.eq.s32.totalorder %s20, 1
    %p185 = scmp.ne.s32.totalorder %s180, %s182
    %p186 = scmp.eq.s32.totalorder %s20, 0
    %p187 = por %p185, %p186
    %p188 = scmp.ne.s32.totalorder %s180, %s182
    %p189 = scmp.eq.s32.totalorder %s25, 1
    %p190 = por %p188, %p189
    %p191 = scmp.ne.s32.totalorder %s182, %s183
    %p192 = scmp.eq.s32.totalorder %s25, 0
    %p193 = por %p191, %p192
    %p194 = scmp.ne.s32.totalorder %s182, %s183
    %p195 = scmp.eq.s32.totalorder %s26, 1
    %p196 = por %p194, %p195
    %p198 = scmp.ne.s32.totalorder %s183, %s197
    %p199 = scmp.eq.s32.totalorder %s26, 0
    %p200 = por %p198, %p199
    %s202 = sadd.s32 %s201, 1
    %p205 = scmp.eq.s32.totalorder %s20, 1
    %p206 = scmp.ne.s32.totalorder %s201, %s203
    %p207 = scmp.eq.s32.totalorder %s20, 0
    %p208 = por %p206, %p207
    %p209 = scmp.ne.s32.totalorder %s201, %s203
    %p210 = scmp.eq.s32.totalorder %s25, 1
    %p211 = por %p209, %p210
    %p212 = scmp.ne.s32.totalorder %s203, %s204
    %p213 = scmp.eq.s32.totalorder %s25, 0
    %p214 = por %p212, %p213
    %p215 = scmp.ne.s32.totalorder %s203, %s204
    %p216 = scmp.eq.s32.totalorder %s26, 1
    %p217 = por %p215, %p216
    %p219 = scmp.ne.s32.totalorder %s204, %s218
    %p220 = scmp.eq.s32.totalorder %s26, 0
    %p221 = por %p219, %p220
    %s223 = sadd.s32 %s222, 1
    %p226 = scmp.eq.s32.totalorder %s20, 1
    %p227 = scmp.ne.s32.totalorder %s222, %s224
    %p228 = scmp.eq.s32.totalorder %s20, 0
    %p229 = por %p227, %p228
    %p230 = scmp.ne.s32.totalorder %s222, %s224
    %p231 = scmp.eq.s32.totalorder %s25, 1
    %p232 = por %p230, %p231
    %p233 = scmp.ne.s32.totalorder %s224, %s225
    %p234 = scmp.eq.s32.totalorder %s25, 0
    %p235 = por %p233, %p234
    %p236 = scmp.ne.s32.totalorder %s224, %s225
    %p237 = scmp.eq.s32.totalorder %s26, 1
    %p238 = por %p236, %p237
    %p240 = scmp.ne.s32.totalorder %s225, %s239
    %p241 = scmp.eq.s32.totalorder %s26, 0
    %p242 = por %p240, %p241
    %s244 = sadd.s32 %s243, 1
    %p247 = scmp.eq.s32.totalorder %s20, 1
    %p248 = scmp.ne.s32.totalorder %s243, %s245
    %p249 = scmp.eq.s32.totalorder %s20, 0
    %p250 = por %p248, %p249
    %p251 = scmp.ne.s32.totalorder %s243, %s245
    %p252 = scmp.eq.s32.totalorder %s25, 1
    %p253 = por %p251, %p252
    %p254 = scmp.ne.s32.totalorder %s245, %s246
    %p255 = scmp.eq.s32.totalorder %s25, 0
    %p256 = por %p254, %p255
    %p257 = scmp.ne.s32.totalorder %s245, %s246
    %p258 = scmp.eq.s32.totalorder %s26, 1
    %p259 = por %p257, %p258
    %p261 = scmp.ne.s32.totalorder %s246, %s260
    %p262 = scmp.eq.s32.totalorder %s26, 0
    %p263 = por %p261, %p262
    %s265 = sadd.s32 %s264, 1
    %p268 = scmp.eq.s32.totalorder %s20, 1
    %p269 = scmp.ne.s32.totalorder %s264, %s266
    %p270 = scmp.eq.s32.totalorder %s20, 0
    %p271 = por %p269, %p270
    %p272 = scmp.ne.s32.totalorder %s264, %s266
    %p273 = scmp.eq.s32.totalorder %s25, 1
    %p274 = por %p272, %p273
    %p275 = scmp.ne.s32.totalorder %s266, %s267
    %p276 = scmp.eq.s32.totalorder %s25, 0
    %p277 = por %p275, %p276
    %p278 = scmp.ne.s32.totalorder %s266, %s267
    %p279 = scmp.eq.s32.totalorder %s26, 1
    %p280 = por %p278, %p279
    %p282 = scmp.ne.s32.totalorder %s267, %s281
    %p283 = scmp.eq.s32.totalorder %s26, 0
    %p284 = por %p282, %p283
    %s286 = sadd.s32 %s285, 1
    %p289 = scmp.eq.s32.totalorder %s20, 1
    %p290 = scmp.ne.s32.totalorder %s285, %s287
    %p291 = scmp.eq.s32.totalorder %s20, 0
    %p292 = por %p290, %p291
    %p293 = scmp.ne.s32.totalorder %s285, %s287
    %p294 = scmp.eq.s32.totalorder %s25, 1
    %p295 = por %p293, %p294
    %p296 = scmp.ne.s32.totalorder %s287, %s288
    %p297 = scmp.eq.s32.totalorder %s25, 0
    %p298 = por %p296, %p297
    %p299 = scmp.ne.s32.totalorder %s287, %s288
    %p300 = scmp.eq.s32.totalorder %s26, 1
    %p301 = por %p299, %p300
    %p303 = scmp.ne.s32.totalorder %s288, %s302
    %p304 = scmp.eq.s32.totalorder %s26, 0
    %p305 = por %p303, %p304
    %s307 = sadd.s32 %s306, 1
    %p310 = scmp.eq.s32.totalorder %s20, 1
    %p311 = scmp.ne.s32.totalorder %s306, %s308
    %p312 = scmp.eq.s32.totalorder %s20, 0
    %p313 = por %p311, %p312
    %p314 = scmp.ne.s32.totalorder %s306, %s308
    %p315 = scmp.eq.s32.totalorder %s25, 1
    %p316 = por %p314, %p315
    %p317 = scmp.ne.s32.totalorder %s308, %s309
    %p318 = scmp.eq.s32.totalorder %s25, 0
    %p319 = por %p317, %p318
    %p320 = scmp.ne.s32.totalorder %s308, %s309
    %p321 = scmp.eq.s32.totalorder %s26, 1
    %p322 = por %p320, %p321
    %p324 = scmp.ne.s32.totalorder %s309, %s323
    %p325 = scmp.eq.s32.totalorder %s26, 0
    %p326 = por %p324, %p325
    %s327 = ssub.s32 %s20, %s27
    %p328 = scmp.eq.s32.totalorder %s327, 0
    %s330 = sadd.s32 %s329, 1
    %s331 = scalar_select %p328, %s329, %s330
    %p334 = pneg %p328
    %p335 = scmp.eq.s32.totalorder %s20, 1
    %p336 = por %p334, %p335
    %p337 = scmp.ne.s32.totalorder %s329, %s332
    %p338 = scmp.eq.s32.totalorder %s20, 0
    %p339 = por %p337, %p338
    %p340 = scmp.ne.s32.totalorder %s329, %s332
    %p341 = scmp.eq.s32.totalorder %s25, 1
    %p342 = por %p340, %p341
    %p343 = scmp.ne.s32.totalorder %s332, %s333
    %p344 = scmp.eq.s32.totalorder %s25, 0
    %p345 = por %p343, %p344
    %p346 = scmp.ne.s32.totalorder %s332, %s333
    %p347 = scmp.eq.s32.totalorder %s26, 1
    %p348 = por %p346, %p347
    %p350 = scmp.ne.s32.totalorder %s333, %s349
    %p351 = scmp.eq.s32.totalorder %s26, 0
    %p352 = por %p350, %p351
    %p353 = scmp.le.s32.totalorder 1, %s20
    %p354 = scmp.lt.s32.totalorder %s20, 3
    %p355 = pnand %p353, %p354
    %p356 = pneg %p355
    // Predicated region
    $region9: #{pet_recognizer_forward.1} parent=5 // pred_check
      _
    $region10: #{pet_recognizer_forward.1} parent=5 // pred_check_branch
      %358 = sbr.rel (%p355) target = $region12
    $region11: #{pet_recognizer_forward.1} parent=5 // pred_region
      %s359 = ssub.s32 %s20, 1
      // Predicated region
      $region13: #{pet_recognizer_forward.1} parent=11 // pred_check
        %p360 = pneg %p67
      $region14: #{pet_recognizer_forward.1} parent=11 // pred_check_branch
        %362 = sbr.rel (%p360) target = $region16
      $region15: #{pet_recognizer_forward.1} parent=11 // pred_region
        _
      $region16: #{pet_recognizer_forward.1} parent=11 // pred_fallthru
        _
      // Predicated region
      $region17: #{pet_recognizer_forward.1} parent=11 // pred_check
        %p363 = pneg %p88
      $region18: #{pet_recognizer_forward.1} parent=11 // pred_check_branch
        %365 = sbr.rel (%p363) target = $region20
      $region19: #{pet_recognizer_forward.1} parent=11 // pred_region
        _
      $region20: #{pet_recognizer_forward.1} parent=11 // pred_fallthru
        _
      // Predicated region
      $region21: #{pet_recognizer_forward.1} parent=11 // pred_check
        %p366 = pneg %p109
      $region22: #{pet_recognizer_forward.1} parent=11 // pred_check_branch
        %368 = sbr.rel (%p366) target = $region24
      $region23: #{pet_recognizer_forward.1} parent=11 // pred_region
        _
      $region24: #{pet_recognizer_forward.1} parent=11 // pred_fallthru
        _
      // Predicated region
      $region25: #{pet_recognizer_forward.1} parent=11 // pred_check
        %p369 = pneg %p130
      $region26: #{pet_recognizer_forward.1} parent=11 // pred_check_branch
        %371 = sbr.rel (%p369) target = $region28
      $region27: #{pet_recognizer_forward.1} parent=11 // pred_region
        _
      $region28: #{pet_recognizer_forward.1} parent=11 // pred_fallthru
        _
      // Predicated region
      $region29: #{pet_recognizer_forward.1} parent=11 // pred_check
        %p372 = pneg %p151
      $region30: #{pet_recognizer_forward.1} parent=11 // pred_check_branch
        %374 = sbr.rel (%p372) target = $region32
      $region31: #{pet_recognizer_forward.1} parent=11 // pred_region
        _
      $region32: #{pet_recognizer_forward.1} parent=11 // pred_fallthru
        _
      // Predicated region
      $region33: #{pet_recognizer_forward.1} parent=11 // pred_check
        %p375 = pneg %p172
      $region34: #{pet_recognizer_forward.1} parent=11 // pred_check_branch
        %377 = sbr.rel (%p375) target = $region36
      $region35: #{pet_recognizer_forward.1} parent=11 // pred_region
        _
      $region36: #{pet_recognizer_forward.1} parent=11 // pred_fallthru
        _
      // Predicated region
      $region37: #{pet_recognizer_forward.1} parent=11 // pred_check
        %p378 = pneg %p193
      $region38: #{pet_recognizer_forward.1} parent=11 // pred_check_branch
        %380 = sbr.rel (%p378) target = $region40
      $region39: #{pet_recognizer_forward.1} parent=11 // pred_region
        _
      $region40: #{pet_recognizer_forward.1} parent=11 // pred_fallthru
        _
      // Predicated region
      $region41: #{pet_recognizer_forward.1} parent=11 // pred_check
        %p381 = pneg %p214
      $region42: #{pet_recognizer_forward.1} parent=11 // pred_check_branch
        %383 = sbr.rel (%p381) target = $region44
      $region43: #{pet_recognizer_forward.1} parent=11 // pred_region
        _
      $region44: #{pet_recognizer_forward.1} parent=11 // pred_fallthru
        _
      // Predicated region
      $region45: #{pet_recognizer_forward.1} parent=11 // pred_check
        %p384 = pneg %p235
      $region46: #{pet_recognizer_forward.1} parent=11 // pred_check_branch
        %386 = sbr.rel (%p384) target = $region48
      $region47: #{pet_recognizer_forward.1} parent=11 // pred_region
        _
      $region48: #{pet_recognizer_forward.1} parent=11 // pred_fallthru
        _
      // Predicated region
      $region49: #{pet_recognizer_forward.1} parent=11 // pred_check
        %p387 = pneg %p256
      $region50: #{pet_recognizer_forward.1} parent=11 // pred_check_branch
        %389 = sbr.rel (%p387) target = $region52
      $region51: #{pet_recognizer_forward.1} parent=11 // pred_region
        _
      $region52: #{pet_recognizer_forward.1} parent=11 // pred_fallthru
        _
      // Predicated region
      $region53: #{pet_recognizer_forward.1} parent=11 // pred_check
        %p390 = pneg %p277
      $region54: #{pet_recognizer_forward.1} parent=11 // pred_check_branch
        %392 = sbr.rel (%p390) target = $region56
      $region55: #{pet_recognizer_forward.1} parent=11 // pred_region
        _
      $region56: #{pet_recognizer_forward.1} parent=11 // pred_fallthru
        _
      // Predicated region
      $region57: #{pet_recognizer_forward.1} parent=11 // pred_check
        %p393 = pneg %p298
      $region58: #{pet_recognizer_forward.1} parent=11 // pred_check_branch
        %395 = sbr.rel (%p393) target = $region60
      $region59: #{pet_recognizer_forward.1} parent=11 // pred_region
        _
      $region60: #{pet_recognizer_forward.1} parent=11 // pred_fallthru
        _
      // Predicated region
      $region61: #{pet_recognizer_forward.1} parent=11 // pred_check
        %p396 = pneg %p319
      $region62: #{pet_recognizer_forward.1} parent=11 // pred_check_branch
        %398 = sbr.rel (%p396) target = $region64
      $region63: #{pet_recognizer_forward.1} parent=11 // pred_region
        _
      $region64: #{pet_recognizer_forward.1} parent=11 // pred_fallthru
        _
    $region12: #{pet_recognizer_forward.1} parent=5 // pred_fallthru
      _
    %p399 = scmp.lt.s32.totalorder %s20, 2
    // Predicated region
    $region65: #{pet_recognizer_forward.1} parent=5 // pred_check
      %p400 = pneg %p399
    $region66: #{pet_recognizer_forward.1} parent=5 // pred_check_branch
      %402 = sbr.rel (%p400) target = $region68
    $region67: #{pet_recognizer_forward.1} parent=5 // pred_region
      // Predicated region
      $region69: #{pet_recognizer_forward.1} parent=67 // pred_check
        %p403 = pneg %p40
      $region70: #{pet_recognizer_forward.1} parent=67 // pred_check_branch
        %405 = sbr.rel (%p403) target = $region72
      $region71: #{pet_recognizer_forward.1} parent=67 // pred_region
        %s406 = smul.u32 16, %s20
        %p407 = scmp.lt.s32.totalorder %s406, 31
        %s408 = scalar_select %p407, %s406, 31
        %s409 = smul.addr %s408, 8
        %s410 = scalar_lea.vmem %s0, %s409
        %s411 = smul.u32 16, %s20
      $region72: #{pet_recognizer_forward.1} parent=67 // pred_fallthru
        _
    $region68: #{pet_recognizer_forward.1} parent=5 // pred_fallthru
      _
    %p412 = scmp.le.s32.totalorder 1, %s20
    %p413 = scmp.lt.s32.totalorder %s20, 3
    %p414 = pnand %p412, %p413
    %p415 = pneg %p414
    // Predicated region
    $region73: #{pet_recognizer_forward.1} parent=5 // pred_check
      _
    $region74: #{pet_recognizer_forward.1} parent=5 // pred_check_branch
      %417 = sbr.rel (%p414) target = $region76
    $region75: #{pet_recognizer_forward.1} parent=5 // pred_region
      %s418 = ssub.s32 %s20, 1
      %s419 = smul.u32 16, %s25
      %p420 = scmp.lt.s32.totalorder %s419, 31
      %s421 = scalar_select %p420, %s419, 31
      %s422 = smul.addr %s421, 8
      %s423 = scalar_lea.vmem %s0, %s422
      %p424 = pneg %p46
      %p425 = pneg %p43
      %p426 = pneg %p67
      %p427 = pneg %p64
      %p428 = pneg %p88
      %p429 = pneg %p85
      %p430 = pneg %p109
      %p431 = pneg %p106
      %p432 = pneg %p130
      %p433 = pneg %p127
      %p434 = pneg %p151
      %p435 = pneg %p148
      %p436 = pneg %p172
      %p437 = pneg %p169
      %p438 = pneg %p193
      %p439 = pneg %p190
      %p440 = pneg %p214
      %p441 = pneg %p211
      %p442 = pneg %p235
      %p443 = pneg %p232
      %p444 = pneg %p256
      %p445 = pneg %p253
      %p446 = pneg %p277
      %p447 = pneg %p274
      %p448 = pneg %p298
      %p449 = pneg %p295
      %p450 = pneg %p319
      %p451 = pneg %p316
      %p452 = pneg %p345
      %p453 = pneg %p342
      %p454 = scmp.lt.s32.totalorder %s25, 1
      %s455 = scalar_select %p454, %s25, 1
      %s456 = smul.addr %s455, 5
      %s457 = smul.addr %s456, 8
      %s458 = scalar_lea.vmem %s14, %s457
      %s459 = smul.u32 16, %s25
      %p460 = scmp.lt.s32.totalorder %s459, 31
      %s461 = scalar_select %p460, %s459, 31
      %s462 = smul.addr %s461, 8
      %s463 = scalar_lea.vmem %s0, %s462
      %s464 = smul.u32 16, %s25
      %p465 = scmp.lt.s32.totalorder %s25, 1
      %s466 = scalar_select %p465, %s25, 1
      %s467 = smul.addr %s466, 5
      %s468 = smul.addr %s467, 8
      %s469 = scalar_lea.vmem %s14, %s468
      %v470 = vld [vmem:[%s1] sm:$0xff]
      %v471 = vld [vmem:[%s1 + $0x8] sm:$0xff]
      %v472 = vld [vmem:[%s1 + $0x10] sm:$0xff]
      %v473 = vld [vmem:[%s1 + $0x18] sm:$0xff]
      %v474 = vld [vmem:[%s1 + $0x20] sm:$0xff]
      %v475 = vld [vmem:[%s1 + $0x28] sm:$0xff]
      %v476 = vld [vmem:[%s1 + $0x30] sm:$0xff]
      %v477 = vld [vmem:[%s1 + $0x38] sm:$0xff]
      %v478 = vld [vmem:[%s1 + $0x40] sm:$0xff]
      %v479 = vld [vmem:[%s1 + $0x48] sm:$0xff]
      %v480 = vld [vmem:[%s1 + $0x50] sm:$0xff]
      %v481 = vld [vmem:[%s1 + $0x58] sm:$0xff]
      %v482 = vld [vmem:[%s1 + $0x60] sm:$0xff]
      %v483 = vld [vmem:[%s1 + $0x68] sm:$0xff]
      %v484 = vld [vmem:[%s1 + $0x70] sm:$0xff]
      %v485 = vld [vmem:[%s1 + $0x78] sm:$0xff]
      %v486 = vld [vmem:[%s1 + $0x80] sm:$0x1]
      %v487 = vld [vmem:[%s1 + $0x88] sm:$0x1]
      %v488 = vld [vmem:[%s1 + $0x90] sm:$0x1]
      %v489 = vld [vmem:[%s1 + $0x98] sm:$0x1]
      %v490 = vld [vmem:[%s1 + $0xa0] sm:$0x1]
      %v491 = vld [vmem:[%s1 + $0xa8] sm:$0x1]
      %v492 = vld [vmem:[%s1 + $0xb0] sm:$0x1]
      %v493 = vld [vmem:[%s1 + $0xb8] sm:$0x1]
      %v494 = vld [vmem:[%s1 + $0xc0] sm:$0x1]
      %v495 = vld [vmem:[%s1 + $0xc8] sm:$0x1]
      %v496 = vld [vmem:[%s1 + $0xd0] sm:$0x1]
      %v497 = vld [vmem:[%s1 + $0xd8] sm:$0x1]
      %v498 = vld [vmem:[%s1 + $0xe0] sm:$0x1]
      %v499 = vld [vmem:[%s1 + $0xe8] sm:$0x1]
      %v500 = vld [vmem:[%s1 + $0xf0] sm:$0x1]
      %v501 = vld [vmem:[%s1 + $0xf8] sm:$0x1]
      %v502 = vld [vmem:[%s2] sm:$0xff]
      %v503 = vld [vmem:[%s2 + $0x8] sm:$0xff]
      %v504 = vld [vmem:[%s2 + $0x10] sm:$0xff]
      %v505 = vld [vmem:[%s2 + $0x18] sm:$0xff]
      %v506 = vld [vmem:[%s2 + $0x20] sm:$0xff]
      %v507 = vld [vmem:[%s2 + $0x28] sm:$0xff]
      %v508 = vld [vmem:[%s2 + $0x30] sm:$0xff]
      %v509 = vld [vmem:[%s2 + $0x38] sm:$0xff]
      %v510 = vld [vmem:[%s2 + $0x40] sm:$0xff]
      %v511 = vld [vmem:[%s2 + $0x48] sm:$0xff]
      %v512 = vld [vmem:[%s2 + $0x50] sm:$0xff]
      %v513 = vld [vmem:[%s2 + $0x58] sm:$0xff]
      %v514 = vld [vmem:[%s2 + $0x60] sm:$0xff]
      %v515 = vld [vmem:[%s2 + $0x68] sm:$0xff]
      %v516 = vld [vmem:[%s2 + $0x70] sm:$0xff]
      %v517 = vld [vmem:[%s2 + $0x78] sm:$0xff]
      %v518 = vld [vmem:[%s2 + $0x80] sm:$0x1]
      %v519 = vld [vmem:[%s2 + $0x88] sm:$0x1]
      %v520 = vld [vmem:[%s2 + $0x90] sm:$0x1]
      %v521 = vld [vmem:[%s2 + $0x98] sm:$0x1]
      %v522 = vld [vmem:[%s2 + $0xa0] sm:$0x1]
      %v523 = vld [vmem:[%s2 + $0xa8] sm:$0x1]
      %v524 = vld [vmem:[%s2 + $0xb0] sm:$0x1]
      %v525 = vld [vmem:[%s2 + $0xb8] sm:$0x1]
      %v526 = vld [vmem:[%s2 + $0xc0] sm:$0x1]
      %v527 = vld [vmem:[%s2 + $0xc8] sm:$0x1]
      %v528 = vld [vmem:[%s2 + $0xd0] sm:$0x1]
      %v529 = vld [vmem:[%s2 + $0xd8] sm:$0x1]
      %v530 = vld [vmem:[%s2 + $0xe0] sm:$0x1]
      %v531 = vld [vmem:[%s2 + $0xe8] sm:$0x1]
      %v532 = vld [vmem:[%s2 + $0xf0] sm:$0x1]
      %v533 = vld [vmem:[%s2 + $0xf8] sm:$0x1]
      %v534 = vld [vmem:[%s463] sm:$0xff]
      %v535 = vld [vmem:[%s463 + $0x8] sm:$0xff]
      %v536 = vld [vmem:[%s463 + $0x10] sm:$0xff]
      %v537 = vld [vmem:[%s463 + $0x18] sm:$0xff]
      %v538 = vld [vmem:[%s463 + $0x20] sm:$0xff]
      %v539 = vld [vmem:[%s463 + $0x28] sm:$0xff]
      %v540 = vld [vmem:[%s463 + $0x30] sm:$0xff]
      %v541 = vld [vmem:[%s463 + $0x38] sm:$0xff]
      %v542 = vld [vmem:[%s463 + $0x40] sm:$0xff]
      %v543 = vld [vmem:[%s463 + $0x48] sm:$0xff]
      %v544 = vld [vmem:[%s463 + $0x50] sm:$0xff]
      %v545 = vld [vmem:[%s463 + $0x58] sm:$0xff]
      %v546 = vld [vmem:[%s463 + $0x60] sm:$0xff]
      %v547 = vld [vmem:[%s463 + $0x68] sm:$0xff]
      %v548 = vld [vmem:[%s463 + $0x70] sm:$0xff]
      %v549 = vld [vmem:[%s463 + $0x78] sm:$0xff]
      %550 = vrot.lane.b32.xlu0 %v534, 17
      %v551 = vpop.permute.xlu0 %550
      %552 = vrot.lane.b32.xlu0 %v535, 17
      %v553 = vpop.permute.xlu0 %552
      %554 = vrot.lane.b32.xlu0 %v536, 17
      %v555 = vpop.permute.xlu0 %554
      %556 = vrot.lane.b32.xlu0 %v537, 17
      %v557 = vpop.permute.xlu0 %556
      %558 = vrot.lane.b32.xlu0 %v538, 17
      %v559 = vpop.permute.xlu0 %558
      %560 = vrot.lane.b32.xlu0 %v539, 17
      %v561 = vpop.permute.xlu0 %560
      %562 = vrot.lane.b32.xlu0 %v540, 17
      %v563 = vpop.permute.xlu0 %562
      %564 = vrot.lane.b32.xlu0 %v541, 17
      %v565 = vpop.permute.xlu0 %564
      %566 = vrot.lane.b32.xlu0 %v542, 17
      %v567 = vpop.permute.xlu0 %566
      %568 = vrot.lane.b32.xlu0 %v543, 17
      %v569 = vpop.permute.xlu0 %568
      %570 = vrot.lane.b32.xlu0 %v544, 17
      %v571 = vpop.permute.xlu0 %570
      %572 = vrot.lane.b32.xlu0 %v545, 17
      %v573 = vpop.permute.xlu0 %572
      %574 = vrot.lane.b32.xlu0 %v546, 17
      %v575 = vpop.permute.xlu0 %574
      %576 = vrot.lane.b32.xlu0 %v547, 17
      %v577 = vpop.permute.xlu0 %576
      %578 = vrot.lane.b32.xlu0 %v548, 17
      %v579 = vpop.permute.xlu0 %578
      %580 = vrot.lane.b32.xlu0 %v549, 17
      %v581 = vpop.permute.xlu0 %580
      %v582 = vlaneseq
      %v583 = vand.u32 %v582, 127
      %vm584 = vcmp.lt.s32.totalorder %v583, 17
      %v585 = vsel %vm584, %v579, %v581
      %v586 = vsel %vm584, %v577, %v579
      %v587 = vsel %vm584, %v575, %v577
      %v588 = vsel %vm584, %v573, %v575
      %v589 = vsel %vm584, %v571, %v573
      %v590 = vsel %vm584, %v569, %v571
      %v591 = vsel %vm584, %v567, %v569
      %v592 = vsel %vm584, %v565, %v567
      %v593 = vsel %vm584, %v563, %v565
      %v594 = vsel %vm584, %v561, %v563
      %v595 = vsel %vm584, %v559, %v561
      %v596 = vsel %vm584, %v557, %v559
      %v597 = vsel %vm584, %v555, %v557
      %v598 = vsel %vm584, %v553, %v555
      %v599 = vsel %vm584, %v551, %v553
      %v600 = vsel %vm584, %v581, %v551
      %v601 = vlaneseq
      %v602 = vshrl.u32 %v601, 7
      %v603 = vsub.s32 0, %v602
      %v604 = vrot.slane %v470, %v603
      %v605 = vlaneseq
      %v606 = vshrl.u32 %v605, 7
      %v607 = vsub.s32 0, %v606
      %v608 = vrot.slane %v471, %v607
      %v609 = vlaneseq
      %v610 = vshrl.u32 %v609, 7
      %v611 = vsub.s32 0, %v610
      %v612 = vrot.slane %v472, %v611
      %v613 = vlaneseq
      %v614 = vshrl.u32 %v613, 7
      %v615 = vsub.s32 0, %v614
      %v616 = vrot.slane %v473, %v615
      %v617 = vlaneseq
      %v618 = vshrl.u32 %v617, 7
      %v619 = vsub.s32 0, %v618
      %v620 = vrot.slane %v474, %v619
      %v621 = vlaneseq
      %v622 = vshrl.u32 %v621, 7
      %v623 = vsub.s32 0, %v622
      %v624 = vrot.slane %v475, %v623
      %v625 = vlaneseq
      %v626 = vshrl.u32 %v625, 7
      %v627 = vsub.s32 0, %v626
      %v628 = vrot.slane %v476, %v627
      %v629 = vlaneseq
      %v630 = vshrl.u32 %v629, 7
      %v631 = vsub.s32 0, %v630
      %v632 = vrot.slane %v477, %v631
      %v633 = vlaneseq
      %v634 = vshrl.u32 %v633, 7
      %v635 = vsub.s32 0, %v634
      %v636 = vrot.slane %v478, %v635
      %v637 = vlaneseq
      %v638 = vshrl.u32 %v637, 7
      %v639 = vsub.s32 0, %v638
      %v640 = vrot.slane %v479, %v639
      %v641 = vlaneseq
      %v642 = vshrl.u32 %v641, 7
      %v643 = vsub.s32 0, %v642
      %v644 = vrot.slane %v480, %v643
      %v645 = vlaneseq
      %v646 = vshrl.u32 %v645, 7
      %v647 = vsub.s32 0, %v646
      %v648 = vrot.slane %v481, %v647
      %v649 = vlaneseq
      %v650 = vshrl.u32 %v649, 7
      %v651 = vsub.s32 0, %v650
      %v652 = vrot.slane %v482, %v651
      %v653 = vlaneseq
      %v654 = vshrl.u32 %v653, 7
      %v655 = vsub.s32 0, %v654
      %v656 = vrot.slane %v483, %v655
      %v657 = vlaneseq
      %v658 = vshrl.u32 %v657, 7
      %v659 = vsub.s32 0, %v658
      %v660 = vrot.slane %v484, %v659
      %v661 = vlaneseq
      %v662 = vshrl.u32 %v661, 7
      %v663 = vsub.s32 0, %v662
      %v664 = vrot.slane %v485, %v663
      %v665 = vmul.f32 %v604, %v600
      %v666 = vmul.f32 %v608, %v599
      %v667 = vmul.f32 %v612, %v598
      %v668 = vmul.f32 %v616, %v597
      %v669 = vmul.f32 %v620, %v596
      %v670 = vmul.f32 %v624, %v595
      %v671 = vmul.f32 %v628, %v594
      %v672 = vmul.f32 %v632, %v593
      %v673 = vmul.f32 %v636, %v592
      %v674 = vmul.f32 %v640, %v591
      %v675 = vmul.f32 %v644, %v590
      %v676 = vmul.f32 %v648, %v589
      %v677 = vmul.f32 %v652, %v588
      %v678 = vmul.f32 %v656, %v587
      %v679 = vmul.f32 %v660, %v586
      %v680 = vmul.f32 %v664, %v585
      %681 = vrot.lane.b32.xlu0 %v534, 16
      %v682 = vpop.permute.xlu0 %681
      %683 = vrot.lane.b32.xlu0 %v535, 16
      %v684 = vpop.permute.xlu0 %683
      %685 = vrot.lane.b32.xlu0 %v536, 16
      %v686 = vpop.permute.xlu0 %685
      %687 = vrot.lane.b32.xlu0 %v537, 16
      %v688 = vpop.permute.xlu0 %687
      %689 = vrot.lane.b32.xlu0 %v538, 16
      %v690 = vpop.permute.xlu0 %689
      %691 = vrot.lane.b32.xlu0 %v539, 16
      %v692 = vpop.permute.xlu0 %691
      %693 = vrot.lane.b32.xlu0 %v540, 16
      %v694 = vpop.permute.xlu0 %693
      %695 = vrot.lane.b32.xlu0 %v541, 16
      %v696 = vpop.permute.xlu0 %695
      %697 = vrot.lane.b32.xlu0 %v542, 16
      %v698 = vpop.permute.xlu0 %697
      %699 = vrot.lane.b32.xlu0 %v543, 16
      %v700 = vpop.permute.xlu0 %699
      %701 = vrot.lane.b32.xlu0 %v544, 16
      %v702 = vpop.permute.xlu0 %701
      %703 = vrot.lane.b32.xlu0 %v545, 16
      %v704 = vpop.permute.xlu0 %703
      %705 = vrot.lane.b32.xlu0 %v546, 16
      %v706 = vpop.permute.xlu0 %705
      %707 = vrot.lane.b32.xlu0 %v547, 16
      %v708 = vpop.permute.xlu0 %707
      %709 = vrot.lane.b32.xlu0 %v548, 16
      %v710 = vpop.permute.xlu0 %709
      %711 = vrot.lane.b32.xlu0 %v549, 16
      %v712 = vpop.permute.xlu0 %711
      %vm713 = vcmp.lt.s32.totalorder %v583, 16
      %v714 = vsel %vm713, %v710, %v712
      %v715 = vsel %vm713, %v708, %v710
      %v716 = vsel %vm713, %v706, %v708
      %v717 = vsel %vm713, %v704, %v706
      %v718 = vsel %vm713, %v702, %v704
      %v719 = vsel %vm713, %v700, %v702
      %v720 = vsel %vm713, %v698, %v700
      %v721 = vsel %vm713, %v696, %v698
      %v722 = vsel %vm713, %v694, %v696
      %v723 = vsel %vm713, %v692, %v694
      %v724 = vsel %vm713, %v690, %v692
      %v725 = vsel %vm713, %v688, %v690
      %v726 = vsel %vm713, %v686, %v688
      %v727 = vsel %vm713, %v684, %v686
      %v728 = vsel %vm713, %v682, %v684
      %v729 = vsel %vm713, %v712, %v682
      %v730 = vlaneseq
      %v731 = vshrl.u32 %v730, 7
      %v732 = vsub.s32 1, %v731
      %v733 = vrot.slane %v470, %v732
      %v734 = vlaneseq
      %v735 = vshrl.u32 %v734, 7
      %v736 = vsub.s32 1, %v735
      %v737 = vrot.slane %v471, %v736
      %v738 = vlaneseq
      %v739 = vshrl.u32 %v738, 7
      %v740 = vsub.s32 1, %v739
      %v741 = vrot.slane %v472, %v740
      %v742 = vlaneseq
      %v743 = vshrl.u32 %v742, 7
      %v744 = vsub.s32 1, %v743
      %v745 = vrot.slane %v473, %v744
      %v746 = vlaneseq
      %v747 = vshrl.u32 %v746, 7
      %v748 = vsub.s32 1, %v747
      %v749 = vrot.slane %v474, %v748
      %v750 = vlaneseq
      %v751 = vshrl.u32 %v750, 7
      %v752 = vsub.s32 1, %v751
      %v753 = vrot.slane %v475, %v752
      %v754 = vlaneseq
      %v755 = vshrl.u32 %v754, 7
      %v756 = vsub.s32 1, %v755
      %v757 = vrot.slane %v476, %v756
      %v758 = vlaneseq
      %v759 = vshrl.u32 %v758, 7
      %v760 = vsub.s32 1, %v759
      %v761 = vrot.slane %v477, %v760
      %v762 = vlaneseq
      %v763 = vshrl.u32 %v762, 7
      %v764 = vsub.s32 1, %v763
      %v765 = vrot.slane %v478, %v764
      %v766 = vlaneseq
      %v767 = vshrl.u32 %v766, 7
      %v768 = vsub.s32 1, %v767
      %v769 = vrot.slane %v479, %v768
      %v770 = vlaneseq
      %v771 = vshrl.u32 %v770, 7
      %v772 = vsub.s32 1, %v771
      %v773 = vrot.slane %v480, %v772
      %v774 = vlaneseq
      %v775 = vshrl.u32 %v774, 7
      %v776 = vsub.s32 1, %v775
      %v777 = vrot.slane %v481, %v776
      %v778 = vlaneseq
      %v779 = vshrl.u32 %v778, 7
      %v780 = vsub.s32 1, %v779
      %v781 = vrot.slane %v482, %v780
      %v782 = vlaneseq
      %v783 = vshrl.u32 %v782, 7
      %v784 = vsub.s32 1, %v783
      %v785 = vrot.slane %v483, %v784
      %v786 = vlaneseq
      %v787 = vshrl.u32 %v786, 7
      %v788 = vsub.s32 1, %v787
      %v789 = vrot.slane %v484, %v788
      %v790 = vlaneseq
      %v791 = vshrl.u32 %v790, 7
      %v792 = vsub.s32 1, %v791
      %v793 = vrot.slane %v485, %v792
      %v794 = vmul.f32 %v733, %v729
      %v795 = vmul.f32 %v737, %v728
      %v796 = vmul.f32 %v741, %v727
      %v797 = vmul.f32 %v745, %v726
      %v798 = vmul.f32 %v749, %v725
      %v799 = vmul.f32 %v753, %v724
      %v800 = vmul.f32 %v757, %v723
      %v801 = vmul.f32 %v761, %v722
      %v802 = vmul.f32 %v765, %v721
      %v803 = vmul.f32 %v769, %v720
      %v804 = vmul.f32 %v773, %v719
      %v805 = vmul.f32 %v777, %v718
      %v806 = vmul.f32 %v781, %v717
      %v807 = vmul.f32 %v785, %v716
      %v808 = vmul.f32 %v789, %v715
      %v809 = vmul.f32 %v793, %v714
      %810 = vrot.lane.b32.xlu0 %v534, 15
      %v811 = vpop.permute.xlu0 %810
      %812 = vrot.lane.b32.xlu0 %v535, 15
      %v813 = vpop.permute.xlu0 %812
      %814 = vrot.lane.b32.xlu0 %v536, 15
      %v815 = vpop.permute.xlu0 %814
      %816 = vrot.lane.b32.xlu0 %v537, 15
      %v817 = vpop.permute.xlu0 %816
      %818 = vrot.lane.b32.xlu0 %v538, 15
      %v819 = vpop.permute.xlu0 %818
      %820 = vrot.lane.b32.xlu0 %v539, 15
      %v821 = vpop.permute.xlu0 %820
      %822 = vrot.lane.b32.xlu0 %v540, 15
      %v823 = vpop.permute.xlu0 %822
      %824 = vrot.lane.b32.xlu0 %v541, 15
      %v825 = vpop.permute.xlu0 %824
      %826 = vrot.lane.b32.xlu0 %v542, 15
      %v827 = vpop.permute.xlu0 %826
      %828 = vrot.lane.b32.xlu0 %v543, 15
      %v829 = vpop.permute.xlu0 %828
      %830 = vrot.lane.b32.xlu0 %v544, 15
      %v831 = vpop.permute.xlu0 %830
      %832 = vrot.lane.b32.xlu0 %v545, 15
      %v833 = vpop.permute.xlu0 %832
      %834 = vrot.lane.b32.xlu0 %v546, 15
      %v835 = vpop.permute.xlu0 %834
      %836 = vrot.lane.b32.xlu0 %v547, 15
      %v837 = vpop.permute.xlu0 %836
      %838 = vrot.lane.b32.xlu0 %v548, 15
      %v839 = vpop.permute.xlu0 %838
      %840 = vrot.lane.b32.xlu0 %v549, 15
      %v841 = vpop.permute.xlu0 %840
      %vm842 = vcmp.lt.s32.totalorder %v583, 15
      %v843 = vsel %vm842, %v839, %v841
      %v844 = vsel %vm842, %v837, %v839
      %v845 = vsel %vm842, %v835, %v837
      %v846 = vsel %vm842, %v833, %v835
      %v847 = vsel %vm842, %v831, %v833
      %v848 = vsel %vm842, %v829, %v831
      %v849 = vsel %vm842, %v827, %v829
      %v850 = vsel %vm842, %v825, %v827
      %v851 = vsel %vm842, %v823, %v825
      %v852 = vsel %vm842, %v821, %v823
      %v853 = vsel %vm842, %v819, %v821
      %v854 = vsel %vm842, %v817, %v819
      %v855 = vsel %vm842, %v815, %v817
      %v856 = vsel %vm842, %v813, %v815
      %v857 = vsel %vm842, %v811, %v813
      %v858 = vsel %vm842, %v841, %v811
      %v859 = vlaneseq
      %v860 = vshrl.u32 %v859, 7
      %v861 = vsub.s32 2, %v860
      %v862 = vrot.slane %v470, %v861
      %v863 = vlaneseq
      %v864 = vshrl.u32 %v863, 7
      %v865 = vsub.s32 2, %v864
      %v866 = vrot.slane %v471, %v865
      %v867 = vlaneseq
      %v868 = vshrl.u32 %v867, 7
      %v869 = vsub.s32 2, %v868
      %v870 = vrot.slane %v472, %v869
      %v871 = vlaneseq
      %v872 = vshrl.u32 %v871, 7
      %v873 = vsub.s32 2, %v872
      %v874 = vrot.slane %v473, %v873
      %v875 = vlaneseq
      %v876 = vshrl.u32 %v875, 7
      %v877 = vsub.s32 2, %v876
      %v878 = vrot.slane %v474, %v877
      %v879 = vlaneseq
      %v880 = vshrl.u32 %v879, 7
      %v881 = vsub.s32 2, %v880
      %v882 = vrot.slane %v475, %v881
      %v883 = vlaneseq
      %v884 = vshrl.u32 %v883, 7
      %v885 = vsub.s32 2, %v884
      %v886 = vrot.slane %v476, %v885
      %v887 = vlaneseq
      %v888 = vshrl.u32 %v887, 7
      %v889 = vsub.s32 2, %v888
      %v890 = vrot.slane %v477, %v889
      %v891 = vlaneseq
      %v892 = vshrl.u32 %v891, 7
      %v893 = vsub.s32 2, %v892
      %v894 = vrot.slane %v478, %v893
      %v895 = vlaneseq
      %v896 = vshrl.u32 %v895, 7
      %v897 = vsub.s32 2, %v896
      %v898 = vrot.slane %v479, %v897
      %v899 = vlaneseq
      %v900 = vshrl.u32 %v899, 7
      %v901 = vsub.s32 2, %v900
      %v902 = vrot.slane %v480, %v901
      %v903 = vlaneseq
      %v904 = vshrl.u32 %v903, 7
      %v905 = vsub.s32 2, %v904
      %v906 = vrot.slane %v481, %v905
      %v907 = vlaneseq
      %v908 = vshrl.u32 %v907, 7
      %v909 = vsub.s32 2, %v908
      %v910 = vrot.slane %v482, %v909
      %v911 = vlaneseq
      %v912 = vshrl.u32 %v911, 7
      %v913 = vsub.s32 2, %v912
      %v914 = vrot.slane %v483, %v913
      %v915 = vlaneseq
      %v916 = vshrl.u32 %v915, 7
      %v917 = vsub.s32 2, %v916
      %v918 = vrot.slane %v484, %v917
      %v919 = vlaneseq
      %v920 = vshrl.u32 %v919, 7
      %v921 = vsub.s32 2, %v920
      %v922 = vrot.slane %v485, %v921
      %v923 = vmul.f32 %v862, %v858
      %v924 = vmul.f32 %v866, %v857
      %v925 = vmul.f32 %v870, %v856
      %v926 = vmul.f32 %v874, %v855
      %v927 = vmul.f32 %v878, %v854
      %v928 = vmul.f32 %v882, %v853
      %v929 = vmul.f32 %v886, %v852
      %v930 = vmul.f32 %v890, %v851
      %v931 = vmul.f32 %v894, %v850
      %v932 = vmul.f32 %v898, %v849
      %v933 = vmul.f32 %v902, %v848
      %v934 = vmul.f32 %v906, %v847
      %v935 = vmul.f32 %v910, %v846
      %v936 = vmul.f32 %v914, %v845
      %v937 = vmul.f32 %v918, %v844
      %v938 = vmul.f32 %v922, %v843
      %939 = vrot.lane.b32.xlu0 %v534, 1
      %v940 = vpop.permute.xlu0 %939
      %941 = vrot.lane.b32.xlu0 %v535, 1
      %v942 = vpop.permute.xlu0 %941
      %943 = vrot.lane.b32.xlu0 %v536, 1
      %v944 = vpop.permute.xlu0 %943
      %945 = vrot.lane.b32.xlu0 %v537, 1
      %v946 = vpop.permute.xlu0 %945
      %947 = vrot.lane.b32.xlu0 %v538, 1
      %v948 = vpop.permute.xlu0 %947
      %949 = vrot.lane.b32.xlu0 %v539, 1
      %v950 = vpop.permute.xlu0 %949
      %951 = vrot.lane.b32.xlu0 %v540, 1
      %v952 = vpop.permute.xlu0 %951
      %953 = vrot.lane.b32.xlu0 %v541, 1
      %v954 = vpop.permute.xlu0 %953
      %955 = vrot.lane.b32.xlu0 %v542, 1
      %v956 = vpop.permute.xlu0 %955
      %957 = vrot.lane.b32.xlu0 %v543, 1
      %v958 = vpop.permute.xlu0 %957
      %959 = vrot.lane.b32.xlu0 %v544, 1
      %v960 = vpop.permute.xlu0 %959
      %961 = vrot.lane.b32.xlu0 %v545, 1
      %v962 = vpop.permute.xlu0 %961
      %963 = vrot.lane.b32.xlu0 %v546, 1
      %v964 = vpop.permute.xlu0 %963
      %965 = vrot.lane.b32.xlu0 %v547, 1
      %v966 = vpop.permute.xlu0 %965
      %967 = vrot.lane.b32.xlu0 %v548, 1
      %v968 = vpop.permute.xlu0 %967
      %969 = vrot.lane.b32.xlu0 %v549, 1
      %v970 = vpop.permute.xlu0 %969
      %vm971 = vcmp.lt.s32.totalorder %v583, 1
      %v972 = vsel %vm971, %v968, %v970
      %v973 = vsel %vm971, %v966, %v968
      %v974 = vsel %vm971, %v964, %v966
      %v975 = vsel %vm971, %v962, %v964
      %v976 = vsel %vm971, %v960, %v962
      %v977 = vsel %vm971, %v958, %v960
      %v978 = vsel %vm971, %v956, %v958
      %v979 = vsel %vm971, %v954, %v956
      %v980 = vsel %vm971, %v952, %v954
      %v981 = vsel %vm971, %v950, %v952
      %v982 = vsel %vm971, %v948, %v950
      %v983 = vsel %vm971, %v946, %v948
      %v984 = vsel %vm971, %v944, %v946
      %v985 = vsel %vm971, %v942, %v944
      %v986 = vsel %vm971, %v940, %v942
      %v987 = vsel %vm971, %v970, %v940
      %v988 = vlaneseq
      %v989 = vshrl.u32 %v988, 7
      %v990 = vsub.s32 3, %v989
      %v991 = vrot.slane %v470, %v990
      %v992 = vlaneseq
      %v993 = vshrl.u32 %v992, 7
      %v994 = vsub.s32 3, %v993
      %v995 = vrot.slane %v471, %v994
      %v996 = vlaneseq
      %v997 = vshrl.u32 %v996, 7
      %v998 = vsub.s32 3, %v997
      %v999 = vrot.slane %v472, %v998
      %v1000 = vlaneseq
      %v1001 = vshrl.u32 %v1000, 7
      %v1002 = vsub.s32 3, %v1001
      %v1003 = vrot.slane %v473, %v1002
      %v1004 = vlaneseq
      %v1005 = vshrl.u32 %v1004, 7
      %v1006 = vsub.s32 3, %v1005
      %v1007 = vrot.slane %v474, %v1006
      %v1008 = vlaneseq
      %v1009 = vshrl.u32 %v1008, 7
      %v1010 = vsub.s32 3, %v1009
      %v1011 = vrot.slane %v475, %v1010
      %v1012 = vlaneseq
      %v1013 = vshrl.u32 %v1012, 7
      %v1014 = vsub.s32 3, %v1013
      %v1015 = vrot.slane %v476, %v1014
      %v1016 = vlaneseq
      %v1017 = vshrl.u32 %v1016, 7
      %v1018 = vsub.s32 3, %v1017
      %v1019 = vrot.slane %v477, %v1018
      %v1020 = vlaneseq
      %v1021 = vshrl.u32 %v1020, 7
      %v1022 = vsub.s32 3, %v1021
      %v1023 = vrot.slane %v478, %v1022
      %v1024 = vlaneseq
      %v1025 = vshrl.u32 %v1024, 7
      %v1026 = vsub.s32 3, %v1025
      %v1027 = vrot.slane %v479, %v1026
      %v1028 = vlaneseq
      %v1029 = vshrl.u32 %v1028, 7
      %v1030 = vsub.s32 3, %v1029
      %v1031 = vrot.slane %v480, %v1030
      %v1032 = vlaneseq
      %v1033 = vshrl.u32 %v1032, 7
      %v1034 = vsub.s32 3, %v1033
      %v1035 = vrot.slane %v481, %v1034
      %v1036 = vlaneseq
      %v1037 = vshrl.u32 %v1036, 7
      %v1038 = vsub.s32 3, %v1037
      %v1039 = vrot.slane %v482, %v1038
      %v1040 = vlaneseq
      %v1041 = vshrl.u32 %v1040, 7
      %v1042 = vsub.s32 3, %v1041
      %v1043 = vrot.slane %v483, %v1042
      %v1044 = vlaneseq
      %v1045 = vshrl.u32 %v1044, 7
      %v1046 = vsub.s32 3, %v1045
      %v1047 = vrot.slane %v484, %v1046
      %v1048 = vlaneseq
      %v1049 = vshrl.u32 %v1048, 7
      %v1050 = vsub.s32 3, %v1049
      %v1051 = vrot.slane %v485, %v1050
      %v1052 = vmul.f32 %v991, %v987
      %v1053 = vmul.f32 %v995, %v986
      %v1054 = vmul.f32 %v999, %v985
      %v1055 = vmul.f32 %v1003, %v984
      %v1056 = vmul.f32 %v1007, %v983
      %v1057 = vmul.f32 %v1011, %v982
      %v1058 = vmul.f32 %v1015, %v981
      %v1059 = vmul.f32 %v1019, %v980
      %v1060 = vmul.f32 %v1023, %v979
      %v1061 = vmul.f32 %v1027, %v978
      %v1062 = vmul.f32 %v1031, %v977
      %v1063 = vmul.f32 %v1035, %v976
      %v1064 = vmul.f32 %v1039, %v975
      %v1065 = vmul.f32 %v1043, %v974
      %v1066 = vmul.f32 %v1047, %v973
      %v1067 = vmul.f32 %v1051, %v972
      %v1068 = vlaneseq
      %v1069 = vshrl.u32 %v1068, 7
      %v1070 = vsub.s32 4, %v1069
      %v1071 = vrot.slane %v470, %v1070
      %v1072 = vlaneseq
      %v1073 = vshrl.u32 %v1072, 7
      %v1074 = vsub.s32 4, %v1073
      %v1075 = vrot.slane %v471, %v1074
      %v1076 = vlaneseq
      %v1077 = vshrl.u32 %v1076, 7
      %v1078 = vsub.s32 4, %v1077
      %v1079 = vrot.slane %v472, %v1078
      %v1080 = vlaneseq
      %v1081 = vshrl.u32 %v1080, 7
      %v1082 = vsub.s32 4, %v1081
      %v1083 = vrot.slane %v473, %v1082
      %v1084 = vlaneseq
      %v1085 = vshrl.u32 %v1084, 7
      %v1086 = vsub.s32 4, %v1085
      %v1087 = vrot.slane %v474, %v1086
      %v1088 = vlaneseq
      %v1089 = vshrl.u32 %v1088, 7
      %v1090 = vsub.s32 4, %v1089
      %v1091 = vrot.slane %v475, %v1090
      %v1092 = vlaneseq
      %v1093 = vshrl.u32 %v1092, 7
      %v1094 = vsub.s32 4, %v1093
      %v1095 = vrot.slane %v476, %v1094
      %v1096 = vlaneseq
      %v1097 = vshrl.u32 %v1096, 7
      %v1098 = vsub.s32 4, %v1097
      %v1099 = vrot.slane %v477, %v1098
      %v1100 = vlaneseq
      %v1101 = vshrl.u32 %v1100, 7
      %v1102 = vsub.s32 4, %v1101
      %v1103 = vrot.slane %v478, %v1102
      %v1104 = vlaneseq
      %v1105 = vshrl.u32 %v1104, 7
      %v1106 = vsub.s32 4, %v1105
      %v1107 = vrot.slane %v479, %v1106
      %v1108 = vlaneseq
      %v1109 = vshrl.u32 %v1108, 7
      %v1110 = vsub.s32 4, %v1109
      %v1111 = vrot.slane %v480, %v1110
      %v1112 = vlaneseq
      %v1113 = vshrl.u32 %v1112, 7
      %v1114 = vsub.s32 4, %v1113
      %v1115 = vrot.slane %v481, %v1114
      %v1116 = vlaneseq
      %v1117 = vshrl.u32 %v1116, 7
      %v1118 = vsub.s32 4, %v1117
      %v1119 = vrot.slane %v482, %v1118
      %v1120 = vlaneseq
      %v1121 = vshrl.u32 %v1120, 7
      %v1122 = vsub.s32 4, %v1121
      %v1123 = vrot.slane %v483, %v1122
      %v1124 = vlaneseq
      %v1125 = vshrl.u32 %v1124, 7
      %v1126 = vsub.s32 4, %v1125
      %v1127 = vrot.slane %v484, %v1126
      %v1128 = vlaneseq
      %v1129 = vshrl.u32 %v1128, 7
      %v1130 = vsub.s32 4, %v1129
      %v1131 = vrot.slane %v485, %v1130
      %v1132 = vmul.f32 %v1071, %v534
      %v1133 = vmul.f32 %v1075, %v535
      %v1134 = vmul.f32 %v1079, %v536
      %v1135 = vmul.f32 %v1083, %v537
      %v1136 = vmul.f32 %v1087, %v538
      %v1137 = vmul.f32 %v1091, %v539
      %v1138 = vmul.f32 %v1095, %v540
      %v1139 = vmul.f32 %v1099, %v541
      %v1140 = vmul.f32 %v1103, %v542
      %v1141 = vmul.f32 %v1107, %v543
      %v1142 = vmul.f32 %v1111, %v544
      %v1143 = vmul.f32 %v1115, %v545
      %v1144 = vmul.f32 %v1119, %v546
      %v1145 = vmul.f32 %v1123, %v547
      %v1146 = vmul.f32 %v1127, %v548
      %v1147 = vmul.f32 %v1131, %v549
      %1148 = vrot.lane.b32.xlu0 %v534, 127
      %v1149 = vpop.permute.xlu0 %1148
      %1150 = vrot.lane.b32.xlu0 %v535, 127
      %v1151 = vpop.permute.xlu0 %1150
      %1152 = vrot.lane.b32.xlu0 %v536, 127
      %v1153 = vpop.permute.xlu0 %1152
      %1154 = vrot.lane.b32.xlu0 %v537, 127
      %v1155 = vpop.permute.xlu0 %1154
      %1156 = vrot.lane.b32.xlu0 %v538, 127
      %v1157 = vpop.permute.xlu0 %1156
      %1158 = vrot.lane.b32.xlu0 %v539, 127
      %v1159 = vpop.permute.xlu0 %1158
      %1160 = vrot.lane.b32.xlu0 %v540, 127
      %v1161 = vpop.permute.xlu0 %1160
      %1162 = vrot.lane.b32.xlu0 %v541, 127
      %v1163 = vpop.permute.xlu0 %1162
      %1164 = vrot.lane.b32.xlu0 %v542, 127
      %v1165 = vpop.permute.xlu0 %1164
      %1166 = vrot.lane.b32.xlu0 %v543, 127
      %v1167 = vpop.permute.xlu0 %1166
      %1168 = vrot.lane.b32.xlu0 %v544, 127
      %v1169 = vpop.permute.xlu0 %1168
      %1170 = vrot.lane.b32.xlu0 %v545, 127
      %v1171 = vpop.permute.xlu0 %1170
      %1172 = vrot.lane.b32.xlu0 %v546, 127
      %v1173 = vpop.permute.xlu0 %1172
      %1174 = vrot.lane.b32.xlu0 %v547, 127
      %v1175 = vpop.permute.xlu0 %1174
      %1176 = vrot.lane.b32.xlu0 %v548, 127
      %v1177 = vpop.permute.xlu0 %1176
      %1178 = vrot.lane.b32.xlu0 %v549, 127
      %v1179 = vpop.permute.xlu0 %1178
      %vm1180 = vcmp.lt.s32.totalorder %v583, 127
      %v1181 = vsel %vm1180, %v1177, %v1179
      %v1182 = vsel %vm1180, %v1175, %v1177
      %v1183 = vsel %vm1180, %v1173, %v1175
      %v1184 = vsel %vm1180, %v1171, %v1173
      %v1185 = vsel %vm1180, %v1169, %v1171
      %v1186 = vsel %vm1180, %v1167, %v1169
      %v1187 = vsel %vm1180, %v1165, %v1167
      %v1188 = vsel %vm1180, %v1163, %v1165
      %v1189 = vsel %vm1180, %v1161, %v1163
      %v1190 = vsel %vm1180, %v1159, %v1161
      %v1191 = vsel %vm1180, %v1157, %v1159
      %v1192 = vsel %vm1180, %v1155, %v1157
      %v1193 = vsel %vm1180, %v1153, %v1155
      %v1194 = vsel %vm1180, %v1151, %v1153
      %v1195 = vsel %vm1180, %v1149, %v1151
      %v1196 = vsel %vm1180, %v1179, %v1149
      %v1197 = vlaneseq
      %v1198 = vshrl.u32 %v1197, 7
      %v1199 = vsub.s32 5, %v1198
      %v1200 = vrot.slane %v470, %v1199
      %v1201 = vlaneseq
      %v1202 = vshrl.u32 %v1201, 7
      %v1203 = vsub.s32 5, %v1202
      %v1204 = vrot.slane %v471, %v1203
      %v1205 = vlaneseq
      %v1206 = vshrl.u32 %v1205, 7
      %v1207 = vsub.s32 5, %v1206
      %v1208 = vrot.slane %v472, %v1207
      %v1209 = vlaneseq
      %v1210 = vshrl.u32 %v1209, 7
      %v1211 = vsub.s32 5, %v1210
      %v1212 = vrot.slane %v473, %v1211
      %v1213 = vlaneseq
      %v1214 = vshrl.u32 %v1213, 7
      %v1215 = vsub.s32 5, %v1214
      %v1216 = vrot.slane %v474, %v1215
      %v1217 = vlaneseq
      %v1218 = vshrl.u32 %v1217, 7
      %v1219 = vsub.s32 5, %v1218
      %v1220 = vrot.slane %v475, %v1219
      %v1221 = vlaneseq
      %v1222 = vshrl.u32 %v1221, 7
      %v1223 = vsub.s32 5, %v1222
      %v1224 = vrot.slane %v476, %v1223
      %v1225 = vlaneseq
      %v1226 = vshrl.u32 %v1225, 7
      %v1227 = vsub.s32 5, %v1226
      %v1228 = vrot.slane %v477, %v1227
      %v1229 = vlaneseq
      %v1230 = vshrl.u32 %v1229, 7
      %v1231 = vsub.s32 5, %v1230
      %v1232 = vrot.slane %v478, %v1231
      %v1233 = vlaneseq
      %v1234 = vshrl.u32 %v1233, 7
      %v1235 = vsub.s32 5, %v1234
      %v1236 = vrot.slane %v479, %v1235
      %v1237 = vlaneseq
      %v1238 = vshrl.u32 %v1237, 7
      %v1239 = vsub.s32 5, %v1238
      %v1240 = vrot.slane %v480, %v1239
      %v1241 = vlaneseq
      %v1242 = vshrl.u32 %v1241, 7
      %v1243 = vsub.s32 5, %v1242
      %v1244 = vrot.slane %v481, %v1243
      %v1245 = vlaneseq
      %v1246 = vshrl.u32 %v1245, 7
      %v1247 = vsub.s32 5, %v1246
      %v1248 = vrot.slane %v482, %v1247
      %v1249 = vlaneseq
      %v1250 = vshrl.u32 %v1249, 7
      %v1251 = vsub.s32 5, %v1250
      %v1252 = vrot.slane %v483, %v1251
      %v1253 = vlaneseq
      %v1254 = vshrl.u32 %v1253, 7
      %v1255 = vsub.s32 5, %v1254
      %v1256 = vrot.slane %v484, %v1255
      %v1257 = vlaneseq
      %v1258 = vshrl.u32 %v1257, 7
      %v1259 = vsub.s32 5, %v1258
      %v1260 = vrot.slane %v485, %v1259
      %v1261 = vmul.f32 %v1200, %v1195
      %v1262 = vmul.f32 %v1204, %v1194
      %v1263 = vmul.f32 %v1208, %v1193
      %v1264 = vmul.f32 %v1212, %v1192
      %v1265 = vmul.f32 %v1216, %v1191
      %v1266 = vmul.f32 %v1220, %v1190
      %v1267 = vmul.f32 %v1224, %v1189
      %v1268 = vmul.f32 %v1228, %v1188
      %v1269 = vmul.f32 %v1232, %v1187
      %v1270 = vmul.f32 %v1236, %v1186
      %v1271 = vmul.f32 %v1240, %v1185
      %v1272 = vmul.f32 %v1244, %v1184
      %v1273 = vmul.f32 %v1248, %v1183
      %v1274 = vmul.f32 %v1252, %v1182
      %v1275 = vmul.f32 %v1256, %v1181
      %v1276 = vmul.f32 %v1260, %v1196
      %1277 = vrot.lane.b32.xlu0 %v534, 113
      %v1278 = vpop.permute.xlu0 %1277
      %1279 = vrot.lane.b32.xlu0 %v535, 113
      %v1280 = vpop.permute.xlu0 %1279
      %1281 = vrot.lane.b32.xlu0 %v536, 113
      %v1282 = vpop.permute.xlu0 %1281
      %1283 = vrot.lane.b32.xlu0 %v537, 113
      %v1284 = vpop.permute.xlu0 %1283
      %1285 = vrot.lane.b32.xlu0 %v538, 113
      %v1286 = vpop.permute.xlu0 %1285
      %1287 = vrot.lane.b32.xlu0 %v539, 113
      %v1288 = vpop.permute.xlu0 %1287
      %1289 = vrot.lane.b32.xlu0 %v540, 113
      %v1290 = vpop.permute.xlu0 %1289
      %1291 = vrot.lane.b32.xlu0 %v541, 113
      %v1292 = vpop.permute.xlu0 %1291
      %1293 = vrot.lane.b32.xlu0 %v542, 113
      %v1294 = vpop.permute.xlu0 %1293
      %1295 = vrot.lane.b32.xlu0 %v543, 113
      %v1296 = vpop.permute.xlu0 %1295
      %1297 = vrot.lane.b32.xlu0 %v544, 113
      %v1298 = vpop.permute.xlu0 %1297
      %1299 = vrot.lane.b32.xlu0 %v545, 113
      %v1300 = vpop.permute.xlu0 %1299
      %1301 = vrot.lane.b32.xlu0 %v546, 113
      %v1302 = vpop.permute.xlu0 %1301
      %1303 = vrot.lane.b32.xlu0 %v547, 113
      %v1304 = vpop.permute.xlu0 %1303
      %1305 = vrot.lane.b32.xlu0 %v548, 113
      %v1306 = vpop.permute.xlu0 %1305
      %1307 = vrot.lane.b32.xlu0 %v549, 113
      %v1308 = vpop.permute.xlu0 %1307
      %vm1309 = vcmp.lt.s32.totalorder %v583, 113
      %v1310 = vsel %vm1309, %v1306, %v1308
      %v1311 = vsel %vm1309, %v1304, %v1306
      %v1312 = vsel %vm1309, %v1302, %v1304
      %v1313 = vsel %vm1309, %v1300, %v1302
      %v1314 = vsel %vm1309, %v1298, %v1300
      %v1315 = vsel %vm1309, %v1296, %v1298
      %v1316 = vsel %vm1309, %v1294, %v1296
      %v1317 = vsel %vm1309, %v1292, %v1294
      %v1318 = vsel %vm1309, %v1290, %v1292
      %v1319 = vsel %vm1309, %v1288, %v1290
      %v1320 = vsel %vm1309, %v1286, %v1288
      %v1321 = vsel %vm1309, %v1284, %v1286
      %v1322 = vsel %vm1309, %v1282, %v1284
      %v1323 = vsel %vm1309, %v1280, %v1282
      %v1324 = vsel %vm1309, %v1278, %v1280
      %v1325 = vsel %vm1309, %v1308, %v1278
      %v1326 = vlaneseq
      %v1327 = vshrl.u32 %v1326, 7
      %v1328 = vsub.s32 6, %v1327
      %v1329 = vrot.slane %v470, %v1328
      %v1330 = vlaneseq
      %v1331 = vshrl.u32 %v1330, 7
      %v1332 = vsub.s32 6, %v1331
      %v1333 = vrot.slane %v471, %v1332
      %v1334 = vlaneseq
      %v1335 = vshrl.u32 %v1334, 7
      %v1336 = vsub.s32 6, %v1335
      %v1337 = vrot.slane %v472, %v1336
      %v1338 = vlaneseq
      %v1339 = vshrl.u32 %v1338, 7
      %v1340 = vsub.s32 6, %v1339
      %v1341 = vrot.slane %v473, %v1340
      %v1342 = vlaneseq
      %v1343 = vshrl.u32 %v1342, 7
      %v1344 = vsub.s32 6, %v1343
      %v1345 = vrot.slane %v474, %v1344
      %v1346 = vlaneseq
      %v1347 = vshrl.u32 %v1346, 7
      %v1348 = vsub.s32 6, %v1347
      %v1349 = vrot.slane %v475, %v1348
      %v1350 = vlaneseq
      %v1351 = vshrl.u32 %v1350, 7
      %v1352 = vsub.s32 6, %v1351
      %v1353 = vrot.slane %v476, %v1352
      %v1354 = vlaneseq
      %v1355 = vshrl.u32 %v1354, 7
      %v1356 = vsub.s32 6, %v1355
      %v1357 = vrot.slane %v477, %v1356
      %v1358 = vlaneseq
      %v1359 = vshrl.u32 %v1358, 7
      %v1360 = vsub.s32 6, %v1359
      %v1361 = vrot.slane %v478, %v1360
      %v1362 = vlaneseq
      %v1363 = vshrl.u32 %v1362, 7
      %v1364 = vsub.s32 6, %v1363
      %v1365 = vrot.slane %v479, %v1364
      %v1366 = vlaneseq
      %v1367 = vshrl.u32 %v1366, 7
      %v1368 = vsub.s32 6, %v1367
      %v1369 = vrot.slane %v480, %v1368
      %v1370 = vlaneseq
      %v1371 = vshrl.u32 %v1370, 7
      %v1372 = vsub.s32 6, %v1371
      %v1373 = vrot.slane %v481, %v1372
      %v1374 = vlaneseq
      %v1375 = vshrl.u32 %v1374, 7
      %v1376 = vsub.s32 6, %v1375
      %v1377 = vrot.slane %v482, %v1376
      %v1378 = vlaneseq
      %v1379 = vshrl.u32 %v1378, 7
      %v1380 = vsub.s32 6, %v1379
      %v1381 = vrot.slane %v483, %v1380
      %v1382 = vlaneseq
      %v1383 = vshrl.u32 %v1382, 7
      %v1384 = vsub.s32 6, %v1383
      %v1385 = vrot.slane %v484, %v1384
      %v1386 = vlaneseq
      %v1387 = vshrl.u32 %v1386, 7
      %v1388 = vsub.s32 6, %v1387
      %v1389 = vrot.slane %v485, %v1388
      %v1390 = vmul.f32 %v1329, %v1324
      %v1391 = vmul.f32 %v1333, %v1323
      %v1392 = vmul.f32 %v1337, %v1322
      %v1393 = vmul.f32 %v1341, %v1321
      %v1394 = vmul.f32 %v1345, %v1320
      %v1395 = vmul.f32 %v1349, %v1319
      %v1396 = vmul.f32 %v1353, %v1318
      %v1397 = vmul.f32 %v1357, %v1317
      %v1398 = vmul.f32 %v1361, %v1316
      %v1399 = vmul.f32 %v1365, %v1315
      %v1400 = vmul.f32 %v1369, %v1314
      %v1401 = vmul.f32 %v1373, %v1313
      %v1402 = vmul.f32 %v1377, %v1312
      %v1403 = vmul.f32 %v1381, %v1311
      %v1404 = vmul.f32 %v1385, %v1310
      %v1405 = vmul.f32 %v1389, %v1325
      %1406 = vrot.lane.b32.xlu0 %v534, 112
      %v1407 = vpop.permute.xlu0 %1406
      %1408 = vrot.lane.b32.xlu0 %v535, 112
      %v1409 = vpop.permute.xlu0 %1408
      %1410 = vrot.lane.b32.xlu0 %v536, 112
      %v1411 = vpop.permute.xlu0 %1410
      %1412 = vrot.lane.b32.xlu0 %v537, 112
      %v1413 = vpop.permute.xlu0 %1412
      %1414 = vrot.lane.b32.xlu0 %v538, 112
      %v1415 = vpop.permute.xlu0 %1414
      %1416 = vrot.lane.b32.xlu0 %v539, 112
      %v1417 = vpop.permute.xlu0 %1416
      %1418 = vrot.lane.b32.xlu0 %v540, 112
      %v1419 = vpop.permute.xlu0 %1418
      %1420 = vrot.lane.b32.xlu0 %v541, 112
      %v1421 = vpop.permute.xlu0 %1420
      %1422 = vrot.lane.b32.xlu0 %v542, 112
      %v1423 = vpop.permute.xlu0 %1422
      %1424 = vrot.lane.b32.xlu0 %v543, 112
      %v1425 = vpop.permute.xlu0 %1424
      %1426 = vrot.lane.b32.xlu0 %v544, 112
      %v1427 = vpop.permute.xlu0 %1426
      %1428 = vrot.lane.b32.xlu0 %v545, 112
      %v1429 = vpop.permute.xlu0 %1428
      %1430 = vrot.lane.b32.xlu0 %v546, 112
      %v1431 = vpop.permute.xlu0 %1430
      %1432 = vrot.lane.b32.xlu0 %v547, 112
      %v1433 = vpop.permute.xlu0 %1432
      %1434 = vrot.lane.b32.xlu0 %v548, 112
      %v1435 = vpop.permute.xlu0 %1434
      %1436 = vrot.lane.b32.xlu0 %v549, 112
      %v1437 = vpop.permute.xlu0 %1436
      %vm1438 = vcmp.lt.s32.totalorder %v583, 112
      %v1439 = vsel %vm1438, %v1435, %v1437
      %v1440 = vsel %vm1438, %v1433, %v1435
      %v1441 = vsel %vm1438, %v1431, %v1433
      %v1442 = vsel %vm1438, %v1429, %v1431
      %v1443 = vsel %vm1438, %v1427, %v1429
      %v1444 = vsel %vm1438, %v1425, %v1427
      %v1445 = vsel %vm1438, %v1423, %v1425
      %v1446 = vsel %vm1438, %v1421, %v1423
      %v1447 = vsel %vm1438, %v1419, %v1421
      %v1448 = vsel %vm1438, %v1417, %v1419
      %v1449 = vsel %vm1438, %v1415, %v1417
      %v1450 = vsel %vm1438, %v1413, %v1415
      %v1451 = vsel %vm1438, %v1411, %v1413
      %v1452 = vsel %vm1438, %v1409, %v1411
      %v1453 = vsel %vm1438, %v1407, %v1409
      %v1454 = vsel %vm1438, %v1437, %v1407
      %v1455 = vlaneseq
      %v1456 = vshrl.u32 %v1455, 7
      %v1457 = vsub.s32 7, %v1456
      %v1458 = vrot.slane %v470, %v1457
      %v1459 = vlaneseq
      %v1460 = vshrl.u32 %v1459, 7
      %v1461 = vsub.s32 7, %v1460
      %v1462 = vrot.slane %v471, %v1461
      %v1463 = vlaneseq
      %v1464 = vshrl.u32 %v1463, 7
      %v1465 = vsub.s32 7, %v1464
      %v1466 = vrot.slane %v472, %v1465
      %v1467 = vlaneseq
      %v1468 = vshrl.u32 %v1467, 7
      %v1469 = vsub.s32 7, %v1468
      %v1470 = vrot.slane %v473, %v1469
      %v1471 = vlaneseq
      %v1472 = vshrl.u32 %v1471, 7
      %v1473 = vsub.s32 7, %v1472
      %v1474 = vrot.slane %v474, %v1473
      %v1475 = vlaneseq
      %v1476 = vshrl.u32 %v1475, 7
      %v1477 = vsub.s32 7, %v1476
      %v1478 = vrot.slane %v475, %v1477
      %v1479 = vlaneseq
      %v1480 = vshrl.u32 %v1479, 7
      %v1481 = vsub.s32 7, %v1480
      %v1482 = vrot.slane %v476, %v1481
      %v1483 = vlaneseq
      %v1484 = vshrl.u32 %v1483, 7
      %v1485 = vsub.s32 7, %v1484
      %v1486 = vrot.slane %v477, %v1485
      %v1487 = vlaneseq
      %v1488 = vshrl.u32 %v1487, 7
      %v1489 = vsub.s32 7, %v1488
      %v1490 = vrot.slane %v478, %v1489
      %v1491 = vlaneseq
      %v1492 = vshrl.u32 %v1491, 7
      %v1493 = vsub.s32 7, %v1492
      %v1494 = vrot.slane %v479, %v1493
      %v1495 = vlaneseq
      %v1496 = vshrl.u32 %v1495, 7
      %v1497 = vsub.s32 7, %v1496
      %v1498 = vrot.slane %v480, %v1497
      %v1499 = vlaneseq
      %v1500 = vshrl.u32 %v1499, 7
      %v1501 = vsub.s32 7, %v1500
      %v1502 = vrot.slane %v481, %v1501
      %v1503 = vlaneseq
      %v1504 = vshrl.u32 %v1503, 7
      %v1505 = vsub.s32 7, %v1504
      %v1506 = vrot.slane %v482, %v1505
      %v1507 = vlaneseq
      %v1508 = vshrl.u32 %v1507, 7
      %v1509 = vsub.s32 7, %v1508
      %v1510 = vrot.slane %v483, %v1509
      %v1511 = vlaneseq
      %v1512 = vshrl.u32 %v1511, 7
      %v1513 = vsub.s32 7, %v1512
      %v1514 = vrot.slane %v484, %v1513
      %v1515 = vlaneseq
      %v1516 = vshrl.u32 %v1515, 7
      %v1517 = vsub.s32 7, %v1516
      %v1518 = vrot.slane %v485, %v1517
      %v1519 = vmul.f32 %v1458, %v1453
      %v1520 = vmul.f32 %v1462, %v1452
      %v1521 = vmul.f32 %v1466, %v1451
      %v1522 = vmul.f32 %v1470, %v1450
      %v1523 = vmul.f32 %v1474, %v1449
      %v1524 = vmul.f32 %v1478, %v1448
      %v1525 = vmul.f32 %v1482, %v1447
      %v1526 = vmul.f32 %v1486, %v1446
      %v1527 = vmul.f32 %v1490, %v1445
      %v1528 = vmul.f32 %v1494, %v1444
      %v1529 = vmul.f32 %v1498, %v1443
      %v1530 = vmul.f32 %v1502, %v1442
      %v1531 = vmul.f32 %v1506, %v1441
      %v1532 = vmul.f32 %v1510, %v1440
      %v1533 = vmul.f32 %v1514, %v1439
      %v1534 = vmul.f32 %v1518, %v1454
      %1535 = vrot.lane.b32.xlu0 %v534, 111
      %v1536 = vpop.permute.xlu0 %1535
      %1537 = vrot.lane.b32.xlu0 %v535, 111
      %v1538 = vpop.permute.xlu0 %1537
      %1539 = vrot.lane.b32.xlu0 %v536, 111
      %v1540 = vpop.permute.xlu0 %1539
      %1541 = vrot.lane.b32.xlu0 %v537, 111
      %v1542 = vpop.permute.xlu0 %1541
      %1543 = vrot.lane.b32.xlu0 %v538, 111
      %v1544 = vpop.permute.xlu0 %1543
      %1545 = vrot.lane.b32.xlu0 %v539, 111
      %v1546 = vpop.permute.xlu0 %1545
      %1547 = vrot.lane.b32.xlu0 %v540, 111
      %v1548 = vpop.permute.xlu0 %1547
      %1549 = vrot.lane.b32.xlu0 %v541, 111
      %v1550 = vpop.permute.xlu0 %1549
      %1551 = vrot.lane.b32.xlu0 %v542, 111
      %v1552 = vpop.permute.xlu0 %1551
      %1553 = vrot.lane.b32.xlu0 %v543, 111
      %v1554 = vpop.permute.xlu0 %1553
      %1555 = vrot.lane.b32.xlu0 %v544, 111
      %v1556 = vpop.permute.xlu0 %1555
      %1557 = vrot.lane.b32.xlu0 %v545, 111
      %v1558 = vpop.permute.xlu0 %1557
      %1559 = vrot.lane.b32.xlu0 %v546, 111
      %v1560 = vpop.permute.xlu0 %1559
      %1561 = vrot.lane.b32.xlu0 %v547, 111
      %v1562 = vpop.permute.xlu0 %1561
      %1563 = vrot.lane.b32.xlu0 %v548, 111
      %v1564 = vpop.permute.xlu0 %1563
      %1565 = vrot.lane.b32.xlu0 %v549, 111
      %v1566 = vpop.permute.xlu0 %1565
      %vm1567 = vcmp.lt.s32.totalorder %v583, 111
      %v1568 = vsel %vm1567, %v1564, %v1566
      %v1569 = vsel %vm1567, %v1562, %v1564
      %v1570 = vsel %vm1567, %v1560, %v1562
      %v1571 = vsel %vm1567, %v1558, %v1560
      %v1572 = vsel %vm1567, %v1556, %v1558
      %v1573 = vsel %vm1567, %v1554, %v1556
      %v1574 = vsel %vm1567, %v1552, %v1554
      %v1575 = vsel %vm1567, %v1550, %v1552
      %v1576 = vsel %vm1567, %v1548, %v1550
      %v1577 = vsel %vm1567, %v1546, %v1548
      %v1578 = vsel %vm1567, %v1544, %v1546
      %v1579 = vsel %vm1567, %v1542, %v1544
      %v1580 = vsel %vm1567, %v1540, %v1542
      %v1581 = vsel %vm1567, %v1538, %v1540
      %v1582 = vsel %vm1567, %v1536, %v1538
      %v1583 = vsel %vm1567, %v1566, %v1536
      %v1584 = vlaneseq
      %v1585 = vshrl.u32 %v1584, 7
      %v1586 = vsub.s32 0, %v1585
      %v1587 = vrot.slane %v486, %v1586
      %v1588 = vlaneseq
      %v1589 = vshrl.u32 %v1588, 7
      %v1590 = vsub.s32 0, %v1589
      %v1591 = vrot.slane %v487, %v1590
      %v1592 = vlaneseq
      %v1593 = vshrl.u32 %v1592, 7
      %v1594 = vsub.s32 0, %v1593
      %v1595 = vrot.slane %v488, %v1594
      %v1596 = vlaneseq
      %v1597 = vshrl.u32 %v1596, 7
      %v1598 = vsub.s32 0, %v1597
      %v1599 = vrot.slane %v489, %v1598
      %v1600 = vlaneseq
      %v1601 = vshrl.u32 %v1600, 7
      %v1602 = vsub.s32 0, %v1601
      %v1603 = vrot.slane %v490, %v1602
      %v1604 = vlaneseq
      %v1605 = vshrl.u32 %v1604, 7
      %v1606 = vsub.s32 0, %v1605
      %v1607 = vrot.slane %v491, %v1606
      %v1608 = vlaneseq
      %v1609 = vshrl.u32 %v1608, 7
      %v1610 = vsub.s32 0, %v1609
      %v1611 = vrot.slane %v492, %v1610
      %v1612 = vlaneseq
      %v1613 = vshrl.u32 %v1612, 7
      %v1614 = vsub.s32 0, %v1613
      %v1615 = vrot.slane %v493, %v1614
      %v1616 = vlaneseq
      %v1617 = vshrl.u32 %v1616, 7
      %v1618 = vsub.s32 0, %v1617
      %v1619 = vrot.slane %v494, %v1618
      %v1620 = vlaneseq
      %v1621 = vshrl.u32 %v1620, 7
      %v1622 = vsub.s32 0, %v1621
      %v1623 = vrot.slane %v495, %v1622
      %v1624 = vlaneseq
      %v1625 = vshrl.u32 %v1624, 7
      %v1626 = vsub.s32 0, %v1625
      %v1627 = vrot.slane %v496, %v1626
      %v1628 = vlaneseq
      %v1629 = vshrl.u32 %v1628, 7
      %v1630 = vsub.s32 0, %v1629
      %v1631 = vrot.slane %v497, %v1630
      %v1632 = vlaneseq
      %v1633 = vshrl.u32 %v1632, 7
      %v1634 = vsub.s32 0, %v1633
      %v1635 = vrot.slane %v498, %v1634
      %v1636 = vlaneseq
      %v1637 = vshrl.u32 %v1636, 7
      %v1638 = vsub.s32 0, %v1637
      %v1639 = vrot.slane %v499, %v1638
      %v1640 = vlaneseq
      %v1641 = vshrl.u32 %v1640, 7
      %v1642 = vsub.s32 0, %v1641
      %v1643 = vrot.slane %v500, %v1642
      %v1644 = vlaneseq
      %v1645 = vshrl.u32 %v1644, 7
      %v1646 = vsub.s32 0, %v1645
      %v1647 = vrot.slane %v501, %v1646
      %v1648 = vmul.f32 %v1587, %v1582
      %v1649 = vmul.f32 %v1591, %v1581
      %v1650 = vmul.f32 %v1595, %v1580
      %v1651 = vmul.f32 %v1599, %v1579
      %v1652 = vmul.f32 %v1603, %v1578
      %v1653 = vmul.f32 %v1607, %v1577
      %v1654 = vmul.f32 %v1611, %v1576
      %v1655 = vmul.f32 %v1615, %v1575
      %v1656 = vmul.f32 %v1619, %v1574
      %v1657 = vmul.f32 %v1623, %v1573
      %v1658 = vmul.f32 %v1627, %v1572
      %v1659 = vmul.f32 %v1631, %v1571
      %v1660 = vmul.f32 %v1635, %v1570
      %v1661 = vmul.f32 %v1639, %v1569
      %v1662 = vmul.f32 %v1643, %v1568
      %v1663 = vmul.f32 %v1647, %v1583
      %v1664 = vld [vmem:[%s3] sm:$0xff]
      %v1665 = vld [vmem:[%s4] sm:$0xff]
      %1667 = vset.pattern.permute.xlu0 0
      %1668 = vperm.xlu0 %1667, %v1665
      %v1669 = vpop.permute.xlu0 %1668
      %vm1671 = vcmask 588800
      %v1673 = vsel %vm1671, %v1664, 0
      %1675 = vmatprep.subr.mxu0 %v666
      %1676 = vmatpush1.msra.mxu0 %v665
      %1677 = vmatprep.subr.mxu0 %v795
      %1678 = vmatpush1.msra.mxu0 %v794
      %1679 = vmatprep.subr.mxu0 %v924
      %1680 = vmatpush1.msra.mxu0 %v923
      %1681 = vmatprep.subr.mxu0 %v1053
      %1682 = vmatpush1.msra.mxu0 %v1052
      %1683 = vmatprep.subr.mxu0 %v1133
      %1684 = vmatpush1.msra.mxu0 %v1132
      %1685 = vmatprep.subr.mxu0 %v1262
      %1686 = vmatpush1.msra.mxu0 %v1261
      %1687 = vmatprep.subr.mxu0 %v1391
      %1688 = vmatpush1.msra.mxu0 %v1390
      %1689 = vmatprep.subr.mxu0 %v1520
      %1690 = vmatpush1.msra.mxu0 %v1519
      %1691 = vmatprep.subr.mxu0 %v1649
      %1692 = vmatpush1.msra.mxu0 %v1648
      %1693 = vmatprep.subr.mxu0 0.0
      %1694 = vmatpush1.msra.mxu0 0.0
      %1695 = vmatprep.subr.mxu0 0.0
      %1696 = vmatpush1.msra.mxu0 0.0
      %1697 = vmatprep.subr.mxu0 0.0
      %1698 = vmatpush1.msra.mxu0 0.0
      %1699 = vmatprep.subr.mxu0 0.0
      %1700 = vmatpush1.msra.mxu0 0.0
      %1701 = vmatprep.subr.mxu0 0.0
      %1702 = vmatpush1.msra.mxu0 0.0
      %1703 = vmatprep.subr.mxu0 0.0
      %1704 = vmatpush1.msra.mxu0 0.0
      %1705 = vmatprep.subr.mxu0 0.0
      %1706 = vmatpush1.msra.mxu0 0.0
      %1707 = vmatprep.subr.mxu0 0.0
      %1708 = vmatpush1.msra.mxu0 0.0
      %1709 = vmatprep.subr.mxu0 0.0
      %1710 = vmatpush1.msra.mxu0 0.0
      %1711 = vmatprep.subr.mxu0 0.0
      %1712 = vmatpush1.msra.mxu0 0.0
      %1713 = vmatprep.subr.mxu0 0.0
      %1714 = vmatpush1.msra.mxu0 0.0
      %1715 = vmatprep.subr.mxu0 0.0
      %1716 = vmatpush1.msra.mxu0 0.0
      %1717 = vmatprep.subr.mxu0 0.0
      %1718 = vmatpush1.msra.mxu0 0.0
      %1719 = vmatprep.subr.mxu0 0.0
      %1720 = vmatpush1.msra.mxu0 0.0
      %1721 = vmatprep.subr.mxu0 0.0
      %1722 = vmatpush1.msra.mxu0 0.0
      %1723 = vmatprep.subr.mxu0 0.0
      %1724 = vmatpush1.msra.mxu0 0.0
      %1725 = vmatprep.subr.mxu0 0.0
      %1726 = vmatpush1.msra.mxu0 0.0
      %1727 = vmatprep.subr.mxu0 0.0
      %1728 = vmatpush1.msra.mxu0 0.0
      %1729 = vmatprep.subr.mxu0 0.0
      %1730 = vmatpush1.msra.mxu0 0.0
      %1731 = vmatprep.subr.mxu0 0.0
      %1732 = vmatpush1.msra.mxu0 0.0
      %1733 = vmatprep.subr.mxu0 0.0
      %1734 = vmatpush1.msra.mxu0 0.0
      %1735 = vmatprep.subr.mxu0 0.0
      %1736 = vmatpush1.msra.mxu0 0.0
      %1737 = vmatprep.subr.mxu0 0.0
      %1738 = vmatpush1.msra.mxu0 0.0
      %1739 = vmatprep.mubr.f32.mxu0 0.0
      %1740 = vmatmul.mubr.f32.gmra.mrb[0].mxu0 %v1673
      %v1741 = vpop.f32.mrb[0].mxu0
      %v1742 = vadd.f32 %v1669, %v1741
      %v1743 = vpop.f32.mrb[0].mxu0
      %v1744 = vadd.f32 %v1669, %v1743
      %1745 = vdwg.mxu0
      %1746 = vmatprep.subr.mxu0 %v668
      %1747 = vmatpush1.msra.mxu0 %v667
      %1748 = vmatprep.subr.mxu0 %v797
      %1749 = vmatpush1.msra.mxu0 %v796
      %1750 = vmatprep.subr.mxu0 %v926
      %1751 = vmatpush1.msra.mxu0 %v925
      %1752 = vmatprep.subr.mxu0 %v1055
      %1753 = vmatpush1.msra.mxu0 %v1054
      %1754 = vmatprep.subr.mxu0 %v1135
      %1755 = vmatpush1.msra.mxu0 %v1134
      %1756 = vmatprep.subr.mxu0 %v1264
      %1757 = vmatpush1.msra.mxu0 %v1263
      %1758 = vmatprep.subr.mxu0 %v1393
      %1759 = vmatpush1.msra.mxu0 %v1392
      %1760 = vmatprep.subr.mxu0 %v1522
      %1761 = vmatpush1.msra.mxu0 %v1521
      %1762 = vmatprep.subr.mxu0 %v1651
      %1763 = vmatpush1.msra.mxu0 %v1650
      %1764 = vmatprep.subr.mxu0 0.0
      %1765 = vmatpush1.msra.mxu0 0.0
      %1766 = vmatprep.subr.mxu0 0.0
      %1767 = vmatpush1.msra.mxu0 0.0
      %1768 = vmatprep.subr.mxu0 0.0
      %1769 = vmatpush1.msra.mxu0 0.0
      %1770 = vmatprep.subr.mxu0 0.0
      %1771 = vmatpush1.msra.mxu0 0.0
      %1772 = vmatprep.subr.mxu0 0.0
      %1773 = vmatpush1.msra.mxu0 0.0
      %1774 = vmatprep.subr.mxu0 0.0
      %1775 = vmatpush1.msra.mxu0 0.0
      %1776 = vmatprep.subr.mxu0 0.0
      %1777 = vmatpush1.msra.mxu0 0.0
      %1778 = vmatprep.subr.mxu0 0.0
      %1779 = vmatpush1.msra.mxu0 0.0
      %1780 = vmatprep.subr.mxu0 0.0
      %1781 = vmatpush1.msra.mxu0 0.0
      %1782 = vmatprep.subr.mxu0 0.0
      %1783 = vmatpush1.msra.mxu0 0.0
      %1784 = vmatprep.subr.mxu0 0.0
      %1785 = vmatpush1.msra.mxu0 0.0
      %1786 = vmatprep.subr.mxu0 0.0
      %1787 = vmatpush1.msra.mxu0 0.0
      %1788 = vmatprep.subr.mxu0 0.0
      %1789 = vmatpush1.msra.mxu0 0.0
      %1790 = vmatprep.subr.mxu0 0.0
      %1791 = vmatpush1.msra.mxu0 0.0
      %1792 = vmatprep.subr.mxu0 0.0
      %1793 = vmatpush1.msra.mxu0 0.0
      %1794 = vmatprep.subr.mxu0 0.0
      %1795 = vmatpush1.msra.mxu0 0.0
      %1796 = vmatprep.subr.mxu0 0.0
      %1797 = vmatpush1.msra.mxu0 0.0
      %1798 = vmatprep.subr.mxu0 0.0
      %1799 = vmatpush1.msra.mxu0 0.0
      %1800 = vmatprep.subr.mxu0 0.0
      %1801 = vmatpush1.msra.mxu0 0.0
      %1802 = vmatprep.subr.mxu0 0.0
      %1803 = vmatpush1.msra.mxu0 0.0
      %1804 = vmatprep.subr.mxu0 0.0
      %1805 = vmatpush1.msra.mxu0 0.0
      %1806 = vmatprep.subr.mxu0 0.0
      %1807 = vmatpush1.msra.mxu0 0.0
      %1808 = vmatprep.subr.mxu0 0.0
      %1809 = vmatpush1.msra.mxu0 0.0
      %1810 = vmatprep.mubr.f32.mxu0 0.0
      %1811 = vmatmul.mubr.f32.gmra.mrb[0].mxu0 %v1673
      %v1812 = vpop.f32.mrb[0].mxu0
      %v1813 = vadd.f32 %v1669, %v1812
      %v1814 = vpop.f32.mrb[0].mxu0
      %v1815 = vadd.f32 %v1669, %v1814
      %1816 = vdwg.mxu0
      %1817 = vmatprep.subr.mxu0 %v670
      %1818 = vmatpush1.msra.mxu0 %v669
      %1819 = vmatprep.subr.mxu0 %v799
      %1820 = vmatpush1.msra.mxu0 %v798
      %1821 = vmatprep.subr.mxu0 %v928
      %1822 = vmatpush1.msra.mxu0 %v927
      %1823 = vmatprep.subr.mxu0 %v1057
      %1824 = vmatpush1.msra.mxu0 %v1056
      %1825 = vmatprep.subr.mxu0 %v1137
      %1826 = vmatpush1.msra.mxu0 %v1136
      %1827 = vmatprep.subr.mxu0 %v1266
      %1828 = vmatpush1.msra.mxu0 %v1265
      %1829 = vmatprep.subr.mxu0 %v1395
      %1830 = vmatpush1.msra.mxu0 %v1394
      %1831 = vmatprep.subr.mxu0 %v1524
      %1832 = vmatpush1.msra.mxu0 %v1523
      %1833 = vmatprep.subr.mxu0 %v1653
      %1834 = vmatpush1.msra.mxu0 %v1652
      %1835 = vmatprep.subr.mxu0 0.0
      %1836 = vmatpush1.msra.mxu0 0.0
      %1837 = vmatprep.subr.mxu0 0.0
      %1838 = vmatpush1.msra.mxu0 0.0
      %1839 = vmatprep.subr.mxu0 0.0
      %1840 = vmatpush1.msra.mxu0 0.0
      %1841 = vmatprep.subr.mxu0 0.0
      %1842 = vmatpush1.msra.mxu0 0.0
      %1843 = vmatprep.subr.mxu0 0.0
      %1844 = vmatpush1.msra.mxu0 0.0
      %1845 = vmatprep.subr.mxu0 0.0
      %1846 = vmatpush1.msra.mxu0 0.0
      %1847 = vmatprep.subr.mxu0 0.0
      %1848 = vmatpush1.msra.mxu0 0.0
      %1849 = vmatprep.subr.mxu0 0.0
      %1850 = vmatpush1.msra.mxu0 0.0
      %1851 = vmatprep.subr.mxu0 0.0
      %1852 = vmatpush1.msra.mxu0 0.0
      %1853 = vmatprep.subr.mxu0 0.0
      %1854 = vmatpush1.msra.mxu0 0.0
      %1855 = vmatprep.subr.mxu0 0.0
      %1856 = vmatpush1.msra.mxu0 0.0
      %1857 = vmatprep.subr.mxu0 0.0
      %1858 = vmatpush1.msra.mxu0 0.0
      %1859 = vmatprep.subr.mxu0 0.0
      %1860 = vmatpush1.msra.mxu0 0.0
      %1861 = vmatprep.subr.mxu0 0.0
      %1862 = vmatpush1.msra.mxu0 0.0
      %1863 = vmatprep.subr.mxu0 0.0
      %1864 = vmatpush1.msra.mxu0 0.0
      %1865 = vmatprep.subr.mxu0 0.0
      %1866 = vmatpush1.msra.mxu0 0.0
      %1867 = vmatprep.subr.mxu0 0.0
      %1868 = vmatpush1.msra.mxu0 0.0
      %1869 = vmatprep.subr.mxu0 0.0
      %1870 = vmatpush1.msra.mxu0 0.0
      %1871 = vmatprep.subr.mxu0 0.0
      %1872 = vmatpush1.msra.mxu0 0.0
      %1873 = vmatprep.subr.mxu0 0.0
      %1874 = vmatpush1.msra.mxu0 0.0
      %1875 = vmatprep.subr.mxu0 0.0
      %1876 = vmatpush1.msra.mxu0 0.0
      %1877 = vmatprep.subr.mxu0 0.0
      %1878 = vmatpush1.msra.mxu0 0.0
      %1879 = vmatprep.subr.mxu0 0.0
      %1880 = vmatpush1.msra.mxu0 0.0
      %1881 = vmatprep.mubr.f32.mxu0 0.0
      %1882 = vmatmul.mubr.f32.gmra.mrb[0].mxu0 %v1673
      %v1883 = vpop.f32.mrb[0].mxu0
      %v1884 = vadd.f32 %v1669, %v1883
      %v1885 = vpop.f32.mrb[0].mxu0
      %v1886 = vadd.f32 %v1669, %v1885
      %1887 = vdwg.mxu0
      %1888 = vmatprep.subr.mxu0 %v672
      %1889 = vmatpush1.msra.mxu0 %v671
      %1890 = vmatprep.subr.mxu0 %v801
      %1891 = vmatpush1.msra.mxu0 %v800
      %1892 = vmatprep.subr.mxu0 %v930
      %1893 = vmatpush1.msra.mxu0 %v929
      %1894 = vmatprep.subr.mxu0 %v1059
      %1895 = vmatpush1.msra.mxu0 %v1058
      %1896 = vmatprep.subr.mxu0 %v1139
      %1897 = vmatpush1.msra.mxu0 %v1138
      %1898 = vmatprep.subr.mxu0 %v1268
      %1899 = vmatpush1.msra.mxu0 %v1267
      %1900 = vmatprep.subr.mxu0 %v1397
      %1901 = vmatpush1.msra.mxu0 %v1396
      %1902 = vmatprep.subr.mxu0 %v1526
      %1903 = vmatpush1.msra.mxu0 %v1525
      %1904 = vmatprep.subr.mxu0 %v1655
      %1905 = vmatpush1.msra.mxu0 %v1654
      %1906 = vmatprep.subr.mxu0 0.0
      %1907 = vmatpush1.msra.mxu0 0.0
      %1908 = vmatprep.subr.mxu0 0.0
      %1909 = vmatpush1.msra.mxu0 0.0
      %1910 = vmatprep.subr.mxu0 0.0
      %1911 = vmatpush1.msra.mxu0 0.0
      %1912 = vmatprep.subr.mxu0 0.0
      %1913 = vmatpush1.msra.mxu0 0.0
      %1914 = vmatprep.subr.mxu0 0.0
      %1915 = vmatpush1.msra.mxu0 0.0
      %1916 = vmatprep.subr.mxu0 0.0
      %1917 = vmatpush1.msra.mxu0 0.0
      %1918 = vmatprep.subr.mxu0 0.0
      %1919 = vmatpush1.msra.mxu0 0.0
      %1920 = vmatprep.subr.mxu0 0.0
      %1921 = vmatpush1.msra.mxu0 0.0
      %1922 = vmatprep.subr.mxu0 0.0
      %1923 = vmatpush1.msra.mxu0 0.0
      %1924 = vmatprep.subr.mxu0 0.0
      %1925 = vmatpush1.msra.mxu0 0.0
      %1926 = vmatprep.subr.mxu0 0.0
      %1927 = vmatpush1.msra.mxu0 0.0
      %1928 = vmatprep.subr.mxu0 0.0
      %1929 = vmatpush1.msra.mxu0 0.0
      %1930 = vmatprep.subr.mxu0 0.0
      %1931 = vmatpush1.msra.mxu0 0.0
      %1932 = vmatprep.subr.mxu0 0.0
      %1933 = vmatpush1.msra.mxu0 0.0
      %1934 = vmatprep.subr.mxu0 0.0
      %1935 = vmatpush1.msra.mxu0 0.0
      %1936 = vmatprep.subr.mxu0 0.0
      %1937 = vmatpush1.msra.mxu0 0.0
      %1938 = vmatprep.subr.mxu0 0.0
      %1939 = vmatpush1.msra.mxu0 0.0
      %1940 = vmatprep.subr.mxu0 0.0
      %1941 = vmatpush1.msra.mxu0 0.0
      %1942 = vmatprep.subr.mxu0 0.0
      %1943 = vmatpush1.msra.mxu0 0.0
      %1944 = vmatprep.subr.mxu0 0.0
      %1945 = vmatpush1.msra.mxu0 0.0
      %1946 = vmatprep.subr.mxu0 0.0
      %1947 = vmatpush1.msra.mxu0 0.0
      %1948 = vmatprep.subr.mxu0 0.0
      %1949 = vmatpush1.msra.mxu0 0.0
      %1950 = vmatprep.subr.mxu0 0.0
      %1951 = vmatpush1.msra.mxu0 0.0
      %1952 = vmatprep.mubr.f32.mxu0 0.0
      %1953 = vmatmul.mubr.f32.gmra.mrb[0].mxu0 %v1673
      %v1954 = vpop.f32.mrb[0].mxu0
      %v1955 = vadd.f32 %v1669, %v1954
      %v1956 = vpop.f32.mrb[0].mxu0
      %v1957 = vadd.f32 %v1669, %v1956
      %1958 = vdwg.mxu0
      %1959 = vmatprep.subr.mxu0 %v674
      %1960 = vmatpush1.msra.mxu0 %v673
      %1961 = vmatprep.subr.mxu0 %v803
      %1962 = vmatpush1.msra.mxu0 %v802
      %1963 = vmatprep.subr.mxu0 %v932
      %1964 = vmatpush1.msra.mxu0 %v931
      %1965 = vmatprep.subr.mxu0 %v1061
      %1966 = vmatpush1.msra.mxu0 %v1060
      %1967 = vmatprep.subr.mxu0 %v1141
      %1968 = vmatpush1.msra.mxu0 %v1140
      %1969 = vmatprep.subr.mxu0 %v1270
      %1970 = vmatpush1.msra.mxu0 %v1269
      %1971 = vmatprep.subr.mxu0 %v1399
      %1972 = vmatpush1.msra.mxu0 %v1398
      %1973 = vmatprep.subr.mxu0 %v1528
      %1974 = vmatpush1.msra.mxu0 %v1527
      %1975 = vmatprep.subr.mxu0 %v1657
      %1976 = vmatpush1.msra.mxu0 %v1656
      %1977 = vmatprep.subr.mxu0 0.0
      %1978 = vmatpush1.msra.mxu0 0.0
      %1979 = vmatprep.subr.mxu0 0.0
      %1980 = vmatpush1.msra.mxu0 0.0
      %1981 = vmatprep.subr.mxu0 0.0
      %1982 = vmatpush1.msra.mxu0 0.0
      %1983 = vmatprep.subr.mxu0 0.0
      %1984 = vmatpush1.msra.mxu0 0.0
      %1985 = vmatprep.subr.mxu0 0.0
      %1986 = vmatpush1.msra.mxu0 0.0
      %1987 = vmatprep.subr.mxu0 0.0
      %1988 = vmatpush1.msra.mxu0 0.0
      %1989 = vmatprep.subr.mxu0 0.0
      %1990 = vmatpush1.msra.mxu0 0.0
      %1991 = vmatprep.subr.mxu0 0.0
      %1992 = vmatpush1.msra.mxu0 0.0
      %1993 = vmatprep.subr.mxu0 0.0
      %1994 = vmatpush1.msra.mxu0 0.0
      %1995 = vmatprep.subr.mxu0 0.0
      %1996 = vmatpush1.msra.mxu0 0.0
      %1997 = vmatprep.subr.mxu0 0.0
      %1998 = vmatpush1.msra.mxu0 0.0
      %1999 = vmatprep.subr.mxu0 0.0
      %2000 = vmatpush1.msra.mxu0 0.0
      %2001 = vmatprep.subr.mxu0 0.0
      %2002 = vmatpush1.msra.mxu0 0.0
      %2003 = vmatprep.subr.mxu0 0.0
      %2004 = vmatpush1.msra.mxu0 0.0
      %2005 = vmatprep.subr.mxu0 0.0
      %2006 = vmatpush1.msra.mxu0 0.0
      %2007 = vmatprep.subr.mxu0 0.0
      %2008 = vmatpush1.msra.mxu0 0.0
      %2009 = vmatprep.subr.mxu0 0.0
      %2010 = vmatpush1.msra.mxu0 0.0
      %2011 = vmatprep.subr.mxu0 0.0
      %2012 = vmatpush1.msra.mxu0 0.0
      %2013 = vmatprep.subr.mxu0 0.0
      %2014 = vmatpush1.msra.mxu0 0.0
      %2015 = vmatprep.subr.mxu0 0.0
      %2016 = vmatpush1.msra.mxu0 0.0
      %2017 = vmatprep.subr.mxu0 0.0
      %2018 = vmatpush1.msra.mxu0 0.0
      %2019 = vmatprep.subr.mxu0 0.0
      %2020 = vmatpush1.msra.mxu0 0.0
      %2021 = vmatprep.subr.mxu0 0.0
      %2022 = vmatpush1.msra.mxu0 0.0
      %2023 = vmatprep.mubr.f32.mxu0 0.0
      %2024 = vmatmul.mubr.f32.gmra.mrb[0].mxu0 %v1673
      %v2025 = vpop.f32.mrb[0].mxu0
      %v2026 = vadd.f32 %v1669, %v2025
      %v2027 = vpop.f32.mrb[0].mxu0
      %v2028 = vadd.f32 %v1669, %v2027
      %2029 = vdwg.mxu0
      %2030 = vmatprep.subr.mxu0 %v676
      %2031 = vmatpush1.msra.mxu0 %v675
      %2032 = vmatprep.subr.mxu0 %v805
      %2033 = vmatpush1.msra.mxu0 %v804
      %2034 = vmatprep.subr.mxu0 %v934
      %2035 = vmatpush1.msra.mxu0 %v933
      %2036 = vmatprep.subr.mxu0 %v1063
      %2037 = vmatpush1.msra.mxu0 %v1062
      %2038 = vmatprep.subr.mxu0 %v1143
      %2039 = vmatpush1.msra.mxu0 %v1142
      %2040 = vmatprep.subr.mxu0 %v1272
      %2041 = vmatpush1.msra.mxu0 %v1271
      %2042 = vmatprep.subr.mxu0 %v1401
      %2043 = vmatpush1.msra.mxu0 %v1400
      %2044 = vmatprep.subr.mxu0 %v1530
      %2045 = vmatpush1.msra.mxu0 %v1529
      %2046 = vmatprep.subr.mxu0 %v1659
      %2047 = vmatpush1.msra.mxu0 %v1658
      %2048 = vmatprep.subr.mxu0 0.0
      %2049 = vmatpush1.msra.mxu0 0.0
      %2050 = vmatprep.subr.mxu0 0.0
      %2051 = vmatpush1.msra.mxu0 0.0
      %2052 = vmatprep.subr.mxu0 0.0
      %2053 = vmatpush1.msra.mxu0 0.0
      %2054 = vmatprep.subr.mxu0 0.0
      %2055 = vmatpush1.msra.mxu0 0.0
      %2056 = vmatprep.subr.mxu0 0.0
      %2057 = vmatpush1.msra.mxu0 0.0
      %2058 = vmatprep.subr.mxu0 0.0
      %2059 = vmatpush1.msra.mxu0 0.0
      %2060 = vmatprep.subr.mxu0 0.0
      %2061 = vmatpush1.msra.mxu0 0.0
      %2062 = vmatprep.subr.mxu0 0.0
      %2063 = vmatpush1.msra.mxu0 0.0
      %2064 = vmatprep.subr.mxu0 0.0
      %2065 = vmatpush1.msra.mxu0 0.0
      %2066 = vmatprep.subr.mxu0 0.0
      %2067 = vmatpush1.msra.mxu0 0.0
      %2068 = vmatprep.subr.mxu0 0.0
      %2069 = vmatpush1.msra.mxu0 0.0
      %2070 = vmatprep.subr.mxu0 0.0
      %2071 = vmatpush1.msra.mxu0 0.0
      %2072 = vmatprep.subr.mxu0 0.0
      %2073 = vmatpush1.msra.mxu0 0.0
      %2074 = vmatprep.subr.mxu0 0.0
      %2075 = vmatpush1.msra.mxu0 0.0
      %2076 = vmatprep.subr.mxu0 0.0
      %2077 = vmatpush1.msra.mxu0 0.0
      %2078 = vmatprep.subr.mxu0 0.0
      %2079 = vmatpush1.msra.mxu0 0.0
      %2080 = vmatprep.subr.mxu0 0.0
      %2081 = vmatpush1.msra.mxu0 0.0
      %2082 = vmatprep.subr.mxu0 0.0
      %2083 = vmatpush1.msra.mxu0 0.0
      %2084 = vmatprep.subr.mxu0 0.0
      %2085 = vmatpush1.msra.mxu0 0.0
      %2086 = vmatprep.subr.mxu0 0.0
      %2087 = vmatpush1.msra.mxu0 0.0
      %2088 = vmatprep.subr.mxu0 0.0
      %2089 = vmatpush1.msra.mxu0 0.0
      %2090 = vmatprep.subr.mxu0 0.0
      %2091 = vmatpush1.msra.mxu0 0.0
      %2092 = vmatprep.subr.mxu0 0.0
      %2093 = vmatpush1.msra.mxu0 0.0
      %2094 = vmatprep.mubr.f32.mxu0 0.0
      %2095 = vmatmul.mubr.f32.gmra.mrb[0].mxu0 %v1673
      %v2096 = vpop.f32.mrb[0].mxu0
      %v2097 = vadd.f32 %v1669, %v2096
      %v2098 = vpop.f32.mrb[0].mxu0
      %v2099 = vadd.f32 %v1669, %v2098
      %2100 = vdwg.mxu0
      %2101 = vmatprep.subr.mxu0 %v678
      %2102 = vmatpush1.msra.mxu0 %v677
      %2103 = vmatprep.subr.mxu0 %v807
      %2104 = vmatpush1.msra.mxu0 %v806
      %2105 = vmatprep.subr.mxu0 %v936
      %2106 = vmatpush1.msra.mxu0 %v935
      %2107 = vmatprep.subr.mxu0 %v1065
      %2108 = vmatpush1.msra.mxu0 %v1064
      %2109 = vmatprep.subr.mxu0 %v1145
      %2110 = vmatpush1.msra.mxu0 %v1144
      %2111 = vmatprep.subr.mxu0 %v1274
      %2112 = vmatpush1.msra.mxu0 %v1273
      %2113 = vmatprep.subr.mxu0 %v1403
      %2114 = vmatpush1.msra.mxu0 %v1402
      %2115 = vmatprep.subr.mxu0 %v1532
      %2116 = vmatpush1.msra.mxu0 %v1531
      %2117 = vmatprep.subr.mxu0 %v1661
      %2118 = vmatpush1.msra.mxu0 %v1660
      %2119 = vmatprep.subr.mxu0 0.0
      %2120 = vmatpush1.msra.mxu0 0.0
      %2121 = vmatprep.subr.mxu0 0.0
      %2122 = vmatpush1.msra.mxu0 0.0
      %2123 = vmatprep.subr.mxu0 0.0
      %2124 = vmatpush1.msra.mxu0 0.0
      %2125 = vmatprep.subr.mxu0 0.0
      %2126 = vmatpush1.msra.mxu0 0.0
      %2127 = vmatprep.subr.mxu0 0.0
      %2128 = vmatpush1.msra.mxu0 0.0
      %2129 = vmatprep.subr.mxu0 0.0
      %2130 = vmatpush1.msra.mxu0 0.0
      %2131 = vmatprep.subr.mxu0 0.0
      %2132 = vmatpush1.msra.mxu0 0.0
      %2133 = vmatprep.subr.mxu0 0.0
      %2134 = vmatpush1.msra.mxu0 0.0
      %2135 = vmatprep.subr.mxu0 0.0
      %2136 = vmatpush1.msra.mxu0 0.0
      %2137 = vmatprep.subr.mxu0 0.0
      %2138 = vmatpush1.msra.mxu0 0.0
      %2139 = vmatprep.subr.mxu0 0.0
      %2140 = vmatpush1.msra.mxu0 0.0
      %2141 = vmatprep.subr.mxu0 0.0
      %2142 = vmatpush1.msra.mxu0 0.0
      %2143 = vmatprep.subr.mxu0 0.0
      %2144 = vmatpush1.msra.mxu0 0.0
      %2145 = vmatprep.subr.mxu0 0.0
      %2146 = vmatpush1.msra.mxu0 0.0
      %2147 = vmatprep.subr.mxu0 0.0
      %2148 = vmatpush1.msra.mxu0 0.0
      %2149 = vmatprep.subr.mxu0 0.0
      %2150 = vmatpush1.msra.mxu0 0.0
      %2151 = vmatprep.subr.mxu0 0.0
      %2152 = vmatpush1.msra.mxu0 0.0
      %2153 = vmatprep.subr.mxu0 0.0
      %2154 = vmatpush1.msra.mxu0 0.0
      %2155 = vmatprep.subr.mxu0 0.0
      %2156 = vmatpush1.msra.mxu0 0.0
      %2157 = vmatprep.subr.mxu0 0.0
      %2158 = vmatpush1.msra.mxu0 0.0
      %2159 = vmatprep.subr.mxu0 0.0
      %2160 = vmatpush1.msra.mxu0 0.0
      %2161 = vmatprep.subr.mxu0 0.0
      %2162 = vmatpush1.msra.mxu0 0.0
      %2163 = vmatprep.subr.mxu0 0.0
      %2164 = vmatpush1.msra.mxu0 0.0
      %2165 = vmatprep.mubr.f32.mxu0 0.0
      %2166 = vmatmul.mubr.f32.gmra.mrb[0].mxu0 %v1673
      %v2167 = vpop.f32.mrb[0].mxu0
      %v2168 = vadd.f32 %v1669, %v2167
      %v2169 = vpop.f32.mrb[0].mxu0
      %v2170 = vadd.f32 %v1669, %v2169
      %2171 = vdwg.mxu0
      %2172 = vmatprep.subr.mxu0 %v680
      %2173 = vmatpush1.msra.mxu0 %v679
      %2174 = vmatprep.subr.mxu0 %v809
      %2175 = vmatpush1.msra.mxu0 %v808
      %2176 = vmatprep.subr.mxu0 %v938
      %2177 = vmatpush1.msra.mxu0 %v937
      %2178 = vmatprep.subr.mxu0 %v1067
      %2179 = vmatpush1.msra.mxu0 %v1066
      %2180 = vmatprep.subr.mxu0 %v1147
      %2181 = vmatpush1.msra.mxu0 %v1146
      %2182 = vmatprep.subr.mxu0 %v1276
      %2183 = vmatpush1.msra.mxu0 %v1275
      %2184 = vmatprep.subr.mxu0 %v1405
      %2185 = vmatpush1.msra.mxu0 %v1404
      %2186 = vmatprep.subr.mxu0 %v1534
      %2187 = vmatpush1.msra.mxu0 %v1533
      %2188 = vmatprep.subr.mxu0 %v1663
      %2189 = vmatpush1.msra.mxu0 %v1662
      %2190 = vmatprep.subr.mxu0 0.0
      %2191 = vmatpush1.msra.mxu0 0.0
      %2192 = vmatprep.subr.mxu0 0.0
      %2193 = vmatpush1.msra.mxu0 0.0
      %2194 = vmatprep.subr.mxu0 0.0
      %2195 = vmatpush1.msra.mxu0 0.0
      %2196 = vmatprep.subr.mxu0 0.0
      %2197 = vmatpush1.msra.mxu0 0.0
      %2198 = vmatprep.subr.mxu0 0.0
      %2199 = vmatpush1.msra.mxu0 0.0
      %2200 = vmatprep.subr.mxu0 0.0
      %2201 = vmatpush1.msra.mxu0 0.0
      %2202 = vmatprep.subr.mxu0 0.0
      %2203 = vmatpush1.msra.mxu0 0.0
      %2204 = vmatprep.subr.mxu0 0.0
      %2205 = vmatpush1.msra.mxu0 0.0
      %2206 = vmatprep.subr.mxu0 0.0
      %2207 = vmatpush1.msra.mxu0 0.0
      %2208 = vmatprep.subr.mxu0 0.0
      %2209 = vmatpush1.msra.mxu0 0.0
      %2210 = vmatprep.subr.mxu0 0.0
      %2211 = vmatpush1.msra.mxu0 0.0
      %2212 = vmatprep.subr.mxu0 0.0
      %2213 = vmatpush1.msra.mxu0 0.0
      %2214 = vmatprep.subr.mxu0 0.0
      %2215 = vmatpush1.msra.mxu0 0.0
      %2216 = vmatprep.subr.mxu0 0.0
      %2217 = vmatpush1.msra.mxu0 0.0
      %2218 = vmatprep.subr.mxu0 0.0
      %2219 = vmatpush1.msra.mxu0 0.0
      %2220 = vmatprep.subr.mxu0 0.0
      %2221 = vmatpush1.msra.mxu0 0.0
      %2222 = vmatprep.subr.mxu0 0.0
      %2223 = vmatpush1.msra.mxu0 0.0
      %2224 = vmatprep.subr.mxu0 0.0
      %2225 = vmatpush1.msra.mxu0 0.0
      %2226 = vmatprep.subr.mxu0 0.0
      %2227 = vmatpush1.msra.mxu0 0.0
      %2228 = vmatprep.subr.mxu0 0.0
      %2229 = vmatpush1.msra.mxu0 0.0
      %2230 = vmatprep.subr.mxu0 0.0
      %2231 = vmatpush1.msra.mxu0 0.0
      %2232 = vmatprep.subr.mxu0 0.0
      %2233 = vmatpush1.msra.mxu0 0.0
      %2234 = vmatprep.subr.mxu0 0.0
      %2235 = vmatpush1.msra.mxu0 0.0
      %2236 = vmatprep.mubr.f32.mxu0 0.0
      %2237 = vmatmul.mubr.f32.gmra.mrb[0].mxu0 %v1673
      %v2238 = vpop.f32.mrb[0].mxu0
      %v2239 = vadd.f32 %v1669, %v2238
      %v2240 = vpop.f32.mrb[0].mxu0
      %v2241 = vadd.f32 %v1669, %v2240
      %2242 = vdwg.mxu0
      %2243 = vrot.lane.b32.xlu0 %v1742, 127
      %v2244 = vpop.permute.xlu0 %2243
      %2245 = vrot.lane.b32.xlu0 %v1744, 127
      %v2246 = vpop.permute.xlu0 %2245
      %2247 = vrot.lane.b32.xlu0 %v1813, 127
      %v2248 = vpop.permute.xlu0 %2247
      %2249 = vrot.lane.b32.xlu0 %v1815, 127
      %v2250 = vpop.permute.xlu0 %2249
      %2251 = vrot.lane.b32.xlu0 %v1884, 127
      %v2252 = vpop.permute.xlu0 %2251
      %2253 = vrot.lane.b32.xlu0 %v1886, 127
      %v2254 = vpop.permute.xlu0 %2253
      %2255 = vrot.lane.b32.xlu0 %v1955, 127
      %v2256 = vpop.permute.xlu0 %2255
      %2257 = vrot.lane.b32.xlu0 %v1957, 127
      %v2258 = vpop.permute.xlu0 %2257
      %2259 = vrot.lane.b32.xlu0 %v2026, 127
      %v2260 = vpop.permute.xlu0 %2259
      %2261 = vrot.lane.b32.xlu0 %v2028, 127
      %v2262 = vpop.permute.xlu0 %2261
      %2263 = vrot.lane.b32.xlu0 %v2097, 127
      %v2264 = vpop.permute.xlu0 %2263
      %2265 = vrot.lane.b32.xlu0 %v2099, 127
      %v2266 = vpop.permute.xlu0 %2265
      %2267 = vrot.lane.b32.xlu0 %v2168, 127
      %v2268 = vpop.permute.xlu0 %2267
      %2269 = vrot.lane.b32.xlu0 %v2170, 127
      %v2270 = vpop.permute.xlu0 %2269
      %2271 = vrot.lane.b32.xlu0 %v2239, 127
      %v2272 = vpop.permute.xlu0 %2271
      %2273 = vrot.lane.b32.xlu0 %v2241, 127
      %v2274 = vpop.permute.xlu0 %2273
      %v2275 = vsel %vm1180, %v2272, %v2274
      %v2276 = vsel %vm1180, %v2270, %v2272
      %v2277 = vsel %vm1180, %v2268, %v2270
      %v2278 = vsel %vm1180, %v2266, %v2268
      %v2279 = vsel %vm1180, %v2264, %v2266
      %v2280 = vsel %vm1180, %v2262, %v2264
      %v2281 = vsel %vm1180, %v2260, %v2262
      %v2282 = vsel %vm1180, %v2258, %v2260
      %v2283 = vsel %vm1180, %v2256, %v2258
      %v2284 = vsel %vm1180, %v2254, %v2256
      %v2285 = vsel %vm1180, %v2252, %v2254
      %v2286 = vsel %vm1180, %v2250, %v2252
      %v2287 = vsel %vm1180, %v2248, %v2250
      %v2288 = vsel %vm1180, %v2246, %v2248
      %v2289 = vsel %vm1180, %v2244, %v2246
      %v2290 = vsel %vm1180, %v2274, %v2244
      %v2291 = vmax.f32 %v1742, %v2289
      %v2292 = vmax.f32 %v1744, %v2288
      %v2293 = vmax.f32 %v1813, %v2287
      %v2294 = vmax.f32 %v1815, %v2286
      %v2295 = vmax.f32 %v1884, %v2285
      %v2296 = vmax.f32 %v1886, %v2284
      %v2297 = vmax.f32 %v1955, %v2283
      %v2298 = vmax.f32 %v1957, %v2282
      %v2299 = vmax.f32 %v2026, %v2281
      %v2300 = vmax.f32 %v2028, %v2280
      %v2301 = vmax.f32 %v2097, %v2279
      %v2302 = vmax.f32 %v2099, %v2278
      %v2303 = vmax.f32 %v2168, %v2277
      %v2304 = vmax.f32 %v2170, %v2276
      %v2305 = vmax.f32 %v2239, %v2275
      %v2306 = vmax.f32 %v2241, %v2290
      %2307 = vrot.lane.b32.xlu0 %v1742, 112
      %v2308 = vpop.permute.xlu0 %2307
      %2309 = vrot.lane.b32.xlu0 %v1744, 112
      %v2310 = vpop.permute.xlu0 %2309
      %2311 = vrot.lane.b32.xlu0 %v1813, 112
      %v2312 = vpop.permute.xlu0 %2311
      %2313 = vrot.lane.b32.xlu0 %v1815, 112
      %v2314 = vpop.permute.xlu0 %2313
      %2315 = vrot.lane.b32.xlu0 %v1884, 112
      %v2316 = vpop.permute.xlu0 %2315
      %2317 = vrot.lane.b32.xlu0 %v1886, 112
      %v2318 = vpop.permute.xlu0 %2317
      %2319 = vrot.lane.b32.xlu0 %v1955, 112
      %v2320 = vpop.permute.xlu0 %2319
      %2321 = vrot.lane.b32.xlu0 %v1957, 112
      %v2322 = vpop.permute.xlu0 %2321
      %2323 = vrot.lane.b32.xlu0 %v2026, 112
      %v2324 = vpop.permute.xlu0 %2323
      %2325 = vrot.lane.b32.xlu0 %v2028, 112
      %v2326 = vpop.permute.xlu0 %2325
      %2327 = vrot.lane.b32.xlu0 %v2097, 112
      %v2328 = vpop.permute.xlu0 %2327
      %2329 = vrot.lane.b32.xlu0 %v2099, 112
      %v2330 = vpop.permute.xlu0 %2329
      %2331 = vrot.lane.b32.xlu0 %v2168, 112
      %v2332 = vpop.permute.xlu0 %2331
      %2333 = vrot.lane.b32.xlu0 %v2170, 112
      %v2334 = vpop.permute.xlu0 %2333
      %2335 = vrot.lane.b32.xlu0 %v2239, 112
      %v2336 = vpop.permute.xlu0 %2335
      %2337 = vrot.lane.b32.xlu0 %v2241, 112
      %v2338 = vpop.permute.xlu0 %2337
      %v2339 = vsel %vm1438, %v2336, %v2338
      %v2340 = vsel %vm1438, %v2334, %v2336
      %v2341 = vsel %vm1438, %v2332, %v2334
      %v2342 = vsel %vm1438, %v2330, %v2332
      %v2343 = vsel %vm1438, %v2328, %v2330
      %v2344 = vsel %vm1438, %v2326, %v2328
      %v2345 = vsel %vm1438, %v2324, %v2326
      %v2346 = vsel %vm1438, %v2322, %v2324
      %v2347 = vsel %vm1438, %v2320, %v2322
      %v2348 = vsel %vm1438, %v2318, %v2320
      %v2349 = vsel %vm1438, %v2316, %v2318
      %v2350 = vsel %vm1438, %v2314, %v2316
      %v2351 = vsel %vm1438, %v2312, %v2314
      %v2352 = vsel %vm1438, %v2310, %v2312
      %v2353 = vsel %vm1438, %v2308, %v2310
      %v2354 = vsel %vm1438, %v2338, %v2308
      %2355 = vrot.lane.b32.xlu0 %v1742, 111
      %v2356 = vpop.permute.xlu0 %2355
      %2357 = vrot.lane.b32.xlu0 %v1744, 111
      %v2358 = vpop.permute.xlu0 %2357
      %2359 = vrot.lane.b32.xlu0 %v1813, 111
      %v2360 = vpop.permute.xlu0 %2359
      %2361 = vrot.lane.b32.xlu0 %v1815, 111
      %v2362 = vpop.permute.xlu0 %2361
      %2363 = vrot.lane.b32.xlu0 %v1884, 111
      %v2364 = vpop.permute.xlu0 %2363
      %2365 = vrot.lane.b32.xlu0 %v1886, 111
      %v2366 = vpop.permute.xlu0 %2365
      %2367 = vrot.lane.b32.xlu0 %v1955, 111
      %v2368 = vpop.permute.xlu0 %2367
      %2369 = vrot.lane.b32.xlu0 %v1957, 111
      %v2370 = vpop.permute.xlu0 %2369
      %2371 = vrot.lane.b32.xlu0 %v2026, 111
      %v2372 = vpop.permute.xlu0 %2371
      %2373 = vrot.lane.b32.xlu0 %v2028, 111
      %v2374 = vpop.permute.xlu0 %2373
      %2375 = vrot.lane.b32.xlu0 %v2097, 111
      %v2376 = vpop.permute.xlu0 %2375
      %2377 = vrot.lane.b32.xlu0 %v2099, 111
      %v2378 = vpop.permute.xlu0 %2377
      %2379 = vrot.lane.b32.xlu0 %v2168, 111
      %v2380 = vpop.permute.xlu0 %2379
      %2381 = vrot.lane.b32.xlu0 %v2170, 111
      %v2382 = vpop.permute.xlu0 %2381
      %2383 = vrot.lane.b32.xlu0 %v2239, 111
      %v2384 = vpop.permute.xlu0 %2383
      %2385 = vrot.lane.b32.xlu0 %v2241, 111
      %v2386 = vpop.permute.xlu0 %2385
      %v2387 = vsel %vm1567, %v2384, %v2386
      %v2388 = vsel %vm1567, %v2382, %v2384
      %v2389 = vsel %vm1567, %v2380, %v2382
      %v2390 = vsel %vm1567, %v2378, %v2380
      %v2391 = vsel %vm1567, %v2376, %v2378
      %v2392 = vsel %vm1567, %v2374, %v2376
      %v2393 = vsel %vm1567, %v2372, %v2374
      %v2394 = vsel %vm1567, %v2370, %v2372
      %v2395 = vsel %vm1567, %v2368, %v2370
      %v2396 = vsel %vm1567, %v2366, %v2368
      %v2397 = vsel %vm1567, %v2364, %v2366
      %v2398 = vsel %vm1567, %v2362, %v2364
      %v2399 = vsel %vm1567, %v2360, %v2362
      %v2400 = vsel %vm1567, %v2358, %v2360
      %v2401 = vsel %vm1567, %v2356, %v2358
      %v2402 = vsel %vm1567, %v2386, %v2356
      %v2403 = vmax.f32 %v2353, %v2401
      %v2404 = vmax.f32 %v2352, %v2400
      %v2405 = vmax.f32 %v2351, %v2399
      %v2406 = vmax.f32 %v2350, %v2398
      %v2407 = vmax.f32 %v2349, %v2397
      %v2408 = vmax.f32 %v2348, %v2396
      %v2409 = vmax.f32 %v2347, %v2395
      %v2410 = vmax.f32 %v2346, %v2394
      %v2411 = vmax.f32 %v2345, %v2393
      %v2412 = vmax.f32 %v2344, %v2392
      %v2413 = vmax.f32 %v2343, %v2391
      %v2414 = vmax.f32 %v2342, %v2390
      %v2415 = vmax.f32 %v2341, %v2389
      %v2416 = vmax.f32 %v2340, %v2388
      %v2417 = vmax.f32 %v2339, %v2387
      %v2418 = vmax.f32 %v2354, %v2402
      %v2419 = vmax.f32 %v2291, %v2403
      %v2420 = vmax.f32 %v2292, %v2404
      %v2421 = vmax.f32 %v2293, %v2405
      %v2422 = vmax.f32 %v2294, %v2406
      %v2423 = vmax.f32 %v2295, %v2407
      %v2424 = vmax.f32 %v2296, %v2408
      %v2425 = vmax.f32 %v2297, %v2409
      %v2426 = vmax.f32 %v2298, %v2410
      %v2427 = vmax.f32 %v2299, %v2411
      %v2428 = vmax.f32 %v2300, %v2412
      %v2429 = vmax.f32 %v2301, %v2413
      %v2430 = vmax.f32 %v2302, %v2414
      %v2431 = vmax.f32 %v2303, %v2415
      %v2432 = vmax.f32 %v2304, %v2416
      %v2433 = vmax.f32 %v2305, %v2417
      %v2434 = vmax.f32 %v2306, %v2418
      %v2435 = vmax.f32 %v2419, 0.0
      %v2436 = vmax.f32 %v2420, 0.0
      %v2437 = vmax.f32 %v2421, 0.0
      %v2438 = vmax.f32 %v2422, 0.0
      %v2439 = vmax.f32 %v2423, 0.0
      %v2440 = vmax.f32 %v2424, 0.0
      %v2441 = vmax.f32 %v2425, 0.0
      %v2442 = vmax.f32 %v2426, 0.0
      %v2443 = vmax.f32 %v2427, 0.0
      %v2444 = vmax.f32 %v2428, 0.0
      %v2445 = vmax.f32 %v2429, 0.0
      %v2446 = vmax.f32 %v2430, 0.0
      %v2447 = vmax.f32 %v2431, 0.0
      %v2448 = vmax.f32 %v2432, 0.0
      %v2449 = vmax.f32 %v2433, 0.0
      %v2450 = vmax.f32 %v2434, 0.0
      %2451 = vrot.lane.b32.xlu0 %v2435, 34
      %v2452 = vpop.permute.xlu0 %2451
      %2453 = vrot.lane.b32.xlu0 %v2436, 34
      %v2454 = vpop.permute.xlu0 %2453
      %2455 = vrot.lane.b32.xlu0 %v2437, 34
      %v2456 = vpop.permute.xlu0 %2455
      %2457 = vrot.lane.b32.xlu0 %v2438, 34
      %v2458 = vpop.permute.xlu0 %2457
      %2459 = vrot.lane.b32.xlu0 %v2439, 34
      %v2460 = vpop.permute.xlu0 %2459
      %2461 = vrot.lane.b32.xlu0 %v2440, 34
      %v2462 = vpop.permute.xlu0 %2461
      %2463 = vrot.lane.b32.xlu0 %v2441, 34
      %v2464 = vpop.permute.xlu0 %2463
      %2465 = vrot.lane.b32.xlu0 %v2442, 34
      %v2466 = vpop.permute.xlu0 %2465
      %2467 = vrot.lane.b32.xlu0 %v2443, 34
      %v2468 = vpop.permute.xlu0 %2467
      %2469 = vrot.lane.b32.xlu0 %v2444, 34
      %v2470 = vpop.permute.xlu0 %2469
      %2471 = vrot.lane.b32.xlu0 %v2445, 34
      %v2472 = vpop.permute.xlu0 %2471
      %2473 = vrot.lane.b32.xlu0 %v2446, 34
      %v2474 = vpop.permute.xlu0 %2473
      %2475 = vrot.lane.b32.xlu0 %v2447, 34
      %v2476 = vpop.permute.xlu0 %2475
      %2477 = vrot.lane.b32.xlu0 %v2448, 34
      %v2478 = vpop.permute.xlu0 %2477
      %2479 = vrot.lane.b32.xlu0 %v2449, 34
      %v2480 = vpop.permute.xlu0 %2479
      %2481 = vrot.lane.b32.xlu0 %v2450, 34
      %v2482 = vpop.permute.xlu0 %2481
      %vm2483 = vcmp.lt.s32.totalorder %v583, 34
      %v2484 = vsel %vm2483, %v2480, %v2482
      %v2485 = vsel %vm2483, %v2478, %v2480
      %v2486 = vsel %vm2483, %v2476, %v2478
      %v2487 = vsel %vm2483, %v2474, %v2476
      %v2488 = vsel %vm2483, %v2472, %v2474
      %v2489 = vsel %vm2483, %v2470, %v2472
      %v2490 = vsel %vm2483, %v2468, %v2470
      %v2491 = vsel %vm2483, %v2466, %v2468
      %v2492 = vsel %vm2483, %v2464, %v2466
      %v2493 = vsel %vm2483, %v2462, %v2464
      %v2494 = vsel %vm2483, %v2460, %v2462
      %v2495 = vsel %vm2483, %v2458, %v2460
      %v2496 = vsel %vm2483, %v2456, %v2458
      %v2497 = vsel %vm2483, %v2454, %v2456
      %v2498 = vsel %vm2483, %v2452, %v2454
      %v2499 = vsel %vm2483, %v2482, %v2452
      %v2500 = vlaneseq
      %v2501 = vshrl.u32 %v2500, 7
      %v2502 = vsub.s32 0, %v2501
      %v2503 = vrot.slane %v502, %v2502
      %v2504 = vlaneseq
      %v2505 = vshrl.u32 %v2504, 7
      %v2506 = vsub.s32 0, %v2505
      %v2507 = vrot.slane %v503, %v2506
      %v2508 = vlaneseq
      %v2509 = vshrl.u32 %v2508, 7
      %v2510 = vsub.s32 0, %v2509
      %v2511 = vrot.slane %v504, %v2510
      %v2512 = vlaneseq
      %v2513 = vshrl.u32 %v2512, 7
      %v2514 = vsub.s32 0, %v2513
      %v2515 = vrot.slane %v505, %v2514
      %v2516 = vlaneseq
      %v2517 = vshrl.u32 %v2516, 7
      %v2518 = vsub.s32 0, %v2517
      %v2519 = vrot.slane %v506, %v2518
      %v2520 = vlaneseq
      %v2521 = vshrl.u32 %v2520, 7
      %v2522 = vsub.s32 0, %v2521
      %v2523 = vrot.slane %v507, %v2522
      %v2524 = vlaneseq
      %v2525 = vshrl.u32 %v2524, 7
      %v2526 = vsub.s32 0, %v2525
      %v2527 = vrot.slane %v508, %v2526
      %v2528 = vlaneseq
      %v2529 = vshrl.u32 %v2528, 7
      %v2530 = vsub.s32 0, %v2529
      %v2531 = vrot.slane %v509, %v2530
      %v2532 = vlaneseq
      %v2533 = vshrl.u32 %v2532, 7
      %v2534 = vsub.s32 0, %v2533
      %v2535 = vrot.slane %v510, %v2534
      %v2536 = vlaneseq
      %v2537 = vshrl.u32 %v2536, 7
      %v2538 = vsub.s32 0, %v2537
      %v2539 = vrot.slane %v511, %v2538
      %v2540 = vlaneseq
      %v2541 = vshrl.u32 %v2540, 7
      %v2542 = vsub.s32 0, %v2541
      %v2543 = vrot.slane %v512, %v2542
      %v2544 = vlaneseq
      %v2545 = vshrl.u32 %v2544, 7
      %v2546 = vsub.s32 0, %v2545
      %v2547 = vrot.slane %v513, %v2546
      %v2548 = vlaneseq
      %v2549 = vshrl.u32 %v2548, 7
      %v2550 = vsub.s32 0, %v2549
      %v2551 = vrot.slane %v514, %v2550
      %v2552 = vlaneseq
      %v2553 = vshrl.u32 %v2552, 7
      %v2554 = vsub.s32 0, %v2553
      %v2555 = vrot.slane %v515, %v2554
      %v2556 = vlaneseq
      %v2557 = vshrl.u32 %v2556, 7
      %v2558 = vsub.s32 0, %v2557
      %v2559 = vrot.slane %v516, %v2558
      %v2560 = vlaneseq
      %v2561 = vshrl.u32 %v2560, 7
      %v2562 = vsub.s32 0, %v2561
      %v2563 = vrot.slane %v517, %v2562
      %v2564 = vmul.f32 %v2503, %v2499
      %v2565 = vmul.f32 %v2507, %v2498
      %v2566 = vmul.f32 %v2511, %v2497
      %v2567 = vmul.f32 %v2515, %v2496
      %v2568 = vmul.f32 %v2519, %v2495
      %v2569 = vmul.f32 %v2523, %v2494
      %v2570 = vmul.f32 %v2527, %v2493
      %v2571 = vmul.f32 %v2531, %v2492
      %v2572 = vmul.f32 %v2535, %v2491
      %v2573 = vmul.f32 %v2539, %v2490
      %v2574 = vmul.f32 %v2543, %v2489
      %v2575 = vmul.f32 %v2547, %v2488
      %v2576 = vmul.f32 %v2551, %v2487
      %v2577 = vmul.f32 %v2555, %v2486
      %v2578 = vmul.f32 %v2559, %v2485
      %v2579 = vmul.f32 %v2563, %v2484
      %2580 = vrot.lane.b32.xlu0 %v2435, 32
      %v2581 = vpop.permute.xlu0 %2580
      %2582 = vrot.lane.b32.xlu0 %v2436, 32
      %v2583 = vpop.permute.xlu0 %2582
      %2584 = vrot.lane.b32.xlu0 %v2437, 32
      %v2585 = vpop.permute.xlu0 %2584
      %2586 = vrot.lane.b32.xlu0 %v2438, 32
      %v2587 = vpop.permute.xlu0 %2586
      %2588 = vrot.lane.b32.xlu0 %v2439, 32
      %v2589 = vpop.permute.xlu0 %2588
      %2590 = vrot.lane.b32.xlu0 %v2440, 32
      %v2591 = vpop.permute.xlu0 %2590
      %2592 = vrot.lane.b32.xlu0 %v2441, 32
      %v2593 = vpop.permute.xlu0 %2592
      %2594 = vrot.lane.b32.xlu0 %v2442, 32
      %v2595 = vpop.permute.xlu0 %2594
      %2596 = vrot.lane.b32.xlu0 %v2443, 32
      %v2597 = vpop.permute.xlu0 %2596
      %2598 = vrot.lane.b32.xlu0 %v2444, 32
      %v2599 = vpop.permute.xlu0 %2598
      %2600 = vrot.lane.b32.xlu0 %v2445, 32
      %v2601 = vpop.permute.xlu0 %2600
      %2602 = vrot.lane.b32.xlu0 %v2446, 32
      %v2603 = vpop.permute.xlu0 %2602
      %2604 = vrot.lane.b32.xlu0 %v2447, 32
      %v2605 = vpop.permute.xlu0 %2604
      %2606 = vrot.lane.b32.xlu0 %v2448, 32
      %v2607 = vpop.permute.xlu0 %2606
      %2608 = vrot.lane.b32.xlu0 %v2449, 32
      %v2609 = vpop.permute.xlu0 %2608
      %2610 = vrot.lane.b32.xlu0 %v2450, 32
      %v2611 = vpop.permute.xlu0 %2610
      %vm2612 = vcmp.lt.s32.totalorder %v583, 32
      %v2613 = vsel %vm2612, %v2609, %v2611
      %v2614 = vsel %vm2612, %v2607, %v2609
      %v2615 = vsel %vm2612, %v2605, %v2607
      %v2616 = vsel %vm2612, %v2603, %v2605
      %v2617 = vsel %vm2612, %v2601, %v2603
      %v2618 = vsel %vm2612, %v2599, %v2601
      %v2619 = vsel %vm2612, %v2597, %v2599
      %v2620 = vsel %vm2612, %v2595, %v2597
      %v2621 = vsel %vm2612, %v2593, %v2595
      %v2622 = vsel %vm2612, %v2591, %v2593
      %v2623 = vsel %vm2612, %v2589, %v2591
      %v2624 = vsel %vm2612, %v2587, %v2589
      %v2625 = vsel %vm2612, %v2585, %v2587
      %v2626 = vsel %vm2612, %v2583, %v2585
      %v2627 = vsel %vm2612, %v2581, %v2583
      %v2628 = vsel %vm2612, %v2611, %v2581
      %v2629 = vlaneseq
      %v2630 = vshrl.u32 %v2629, 7
      %v2631 = vsub.s32 1, %v2630
      %v2632 = vrot.slane %v502, %v2631
      %v2633 = vlaneseq
      %v2634 = vshrl.u32 %v2633, 7
      %v2635 = vsub.s32 1, %v2634
      %v2636 = vrot.slane %v503, %v2635
      %v2637 = vlaneseq
      %v2638 = vshrl.u32 %v2637, 7
      %v2639 = vsub.s32 1, %v2638
      %v2640 = vrot.slane %v504, %v2639
      %v2641 = vlaneseq
      %v2642 = vshrl.u32 %v2641, 7
      %v2643 = vsub.s32 1, %v2642
      %v2644 = vrot.slane %v505, %v2643
      %v2645 = vlaneseq
      %v2646 = vshrl.u32 %v2645, 7
      %v2647 = vsub.s32 1, %v2646
      %v2648 = vrot.slane %v506, %v2647
      %v2649 = vlaneseq
      %v2650 = vshrl.u32 %v2649, 7
      %v2651 = vsub.s32 1, %v2650
      %v2652 = vrot.slane %v507, %v2651
      %v2653 = vlaneseq
      %v2654 = vshrl.u32 %v2653, 7
      %v2655 = vsub.s32 1, %v2654
      %v2656 = vrot.slane %v508, %v2655
      %v2657 = vlaneseq
      %v2658 = vshrl.u32 %v2657, 7
      %v2659 = vsub.s32 1, %v2658
      %v2660 = vrot.slane %v509, %v2659
      %v2661 = vlaneseq
      %v2662 = vshrl.u32 %v2661, 7
      %v2663 = vsub.s32 1, %v2662
      %v2664 = vrot.slane %v510, %v2663
      %v2665 = vlaneseq
      %v2666 = vshrl.u32 %v2665, 7
      %v2667 = vsub.s32 1, %v2666
      %v2668 = vrot.slane %v511, %v2667
      %v2669 = vlaneseq
      %v2670 = vshrl.u32 %v2669, 7
      %v2671 = vsub.s32 1, %v2670
      %v2672 = vrot.slane %v512, %v2671
      %v2673 = vlaneseq
      %v2674 = vshrl.u32 %v2673, 7
      %v2675 = vsub.s32 1, %v2674
      %v2676 = vrot.slane %v513, %v2675
      %v2677 = vlaneseq
      %v2678 = vshrl.u32 %v2677, 7
      %v2679 = vsub.s32 1, %v2678
      %v2680 = vrot.slane %v514, %v2679
      %v2681 = vlaneseq
      %v2682 = vshrl.u32 %v2681, 7
      %v2683 = vsub.s32 1, %v2682
      %v2684 = vrot.slane %v515, %v2683
      %v2685 = vlaneseq
      %v2686 = vshrl.u32 %v2685, 7
      %v2687 = vsub.s32 1, %v2686
      %v2688 = vrot.slane %v516, %v2687
      %v2689 = vlaneseq
      %v2690 = vshrl.u32 %v2689, 7
      %v2691 = vsub.s32 1, %v2690
      %v2692 = vrot.slane %v517, %v2691
      %v2693 = vmul.f32 %v2632, %v2628
      %v2694 = vmul.f32 %v2636, %v2627
      %v2695 = vmul.f32 %v2640, %v2626
      %v2696 = vmul.f32 %v2644, %v2625
      %v2697 = vmul.f32 %v2648, %v2624
      %v2698 = vmul.f32 %v2652, %v2623
      %v2699 = vmul.f32 %v2656, %v2622
      %v2700 = vmul.f32 %v2660, %v2621
      %v2701 = vmul.f32 %v2664, %v2620
      %v2702 = vmul.f32 %v2668, %v2619
      %v2703 = vmul.f32 %v2672, %v2618
      %v2704 = vmul.f32 %v2676, %v2617
      %v2705 = vmul.f32 %v2680, %v2616
      %v2706 = vmul.f32 %v2684, %v2615
      %v2707 = vmul.f32 %v2688, %v2614
      %v2708 = vmul.f32 %v2692, %v2613
      %2709 = vrot.lane.b32.xlu0 %v2435, 30
      %v2710 = vpop.permute.xlu0 %2709
      %2711 = vrot.lane.b32.xlu0 %v2436, 30
      %v2712 = vpop.permute.xlu0 %2711
      %2713 = vrot.lane.b32.xlu0 %v2437, 30
      %v2714 = vpop.permute.xlu0 %2713
      %2715 = vrot.lane.b32.xlu0 %v2438, 30
      %v2716 = vpop.permute.xlu0 %2715
      %2717 = vrot.lane.b32.xlu0 %v2439, 30
      %v2718 = vpop.permute.xlu0 %2717
      %2719 = vrot.lane.b32.xlu0 %v2440, 30
      %v2720 = vpop.permute.xlu0 %2719
      %2721 = vrot.lane.b32.xlu0 %v2441, 30
      %v2722 = vpop.permute.xlu0 %2721
      %2723 = vrot.lane.b32.xlu0 %v2442, 30
      %v2724 = vpop.permute.xlu0 %2723
      %2725 = vrot.lane.b32.xlu0 %v2443, 30
      %v2726 = vpop.permute.xlu0 %2725
      %2727 = vrot.lane.b32.xlu0 %v2444, 30
      %v2728 = vpop.permute.xlu0 %2727
      %2729 = vrot.lane.b32.xlu0 %v2445, 30
      %v2730 = vpop.permute.xlu0 %2729
      %2731 = vrot.lane.b32.xlu0 %v2446, 30
      %v2732 = vpop.permute.xlu0 %2731
      %2733 = vrot.lane.b32.xlu0 %v2447, 30
      %v2734 = vpop.permute.xlu0 %2733
      %2735 = vrot.lane.b32.xlu0 %v2448, 30
      %v2736 = vpop.permute.xlu0 %2735
      %2737 = vrot.lane.b32.xlu0 %v2449, 30
      %v2738 = vpop.permute.xlu0 %2737
      %2739 = vrot.lane.b32.xlu0 %v2450, 30
      %v2740 = vpop.permute.xlu0 %2739
      %vm2741 = vcmp.lt.s32.totalorder %v583, 30
      %v2742 = vsel %vm2741, %v2738, %v2740
      %v2743 = vsel %vm2741, %v2736, %v2738
      %v2744 = vsel %vm2741, %v2734, %v2736
      %v2745 = vsel %vm2741, %v2732, %v2734
      %v2746 = vsel %vm2741, %v2730, %v2732
      %v2747 = vsel %vm2741, %v2728, %v2730
      %v2748 = vsel %vm2741, %v2726, %v2728
      %v2749 = vsel %vm2741, %v2724, %v2726
      %v2750 = vsel %vm2741, %v2722, %v2724
      %v2751 = vsel %vm2741, %v2720, %v2722
      %v2752 = vsel %vm2741, %v2718, %v2720
      %v2753 = vsel %vm2741, %v2716, %v2718
      %v2754 = vsel %vm2741, %v2714, %v2716
      %v2755 = vsel %vm2741, %v2712, %v2714
      %v2756 = vsel %vm2741, %v2710, %v2712
      %v2757 = vsel %vm2741, %v2740, %v2710
      %v2758 = vlaneseq
      %v2759 = vshrl.u32 %v2758, 7
      %v2760 = vsub.s32 2, %v2759
      %v2761 = vrot.slane %v502, %v2760
      %v2762 = vlaneseq
      %v2763 = vshrl.u32 %v2762, 7
      %v2764 = vsub.s32 2, %v2763
      %v2765 = vrot.slane %v503, %v2764
      %v2766 = vlaneseq
      %v2767 = vshrl.u32 %v2766, 7
      %v2768 = vsub.s32 2, %v2767
      %v2769 = vrot.slane %v504, %v2768
      %v2770 = vlaneseq
      %v2771 = vshrl.u32 %v2770, 7
      %v2772 = vsub.s32 2, %v2771
      %v2773 = vrot.slane %v505, %v2772
      %v2774 = vlaneseq
      %v2775 = vshrl.u32 %v2774, 7
      %v2776 = vsub.s32 2, %v2775
      %v2777 = vrot.slane %v506, %v2776
      %v2778 = vlaneseq
      %v2779 = vshrl.u32 %v2778, 7
      %v2780 = vsub.s32 2, %v2779
      %v2781 = vrot.slane %v507, %v2780
      %v2782 = vlaneseq
      %v2783 = vshrl.u32 %v2782, 7
      %v2784 = vsub.s32 2, %v2783
      %v2785 = vrot.slane %v508, %v2784
      %v2786 = vlaneseq
      %v2787 = vshrl.u32 %v2786, 7
      %v2788 = vsub.s32 2, %v2787
      %v2789 = vrot.slane %v509, %v2788
      %v2790 = vlaneseq
      %v2791 = vshrl.u32 %v2790, 7
      %v2792 = vsub.s32 2, %v2791
      %v2793 = vrot.slane %v510, %v2792
      %v2794 = vlaneseq
      %v2795 = vshrl.u32 %v2794, 7
      %v2796 = vsub.s32 2, %v2795
      %v2797 = vrot.slane %v511, %v2796
      %v2798 = vlaneseq
      %v2799 = vshrl.u32 %v2798, 7
      %v2800 = vsub.s32 2, %v2799
      %v2801 = vrot.slane %v512, %v2800
      %v2802 = vlaneseq
      %v2803 = vshrl.u32 %v2802, 7
      %v2804 = vsub.s32 2, %v2803
      %v2805 = vrot.slane %v513, %v2804
      %v2806 = vlaneseq
      %v2807 = vshrl.u32 %v2806, 7
      %v2808 = vsub.s32 2, %v2807
      %v2809 = vrot.slane %v514, %v2808
      %v2810 = vlaneseq
      %v2811 = vshrl.u32 %v2810, 7
      %v2812 = vsub.s32 2, %v2811
      %v2813 = vrot.slane %v515, %v2812
      %v2814 = vlaneseq
      %v2815 = vshrl.u32 %v2814, 7
      %v2816 = vsub.s32 2, %v2815
      %v2817 = vrot.slane %v516, %v2816
      %v2818 = vlaneseq
      %v2819 = vshrl.u32 %v2818, 7
      %v2820 = vsub.s32 2, %v2819
      %v2821 = vrot.slane %v517, %v2820
      %v2822 = vmul.f32 %v2761, %v2757
      %v2823 = vmul.f32 %v2765, %v2756
      %v2824 = vmul.f32 %v2769, %v2755
      %v2825 = vmul.f32 %v2773, %v2754
      %v2826 = vmul.f32 %v2777, %v2753
      %v2827 = vmul.f32 %v2781, %v2752
      %v2828 = vmul.f32 %v2785, %v2751
      %v2829 = vmul.f32 %v2789, %v2750
      %v2830 = vmul.f32 %v2793, %v2749
      %v2831 = vmul.f32 %v2797, %v2748
      %v2832 = vmul.f32 %v2801, %v2747
      %v2833 = vmul.f32 %v2805, %v2746
      %v2834 = vmul.f32 %v2809, %v2745
      %v2835 = vmul.f32 %v2813, %v2744
      %v2836 = vmul.f32 %v2817, %v2743
      %v2837 = vmul.f32 %v2821, %v2742
      %2838 = vrot.lane.b32.xlu0 %v2435, 2
      %v2839 = vpop.permute.xlu0 %2838
      %2840 = vrot.lane.b32.xlu0 %v2436, 2
      %v2841 = vpop.permute.xlu0 %2840
      %2842 = vrot.lane.b32.xlu0 %v2437, 2
      %v2843 = vpop.permute.xlu0 %2842
      %2844 = vrot.lane.b32.xlu0 %v2438, 2
      %v2845 = vpop.permute.xlu0 %2844
      %2846 = vrot.lane.b32.xlu0 %v2439, 2
      %v2847 = vpop.permute.xlu0 %2846
      %2848 = vrot.lane.b32.xlu0 %v2440, 2
      %v2849 = vpop.permute.xlu0 %2848
      %2850 = vrot.lane.b32.xlu0 %v2441, 2
      %v2851 = vpop.permute.xlu0 %2850
      %2852 = vrot.lane.b32.xlu0 %v2442, 2
      %v2853 = vpop.permute.xlu0 %2852
      %2854 = vrot.lane.b32.xlu0 %v2443, 2
      %v2855 = vpop.permute.xlu0 %2854
      %2856 = vrot.lane.b32.xlu0 %v2444, 2
      %v2857 = vpop.permute.xlu0 %2856
      %2858 = vrot.lane.b32.xlu0 %v2445, 2
      %v2859 = vpop.permute.xlu0 %2858
      %2860 = vrot.lane.b32.xlu0 %v2446, 2
      %v2861 = vpop.permute.xlu0 %2860
      %2862 = vrot.lane.b32.xlu0 %v2447, 2
      %v2863 = vpop.permute.xlu0 %2862
      %2864 = vrot.lane.b32.xlu0 %v2448, 2
      %v2865 = vpop.permute.xlu0 %2864
      %2866 = vrot.lane.b32.xlu0 %v2449, 2
      %v2867 = vpop.permute.xlu0 %2866
      %2868 = vrot.lane.b32.xlu0 %v2450, 2
      %v2869 = vpop.permute.xlu0 %2868
      %vm2870 = vcmp.lt.s32.totalorder %v583, 2
      %v2871 = vsel %vm2870, %v2867, %v2869
      %v2872 = vsel %vm2870, %v2865, %v2867
      %v2873 = vsel %vm2870, %v2863, %v2865
      %v2874 = vsel %vm2870, %v2861, %v2863
      %v2875 = vsel %vm2870, %v2859, %v2861
      %v2876 = vsel %vm2870, %v2857, %v2859
      %v2877 = vsel %vm2870, %v2855, %v2857
      %v2878 = vsel %vm2870, %v2853, %v2855
      %v2879 = vsel %vm2870, %v2851, %v2853
      %v2880 = vsel %vm2870, %v2849, %v2851
      %v2881 = vsel %vm2870, %v2847, %v2849
      %v2882 = vsel %vm2870, %v2845, %v2847
      %v2883 = vsel %vm2870, %v2843, %v2845
      %v2884 = vsel %vm2870, %v2841, %v2843
      %v2885 = vsel %vm2870, %v2839, %v2841
      %v2886 = vsel %vm2870, %v2869, %v2839
      %v2887 = vlaneseq
      %v2888 = vshrl.u32 %v2887, 7
      %v2889 = vsub.s32 3, %v2888
      %v2890 = vrot.slane %v502, %v2889
      %v2891 = vlaneseq
      %v2892 = vshrl.u32 %v2891, 7
      %v2893 = vsub.s32 3, %v2892
      %v2894 = vrot.slane %v503, %v2893
      %v2895 = vlaneseq
      %v2896 = vshrl.u32 %v2895, 7
      %v2897 = vsub.s32 3, %v2896
      %v2898 = vrot.slane %v504, %v2897
      %v2899 = vlaneseq
      %v2900 = vshrl.u32 %v2899, 7
      %v2901 = vsub.s32 3, %v2900
      %v2902 = vrot.slane %v505, %v2901
      %v2903 = vlaneseq
      %v2904 = vshrl.u32 %v2903, 7
      %v2905 = vsub.s32 3, %v2904
      %v2906 = vrot.slane %v506, %v2905
      %v2907 = vlaneseq
      %v2908 = vshrl.u32 %v2907, 7
      %v2909 = vsub.s32 3, %v2908
      %v2910 = vrot.slane %v507, %v2909
      %v2911 = vlaneseq
      %v2912 = vshrl.u32 %v2911, 7
      %v2913 = vsub.s32 3, %v2912
      %v2914 = vrot.slane %v508, %v2913
      %v2915 = vlaneseq
      %v2916 = vshrl.u32 %v2915, 7
      %v2917 = vsub.s32 3, %v2916
      %v2918 = vrot.slane %v509, %v2917
      %v2919 = vlaneseq
      %v2920 = vshrl.u32 %v2919, 7
      %v2921 = vsub.s32 3, %v2920
      %v2922 = vrot.slane %v510, %v2921
      %v2923 = vlaneseq
      %v2924 = vshrl.u32 %v2923, 7
      %v2925 = vsub.s32 3, %v2924
      %v2926 = vrot.slane %v511, %v2925
      %v2927 = vlaneseq
      %v2928 = vshrl.u32 %v2927, 7
      %v2929 = vsub.s32 3, %v2928
      %v2930 = vrot.slane %v512, %v2929
      %v2931 = vlaneseq
      %v2932 = vshrl.u32 %v2931, 7
      %v2933 = vsub.s32 3, %v2932
      %v2934 = vrot.slane %v513, %v2933
      %v2935 = vlaneseq
      %v2936 = vshrl.u32 %v2935, 7
      %v2937 = vsub.s32 3, %v2936
      %v2938 = vrot.slane %v514, %v2937
      %v2939 = vlaneseq
      %v2940 = vshrl.u32 %v2939, 7
      %v2941 = vsub.s32 3, %v2940
      %v2942 = vrot.slane %v515, %v2941
      %v2943 = vlaneseq
      %v2944 = vshrl.u32 %v2943, 7
      %v2945 = vsub.s32 3, %v2944
      %v2946 = vrot.slane %v516, %v2945
      %v2947 = vlaneseq
      %v2948 = vshrl.u32 %v2947, 7
      %v2949 = vsub.s32 3, %v2948
      %v2950 = vrot.slane %v517, %v2949
      %v2951 = vmul.f32 %v2890, %v2886
      %v2952 = vmul.f32 %v2894, %v2885
      %v2953 = vmul.f32 %v2898, %v2884
      %v2954 = vmul.f32 %v2902, %v2883
      %v2955 = vmul.f32 %v2906, %v2882
      %v2956 = vmul.f32 %v2910, %v2881
      %v2957 = vmul.f32 %v2914, %v2880
      %v2958 = vmul.f32 %v2918, %v2879
      %v2959 = vmul.f32 %v2922, %v2878
      %v2960 = vmul.f32 %v2926, %v2877
      %v2961 = vmul.f32 %v2930, %v2876
      %v2962 = vmul.f32 %v2934, %v2875
      %v2963 = vmul.f32 %v2938, %v2874
      %v2964 = vmul.f32 %v2942, %v2873
      %v2965 = vmul.f32 %v2946, %v2872
      %v2966 = vmul.f32 %v2950, %v2871
      %v2967 = vlaneseq
      %v2968 = vshrl.u32 %v2967, 7
      %v2969 = vsub.s32 4, %v2968
      %v2970 = vrot.slane %v502, %v2969
      %v2971 = vlaneseq
      %v2972 = vshrl.u32 %v2971, 7
      %v2973 = vsub.s32 4, %v2972
      %v2974 = vrot.slane %v503, %v2973
      %v2975 = vlaneseq
      %v2976 = vshrl.u32 %v2975, 7
      %v2977 = vsub.s32 4, %v2976
      %v2978 = vrot.slane %v504, %v2977
      %v2979 = vlaneseq
      %v2980 = vshrl.u32 %v2979, 7
      %v2981 = vsub.s32 4, %v2980
      %v2982 = vrot.slane %v505, %v2981
      %v2983 = vlaneseq
      %v2984 = vshrl.u32 %v2983, 7
      %v2985 = vsub.s32 4, %v2984
      %v2986 = vrot.slane %v506, %v2985
      %v2987 = vlaneseq
      %v2988 = vshrl.u32 %v2987, 7
      %v2989 = vsub.s32 4, %v2988
      %v2990 = vrot.slane %v507, %v2989
      %v2991 = vlaneseq
      %v2992 = vshrl.u32 %v2991, 7
      %v2993 = vsub.s32 4, %v2992
      %v2994 = vrot.slane %v508, %v2993
      %v2995 = vlaneseq
      %v2996 = vshrl.u32 %v2995, 7
      %v2997 = vsub.s32 4, %v2996
      %v2998 = vrot.slane %v509, %v2997
      %v2999 = vlaneseq
      %v3000 = vshrl.u32 %v2999, 7
      %v3001 = vsub.s32 4, %v3000
      %v3002 = vrot.slane %v510, %v3001
      %v3003 = vlaneseq
      %v3004 = vshrl.u32 %v3003, 7
      %v3005 = vsub.s32 4, %v3004
      %v3006 = vrot.slane %v511, %v3005
      %v3007 = vlaneseq
      %v3008 = vshrl.u32 %v3007, 7
      %v3009 = vsub.s32 4, %v3008
      %v3010 = vrot.slane %v512, %v3009
      %v3011 = vlaneseq
      %v3012 = vshrl.u32 %v3011, 7
      %v3013 = vsub.s32 4, %v3012
      %v3014 = vrot.slane %v513, %v3013
      %v3015 = vlaneseq
      %v3016 = vshrl.u32 %v3015, 7
      %v3017 = vsub.s32 4, %v3016
      %v3018 = vrot.slane %v514, %v3017
      %v3019 = vlaneseq
      %v3020 = vshrl.u32 %v3019, 7
      %v3021 = vsub.s32 4, %v3020
      %v3022 = vrot.slane %v515, %v3021
      %v3023 = vlaneseq
      %v3024 = vshrl.u32 %v3023, 7
      %v3025 = vsub.s32 4, %v3024
      %v3026 = vrot.slane %v516, %v3025
      %v3027 = vlaneseq
      %v3028 = vshrl.u32 %v3027, 7
      %v3029 = vsub.s32 4, %v3028
      %v3030 = vrot.slane %v517, %v3029
      %v3031 = vmul.f32 %v2970, %v2435
      %v3032 = vmul.f32 %v2974, %v2436
      %v3033 = vmul.f32 %v2978, %v2437
      %v3034 = vmul.f32 %v2982, %v2438
      %v3035 = vmul.f32 %v2986, %v2439
      %v3036 = vmul.f32 %v2990, %v2440
      %v3037 = vmul.f32 %v2994, %v2441
      %v3038 = vmul.f32 %v2998, %v2442
      %v3039 = vmul.f32 %v3002, %v2443
      %v3040 = vmul.f32 %v3006, %v2444
      %v3041 = vmul.f32 %v3010, %v2445
      %v3042 = vmul.f32 %v3014, %v2446
      %v3043 = vmul.f32 %v3018, %v2447
      %v3044 = vmul.f32 %v3022, %v2448
      %v3045 = vmul.f32 %v3026, %v2449
      %v3046 = vmul.f32 %v3030, %v2450
      %3047 = vrot.lane.b32.xlu0 %v2435, 126
      %v3048 = vpop.permute.xlu0 %3047
      %3049 = vrot.lane.b32.xlu0 %v2436, 126
      %v3050 = vpop.permute.xlu0 %3049
      %3051 = vrot.lane.b32.xlu0 %v2437, 126
      %v3052 = vpop.permute.xlu0 %3051
      %3053 = vrot.lane.b32.xlu0 %v2438, 126
      %v3054 = vpop.permute.xlu0 %3053
      %3055 = vrot.lane.b32.xlu0 %v2439, 126
      %v3056 = vpop.permute.xlu0 %3055
      %3057 = vrot.lane.b32.xlu0 %v2440, 126
      %v3058 = vpop.permute.xlu0 %3057
      %3059 = vrot.lane.b32.xlu0 %v2441, 126
      %v3060 = vpop.permute.xlu0 %3059
      %3061 = vrot.lane.b32.xlu0 %v2442, 126
      %v3062 = vpop.permute.xlu0 %3061
      %3063 = vrot.lane.b32.xlu0 %v2443, 126
      %v3064 = vpop.permute.xlu0 %3063
      %3065 = vrot.lane.b32.xlu0 %v2444, 126
      %v3066 = vpop.permute.xlu0 %3065
      %3067 = vrot.lane.b32.xlu0 %v2445, 126
      %v3068 = vpop.permute.xlu0 %3067
      %3069 = vrot.lane.b32.xlu0 %v2446, 126
      %v3070 = vpop.permute.xlu0 %3069
      %3071 = vrot.lane.b32.xlu0 %v2447, 126
      %v3072 = vpop.permute.xlu0 %3071
      %3073 = vrot.lane.b32.xlu0 %v2448, 126
      %v3074 = vpop.permute.xlu0 %3073
      %3075 = vrot.lane.b32.xlu0 %v2449, 126
      %v3076 = vpop.permute.xlu0 %3075
      %3077 = vrot.lane.b32.xlu0 %v2450, 126
      %v3078 = vpop.permute.xlu0 %3077
      %vm3079 = vcmp.lt.s32.totalorder %v583, 126
      %v3080 = vsel %vm3079, %v3076, %v3078
      %v3081 = vsel %vm3079, %v3074, %v3076
      %v3082 = vsel %vm3079, %v3072, %v3074
      %v3083 = vsel %vm3079, %v3070, %v3072
      %v3084 = vsel %vm3079, %v3068, %v3070
      %v3085 = vsel %vm3079, %v3066, %v3068
      %v3086 = vsel %vm3079, %v3064, %v3066
      %v3087 = vsel %vm3079, %v3062, %v3064
      %v3088 = vsel %vm3079, %v3060, %v3062
      %v3089 = vsel %vm3079, %v3058, %v3060
      %v3090 = vsel %vm3079, %v3056, %v3058
      %v3091 = vsel %vm3079, %v3054, %v3056
      %v3092 = vsel %vm3079, %v3052, %v3054
      %v3093 = vsel %vm3079, %v3050, %v3052
      %v3094 = vsel %vm3079, %v3048, %v3050
      %v3095 = vsel %vm3079, %v3078, %v3048
      %v3096 = vlaneseq
      %v3097 = vshrl.u32 %v3096, 7
      %v3098 = vsub.s32 5, %v3097
      %v3099 = vrot.slane %v502, %v3098
      %v3100 = vlaneseq
      %v3101 = vshrl.u32 %v3100, 7
      %v3102 = vsub.s32 5, %v3101
      %v3103 = vrot.slane %v503, %v3102
      %v3104 = vlaneseq
      %v3105 = vshrl.u32 %v3104, 7
      %v3106 = vsub.s32 5, %v3105
      %v3107 = vrot.slane %v504, %v3106
      %v3108 = vlaneseq
      %v3109 = vshrl.u32 %v3108, 7
      %v3110 = vsub.s32 5, %v3109
      %v3111 = vrot.slane %v505, %v3110
      %v3112 = vlaneseq
      %v3113 = vshrl.u32 %v3112, 7
      %v3114 = vsub.s32 5, %v3113
      %v3115 = vrot.slane %v506, %v3114
      %v3116 = vlaneseq
      %v3117 = vshrl.u32 %v3116, 7
      %v3118 = vsub.s32 5, %v3117
      %v3119 = vrot.slane %v507, %v3118
      %v3120 = vlaneseq
      %v3121 = vshrl.u32 %v3120, 7
      %v3122 = vsub.s32 5, %v3121
      %v3123 = vrot.slane %v508, %v3122
      %v3124 = vlaneseq
      %v3125 = vshrl.u32 %v3124, 7
      %v3126 = vsub.s32 5, %v3125
      %v3127 = vrot.slane %v509, %v3126
      %v3128 = vlaneseq
      %v3129 = vshrl.u32 %v3128, 7
      %v3130 = vsub.s32 5, %v3129
      %v3131 = vrot.slane %v510, %v3130
      %v3132 = vlaneseq
      %v3133 = vshrl.u32 %v3132, 7
      %v3134 = vsub.s32 5, %v3133
      %v3135 = vrot.slane %v511, %v3134
      %v3136 = vlaneseq
      %v3137 = vshrl.u32 %v3136, 7
      %v3138 = vsub.s32 5, %v3137
      %v3139 = vrot.slane %v512, %v3138
      %v3140 = vlaneseq
      %v3141 = vshrl.u32 %v3140, 7
      %v3142 = vsub.s32 5, %v3141
      %v3143 = vrot.slane %v513, %v3142
      %v3144 = vlaneseq
      %v3145 = vshrl.u32 %v3144, 7
      %v3146 = vsub.s32 5, %v3145
      %v3147 = vrot.slane %v514, %v3146
      %v3148 = vlaneseq
      %v3149 = vshrl.u32 %v3148, 7
      %v3150 = vsub.s32 5, %v3149
      %v3151 = vrot.slane %v515, %v3150
      %v3152 = vlaneseq
      %v3153 = vshrl.u32 %v3152, 7
      %v3154 = vsub.s32 5, %v3153
      %v3155 = vrot.slane %v516, %v3154
      %v3156 = vlaneseq
      %v3157 = vshrl.u32 %v3156, 7
      %v3158 = vsub.s32 5, %v3157
      %v3159 = vrot.slane %v517, %v3158
      %v3160 = vmul.f32 %v3099, %v3094
      %v3161 = vmul.f32 %v3103, %v3093
      %v3162 = vmul.f32 %v3107, %v3092
      %v3163 = vmul.f32 %v3111, %v3091
      %v3164 = vmul.f32 %v3115, %v3090
      %v3165 = vmul.f32 %v3119, %v3089
      %v3166 = vmul.f32 %v3123, %v3088
      %v3167 = vmul.f32 %v3127, %v3087
      %v3168 = vmul.f32 %v3131, %v3086
      %v3169 = vmul.f32 %v3135, %v3085
      %v3170 = vmul.f32 %v3139, %v3084
      %v3171 = vmul.f32 %v3143, %v3083
      %v3172 = vmul.f32 %v3147, %v3082
      %v3173 = vmul.f32 %v3151, %v3081
      %v3174 = vmul.f32 %v3155, %v3080
      %v3175 = vmul.f32 %v3159, %v3095
      %3176 = vrot.lane.b32.xlu0 %v2435, 98
      %v3177 = vpop.permute.xlu0 %3176
      %3178 = vrot.lane.b32.xlu0 %v2436, 98
      %v3179 = vpop.permute.xlu0 %3178
      %3180 = vrot.lane.b32.xlu0 %v2437, 98
      %v3181 = vpop.permute.xlu0 %3180
      %3182 = vrot.lane.b32.xlu0 %v2438, 98
      %v3183 = vpop.permute.xlu0 %3182
      %3184 = vrot.lane.b32.xlu0 %v2439, 98
      %v3185 = vpop.permute.xlu0 %3184
      %3186 = vrot.lane.b32.xlu0 %v2440, 98
      %v3187 = vpop.permute.xlu0 %3186
      %3188 = vrot.lane.b32.xlu0 %v2441, 98
      %v3189 = vpop.permute.xlu0 %3188
      %3190 = vrot.lane.b32.xlu0 %v2442, 98
      %v3191 = vpop.permute.xlu0 %3190
      %3192 = vrot.lane.b32.xlu0 %v2443, 98
      %v3193 = vpop.permute.xlu0 %3192
      %3194 = vrot.lane.b32.xlu0 %v2444, 98
      %v3195 = vpop.permute.xlu0 %3194
      %3196 = vrot.lane.b32.xlu0 %v2445, 98
      %v3197 = vpop.permute.xlu0 %3196
      %3198 = vrot.lane.b32.xlu0 %v2446, 98
      %v3199 = vpop.permute.xlu0 %3198
      %3200 = vrot.lane.b32.xlu0 %v2447, 98
      %v3201 = vpop.permute.xlu0 %3200
      %3202 = vrot.lane.b32.xlu0 %v2448, 98
      %v3203 = vpop.permute.xlu0 %3202
      %3204 = vrot.lane.b32.xlu0 %v2449, 98
      %v3205 = vpop.permute.xlu0 %3204
      %3206 = vrot.lane.b32.xlu0 %v2450, 98
      %v3207 = vpop.permute.xlu0 %3206
      %vm3208 = vcmp.lt.s32.totalorder %v583, 98
      %v3209 = vsel %vm3208, %v3205, %v3207
      %v3210 = vsel %vm3208, %v3203, %v3205
      %v3211 = vsel %vm3208, %v3201, %v3203
      %v3212 = vsel %vm3208, %v3199, %v3201
      %v3213 = vsel %vm3208, %v3197, %v3199
      %v3214 = vsel %vm3208, %v3195, %v3197
      %v3215 = vsel %vm3208, %v3193, %v3195
      %v3216 = vsel %vm3208, %v3191, %v3193
      %v3217 = vsel %vm3208, %v3189, %v3191
      %v3218 = vsel %vm3208, %v3187, %v3189
      %v3219 = vsel %vm3208, %v3185, %v3187
      %v3220 = vsel %vm3208, %v3183, %v3185
      %v3221 = vsel %vm3208, %v3181, %v3183
      %v3222 = vsel %vm3208, %v3179, %v3181
      %v3223 = vsel %vm3208, %v3177, %v3179
      %v3224 = vsel %vm3208, %v3207, %v3177
      %v3225 = vlaneseq
      %v3226 = vshrl.u32 %v3225, 7
      %v3227 = vsub.s32 6, %v3226
      %v3228 = vrot.slane %v502, %v3227
      %v3229 = vlaneseq
      %v3230 = vshrl.u32 %v3229, 7
      %v3231 = vsub.s32 6, %v3230
      %v3232 = vrot.slane %v503, %v3231
      %v3233 = vlaneseq
      %v3234 = vshrl.u32 %v3233, 7
      %v3235 = vsub.s32 6, %v3234
      %v3236 = vrot.slane %v504, %v3235
      %v3237 = vlaneseq
      %v3238 = vshrl.u32 %v3237, 7
      %v3239 = vsub.s32 6, %v3238
      %v3240 = vrot.slane %v505, %v3239
      %v3241 = vlaneseq
      %v3242 = vshrl.u32 %v3241, 7
      %v3243 = vsub.s32 6, %v3242
      %v3244 = vrot.slane %v506, %v3243
      %v3245 = vlaneseq
      %v3246 = vshrl.u32 %v3245, 7
      %v3247 = vsub.s32 6, %v3246
      %v3248 = vrot.slane %v507, %v3247
      %v3249 = vlaneseq
      %v3250 = vshrl.u32 %v3249, 7
      %v3251 = vsub.s32 6, %v3250
      %v3252 = vrot.slane %v508, %v3251
      %v3253 = vlaneseq
      %v3254 = vshrl.u32 %v3253, 7
      %v3255 = vsub.s32 6, %v3254
      %v3256 = vrot.slane %v509, %v3255
      %v3257 = vlaneseq
      %v3258 = vshrl.u32 %v3257, 7
      %v3259 = vsub.s32 6, %v3258
      %v3260 = vrot.slane %v510, %v3259
      %v3261 = vlaneseq
      %v3262 = vshrl.u32 %v3261, 7
      %v3263 = vsub.s32 6, %v3262
      %v3264 = vrot.slane %v511, %v3263
      %v3265 = vlaneseq
      %v3266 = vshrl.u32 %v3265, 7
      %v3267 = vsub.s32 6, %v3266
      %v3268 = vrot.slane %v512, %v3267
      %v3269 = vlaneseq
      %v3270 = vshrl.u32 %v3269, 7
      %v3271 = vsub.s32 6, %v3270
      %v3272 = vrot.slane %v513, %v3271
      %v3273 = vlaneseq
      %v3274 = vshrl.u32 %v3273, 7
      %v3275 = vsub.s32 6, %v3274
      %v3276 = vrot.slane %v514, %v3275
      %v3277 = vlaneseq
      %v3278 = vshrl.u32 %v3277, 7
      %v3279 = vsub.s32 6, %v3278
      %v3280 = vrot.slane %v515, %v3279
      %v3281 = vlaneseq
      %v3282 = vshrl.u32 %v3281, 7
      %v3283 = vsub.s32 6, %v3282
      %v3284 = vrot.slane %v516, %v3283
      %v3285 = vlaneseq
      %v3286 = vshrl.u32 %v3285, 7
      %v3287 = vsub.s32 6, %v3286
      %v3288 = vrot.slane %v517, %v3287
      %v3289 = vmul.f32 %v3228, %v3223
      %v3290 = vmul.f32 %v3232, %v3222
      %v3291 = vmul.f32 %v3236, %v3221
      %v3292 = vmul.f32 %v3240, %v3220
      %v3293 = vmul.f32 %v3244, %v3219
      %v3294 = vmul.f32 %v3248, %v3218
      %v3295 = vmul.f32 %v3252, %v3217
      %v3296 = vmul.f32 %v3256, %v3216
      %v3297 = vmul.f32 %v3260, %v3215
      %v3298 = vmul.f32 %v3264, %v3214
      %v3299 = vmul.f32 %v3268, %v3213
      %v3300 = vmul.f32 %v3272, %v3212
      %v3301 = vmul.f32 %v3276, %v3211
      %v3302 = vmul.f32 %v3280, %v3210
      %v3303 = vmul.f32 %v3284, %v3209
      %v3304 = vmul.f32 %v3288, %v3224
      %3305 = vrot.lane.b32.xlu0 %v2435, 96
      %v3306 = vpop.permute.xlu0 %3305
      %3307 = vrot.lane.b32.xlu0 %v2436, 96
      %v3308 = vpop.permute.xlu0 %3307
      %3309 = vrot.lane.b32.xlu0 %v2437, 96
      %v3310 = vpop.permute.xlu0 %3309
      %3311 = vrot.lane.b32.xlu0 %v2438, 96
      %v3312 = vpop.permute.xlu0 %3311
      %3313 = vrot.lane.b32.xlu0 %v2439, 96
      %v3314 = vpop.permute.xlu0 %3313
      %3315 = vrot.lane.b32.xlu0 %v2440, 96
      %v3316 = vpop.permute.xlu0 %3315
      %3317 = vrot.lane.b32.xlu0 %v2441, 96
      %v3318 = vpop.permute.xlu0 %3317
      %3319 = vrot.lane.b32.xlu0 %v2442, 96
      %v3320 = vpop.permute.xlu0 %3319
      %3321 = vrot.lane.b32.xlu0 %v2443, 96
      %v3322 = vpop.permute.xlu0 %3321
      %3323 = vrot.lane.b32.xlu0 %v2444, 96
      %v3324 = vpop.permute.xlu0 %3323
      %3325 = vrot.lane.b32.xlu0 %v2445, 96
      %v3326 = vpop.permute.xlu0 %3325
      %3327 = vrot.lane.b32.xlu0 %v2446, 96
      %v3328 = vpop.permute.xlu0 %3327
      %3329 = vrot.lane.b32.xlu0 %v2447, 96
      %v3330 = vpop.permute.xlu0 %3329
      %3331 = vrot.lane.b32.xlu0 %v2448, 96
      %v3332 = vpop.permute.xlu0 %3331
      %3333 = vrot.lane.b32.xlu0 %v2449, 96
      %v3334 = vpop.permute.xlu0 %3333
      %3335 = vrot.lane.b32.xlu0 %v2450, 96
      %v3336 = vpop.permute.xlu0 %3335
      %vm3337 = vcmp.lt.s32.totalorder %v583, 96
      %v3338 = vsel %vm3337, %v3334, %v3336
      %v3339 = vsel %vm3337, %v3332, %v3334
      %v3340 = vsel %vm3337, %v3330, %v3332
      %v3341 = vsel %vm3337, %v3328, %v3330
      %v3342 = vsel %vm3337, %v3326, %v3328
      %v3343 = vsel %vm3337, %v3324, %v3326
      %v3344 = vsel %vm3337, %v3322, %v3324
      %v3345 = vsel %vm3337, %v3320, %v3322
      %v3346 = vsel %vm3337, %v3318, %v3320
      %v3347 = vsel %vm3337, %v3316, %v3318
      %v3348 = vsel %vm3337, %v3314, %v3316
      %v3349 = vsel %vm3337, %v3312, %v3314
      %v3350 = vsel %vm3337, %v3310, %v3312
      %v3351 = vsel %vm3337, %v3308, %v3310
      %v3352 = vsel %vm3337, %v3306, %v3308
      %v3353 = vsel %vm3337, %v3336, %v3306
      %v3354 = vlaneseq
      %v3355 = vshrl.u32 %v3354, 7
      %v3356 = vsub.s32 7, %v3355
      %v3357 = vrot.slane %v502, %v3356
      %v3358 = vlaneseq
      %v3359 = vshrl.u32 %v3358, 7
      %v3360 = vsub.s32 7, %v3359
      %v3361 = vrot.slane %v503, %v3360
      %v3362 = vlaneseq
      %v3363 = vshrl.u32 %v3362, 7
      %v3364 = vsub.s32 7, %v3363
      %v3365 = vrot.slane %v504, %v3364
      %v3366 = vlaneseq
      %v3367 = vshrl.u32 %v3366, 7
      %v3368 = vsub.s32 7, %v3367
      %v3369 = vrot.slane %v505, %v3368
      %v3370 = vlaneseq
      %v3371 = vshrl.u32 %v3370, 7
      %v3372 = vsub.s32 7, %v3371
      %v3373 = vrot.slane %v506, %v3372
      %v3374 = vlaneseq
      %v3375 = vshrl.u32 %v3374, 7
      %v3376 = vsub.s32 7, %v3375
      %v3377 = vrot.slane %v507, %v3376
      %v3378 = vlaneseq
      %v3379 = vshrl.u32 %v3378, 7
      %v3380 = vsub.s32 7, %v3379
      %v3381 = vrot.slane %v508, %v3380
      %v3382 = vlaneseq
      %v3383 = vshrl.u32 %v3382, 7
      %v3384 = vsub.s32 7, %v3383
      %v3385 = vrot.slane %v509, %v3384
      %v3386 = vlaneseq
      %v3387 = vshrl.u32 %v3386, 7
      %v3388 = vsub.s32 7, %v3387
      %v3389 = vrot.slane %v510, %v3388
      %v3390 = vlaneseq
      %v3391 = vshrl.u32 %v3390, 7
      %v3392 = vsub.s32 7, %v3391
      %v3393 = vrot.slane %v511, %v3392
      %v3394 = vlaneseq
      %v3395 = vshrl.u32 %v3394, 7
      %v3396 = vsub.s32 7, %v3395
      %v3397 = vrot.slane %v512, %v3396
      %v3398 = vlaneseq
      %v3399 = vshrl.u32 %v3398, 7
      %v3400 = vsub.s32 7, %v3399
      %v3401 = vrot.slane %v513, %v3400
      %v3402 = vlaneseq
      %v3403 = vshrl.u32 %v3402, 7
      %v3404 = vsub.s32 7, %v3403
      %v3405 = vrot.slane %v514, %v3404
      %v3406 = vlaneseq
      %v3407 = vshrl.u32 %v3406, 7
      %v3408 = vsub.s32 7, %v3407
      %v3409 = vrot.slane %v515, %v3408
      %v3410 = vlaneseq
      %v3411 = vshrl.u32 %v3410, 7
      %v3412 = vsub.s32 7, %v3411
      %v3413 = vrot.slane %v516, %v3412
      %v3414 = vlaneseq
      %v3415 = vshrl.u32 %v3414, 7
      %v3416 = vsub.s32 7, %v3415
      %v3417 = vrot.slane %v517, %v3416
      %v3418 = vmul.f32 %v3357, %v3352
      %v3419 = vmul.f32 %v3361, %v3351
      %v3420 = vmul.f32 %v3365, %v3350
      %v3421 = vmul.f32 %v3369, %v3349
      %v3422 = vmul.f32 %v3373, %v3348
      %v3423 = vmul.f32 %v3377, %v3347
      %v3424 = vmul.f32 %v3381, %v3346
      %v3425 = vmul.f32 %v3385, %v3345
      %v3426 = vmul.f32 %v3389, %v3344
      %v3427 = vmul.f32 %v3393, %v3343
      %v3428 = vmul.f32 %v3397, %v3342
      %v3429 = vmul.f32 %v3401, %v3341
      %v3430 = vmul.f32 %v3405, %v3340
      %v3431 = vmul.f32 %v3409, %v3339
      %v3432 = vmul.f32 %v3413, %v3338
      %v3433 = vmul.f32 %v3417, %v3353
      %3434 = vrot.lane.b32.xlu0 %v2435, 94
      %v3435 = vpop.permute.xlu0 %3434
      %3436 = vrot.lane.b32.xlu0 %v2436, 94
      %v3437 = vpop.permute.xlu0 %3436
      %3438 = vrot.lane.b32.xlu0 %v2437, 94
      %v3439 = vpop.permute.xlu0 %3438
      %3440 = vrot.lane.b32.xlu0 %v2438, 94
      %v3441 = vpop.permute.xlu0 %3440
      %3442 = vrot.lane.b32.xlu0 %v2439, 94
      %v3443 = vpop.permute.xlu0 %3442
      %3444 = vrot.lane.b32.xlu0 %v2440, 94
      %v3445 = vpop.permute.xlu0 %3444
      %3446 = vrot.lane.b32.xlu0 %v2441, 94
      %v3447 = vpop.permute.xlu0 %3446
      %3448 = vrot.lane.b32.xlu0 %v2442, 94
      %v3449 = vpop.permute.xlu0 %3448
      %3450 = vrot.lane.b32.xlu0 %v2443, 94
      %v3451 = vpop.permute.xlu0 %3450
      %3452 = vrot.lane.b32.xlu0 %v2444, 94
      %v3453 = vpop.permute.xlu0 %3452
      %3454 = vrot.lane.b32.xlu0 %v2445, 94
      %v3455 = vpop.permute.xlu0 %3454
      %3456 = vrot.lane.b32.xlu0 %v2446, 94
      %v3457 = vpop.permute.xlu0 %3456
      %3458 = vrot.lane.b32.xlu0 %v2447, 94
      %v3459 = vpop.permute.xlu0 %3458
      %3460 = vrot.lane.b32.xlu0 %v2448, 94
      %v3461 = vpop.permute.xlu0 %3460
      %3462 = vrot.lane.b32.xlu0 %v2449, 94
      %v3463 = vpop.permute.xlu0 %3462
      %3464 = vrot.lane.b32.xlu0 %v2450, 94
      %v3465 = vpop.permute.xlu0 %3464
      %vm3466 = vcmp.lt.s32.totalorder %v583, 94
      %v3467 = vsel %vm3466, %v3463, %v3465
      %v3468 = vsel %vm3466, %v3461, %v3463
      %v3469 = vsel %vm3466, %v3459, %v3461
      %v3470 = vsel %vm3466, %v3457, %v3459
      %v3471 = vsel %vm3466, %v3455, %v3457
      %v3472 = vsel %vm3466, %v3453, %v3455
      %v3473 = vsel %vm3466, %v3451, %v3453
      %v3474 = vsel %vm3466, %v3449, %v3451
      %v3475 = vsel %vm3466, %v3447, %v3449
      %v3476 = vsel %vm3466, %v3445, %v3447
      %v3477 = vsel %vm3466, %v3443, %v3445
      %v3478 = vsel %vm3466, %v3441, %v3443
      %v3479 = vsel %vm3466, %v3439, %v3441
      %v3480 = vsel %vm3466, %v3437, %v3439
      %v3481 = vsel %vm3466, %v3435, %v3437
      %v3482 = vsel %vm3466, %v3465, %v3435
      %v3483 = vlaneseq
      %v3484 = vshrl.u32 %v3483, 7
      %v3485 = vsub.s32 0, %v3484
      %v3486 = vrot.slane %v518, %v3485
      %v3487 = vlaneseq
      %v3488 = vshrl.u32 %v3487, 7
      %v3489 = vsub.s32 0, %v3488
      %v3490 = vrot.slane %v519, %v3489
      %v3491 = vlaneseq
      %v3492 = vshrl.u32 %v3491, 7
      %v3493 = vsub.s32 0, %v3492
      %v3494 = vrot.slane %v520, %v3493
      %v3495 = vlaneseq
      %v3496 = vshrl.u32 %v3495, 7
      %v3497 = vsub.s32 0, %v3496
      %v3498 = vrot.slane %v521, %v3497
      %v3499 = vlaneseq
      %v3500 = vshrl.u32 %v3499, 7
      %v3501 = vsub.s32 0, %v3500
      %v3502 = vrot.slane %v522, %v3501
      %v3503 = vlaneseq
      %v3504 = vshrl.u32 %v3503, 7
      %v3505 = vsub.s32 0, %v3504
      %v3506 = vrot.slane %v523, %v3505
      %v3507 = vlaneseq
      %v3508 = vshrl.u32 %v3507, 7
      %v3509 = vsub.s32 0, %v3508
      %v3510 = vrot.slane %v524, %v3509
      %v3511 = vlaneseq
      %v3512 = vshrl.u32 %v3511, 7
      %v3513 = vsub.s32 0, %v3512
      %v3514 = vrot.slane %v525, %v3513
      %v3515 = vlaneseq
      %v3516 = vshrl.u32 %v3515, 7
      %v3517 = vsub.s32 0, %v3516
      %v3518 = vrot.slane %v526, %v3517
      %v3519 = vlaneseq
      %v3520 = vshrl.u32 %v3519, 7
      %v3521 = vsub.s32 0, %v3520
      %v3522 = vrot.slane %v527, %v3521
      %v3523 = vlaneseq
      %v3524 = vshrl.u32 %v3523, 7
      %v3525 = vsub.s32 0, %v3524
      %v3526 = vrot.slane %v528, %v3525
      %v3527 = vlaneseq
      %v3528 = vshrl.u32 %v3527, 7
      %v3529 = vsub.s32 0, %v3528
      %v3530 = vrot.slane %v529, %v3529
      %v3531 = vlaneseq
      %v3532 = vshrl.u32 %v3531, 7
      %v3533 = vsub.s32 0, %v3532
      %v3534 = vrot.slane %v530, %v3533
      %v3535 = vlaneseq
      %v3536 = vshrl.u32 %v3535, 7
      %v3537 = vsub.s32 0, %v3536
      %v3538 = vrot.slane %v531, %v3537
      %v3539 = vlaneseq
      %v3540 = vshrl.u32 %v3539, 7
      %v3541 = vsub.s32 0, %v3540
      %v3542 = vrot.slane %v532, %v3541
      %v3543 = vlaneseq
      %v3544 = vshrl.u32 %v3543, 7
      %v3545 = vsub.s32 0, %v3544
      %v3546 = vrot.slane %v533, %v3545
      %v3547 = vmul.f32 %v3486, %v3481
      %v3548 = vmul.f32 %v3490, %v3480
      %v3549 = vmul.f32 %v3494, %v3479
      %v3550 = vmul.f32 %v3498, %v3478
      %v3551 = vmul.f32 %v3502, %v3477
      %v3552 = vmul.f32 %v3506, %v3476
      %v3553 = vmul.f32 %v3510, %v3475
      %v3554 = vmul.f32 %v3514, %v3474
      %v3555 = vmul.f32 %v3518, %v3473
      %v3556 = vmul.f32 %v3522, %v3472
      %v3557 = vmul.f32 %v3526, %v3471
      %v3558 = vmul.f32 %v3530, %v3470
      %v3559 = vmul.f32 %v3534, %v3469
      %v3560 = vmul.f32 %v3538, %v3468
      %v3561 = vmul.f32 %v3542, %v3467
      %v3562 = vmul.f32 %v3546, %v3482
      %v3563 = vld [vmem:[%s5] sm:$0xff]
      %v3564 = vld [vmem:[%s5 + $0x8] sm:$0xff]
      %v3565 = vld [vmem:[%s6] sm:$0xff]
      %v3566 = vld [vmem:[%s6 + $0x8] sm:$0xff]
      %3568 = vset.pattern.permute.xlu0 0
      %3569 = vperm.xlu0 %3568, %v3565
      %v3570 = vpop.permute.xlu0 %3569
      %3573 = vset.pattern.permute.xlu0 0
      %3574 = vperm.xlu0 %3573, %v3566
      %v3575 = vpop.permute.xlu0 %3574
      %v3578 = vsel %vm1671, %v3563, 0
      %v3581 = vsel %vm1671, %v3564, 0
      %3583 = vmatprep.subr.mxu0 %v2565
      %3584 = vmatpush1.msra.mxu0 %v2564
      %3585 = vmatprep.subr.mxu0 %v2694
      %3586 = vmatpush1.msra.mxu0 %v2693
      %3587 = vmatprep.subr.mxu0 %v2823
      %3588 = vmatpush1.msra.mxu0 %v2822
      %3589 = vmatprep.subr.mxu0 %v2952
      %3590 = vmatpush1.msra.mxu0 %v2951
      %3591 = vmatprep.subr.mxu0 %v3032
      %3592 = vmatpush1.msra.mxu0 %v3031
      %3593 = vmatprep.subr.mxu0 %v3161
      %3594 = vmatpush1.msra.mxu0 %v3160
      %3595 = vmatprep.subr.mxu0 %v3290
      %3596 = vmatpush1.msra.mxu0 %v3289
      %3597 = vmatprep.subr.mxu0 %v3419
      %3598 = vmatpush1.msra.mxu0 %v3418
      %3599 = vmatprep.subr.mxu0 %v3548
      %3600 = vmatpush1.msra.mxu0 %v3547
      %3601 = vmatprep.subr.mxu0 0.0
      %3602 = vmatpush1.msra.mxu0 0.0
      %3603 = vmatprep.subr.mxu0 0.0
      %3604 = vmatpush1.msra.mxu0 0.0
      %3605 = vmatprep.subr.mxu0 0.0
      %3606 = vmatpush1.msra.mxu0 0.0
      %3607 = vmatprep.subr.mxu0 0.0
      %3608 = vmatpush1.msra.mxu0 0.0
      %3609 = vmatprep.subr.mxu0 0.0
      %3610 = vmatpush1.msra.mxu0 0.0
      %3611 = vmatprep.subr.mxu0 0.0
      %3612 = vmatpush1.msra.mxu0 0.0
      %3613 = vmatprep.subr.mxu0 0.0
      %3614 = vmatpush1.msra.mxu0 0.0
      %3615 = vmatprep.subr.mxu0 0.0
      %3616 = vmatpush1.msra.mxu0 0.0
      %3617 = vmatprep.subr.mxu0 0.0
      %3618 = vmatpush1.msra.mxu0 0.0
      %3619 = vmatprep.subr.mxu0 0.0
      %3620 = vmatpush1.msra.mxu0 0.0
      %3621 = vmatprep.subr.mxu0 0.0
      %3622 = vmatpush1.msra.mxu0 0.0
      %3623 = vmatprep.subr.mxu0 0.0
      %3624 = vmatpush1.msra.mxu0 0.0
      %3625 = vmatprep.subr.mxu0 0.0
      %3626 = vmatpush1.msra.mxu0 0.0
      %3627 = vmatprep.subr.mxu0 0.0
      %3628 = vmatpush1.msra.mxu0 0.0
      %3629 = vmatprep.subr.mxu0 0.0
      %3630 = vmatpush1.msra.mxu0 0.0
      %3631 = vmatprep.subr.mxu0 0.0
      %3632 = vmatpush1.msra.mxu0 0.0
      %3633 = vmatprep.subr.mxu0 0.0
      %3634 = vmatpush1.msra.mxu0 0.0
      %3635 = vmatprep.subr.mxu0 0.0
      %3636 = vmatpush1.msra.mxu0 0.0
      %3637 = vmatprep.subr.mxu0 0.0
      %3638 = vmatpush1.msra.mxu0 0.0
      %3639 = vmatprep.subr.mxu0 0.0
      %3640 = vmatpush1.msra.mxu0 0.0
      %3641 = vmatprep.subr.mxu0 0.0
      %3642 = vmatpush1.msra.mxu0 0.0
      %3643 = vmatprep.subr.mxu0 0.0
      %3644 = vmatpush1.msra.mxu0 0.0
      %3645 = vmatprep.subr.mxu0 0.0
      %3646 = vmatpush1.msra.mxu0 0.0
      %3647 = vmatprep.mubr.f32.mxu0 0.0
      %3648 = vmatmul.mubr.f32.gmra.mrb[0].mxu0 %v3578
      %v3649 = vpop.f32.mrb[0].mxu0
      %v3650 = vadd.f32 %v3570, %v3649
      %v3651 = vpop.f32.mrb[0].mxu0
      %v3652 = vadd.f32 %v3570, %v3651
      %3653 = vmatprep.mubr.f32.mxu0 0.0
      %3654 = vmatmul.mubr.f32.gmra.mrb[0].mxu0 %v3581
      %v3655 = vpop.f32.mrb[0].mxu0
      %v3656 = vadd.f32 %v3575, %v3655
      %v3657 = vpop.f32.mrb[0].mxu0
      %v3658 = vadd.f32 %v3575, %v3657
      %3659 = vdwg.mxu0
      %3660 = vmatprep.subr.mxu0 %v2567
      %3661 = vmatpush1.msra.mxu0 %v2566
      %3662 = vmatprep.subr.mxu0 %v2696
      %3663 = vmatpush1.msra.mxu0 %v2695
      %3664 = vmatprep.subr.mxu0 %v2825
      %3665 = vmatpush1.msra.mxu0 %v2824
      %3666 = vmatprep.subr.mxu0 %v2954
      %3667 = vmatpush1.msra.mxu0 %v2953
      %3668 = vmatprep.subr.mxu0 %v3034
      %3669 = vmatpush1.msra.mxu0 %v3033
      %3670 = vmatprep.subr.mxu0 %v3163
      %3671 = vmatpush1.msra.mxu0 %v3162
      %3672 = vmatprep.subr.mxu0 %v3292
      %3673 = vmatpush1.msra.mxu0 %v3291
      %3674 = vmatprep.subr.mxu0 %v3421
      %3675 = vmatpush1.msra.mxu0 %v3420
      %3676 = vmatprep.subr.mxu0 %v3550
      %3677 = vmatpush1.msra.mxu0 %v3549
      %3678 = vmatprep.subr.mxu0 0.0
      %3679 = vmatpush1.msra.mxu0 0.0
      %3680 = vmatprep.subr.mxu0 0.0
      %3681 = vmatpush1.msra.mxu0 0.0
      %3682 = vmatprep.subr.mxu0 0.0
      %3683 = vmatpush1.msra.mxu0 0.0
      %3684 = vmatprep.subr.mxu0 0.0
      %3685 = vmatpush1.msra.mxu0 0.0
      %3686 = vmatprep.subr.mxu0 0.0
      %3687 = vmatpush1.msra.mxu0 0.0
      %3688 = vmatprep.subr.mxu0 0.0
      %3689 = vmatpush1.msra.mxu0 0.0
      %3690 = vmatprep.subr.mxu0 0.0
      %3691 = vmatpush1.msra.mxu0 0.0
      %3692 = vmatprep.subr.mxu0 0.0
      %3693 = vmatpush1.msra.mxu0 0.0
      %3694 = vmatprep.subr.mxu0 0.0
      %3695 = vmatpush1.msra.mxu0 0.0
      %3696 = vmatprep.subr.mxu0 0.0
      %3697 = vmatpush1.msra.mxu0 0.0
      %3698 = vmatprep.subr.mxu0 0.0
      %3699 = vmatpush1.msra.mxu0 0.0
      %3700 = vmatprep.subr.mxu0 0.0
      %3701 = vmatpush1.msra.mxu0 0.0
      %3702 = vmatprep.subr.mxu0 0.0
      %3703 = vmatpush1.msra.mxu0 0.0
      %3704 = vmatprep.subr.mxu0 0.0
      %3705 = vmatpush1.msra.mxu0 0.0
      %3706 = vmatprep.subr.mxu0 0.0
      %3707 = vmatpush1.msra.mxu0 0.0
      %3708 = vmatprep.subr.mxu0 0.0
      %3709 = vmatpush1.msra.mxu0 0.0
      %3710 = vmatprep.subr.mxu0 0.0
      %3711 = vmatpush1.msra.mxu0 0.0
      %3712 = vmatprep.subr.mxu0 0.0
      %3713 = vmatpush1.msra.mxu0 0.0
      %3714 = vmatprep.subr.mxu0 0.0
      %3715 = vmatpush1.msra.mxu0 0.0
      %3716 = vmatprep.subr.mxu0 0.0
      %3717 = vmatpush1.msra.mxu0 0.0
      %3718 = vmatprep.subr.mxu0 0.0
      %3719 = vmatpush1.msra.mxu0 0.0
      %3720 = vmatprep.subr.mxu0 0.0
      %3721 = vmatpush1.msra.mxu0 0.0
      %3722 = vmatprep.subr.mxu0 0.0
      %3723 = vmatpush1.msra.mxu0 0.0
      %3724 = vmatprep.mubr.f32.mxu0 0.0
      %3725 = vmatmul.mubr.f32.gmra.mrb[0].mxu0 %v3578
      %v3726 = vpop.f32.mrb[0].mxu0
      %v3727 = vadd.f32 %v3570, %v3726
      %v3728 = vpop.f32.mrb[0].mxu0
      %v3729 = vadd.f32 %v3570, %v3728
      %3730 = vmatprep.mubr.f32.mxu0 0.0
      %3731 = vmatmul.mubr.f32.gmra.mrb[0].mxu0 %v3581
      %v3732 = vpop.f32.mrb[0].mxu0
      %v3733 = vadd.f32 %v3575, %v3732
      %v3734 = vpop.f32.mrb[0].mxu0
      %v3735 = vadd.f32 %v3575, %v3734
      %3736 = vdwg.mxu0
      %3737 = vmatprep.subr.mxu0 %v2569
      %3738 = vmatpush1.msra.mxu0 %v2568
      %3739 = vmatprep.subr.mxu0 %v2698
      %3740 = vmatpush1.msra.mxu0 %v2697
      %3741 = vmatprep.subr.mxu0 %v2827
      %3742 = vmatpush1.msra.mxu0 %v2826
      %3743 = vmatprep.subr.mxu0 %v2956
      %3744 = vmatpush1.msra.mxu0 %v2955
      %3745 = vmatprep.subr.mxu0 %v3036
      %3746 = vmatpush1.msra.mxu0 %v3035
      %3747 = vmatprep.subr.mxu0 %v3165
      %3748 = vmatpush1.msra.mxu0 %v3164
      %3749 = vmatprep.subr.mxu0 %v3294
      %3750 = vmatpush1.msra.mxu0 %v3293
      %3751 = vmatprep.subr.mxu0 %v3423
      %3752 = vmatpush1.msra.mxu0 %v3422
      %3753 = vmatprep.subr.mxu0 %v3552
      %3754 = vmatpush1.msra.mxu0 %v3551
      %3755 = vmatprep.subr.mxu0 0.0
      %3756 = vmatpush1.msra.mxu0 0.0
      %3757 = vmatprep.subr.mxu0 0.0
      %3758 = vmatpush1.msra.mxu0 0.0
      %3759 = vmatprep.subr.mxu0 0.0
      %3760 = vmatpush1.msra.mxu0 0.0
      %3761 = vmatprep.subr.mxu0 0.0
      %3762 = vmatpush1.msra.mxu0 0.0
      %3763 = vmatprep.subr.mxu0 0.0
      %3764 = vmatpush1.msra.mxu0 0.0
      %3765 = vmatprep.subr.mxu0 0.0
      %3766 = vmatpush1.msra.mxu0 0.0
      %3767 = vmatprep.subr.mxu0 0.0
      %3768 = vmatpush1.msra.mxu0 0.0
      %3769 = vmatprep.subr.mxu0 0.0
      %3770 = vmatpush1.msra.mxu0 0.0
      %3771 = vmatprep.subr.mxu0 0.0
      %3772 = vmatpush1.msra.mxu0 0.0
      %3773 = vmatprep.subr.mxu0 0.0
      %3774 = vmatpush1.msra.mxu0 0.0
      %3775 = vmatprep.subr.mxu0 0.0
      %3776 = vmatpush1.msra.mxu0 0.0
      %3777 = vmatprep.subr.mxu0 0.0
      %3778 = vmatpush1.msra.mxu0 0.0
      %3779 = vmatprep.subr.mxu0 0.0
      %3780 = vmatpush1.msra.mxu0 0.0
      %3781 = vmatprep.subr.mxu0 0.0
      %3782 = vmatpush1.msra.mxu0 0.0
      %3783 = vmatprep.subr.mxu0 0.0
      %3784 = vmatpush1.msra.mxu0 0.0
      %3785 = vmatprep.subr.mxu0 0.0
      %3786 = vmatpush1.msra.mxu0 0.0
      %3787 = vmatprep.subr.mxu0 0.0
      %3788 = vmatpush1.msra.mxu0 0.0
      %3789 = vmatprep.subr.mxu0 0.0
      %3790 = vmatpush1.msra.mxu0 0.0
      %3791 = vmatprep.subr.mxu0 0.0
      %3792 = vmatpush1.msra.mxu0 0.0
      %3793 = vmatprep.subr.mxu0 0.0
      %3794 = vmatpush1.msra.mxu0 0.0
      %3795 = vmatprep.subr.mxu0 0.0
      %3796 = vmatpush1.msra.mxu0 0.0
      %3797 = vmatprep.subr.mxu0 0.0
      %3798 = vmatpush1.msra.mxu0 0.0
      %3799 = vmatprep.subr.mxu0 0.0
      %3800 = vmatpush1.msra.mxu0 0.0
      %3801 = vmatprep.mubr.f32.mxu0 0.0
      %3802 = vmatmul.mubr.f32.gmra.mrb[0].mxu0 %v3578
      %v3803 = vpop.f32.mrb[0].mxu0
      %v3804 = vadd.f32 %v3570, %v3803
      %v3805 = vpop.f32.mrb[0].mxu0
      %v3806 = vadd.f32 %v3570, %v3805
      %3807 = vmatprep.mubr.f32.mxu0 0.0
      %3808 = vmatmul.mubr.f32.gmra.mrb[0].mxu0 %v3581
      %v3809 = vpop.f32.mrb[0].mxu0
      %v3810 = vadd.f32 %v3575, %v3809
      %v3811 = vpop.f32.mrb[0].mxu0
      %v3812 = vadd.f32 %v3575, %v3811
      %3813 = vdwg.mxu0
      %3814 = vmatprep.subr.mxu0 %v2571
      %3815 = vmatpush1.msra.mxu0 %v2570
      %3816 = vmatprep.subr.mxu0 %v2700
      %3817 = vmatpush1.msra.mxu0 %v2699
      %3818 = vmatprep.subr.mxu0 %v2829
      %3819 = vmatpush1.msra.mxu0 %v2828
      %3820 = vmatprep.subr.mxu0 %v2958
      %3821 = vmatpush1.msra.mxu0 %v2957
      %3822 = vmatprep.subr.mxu0 %v3038
      %3823 = vmatpush1.msra.mxu0 %v3037
      %3824 = vmatprep.subr.mxu0 %v3167
      %3825 = vmatpush1.msra.mxu0 %v3166
      %3826 = vmatprep.subr.mxu0 %v3296
      %3827 = vmatpush1.msra.mxu0 %v3295
      %3828 = vmatprep.subr.mxu0 %v3425
      %3829 = vmatpush1.msra.mxu0 %v3424
      %3830 = vmatprep.subr.mxu0 %v3554
      %3831 = vmatpush1.msra.mxu0 %v3553
      %3832 = vmatprep.subr.mxu0 0.0
      %3833 = vmatpush1.msra.mxu0 0.0
      %3834 = vmatprep.subr.mxu0 0.0
      %3835 = vmatpush1.msra.mxu0 0.0
      %3836 = vmatprep.subr.mxu0 0.0
      %3837 = vmatpush1.msra.mxu0 0.0
      %3838 = vmatprep.subr.mxu0 0.0
      %3839 = vmatpush1.msra.mxu0 0.0
      %3840 = vmatprep.subr.mxu0 0.0
      %3841 = vmatpush1.msra.mxu0 0.0
      %3842 = vmatprep.subr.mxu0 0.0
      %3843 = vmatpush1.msra.mxu0 0.0
      %3844 = vmatprep.subr.mxu0 0.0
      %3845 = vmatpush1.msra.mxu0 0.0
      %3846 = vmatprep.subr.mxu0 0.0
      %3847 = vmatpush1.msra.mxu0 0.0
      %3848 = vmatprep.subr.mxu0 0.0
      %3849 = vmatpush1.msra.mxu0 0.0
      %3850 = vmatprep.subr.mxu0 0.0
      %3851 = vmatpush1.msra.mxu0 0.0
      %3852 = vmatprep.subr.mxu0 0.0
      %3853 = vmatpush1.msra.mxu0 0.0
      %3854 = vmatprep.subr.mxu0 0.0
      %3855 = vmatpush1.msra.mxu0 0.0
      %3856 = vmatprep.subr.mxu0 0.0
      %3857 = vmatpush1.msra.mxu0 0.0
      %3858 = vmatprep.subr.mxu0 0.0
      %3859 = vmatpush1.msra.mxu0 0.0
      %3860 = vmatprep.subr.mxu0 0.0
      %3861 = vmatpush1.msra.mxu0 0.0
      %3862 = vmatprep.subr.mxu0 0.0
      %3863 = vmatpush1.msra.mxu0 0.0
      %3864 = vmatprep.subr.mxu0 0.0
      %3865 = vmatpush1.msra.mxu0 0.0
      %3866 = vmatprep.subr.mxu0 0.0
      %3867 = vmatpush1.msra.mxu0 0.0
      %3868 = vmatprep.subr.mxu0 0.0
      %3869 = vmatpush1.msra.mxu0 0.0
      %3870 = vmatprep.subr.mxu0 0.0
      %3871 = vmatpush1.msra.mxu0 0.0
      %3872 = vmatprep.subr.mxu0 0.0
      %3873 = vmatpush1.msra.mxu0 0.0
      %3874 = vmatprep.subr.mxu0 0.0
      %3875 = vmatpush1.msra.mxu0 0.0
      %3876 = vmatprep.subr.mxu0 0.0
      %3877 = vmatpush1.msra.mxu0 0.0
      %3878 = vmatprep.mubr.f32.mxu0 0.0
      %3879 = vmatmul.mubr.f32.gmra.mrb[0].mxu0 %v3578
      %v3880 = vpop.f32.mrb[0].mxu0
      %v3881 = vadd.f32 %v3570, %v3880
      %v3882 = vpop.f32.mrb[0].mxu0
      %v3883 = vadd.f32 %v3570, %v3882
      %3884 = vmatprep.mubr.f32.mxu0 0.0
      %3885 = vmatmul.mubr.f32.gmra.mrb[0].mxu0 %v3581
      %v3886 = vpop.f32.mrb[0].mxu0
      %v3887 = vadd.f32 %v3575, %v3886
      %v3888 = vpop.f32.mrb[0].mxu0
      %v3889 = vadd.f32 %v3575, %v3888
      %3890 = vdwg.mxu0
      %3891 = vmatprep.subr.mxu0 %v2573
      %3892 = vmatpush1.msra.mxu0 %v2572
      %3893 = vmatprep.subr.mxu0 %v2702
      %3894 = vmatpush1.msra.mxu0 %v2701
      %3895 = vmatprep.subr.mxu0 %v2831
      %3896 = vmatpush1.msra.mxu0 %v2830
      %3897 = vmatprep.subr.mxu0 %v2960
      %3898 = vmatpush1.msra.mxu0 %v2959
      %3899 = vmatprep.subr.mxu0 %v3040
      %3900 = vmatpush1.msra.mxu0 %v3039
      %3901 = vmatprep.subr.mxu0 %v3169
      %3902 = vmatpush1.msra.mxu0 %v3168
      %3903 = vmatprep.subr.mxu0 %v3298
      %3904 = vmatpush1.msra.mxu0 %v3297
      %3905 = vmatprep.subr.mxu0 %v3427
      %3906 = vmatpush1.msra.mxu0 %v3426
      %3907 = vmatprep.subr.mxu0 %v3556
      %3908 = vmatpush1.msra.mxu0 %v3555
      %3909 = vmatprep.subr.mxu0 0.0
      %3910 = vmatpush1.msra.mxu0 0.0
      %3911 = vmatprep.subr.mxu0 0.0
      %3912 = vmatpush1.msra.mxu0 0.0
      %3913 = vmatprep.subr.mxu0 0.0
      %3914 = vmatpush1.msra.mxu0 0.0
      %3915 = vmatprep.subr.mxu0 0.0
      %3916 = vmatpush1.msra.mxu0 0.0
      %3917 = vmatprep.subr.mxu0 0.0
      %3918 = vmatpush1.msra.mxu0 0.0
      %3919 = vmatprep.subr.mxu0 0.0
      %3920 = vmatpush1.msra.mxu0 0.0
      %3921 = vmatprep.subr.mxu0 0.0
      %3922 = vmatpush1.msra.mxu0 0.0
      %3923 = vmatprep.subr.mxu0 0.0
      %3924 = vmatpush1.msra.mxu0 0.0
      %3925 = vmatprep.subr.mxu0 0.0
      %3926 = vmatpush1.msra.mxu0 0.0
      %3927 = vmatprep.subr.mxu0 0.0
      %3928 = vmatpush1.msra.mxu0 0.0
      %3929 = vmatprep.subr.mxu0 0.0
      %3930 = vmatpush1.msra.mxu0 0.0
      %3931 = vmatprep.subr.mxu0 0.0
      %3932 = vmatpush1.msra.mxu0 0.0
      %3933 = vmatprep.subr.mxu0 0.0
      %3934 = vmatpush1.msra.mxu0 0.0
      %3935 = vmatprep.subr.mxu0 0.0
      %3936 = vmatpush1.msra.mxu0 0.0
      %3937 = vmatprep.subr.mxu0 0.0
      %3938 = vmatpush1.msra.mxu0 0.0
      %3939 = vmatprep.subr.mxu0 0.0
      %3940 = vmatpush1.msra.mxu0 0.0
      %3941 = vmatprep.subr.mxu0 0.0
      %3942 = vmatpush1.msra.mxu0 0.0
      %3943 = vmatprep.subr.mxu0 0.0
      %3944 = vmatpush1.msra.mxu0 0.0
      %3945 = vmatprep.subr.mxu0 0.0
      %3946 = vmatpush1.msra.mxu0 0.0
      %3947 = vmatprep.subr.mxu0 0.0
      %3948 = vmatpush1.msra.mxu0 0.0
      %3949 = vmatprep.subr.mxu0 0.0
      %3950 = vmatpush1.msra.mxu0 0.0
      %3951 = vmatprep.subr.mxu0 0.0
      %3952 = vmatpush1.msra.mxu0 0.0
      %3953 = vmatprep.subr.mxu0 0.0
      %3954 = vmatpush1.msra.mxu0 0.0
      %3955 = vmatprep.mubr.f32.mxu0 0.0
      %3956 = vmatmul.mubr.f32.gmra.mrb[0].mxu0 %v3578
      %v3957 = vpop.f32.mrb[0].mxu0
      %v3958 = vadd.f32 %v3570, %v3957
      %v3959 = vpop.f32.mrb[0].mxu0
      %v3960 = vadd.f32 %v3570, %v3959
      %3961 = vmatprep.mubr.f32.mxu0 0.0
      %3962 = vmatmul.mubr.f32.gmra.mrb[0].mxu0 %v3581
      %v3963 = vpop.f32.mrb[0].mxu0
      %v3964 = vadd.f32 %v3575, %v3963
      %v3965 = vpop.f32.mrb[0].mxu0
      %v3966 = vadd.f32 %v3575, %v3965
      %3967 = vdwg.mxu0
      %3968 = vmatprep.subr.mxu0 %v2575
      %3969 = vmatpush1.msra.mxu0 %v2574
      %3970 = vmatprep.subr.mxu0 %v2704
      %3971 = vmatpush1.msra.mxu0 %v2703
      %3972 = vmatprep.subr.mxu0 %v2833
      %3973 = vmatpush1.msra.mxu0 %v2832
      %3974 = vmatprep.subr.mxu0 %v2962
      %3975 = vmatpush1.msra.mxu0 %v2961
      %3976 = vmatprep.subr.mxu0 %v3042
      %3977 = vmatpush1.msra.mxu0 %v3041
      %3978 = vmatprep.subr.mxu0 %v3171
      %3979 = vmatpush1.msra.mxu0 %v3170
      %3980 = vmatprep.subr.mxu0 %v3300
      %3981 = vmatpush1.msra.mxu0 %v3299
      %3982 = vmatprep.subr.mxu0 %v3429
      %3983 = vmatpush1.msra.mxu0 %v3428
      %3984 = vmatprep.subr.mxu0 %v3558
      %3985 = vmatpush1.msra.mxu0 %v3557
      %3986 = vmatprep.subr.mxu0 0.0
      %3987 = vmatpush1.msra.mxu0 0.0
      %3988 = vmatprep.subr.mxu0 0.0
      %3989 = vmatpush1.msra.mxu0 0.0
      %3990 = vmatprep.subr.mxu0 0.0
      %3991 = vmatpush1.msra.mxu0 0.0
      %3992 = vmatprep.subr.mxu0 0.0
      %3993 = vmatpush1.msra.mxu0 0.0
      %3994 = vmatprep.subr.mxu0 0.0
      %3995 = vmatpush1.msra.mxu0 0.0
      %3996 = vmatprep.subr.mxu0 0.0
      %3997 = vmatpush1.msra.mxu0 0.0
      %3998 = vmatprep.subr.mxu0 0.0
      %3999 = vmatpush1.msra.mxu0 0.0
      %4000 = vmatprep.subr.mxu0 0.0
      %4001 = vmatpush1.msra.mxu0 0.0
      %4002 = vmatprep.subr.mxu0 0.0
      %4003 = vmatpush1.msra.mxu0 0.0
      %4004 = vmatprep.subr.mxu0 0.0
      %4005 = vmatpush1.msra.mxu0 0.0
      %4006 = vmatprep.subr.mxu0 0.0
      %4007 = vmatpush1.msra.mxu0 0.0
      %4008 = vmatprep.subr.mxu0 0.0
      %4009 = vmatpush1.msra.mxu0 0.0
      %4010 = vmatprep.subr.mxu0 0.0
      %4011 = vmatpush1.msra.mxu0 0.0
      %4012 = vmatprep.subr.mxu0 0.0
      %4013 = vmatpush1.msra.mxu0 0.0
      %4014 = vmatprep.subr.mxu0 0.0
      %4015 = vmatpush1.msra.mxu0 0.0
      %4016 = vmatprep.subr.mxu0 0.0
      %4017 = vmatpush1.msra.mxu0 0.0
      %4018 = vmatprep.subr.mxu0 0.0
      %4019 = vmatpush1.msra.mxu0 0.0
      %4020 = vmatprep.subr.mxu0 0.0
      %4021 = vmatpush1.msra.mxu0 0.0
      %4022 = vmatprep.subr.mxu0 0.0
      %4023 = vmatpush1.msra.mxu0 0.0
      %4024 = vmatprep.subr.mxu0 0.0
      %4025 = vmatpush1.msra.mxu0 0.0
      %4026 = vmatprep.subr.mxu0 0.0
      %4027 = vmatpush1.msra.mxu0 0.0
      %4028 = vmatprep.subr.mxu0 0.0
      %4029 = vmatpush1.msra.mxu0 0.0
      %4030 = vmatprep.subr.mxu0 0.0
      %4031 = vmatpush1.msra.mxu0 0.0
      %4032 = vmatprep.mubr.f32.mxu0 0.0
      %4033 = vmatmul.mubr.f32.gmra.mrb[0].mxu0 %v3578
      %v4034 = vpop.f32.mrb[0].mxu0
      %v4035 = vadd.f32 %v3570, %v4034
      %v4036 = vpop.f32.mrb[0].mxu0
      %v4037 = vadd.f32 %v3570, %v4036
      %4038 = vmatprep.mubr.f32.mxu0 0.0
      %4039 = vmatmul.mubr.f32.gmra.mrb[0].mxu0 %v3581
      %v4040 = vpop.f32.mrb[0].mxu0
      %v4041 = vadd.f32 %v3575, %v4040
      %v4042 = vpop.f32.mrb[0].mxu0
      %v4043 = vadd.f32 %v3575, %v4042
      %4044 = vdwg.mxu0
      %4045 = vmatprep.subr.mxu0 %v2577
      %4046 = vmatpush1.msra.mxu0 %v2576
      %4047 = vmatprep.subr.mxu0 %v2706
      %4048 = vmatpush1.msra.mxu0 %v2705
      %4049 = vmatprep.subr.mxu0 %v2835
      %4050 = vmatpush1.msra.mxu0 %v2834
      %4051 = vmatprep.subr.mxu0 %v2964
      %4052 = vmatpush1.msra.mxu0 %v2963
      %4053 = vmatprep.subr.mxu0 %v3044
      %4054 = vmatpush1.msra.mxu0 %v3043
      %4055 = vmatprep.subr.mxu0 %v3173
      %4056 = vmatpush1.msra.mxu0 %v3172
      %4057 = vmatprep.subr.mxu0 %v3302
      %4058 = vmatpush1.msra.mxu0 %v3301
      %4059 = vmatprep.subr.mxu0 %v3431
      %4060 = vmatpush1.msra.mxu0 %v3430
      %4061 = vmatprep.subr.mxu0 %v3560
      %4062 = vmatpush1.msra.mxu0 %v3559
      %4063 = vmatprep.subr.mxu0 0.0
      %4064 = vmatpush1.msra.mxu0 0.0
      %4065 = vmatprep.subr.mxu0 0.0
      %4066 = vmatpush1.msra.mxu0 0.0
      %4067 = vmatprep.subr.mxu0 0.0
      %4068 = vmatpush1.msra.mxu0 0.0
      %4069 = vmatprep.subr.mxu0 0.0
      %4070 = vmatpush1.msra.mxu0 0.0
      %4071 = vmatprep.subr.mxu0 0.0
      %4072 = vmatpush1.msra.mxu0 0.0
      %4073 = vmatprep.subr.mxu0 0.0
      %4074 = vmatpush1.msra.mxu0 0.0
      %4075 = vmatprep.subr.mxu0 0.0
      %4076 = vmatpush1.msra.mxu0 0.0
      %4077 = vmatprep.subr.mxu0 0.0
      %4078 = vmatpush1.msra.mxu0 0.0
      %4079 = vmatprep.subr.mxu0 0.0
      %4080 = vmatpush1.msra.mxu0 0.0
      %4081 = vmatprep.subr.mxu0 0.0
      %4082 = vmatpush1.msra.mxu0 0.0
      %4083 = vmatprep.subr.mxu0 0.0
      %4084 = vmatpush1.msra.mxu0 0.0
      %4085 = vmatprep.subr.mxu0 0.0
      %4086 = vmatpush1.msra.mxu0 0.0
      %4087 = vmatprep.subr.mxu0 0.0
      %4088 = vmatpush1.msra.mxu0 0.0
      %4089 = vmatprep.subr.mxu0 0.0
      %4090 = vmatpush1.msra.mxu0 0.0
      %4091 = vmatprep.subr.mxu0 0.0
      %4092 = vmatpush1.msra.mxu0 0.0
      %4093 = vmatprep.subr.mxu0 0.0
      %4094 = vmatpush1.msra.mxu0 0.0
      %4095 = vmatprep.subr.mxu0 0.0
      %4096 = vmatpush1.msra.mxu0 0.0
      %4097 = vmatprep.subr.mxu0 0.0
      %4098 = vmatpush1.msra.mxu0 0.0
      %4099 = vmatprep.subr.mxu0 0.0
      %4100 = vmatpush1.msra.mxu0 0.0
      %4101 = vmatprep.subr.mxu0 0.0
      %4102 = vmatpush1.msra.mxu0 0.0
      %4103 = vmatprep.subr.mxu0 0.0
      %4104 = vmatpush1.msra.mxu0 0.0
      %4105 = vmatprep.subr.mxu0 0.0
      %4106 = vmatpush1.msra.mxu0 0.0
      %4107 = vmatprep.subr.mxu0 0.0
      %4108 = vmatpush1.msra.mxu0 0.0
      %4109 = vmatprep.mubr.f32.mxu0 0.0
      %4110 = vmatmul.mubr.f32.gmra.mrb[0].mxu0 %v3578
      %v4111 = vpop.f32.mrb[0].mxu0
      %v4112 = vadd.f32 %v3570, %v4111
      %v4113 = vpop.f32.mrb[0].mxu0
      %v4114 = vadd.f32 %v3570, %v4113
      %4115 = vmatprep.mubr.f32.mxu0 0.0
      %4116 = vmatmul.mubr.f32.gmra.mrb[0].mxu0 %v3581
      %v4117 = vpop.f32.mrb[0].mxu0
      %v4118 = vadd.f32 %v3575, %v4117
      %v4119 = vpop.f32.mrb[0].mxu0
      %v4120 = vadd.f32 %v3575, %v4119
      %4121 = vdwg.mxu0
      %4122 = vmatprep.subr.mxu0 %v2579
      %4123 = vmatpush1.msra.mxu0 %v2578
      %4124 = vmatprep.subr.mxu0 %v2708
      %4125 = vmatpush1.msra.mxu0 %v2707
      %4126 = vmatprep.subr.mxu0 %v2837
      %4127 = vmatpush1.msra.mxu0 %v2836
      %4128 = vmatprep.subr.mxu0 %v2966
      %4129 = vmatpush1.msra.mxu0 %v2965
      %4130 = vmatprep.subr.mxu0 %v3046
      %4131 = vmatpush1.msra.mxu0 %v3045
      %4132 = vmatprep.subr.mxu0 %v3175
      %4133 = vmatpush1.msra.mxu0 %v3174
      %4134 = vmatprep.subr.mxu0 %v3304
      %4135 = vmatpush1.msra.mxu0 %v3303
      %4136 = vmatprep.subr.mxu0 %v3433
      %4137 = vmatpush1.msra.mxu0 %v3432
      %4138 = vmatprep.subr.mxu0 %v3562
      %4139 = vmatpush1.msra.mxu0 %v3561
      %4140 = vmatprep.subr.mxu0 0.0
      %4141 = vmatpush1.msra.mxu0 0.0
      %4142 = vmatprep.subr.mxu0 0.0
      %4143 = vmatpush1.msra.mxu0 0.0
      %4144 = vmatprep.subr.mxu0 0.0
      %4145 = vmatpush1.msra.mxu0 0.0
      %4146 = vmatprep.subr.mxu0 0.0
      %4147 = vmatpush1.msra.mxu0 0.0
      %4148 = vmatprep.subr.mxu0 0.0
      %4149 = vmatpush1.msra.mxu0 0.0
      %4150 = vmatprep.subr.mxu0 0.0
      %4151 = vmatpush1.msra.mxu0 0.0
      %4152 = vmatprep.subr.mxu0 0.0
      %4153 = vmatpush1.msra.mxu0 0.0
      %4154 = vmatprep.subr.mxu0 0.0
      %4155 = vmatpush1.msra.mxu0 0.0
      %4156 = vmatprep.subr.mxu0 0.0
      %4157 = vmatpush1.msra.mxu0 0.0
      %4158 = vmatprep.subr.mxu0 0.0
      %4159 = vmatpush1.msra.mxu0 0.0
      %4160 = vmatprep.subr.mxu0 0.0
      %4161 = vmatpush1.msra.mxu0 0.0
      %4162 = vmatprep.subr.mxu0 0.0
      %4163 = vmatpush1.msra.mxu0 0.0
      %4164 = vmatprep.subr.mxu0 0.0
      %4165 = vmatpush1.msra.mxu0 0.0
      %4166 = vmatprep.subr.mxu0 0.0
      %4167 = vmatpush1.msra.mxu0 0.0
      %4168 = vmatprep.subr.mxu0 0.0
      %4169 = vmatpush1.msra.mxu0 0.0
      %4170 = vmatprep.subr.mxu0 0.0
      %4171 = vmatpush1.msra.mxu0 0.0
      %4172 = vmatprep.subr.mxu0 0.0
      %4173 = vmatpush1.msra.mxu0 0.0
      %4174 = vmatprep.subr.mxu0 0.0
      %4175 = vmatpush1.msra.mxu0 0.0
      %4176 = vmatprep.subr.mxu0 0.0
      %4177 = vmatpush1.msra.mxu0 0.0
      %4178 = vmatprep.subr.mxu0 0.0
      %4179 = vmatpush1.msra.mxu0 0.0
      %4180 = vmatprep.subr.mxu0 0.0
      %4181 = vmatpush1.msra.mxu0 0.0
      %4182 = vmatprep.subr.mxu0 0.0
      %4183 = vmatpush1.msra.mxu0 0.0
      %4184 = vmatprep.subr.mxu0 0.0
      %4185 = vmatpush1.msra.mxu0 0.0
      %4186 = vmatprep.mubr.f32.mxu0 0.0
      %4187 = vmatmul.mubr.f32.gmra.mrb[0].mxu0 %v3578
      %v4188 = vpop.f32.mrb[0].mxu0
      %v4189 = vadd.f32 %v3570, %v4188
      %v4190 = vpop.f32.mrb[0].mxu0
      %v4191 = vadd.f32 %v3570, %v4190
      %4192 = vmatprep.mubr.f32.mxu0 0.0
      %4193 = vmatmul.mubr.f32.gmra.mrb[0].mxu0 %v3581
      %v4194 = vpop.f32.mrb[0].mxu0
      %v4195 = vadd.f32 %v3575, %v4194
      %v4196 = vpop.f32.mrb[0].mxu0
      %v4197 = vadd.f32 %v3575, %v4196
      %4198 = vdwg.mxu0
      %v4199 = vmax.f32 %v3650, 0.0
      %v4200 = vmax.f32 %v3652, 0.0
      %v4201 = vmax.f32 %v3727, 0.0
      %v4202 = vmax.f32 %v3729, 0.0
      %v4203 = vmax.f32 %v3804, 0.0
      %v4204 = vmax.f32 %v3806, 0.0
      %v4205 = vmax.f32 %v3881, 0.0
      %v4206 = vmax.f32 %v3883, 0.0
      %v4207 = vmax.f32 %v3958, 0.0
      %v4208 = vmax.f32 %v3960, 0.0
      %v4209 = vmax.f32 %v4035, 0.0
      %v4210 = vmax.f32 %v4037, 0.0
      %v4211 = vmax.f32 %v4112, 0.0
      %v4212 = vmax.f32 %v4114, 0.0
      %v4213 = vmax.f32 %v4189, 0.0
      %v4214 = vmax.f32 %v4191, 0.0
      %v4215 = vmax.f32 %v3656, 0.0
      %v4216 = vmax.f32 %v3658, 0.0
      %v4217 = vmax.f32 %v3733, 0.0
      %v4218 = vmax.f32 %v3735, 0.0
      %v4219 = vmax.f32 %v3810, 0.0
      %v4220 = vmax.f32 %v3812, 0.0
      %v4221 = vmax.f32 %v3887, 0.0
      %v4222 = vmax.f32 %v3889, 0.0
      %v4223 = vmax.f32 %v3964, 0.0
      %v4224 = vmax.f32 %v3966, 0.0
      %v4225 = vmax.f32 %v4041, 0.0
      %v4226 = vmax.f32 %v4043, 0.0
      %v4227 = vmax.f32 %v4118, 0.0
      %v4228 = vmax.f32 %v4120, 0.0
      %v4229 = vmax.f32 %v4195, 0.0
      %v4230 = vmax.f32 %v4197, 0.0
      %4231 = vrot.lane.b32.xlu0 %v4199, 34
      %v4232 = vpop.permute.xlu0 %4231
      %4233 = vrot.lane.b32.xlu0 %v4215, 34
      %v4234 = vpop.permute.xlu0 %4233
      %4235 = vrot.lane.b32.xlu0 %v4200, 34
      %v4236 = vpop.permute.xlu0 %4235
      %4237 = vrot.lane.b32.xlu0 %v4216, 34
      %v4238 = vpop.permute.xlu0 %4237
      %4239 = vrot.lane.b32.xlu0 %v4201, 34
      %v4240 = vpop.permute.xlu0 %4239
      %4241 = vrot.lane.b32.xlu0 %v4217, 34
      %v4242 = vpop.permute.xlu0 %4241
      %4243 = vrot.lane.b32.xlu0 %v4202, 34
      %v4244 = vpop.permute.xlu0 %4243
      %4245 = vrot.lane.b32.xlu0 %v4218, 34
      %v4246 = vpop.permute.xlu0 %4245
      %4247 = vrot.lane.b32.xlu0 %v4203, 34
      %v4248 = vpop.permute.xlu0 %4247
      %4249 = vrot.lane.b32.xlu0 %v4219, 34
      %v4250 = vpop.permute.xlu0 %4249
      %4251 = vrot.lane.b32.xlu0 %v4204, 34
      %v4252 = vpop.permute.xlu0 %4251
      %4253 = vrot.lane.b32.xlu0 %v4220, 34
      %v4254 = vpop.permute.xlu0 %4253
      %4255 = vrot.lane.b32.xlu0 %v4205, 34
      %v4256 = vpop.permute.xlu0 %4255
      %4257 = vrot.lane.b32.xlu0 %v4221, 34
      %v4258 = vpop.permute.xlu0 %4257
      %4259 = vrot.lane.b32.xlu0 %v4206, 34
      %v4260 = vpop.permute.xlu0 %4259
      %4261 = vrot.lane.b32.xlu0 %v4222, 34
      %v4262 = vpop.permute.xlu0 %4261
      %4263 = vrot.lane.b32.xlu0 %v4207, 34
      %v4264 = vpop.permute.xlu0 %4263
      %4265 = vrot.lane.b32.xlu0 %v4223, 34
      %v4266 = vpop.permute.xlu0 %4265
      %4267 = vrot.lane.b32.xlu0 %v4208, 34
      %v4268 = vpop.permute.xlu0 %4267
      %4269 = vrot.lane.b32.xlu0 %v4224, 34
      %v4270 = vpop.permute.xlu0 %4269
      %4271 = vrot.lane.b32.xlu0 %v4209, 34
      %v4272 = vpop.permute.xlu0 %4271
      %4273 = vrot.lane.b32.xlu0 %v4225, 34
      %v4274 = vpop.permute.xlu0 %4273
      %4275 = vrot.lane.b32.xlu0 %v4210, 34
      %v4276 = vpop.permute.xlu0 %4275
      %4277 = vrot.lane.b32.xlu0 %v4226, 34
      %v4278 = vpop.permute.xlu0 %4277
      %4279 = vrot.lane.b32.xlu0 %v4211, 34
      %v4280 = vpop.permute.xlu0 %4279
      %4281 = vrot.lane.b32.xlu0 %v4227, 34
      %v4282 = vpop.permute.xlu0 %4281
      %4283 = vrot.lane.b32.xlu0 %v4212, 34
      %v4284 = vpop.permute.xlu0 %4283
      %4285 = vrot.lane.b32.xlu0 %v4228, 34
      %v4286 = vpop.permute.xlu0 %4285
      %4287 = vrot.lane.b32.xlu0 %v4213, 34
      %v4288 = vpop.permute.xlu0 %4287
      %4289 = vrot.lane.b32.xlu0 %v4229, 34
      %v4290 = vpop.permute.xlu0 %4289
      %4291 = vrot.lane.b32.xlu0 %v4214, 34
      %v4292 = vpop.permute.xlu0 %4291
      %4293 = vrot.lane.b32.xlu0 %v4230, 34
      %v4294 = vpop.permute.xlu0 %4293
      %v4295 = vsel %vm2483, %v4288, %v4292
      %v4296 = vsel %vm2483, %v4290, %v4294
      %v4297 = vsel %vm2483, %v4284, %v4288
      %v4298 = vsel %vm2483, %v4286, %v4290
      %v4299 = vsel %vm2483, %v4280, %v4284
      %v4300 = vsel %vm2483, %v4282, %v4286
      %v4301 = vsel %vm2483, %v4276, %v4280
      %v4302 = vsel %vm2483, %v4278, %v4282
      %v4303 = vsel %vm2483, %v4272, %v4276
      %v4304 = vsel %vm2483, %v4274, %v4278
      %v4305 = vsel %vm2483, %v4268, %v4272
      %v4306 = vsel %vm2483, %v4270, %v4274
      %v4307 = vsel %vm2483, %v4264, %v4268
      %v4308 = vsel %vm2483, %v4266, %v4270
      %v4309 = vsel %vm2483, %v4260, %v4264
      %v4310 = vsel %vm2483, %v4262, %v4266
      %v4311 = vsel %vm2483, %v4256, %v4260
      %v4312 = vsel %vm2483, %v4258, %v4262
      %v4313 = vsel %vm2483, %v4252, %v4256
      %v4314 = vsel %vm2483, %v4254, %v4258
      %v4315 = vsel %vm2483, %v4248, %v4252
      %v4316 = vsel %vm2483, %v4250, %v4254
      %v4317 = vsel %vm2483, %v4244, %v4248
      %v4318 = vsel %vm2483, %v4246, %v4250
      %v4319 = vsel %vm2483, %v4240, %v4244
      %v4320 = vsel %vm2483, %v4242, %v4246
      %v4321 = vsel %vm2483, %v4236, %v4240
      %v4322 = vsel %vm2483, %v4238, %v4242
      %v4323 = vsel %vm2483, %v4232, %v4236
      %v4324 = vsel %vm2483, %v4234, %v4238
      %v4325 = vsel %vm2483, %v4292, %v4232
      %v4326 = vsel %vm2483, %v4294, %v4234
      %v4327 = vmul.f32 %v2503, %v4325
      %v4328 = vmul.f32 %v2507, %v4323
      %v4329 = vmul.f32 %v2511, %v4321
      %v4330 = vmul.f32 %v2515, %v4319
      %v4331 = vmul.f32 %v2519, %v4317
      %v4332 = vmul.f32 %v2523, %v4315
      %v4333 = vmul.f32 %v2527, %v4313
      %v4334 = vmul.f32 %v2531, %v4311
      %v4335 = vmul.f32 %v2535, %v4309
      %v4336 = vmul.f32 %v2539, %v4307
      %v4337 = vmul.f32 %v2543, %v4305
      %v4338 = vmul.f32 %v2547, %v4303
      %v4339 = vmul.f32 %v2551, %v4301
      %v4340 = vmul.f32 %v2555, %v4299
      %v4341 = vmul.f32 %v2559, %v4297
      %v4342 = vmul.f32 %v2563, %v4295
      %v4343 = vmul.f32 %v2503, %v4326
      %v4344 = vmul.f32 %v2507, %v4324
      %v4345 = vmul.f32 %v2511, %v4322
      %v4346 = vmul.f32 %v2515, %v4320
      %v4347 = vmul.f32 %v2519, %v4318
      %v4348 = vmul.f32 %v2523, %v4316
      %v4349 = vmul.f32 %v2527, %v4314
      %v4350 = vmul.f32 %v2531, %v4312
      %v4351 = vmul.f32 %v2535, %v4310
      %v4352 = vmul.f32 %v2539, %v4308
      %v4353 = vmul.f32 %v2543, %v4306
      %v4354 = vmul.f32 %v2547, %v4304
      %v4355 = vmul.f32 %v2551, %v4302
      %v4356 = vmul.f32 %v2555, %v4300
      %v4357 = vmul.f32 %v2559, %v4298
      %v4358 = vmul.f32 %v2563, %v4296
      %4359 = vrot.lane.b32.xlu0 %v4199, 32
      %v4360 = vpop.permute.xlu0 %4359
      %4361 = vrot.lane.b32.xlu0 %v4215, 32
      %v4362 = vpop.permute.xlu0 %4361
      %4363 = vrot.lane.b32.xlu0 %v4200, 32
      %v4364 = vpop.permute.xlu0 %4363
      %4365 = vrot.lane.b32.xlu0 %v4216, 32
      %v4366 = vpop.permute.xlu0 %4365
      %4367 = vrot.lane.b32.xlu0 %v4201, 32
      %v4368 = vpop.permute.xlu0 %4367
      %4369 = vrot.lane.b32.xlu0 %v4217, 32
      %v4370 = vpop.permute.xlu0 %4369
      %4371 = vrot.lane.b32.xlu0 %v4202, 32
      %v4372 = vpop.permute.xlu0 %4371
      %4373 = vrot.lane.b32.xlu0 %v4218, 32
      %v4374 = vpop.permute.xlu0 %4373
      %4375 = vrot.lane.b32.xlu0 %v4203, 32
      %v4376 = vpop.permute.xlu0 %4375
      %4377 = vrot.lane.b32.xlu0 %v4219, 32
      %v4378 = vpop.permute.xlu0 %4377
      %4379 = vrot.lane.b32.xlu0 %v4204, 32
      %v4380 = vpop.permute.xlu0 %4379
      %4381 = vrot.lane.b32.xlu0 %v4220, 32
      %v4382 = vpop.permute.xlu0 %4381
      %4383 = vrot.lane.b32.xlu0 %v4205, 32
      %v4384 = vpop.permute.xlu0 %4383
      %4385 = vrot.lane.b32.xlu0 %v4221, 32
      %v4386 = vpop.permute.xlu0 %4385
      %4387 = vrot.lane.b32.xlu0 %v4206, 32
      %v4388 = vpop.permute.xlu0 %4387
      %4389 = vrot.lane.b32.xlu0 %v4222, 32
      %v4390 = vpop.permute.xlu0 %4389
      %4391 = vrot.lane.b32.xlu0 %v4207, 32
      %v4392 = vpop.permute.xlu0 %4391
      %4393 = vrot.lane.b32.xlu0 %v4223, 32
      %v4394 = vpop.permute.xlu0 %4393
      %4395 = vrot.lane.b32.xlu0 %v4208, 32
      %v4396 = vpop.permute.xlu0 %4395
      %4397 = vrot.lane.b32.xlu0 %v4224, 32
      %v4398 = vpop.permute.xlu0 %4397
      %4399 = vrot.lane.b32.xlu0 %v4209, 32
      %v4400 = vpop.permute.xlu0 %4399
      %4401 = vrot.lane.b32.xlu0 %v4225, 32
      %v4402 = vpop.permute.xlu0 %4401
      %4403 = vrot.lane.b32.xlu0 %v4210, 32
      %v4404 = vpop.permute.xlu0 %4403
      %4405 = vrot.lane.b32.xlu0 %v4226, 32
      %v4406 = vpop.permute.xlu0 %4405
      %4407 = vrot.lane.b32.xlu0 %v4211, 32
      %v4408 = vpop.permute.xlu0 %4407
      %4409 = vrot.lane.b32.xlu0 %v4227, 32
      %v4410 = vpop.permute.xlu0 %4409
      %4411 = vrot.lane.b32.xlu0 %v4212, 32
      %v4412 = vpop.permute.xlu0 %4411
      %4413 = vrot.lane.b32.xlu0 %v4228, 32
      %v4414 = vpop.permute.xlu0 %4413
      %4415 = vrot.lane.b32.xlu0 %v4213, 32
      %v4416 = vpop.permute.xlu0 %4415
      %4417 = vrot.lane.b32.xlu0 %v4229, 32
      %v4418 = vpop.permute.xlu0 %4417
      %4419 = vrot.lane.b32.xlu0 %v4214, 32
      %v4420 = vpop.permute.xlu0 %4419
      %4421 = vrot.lane.b32.xlu0 %v4230, 32
      %v4422 = vpop.permute.xlu0 %4421
      %v4423 = vsel %vm2612, %v4416, %v4420
      %v4424 = vsel %vm2612, %v4418, %v4422
      %v4425 = vsel %vm2612, %v4412, %v4416
      %v4426 = vsel %vm2612, %v4414, %v4418
      %v4427 = vsel %vm2612, %v4408, %v4412
      %v4428 = vsel %vm2612, %v4410, %v4414
      %v4429 = vsel %vm2612, %v4404, %v4408
      %v4430 = vsel %vm2612, %v4406, %v4410
      %v4431 = vsel %vm2612, %v4400, %v4404
      %v4432 = vsel %vm2612, %v4402, %v4406
      %v4433 = vsel %vm2612, %v4396, %v4400
      %v4434 = vsel %vm2612, %v4398, %v4402
      %v4435 = vsel %vm2612, %v4392, %v4396
      %v4436 = vsel %vm2612, %v4394, %v4398
      %v4437 = vsel %vm2612, %v4388, %v4392
      %v4438 = vsel %vm2612, %v4390, %v4394
      %v4439 = vsel %vm2612, %v4384, %v4388
      %v4440 = vsel %vm2612, %v4386, %v4390
      %v4441 = vsel %vm2612, %v4380, %v4384
      %v4442 = vsel %vm2612, %v4382, %v4386
      %v4443 = vsel %vm2612, %v4376, %v4380
      %v4444 = vsel %vm2612, %v4378, %v4382
      %v4445 = vsel %vm2612, %v4372, %v4376
      %v4446 = vsel %vm2612, %v4374, %v4378
      %v4447 = vsel %vm2612, %v4368, %v4372
      %v4448 = vsel %vm2612, %v4370, %v4374
      %v4449 = vsel %vm2612, %v4364, %v4368
      %v4450 = vsel %vm2612, %v4366, %v4370
      %v4451 = vsel %vm2612, %v4360, %v4364
      %v4452 = vsel %vm2612, %v4362, %v4366
      %v4453 = vsel %vm2612, %v4420, %v4360
      %v4454 = vsel %vm2612, %v4422, %v4362
      %v4455 = vmul.f32 %v2632, %v4453
      %v4456 = vmul.f32 %v2636, %v4451
      %v4457 = vmul.f32 %v2640, %v4449
      %v4458 = vmul.f32 %v2644, %v4447
      %v4459 = vmul.f32 %v2648, %v4445
      %v4460 = vmul.f32 %v2652, %v4443
      %v4461 = vmul.f32 %v2656, %v4441
      %v4462 = vmul.f32 %v2660, %v4439
      %v4463 = vmul.f32 %v2664, %v4437
      %v4464 = vmul.f32 %v2668, %v4435
      %v4465 = vmul.f32 %v2672, %v4433
      %v4466 = vmul.f32 %v2676, %v4431
      %v4467 = vmul.f32 %v2680, %v4429
      %v4468 = vmul.f32 %v2684, %v4427
      %v4469 = vmul.f32 %v2688, %v4425
      %v4470 = vmul.f32 %v2692, %v4423
      %v4471 = vmul.f32 %v2632, %v4454
      %v4472 = vmul.f32 %v2636, %v4452
      %v4473 = vmul.f32 %v2640, %v4450
      %v4474 = vmul.f32 %v2644, %v4448
      %v4475 = vmul.f32 %v2648, %v4446
      %v4476 = vmul.f32 %v2652, %v4444
      %v4477 = vmul.f32 %v2656, %v4442
      %v4478 = vmul.f32 %v2660, %v4440
      %v4479 = vmul.f32 %v2664, %v4438
      %v4480 = vmul.f32 %v2668, %v4436
      %v4481 = vmul.f32 %v2672, %v4434
      %v4482 = vmul.f32 %v2676, %v4432
      %v4483 = vmul.f32 %v2680, %v4430
      %v4484 = vmul.f32 %v2684, %v4428
      %v4485 = vmul.f32 %v2688, %v4426
      %v4486 = vmul.f32 %v2692, %v4424
      %4487 = vrot.lane.b32.xlu0 %v4199, 30
      %v4488 = vpop.permute.xlu0 %4487
      %4489 = vrot.lane.b32.xlu0 %v4215, 30
      %v4490 = vpop.permute.xlu0 %4489
      %4491 = vrot.lane.b32.xlu0 %v4200, 30
      %v4492 = vpop.permute.xlu0 %4491
      %4493 = vrot.lane.b32.xlu0 %v4216, 30
      %v4494 = vpop.permute.xlu0 %4493
      %4495 = vrot.lane.b32.xlu0 %v4201, 30
      %v4496 = vpop.permute.xlu0 %4495
      %4497 = vrot.lane.b32.xlu0 %v4217, 30
      %v4498 = vpop.permute.xlu0 %4497
      %4499 = vrot.lane.b32.xlu0 %v4202, 30
      %v4500 = vpop.permute.xlu0 %4499
      %4501 = vrot.lane.b32.xlu0 %v4218, 30
      %v4502 = vpop.permute.xlu0 %4501
      %4503 = vrot.lane.b32.xlu0 %v4203, 30
      %v4504 = vpop.permute.xlu0 %4503
      %4505 = vrot.lane.b32.xlu0 %v4219, 30
      %v4506 = vpop.permute.xlu0 %4505
      %4507 = vrot.lane.b32.xlu0 %v4204, 30
      %v4508 = vpop.permute.xlu0 %4507
      %4509 = vrot.lane.b32.xlu0 %v4220, 30
      %v4510 = vpop.permute.xlu0 %4509
      %4511 = vrot.lane.b32.xlu0 %v4205, 30
      %v4512 = vpop.permute.xlu0 %4511
      %4513 = vrot.lane.b32.xlu0 %v4221, 30
      %v4514 = vpop.permute.xlu0 %4513
      %4515 = vrot.lane.b32.xlu0 %v4206, 30
      %v4516 = vpop.permute.xlu0 %4515
      %4517 = vrot.lane.b32.xlu0 %v4222, 30
      %v4518 = vpop.permute.xlu0 %4517
      %4519 = vrot.lane.b32.xlu0 %v4207, 30
      %v4520 = vpop.permute.xlu0 %4519
      %4521 = vrot.lane.b32.xlu0 %v4223, 30
      %v4522 = vpop.permute.xlu0 %4521
      %4523 = vrot.lane.b32.xlu0 %v4208, 30
      %v4524 = vpop.permute.xlu0 %4523
      %4525 = vrot.lane.b32.xlu0 %v4224, 30
      %v4526 = vpop.permute.xlu0 %4525
      %4527 = vrot.lane.b32.xlu0 %v4209, 30
      %v4528 = vpop.permute.xlu0 %4527
      %4529 = vrot.lane.b32.xlu0 %v4225, 30
      %v4530 = vpop.permute.xlu0 %4529
      %4531 = vrot.lane.b32.xlu0 %v4210, 30
      %v4532 = vpop.permute.xlu0 %4531
      %4533 = vrot.lane.b32.xlu0 %v4226, 30
      %v4534 = vpop.permute.xlu0 %4533
      %4535 = vrot.lane.b32.xlu0 %v4211, 30
      %v4536 = vpop.permute.xlu0 %4535
      %4537 = vrot.lane.b32.xlu0 %v4227, 30
      %v4538 = vpop.permute.xlu0 %4537
      %4539 = vrot.lane.b32.xlu0 %v4212, 30
      %v4540 = vpop.permute.xlu0 %4539
      %4541 = vrot.lane.b32.xlu0 %v4228, 30
      %v4542 = vpop.permute.xlu0 %4541
      %4543 = vrot.lane.b32.xlu0 %v4213, 30
      %v4544 = vpop.permute.xlu0 %4543
      %4545 = vrot.lane.b32.xlu0 %v4229, 30
      %v4546 = vpop.permute.xlu0 %4545
      %4547 = vrot.lane.b32.xlu0 %v4214, 30
      %v4548 = vpop.permute.xlu0 %4547
      %4549 = vrot.lane.b32.xlu0 %v4230, 30
      %v4550 = vpop.permute.xlu0 %4549
      %v4551 = vsel %vm2741, %v4544, %v4548
      %v4552 = vsel %vm2741, %v4546, %v4550
      %v4553 = vsel %vm2741, %v4540, %v4544
      %v4554 = vsel %vm2741, %v4542, %v4546
      %v4555 = vsel %vm2741, %v4536, %v4540
      %v4556 = vsel %vm2741, %v4538, %v4542
      %v4557 = vsel %vm2741, %v4532, %v4536
      %v4558 = vsel %vm2741, %v4534, %v4538
      %v4559 = vsel %vm2741, %v4528, %v4532
      %v4560 = vsel %vm2741, %v4530, %v4534
      %v4561 = vsel %vm2741, %v4524, %v4528
      %v4562 = vsel %vm2741, %v4526, %v4530
      %v4563 = vsel %vm2741, %v4520, %v4524
      %v4564 = vsel %vm2741, %v4522, %v4526
      %v4565 = vsel %vm2741, %v4516, %v4520
      %v4566 = vsel %vm2741, %v4518, %v4522
      %v4567 = vsel %vm2741, %v4512, %v4516
      %v4568 = vsel %vm2741, %v4514, %v4518
      %v4569 = vsel %vm2741, %v4508, %v4512
      %v4570 = vsel %vm2741, %v4510, %v4514
      %v4571 = vsel %vm2741, %v4504, %v4508
      %v4572 = vsel %vm2741, %v4506, %v4510
      %v4573 = vsel %vm2741, %v4500, %v4504
      %v4574 = vsel %vm2741, %v4502, %v4506
      %v4575 = vsel %vm2741, %v4496, %v4500
      %v4576 = vsel %vm2741, %v4498, %v4502
      %v4577 = vsel %vm2741, %v4492, %v4496
      %v4578 = vsel %vm2741, %v4494, %v4498
      %v4579 = vsel %vm2741, %v4488, %v4492
      %v4580 = vsel %vm2741, %v4490, %v4494
      %v4581 = vsel %vm2741, %v4548, %v4488
      %v4582 = vsel %vm2741, %v4550, %v4490
      %v4583 = vmul.f32 %v2761, %v4581
      %v4584 = vmul.f32 %v2765, %v4579
      %v4585 = vmul.f32 %v2769, %v4577
      %v4586 = vmul.f32 %v2773, %v4575
      %v4587 = vmul.f32 %v2777, %v4573
      %v4588 = vmul.f32 %v2781, %v4571
      %v4589 = vmul.f32 %v2785, %v4569
      %v4590 = vmul.f32 %v2789, %v4567
      %v4591 = vmul.f32 %v2793, %v4565
      %v4592 = vmul.f32 %v2797, %v4563
      %v4593 = vmul.f32 %v2801, %v4561
      %v4594 = vmul.f32 %v2805, %v4559
      %v4595 = vmul.f32 %v2809, %v4557
      %v4596 = vmul.f32 %v2813, %v4555
      %v4597 = vmul.f32 %v2817, %v4553
      %v4598 = vmul.f32 %v2821, %v4551
      %v4599 = vmul.f32 %v2761, %v4582
      %v4600 = vmul.f32 %v2765, %v4580
      %v4601 = vmul.f32 %v2769, %v4578
      %v4602 = vmul.f32 %v2773, %v4576
      %v4603 = vmul.f32 %v2777, %v4574
      %v4604 = vmul.f32 %v2781, %v4572
      %v4605 = vmul.f32 %v2785, %v4570
      %v4606 = vmul.f32 %v2789, %v4568
      %v4607 = vmul.f32 %v2793, %v4566
      %v4608 = vmul.f32 %v2797, %v4564
      %v4609 = vmul.f32 %v2801, %v4562
      %v4610 = vmul.f32 %v2805, %v4560
      %v4611 = vmul.f32 %v2809, %v4558
      %v4612 = vmul.f32 %v2813, %v4556
      %v4613 = vmul.f32 %v2817, %v4554
      %v4614 = vmul.f32 %v2821, %v4552
      %4615 = vrot.lane.b32.xlu0 %v4199, 2
      %v4616 = vpop.permute.xlu0 %4615
      %4617 = vrot.lane.b32.xlu0 %v4215, 2
      %v4618 = vpop.permute.xlu0 %4617
      %4619 = vrot.lane.b32.xlu0 %v4200, 2
      %v4620 = vpop.permute.xlu0 %4619
      %4621 = vrot.lane.b32.xlu0 %v4216, 2
      %v4622 = vpop.permute.xlu0 %4621
      %4623 = vrot.lane.b32.xlu0 %v4201, 2
      %v4624 = vpop.permute.xlu0 %4623
      %4625 = vrot.lane.b32.xlu0 %v4217, 2
      %v4626 = vpop.permute.xlu0 %4625
      %4627 = vrot.lane.b32.xlu0 %v4202, 2
      %v4628 = vpop.permute.xlu0 %4627
      %4629 = vrot.lane.b32.xlu0 %v4218, 2
      %v4630 = vpop.permute.xlu0 %4629
      %4631 = vrot.lane.b32.xlu0 %v4203, 2
      %v4632 = vpop.permute.xlu0 %4631
      %4633 = vrot.lane.b32.xlu0 %v4219, 2
      %v4634 = vpop.permute.xlu0 %4633
      %4635 = vrot.lane.b32.xlu0 %v4204, 2
      %v4636 = vpop.permute.xlu0 %4635
      %4637 = vrot.lane.b32.xlu0 %v4220, 2
      %v4638 = vpop.permute.xlu0 %4637
      %4639 = vrot.lane.b32.xlu0 %v4205, 2
      %v4640 = vpop.permute.xlu0 %4639
      %4641 = vrot.lane.b32.xlu0 %v4221, 2
      %v4642 = vpop.permute.xlu0 %4641
      %4643 = vrot.lane.b32.xlu0 %v4206, 2
      %v4644 = vpop.permute.xlu0 %4643
      %4645 = vrot.lane.b32.xlu0 %v4222, 2
      %v4646 = vpop.permute.xlu0 %4645
      %4647 = vrot.lane.b32.xlu0 %v4207, 2
      %v4648 = vpop.permute.xlu0 %4647
      %4649 = vrot.lane.b32.xlu0 %v4223, 2
      %v4650 = vpop.permute.xlu0 %4649
      %4651 = vrot.lane.b32.xlu0 %v4208, 2
      %v4652 = vpop.permute.xlu0 %4651
      %4653 = vrot.lane.b32.xlu0 %v4224, 2
      %v4654 = vpop.permute.xlu0 %4653
      %4655 = vrot.lane.b32.xlu0 %v4209, 2
      %v4656 = vpop.permute.xlu0 %4655
      %4657 = vrot.lane.b32.xlu0 %v4225, 2
      %v4658 = vpop.permute.xlu0 %4657
      %4659 = vrot.lane.b32.xlu0 %v4210, 2
      %v4660 = vpop.permute.xlu0 %4659
      %4661 = vrot.lane.b32.xlu0 %v4226, 2
      %v4662 = vpop.permute.xlu0 %4661
      %4663 = vrot.lane.b32.xlu0 %v4211, 2
      %v4664 = vpop.permute.xlu0 %4663
      %4665 = vrot.lane.b32.xlu0 %v4227, 2
      %v4666 = vpop.permute.xlu0 %4665
      %4667 = vrot.lane.b32.xlu0 %v4212, 2
      %v4668 = vpop.permute.xlu0 %4667
      %4669 = vrot.lane.b32.xlu0 %v4228, 2
      %v4670 = vpop.permute.xlu0 %4669
      %4671 = vrot.lane.b32.xlu0 %v4213, 2
      %v4672 = vpop.permute.xlu0 %4671
      %4673 = vrot.lane.b32.xlu0 %v4229, 2
      %v4674 = vpop.permute.xlu0 %4673
      %4675 = vrot.lane.b32.xlu0 %v4214, 2
      %v4676 = vpop.permute.xlu0 %4675
      %4677 = vrot.lane.b32.xlu0 %v4230, 2
      %v4678 = vpop.permute.xlu0 %4677
      %v4679 = vsel %vm2870, %v4672, %v4676
      %v4680 = vsel %vm2870, %v4674, %v4678
      %v4681 = vsel %vm2870, %v4668, %v4672
      %v4682 = vsel %vm2870, %v4670, %v4674
      %v4683 = vsel %vm2870, %v4664, %v4668
      %v4684 = vsel %vm2870, %v4666, %v4670
      %v4685 = vsel %vm2870, %v4660, %v4664
      %v4686 = vsel %vm2870, %v4662, %v4666
      %v4687 = vsel %vm2870, %v4656, %v4660
      %v4688 = vsel %vm2870, %v4658, %v4662
      %v4689 = vsel %vm2870, %v4652, %v4656
      %v4690 = vsel %vm2870, %v4654, %v4658
      %v4691 = vsel %vm2870, %v4648, %v4652
      %v4692 = vsel %vm2870, %v4650, %v4654
      %v4693 = vsel %vm2870, %v4644, %v4648
      %v4694 = vsel %vm2870, %v4646, %v4650
      %v4695 = vsel %vm2870, %v4640, %v4644
      %v4696 = vsel %vm2870, %v4642, %v4646
      %v4697 = vsel %vm2870, %v4636, %v4640
      %v4698 = vsel %vm2870, %v4638, %v4642
      %v4699 = vsel %vm2870, %v4632, %v4636
      %v4700 = vsel %vm2870, %v4634, %v4638
      %v4701 = vsel %vm2870, %v4628, %v4632
      %v4702 = vsel %vm2870, %v4630, %v4634
      %v4703 = vsel %vm2870, %v4624, %v4628
      %v4704 = vsel %vm2870, %v4626, %v4630
      %v4705 = vsel %vm2870, %v4620, %v4624
      %v4706 = vsel %vm2870, %v4622, %v4626
      %v4707 = vsel %vm2870, %v4616, %v4620
      %v4708 = vsel %vm2870, %v4618, %v4622
      %v4709 = vsel %vm2870, %v4676, %v4616
      %v4710 = vsel %vm2870, %v4678, %v4618
      %v4711 = vmul.f32 %v2890, %v4709
      %v4712 = vmul.f32 %v2894, %v4707
      %v4713 = vmul.f32 %v2898, %v4705
      %v4714 = vmul.f32 %v2902, %v4703
      %v4715 = vmul.f32 %v2906, %v4701
      %v4716 = vmul.f32 %v2910, %v4699
      %v4717 = vmul.f32 %v2914, %v4697
      %v4718 = vmul.f32 %v2918, %v4695
      %v4719 = vmul.f32 %v2922, %v4693
      %v4720 = vmul.f32 %v2926, %v4691
      %v4721 = vmul.f32 %v2930, %v4689
      %v4722 = vmul.f32 %v2934, %v4687
      %v4723 = vmul.f32 %v2938, %v4685
      %v4724 = vmul.f32 %v2942, %v4683
      %v4725 = vmul.f32 %v2946, %v4681
      %v4726 = vmul.f32 %v2950, %v4679
      %v4727 = vmul.f32 %v2890, %v4710
      %v4728 = vmul.f32 %v2894, %v4708
      %v4729 = vmul.f32 %v2898, %v4706
      %v4730 = vmul.f32 %v2902, %v4704
      %v4731 = vmul.f32 %v2906, %v4702
      %v4732 = vmul.f32 %v2910, %v4700
      %v4733 = vmul.f32 %v2914, %v4698
      %v4734 = vmul.f32 %v2918, %v4696
      %v4735 = vmul.f32 %v2922, %v4694
      %v4736 = vmul.f32 %v2926, %v4692
      %v4737 = vmul.f32 %v2930, %v4690
      %v4738 = vmul.f32 %v2934, %v4688
      %v4739 = vmul.f32 %v2938, %v4686
      %v4740 = vmul.f32 %v2942, %v4684
      %v4741 = vmul.f32 %v2946, %v4682
      %v4742 = vmul.f32 %v2950, %v4680
      %v4743 = vmul.f32 %v2970, %v4199
      %v4744 = vmul.f32 %v2974, %v4200
      %v4745 = vmul.f32 %v2978, %v4201
      %v4746 = vmul.f32 %v2982, %v4202
      %v4747 = vmul.f32 %v2986, %v4203
      %v4748 = vmul.f32 %v2990, %v4204
      %v4749 = vmul.f32 %v2994, %v4205
      %v4750 = vmul.f32 %v2998, %v4206
      %v4751 = vmul.f32 %v3002, %v4207
      %v4752 = vmul.f32 %v3006, %v4208
      %v4753 = vmul.f32 %v3010, %v4209
      %v4754 = vmul.f32 %v3014, %v4210
      %v4755 = vmul.f32 %v3018, %v4211
      %v4756 = vmul.f32 %v3022, %v4212
      %v4757 = vmul.f32 %v3026, %v4213
      %v4758 = vmul.f32 %v3030, %v4214
      %v4759 = vmul.f32 %v2970, %v4215
      %v4760 = vmul.f32 %v2974, %v4216
      %v4761 = vmul.f32 %v2978, %v4217
      %v4762 = vmul.f32 %v2982, %v4218
      %v4763 = vmul.f32 %v2986, %v4219
      %v4764 = vmul.f32 %v2990, %v4220
      %v4765 = vmul.f32 %v2994, %v4221
      %v4766 = vmul.f32 %v2998, %v4222
      %v4767 = vmul.f32 %v3002, %v4223
      %v4768 = vmul.f32 %v3006, %v4224
      %v4769 = vmul.f32 %v3010, %v4225
      %v4770 = vmul.f32 %v3014, %v4226
      %v4771 = vmul.f32 %v3018, %v4227
      %v4772 = vmul.f32 %v3022, %v4228
      %v4773 = vmul.f32 %v3026, %v4229
      %v4774 = vmul.f32 %v3030, %v4230
      %4775 = vrot.lane.b32.xlu0 %v4199, 126
      %v4776 = vpop.permute.xlu0 %4775
      %4777 = vrot.lane.b32.xlu0 %v4215, 126
      %v4778 = vpop.permute.xlu0 %4777
      %4779 = vrot.lane.b32.xlu0 %v4200, 126
      %v4780 = vpop.permute.xlu0 %4779
      %4781 = vrot.lane.b32.xlu0 %v4216, 126
      %v4782 = vpop.permute.xlu0 %4781
      %4783 = vrot.lane.b32.xlu0 %v4201, 126
      %v4784 = vpop.permute.xlu0 %4783
      %4785 = vrot.lane.b32.xlu0 %v4217, 126
      %v4786 = vpop.permute.xlu0 %4785
      %4787 = vrot.lane.b32.xlu0 %v4202, 126
      %v4788 = vpop.permute.xlu0 %4787
      %4789 = vrot.lane.b32.xlu0 %v4218, 126
      %v4790 = vpop.permute.xlu0 %4789
      %4791 = vrot.lane.b32.xlu0 %v4203, 126
      %v4792 = vpop.permute.xlu0 %4791
      %4793 = vrot.lane.b32.xlu0 %v4219, 126
      %v4794 = vpop.permute.xlu0 %4793
      %4795 = vrot.lane.b32.xlu0 %v4204, 126
      %v4796 = vpop.permute.xlu0 %4795
      %4797 = vrot.lane.b32.xlu0 %v4220, 126
      %v4798 = vpop.permute.xlu0 %4797
      %4799 = vrot.lane.b32.xlu0 %v4205, 126
      %v4800 = vpop.permute.xlu0 %4799
      %4801 = vrot.lane.b32.xlu0 %v4221, 126
      %v4802 = vpop.permute.xlu0 %4801
      %4803 = vrot.lane.b32.xlu0 %v4206, 126
      %v4804 = vpop.permute.xlu0 %4803
      %4805 = vrot.lane.b32.xlu0 %v4222, 126
      %v4806 = vpop.permute.xlu0 %4805
      %4807 = vrot.lane.b32.xlu0 %v4207, 126
      %v4808 = vpop.permute.xlu0 %4807
      %4809 = vrot.lane.b32.xlu0 %v4223, 126
      %v4810 = vpop.permute.xlu0 %4809
      %4811 = vrot.lane.b32.xlu0 %v4208, 126
      %v4812 = vpop.permute.xlu0 %4811
      %4813 = vrot.lane.b32.xlu0 %v4224, 126
      %v4814 = vpop.permute.xlu0 %4813
      %4815 = vrot.lane.b32.xlu0 %v4209, 126
      %v4816 = vpop.permute.xlu0 %4815
      %4817 = vrot.lane.b32.xlu0 %v4225, 126
      %v4818 = vpop.permute.xlu0 %4817
      %4819 = vrot.lane.b32.xlu0 %v4210, 126
      %v4820 = vpop.permute.xlu0 %4819
      %4821 = vrot.lane.b32.xlu0 %v4226, 126
      %v4822 = vpop.permute.xlu0 %4821
      %4823 = vrot.lane.b32.xlu0 %v4211, 126
      %v4824 = vpop.permute.xlu0 %4823
      %4825 = vrot.lane.b32.xlu0 %v4227, 126
      %v4826 = vpop.permute.xlu0 %4825
      %4827 = vrot.lane.b32.xlu0 %v4212, 126
      %v4828 = vpop.permute.xlu0 %4827
      %4829 = vrot.lane.b32.xlu0 %v4228, 126
      %v4830 = vpop.permute.xlu0 %4829
      %4831 = vrot.lane.b32.xlu0 %v4213, 126
      %v4832 = vpop.permute.xlu0 %4831
      %4833 = vrot.lane.b32.xlu0 %v4229, 126
      %v4834 = vpop.permute.xlu0 %4833
      %4835 = vrot.lane.b32.xlu0 %v4214, 126
      %v4836 = vpop.permute.xlu0 %4835
      %4837 = vrot.lane.b32.xlu0 %v4230, 126
      %v4838 = vpop.permute.xlu0 %4837
      %v4839 = vsel %vm3079, %v4832, %v4836
      %v4840 = vsel %vm3079, %v4834, %v4838
      %v4841 = vsel %vm3079, %v4828, %v4832
      %v4842 = vsel %vm3079, %v4830, %v4834
      %v4843 = vsel %vm3079, %v4824, %v4828
      %v4844 = vsel %vm3079, %v4826, %v4830
      %v4845 = vsel %vm3079, %v4820, %v4824
      %v4846 = vsel %vm3079, %v4822, %v4826
      %v4847 = vsel %vm3079, %v4816, %v4820
      %v4848 = vsel %vm3079, %v4818, %v4822
      %v4849 = vsel %vm3079, %v4812, %v4816
      %v4850 = vsel %vm3079, %v4814, %v4818
      %v4851 = vsel %vm3079, %v4808, %v4812
      %v4852 = vsel %vm3079, %v4810, %v4814
      %v4853 = vsel %vm3079, %v4804, %v4808
      %v4854 = vsel %vm3079, %v4806, %v4810
      %v4855 = vsel %vm3079, %v4800, %v4804
      %v4856 = vsel %vm3079, %v4802, %v4806
      %v4857 = vsel %vm3079, %v4796, %v4800
      %v4858 = vsel %vm3079, %v4798, %v4802
      %v4859 = vsel %vm3079, %v4792, %v4796
      %v4860 = vsel %vm3079, %v4794, %v4798
      %v4861 = vsel %vm3079, %v4788, %v4792
      %v4862 = vsel %vm3079, %v4790, %v4794
      %v4863 = vsel %vm3079, %v4784, %v4788
      %v4864 = vsel %vm3079, %v4786, %v4790
      %v4865 = vsel %vm3079, %v4780, %v4784
      %v4866 = vsel %vm3079, %v4782, %v4786
      %v4867 = vsel %vm3079, %v4776, %v4780
      %v4868 = vsel %vm3079, %v4778, %v4782
      %v4869 = vsel %vm3079, %v4836, %v4776
      %v4870 = vsel %vm3079, %v4838, %v4778
      %v4871 = vmul.f32 %v3099, %v4867
      %v4872 = vmul.f32 %v3103, %v4865
      %v4873 = vmul.f32 %v3107, %v4863
      %v4874 = vmul.f32 %v3111, %v4861
      %v4875 = vmul.f32 %v3115, %v4859
      %v4876 = vmul.f32 %v3119, %v4857
      %v4877 = vmul.f32 %v3123, %v4855
      %v4878 = vmul.f32 %v3127, %v4853
      %v4879 = vmul.f32 %v3131, %v4851
      %v4880 = vmul.f32 %v3135, %v4849
      %v4881 = vmul.f32 %v3139, %v4847
      %v4882 = vmul.f32 %v3143, %v4845
      %v4883 = vmul.f32 %v3147, %v4843
      %v4884 = vmul.f32 %v3151, %v4841
      %v4885 = vmul.f32 %v3155, %v4839
      %v4886 = vmul.f32 %v3159, %v4869
      %v4887 = vmul.f32 %v3099, %v4868
      %v4888 = vmul.f32 %v3103, %v4866
      %v4889 = vmul.f32 %v3107, %v4864
      %v4890 = vmul.f32 %v3111, %v4862
      %v4891 = vmul.f32 %v3115, %v4860
      %v4892 = vmul.f32 %v3119, %v4858
      %v4893 = vmul.f32 %v3123, %v4856
      %v4894 = vmul.f32 %v3127, %v4854
      %v4895 = vmul.f32 %v3131, %v4852
      %v4896 = vmul.f32 %v3135, %v4850
      %v4897 = vmul.f32 %v3139, %v4848
      %v4898 = vmul.f32 %v3143, %v4846
      %v4899 = vmul.f32 %v3147, %v4844
      %v4900 = vmul.f32 %v3151, %v4842
      %v4901 = vmul.f32 %v3155, %v4840
      %v4902 = vmul.f32 %v3159, %v4870
      %4903 = vrot.lane.b32.xlu0 %v4199, 98
      %v4904 = vpop.permute.xlu0 %4903
      %4905 = vrot.lane.b32.xlu0 %v4215, 98
      %v4906 = vpop.permute.xlu0 %4905
      %4907 = vrot.lane.b32.xlu0 %v4200, 98
      %v4908 = vpop.permute.xlu0 %4907
      %4909 = vrot.lane.b32.xlu0 %v4216, 98
      %v4910 = vpop.permute.xlu0 %4909
      %4911 = vrot.lane.b32.xlu0 %v4201, 98
      %v4912 = vpop.permute.xlu0 %4911
      %4913 = vrot.lane.b32.xlu0 %v4217, 98
      %v4914 = vpop.permute.xlu0 %4913
      %4915 = vrot.lane.b32.xlu0 %v4202, 98
      %v4916 = vpop.permute.xlu0 %4915
      %4917 = vrot.lane.b32.xlu0 %v4218, 98
      %v4918 = vpop.permute.xlu0 %4917
      %4919 = vrot.lane.b32.xlu0 %v4203, 98
      %v4920 = vpop.permute.xlu0 %4919
      %4921 = vrot.lane.b32.xlu0 %v4219, 98
      %v4922 = vpop.permute.xlu0 %4921
      %4923 = vrot.lane.b32.xlu0 %v4204, 98
      %v4924 = vpop.permute.xlu0 %4923
      %4925 = vrot.lane.b32.xlu0 %v4220, 98
      %v4926 = vpop.permute.xlu0 %4925
      %4927 = vrot.lane.b32.xlu0 %v4205, 98
      %v4928 = vpop.permute.xlu0 %4927
      %4929 = vrot.lane.b32.xlu0 %v4221, 98
      %v4930 = vpop.permute.xlu0 %4929
      %4931 = vrot.lane.b32.xlu0 %v4206, 98
      %v4932 = vpop.permute.xlu0 %4931
      %4933 = vrot.lane.b32.xlu0 %v4222, 98
      %v4934 = vpop.permute.xlu0 %4933
      %4935 = vrot.lane.b32.xlu0 %v4207, 98
      %v4936 = vpop.permute.xlu0 %4935
      %4937 = vrot.lane.b32.xlu0 %v4223, 98
      %v4938 = vpop.permute.xlu0 %4937
      %4939 = vrot.lane.b32.xlu0 %v4208, 98
      %v4940 = vpop.permute.xlu0 %4939
      %4941 = vrot.lane.b32.xlu0 %v4224, 98
      %v4942 = vpop.permute.xlu0 %4941
      %4943 = vrot.lane.b32.xlu0 %v4209, 98
      %v4944 = vpop.permute.xlu0 %4943
      %4945 = vrot.lane.b32.xlu0 %v4225, 98
      %v4946 = vpop.permute.xlu0 %4945
      %4947 = vrot.lane.b32.xlu0 %v4210, 98
      %v4948 = vpop.permute.xlu0 %4947
      %4949 = vrot.lane.b32.xlu0 %v4226, 98
      %v4950 = vpop.permute.xlu0 %4949
      %4951 = vrot.lane.b32.xlu0 %v4211, 98
      %v4952 = vpop.permute.xlu0 %4951
      %4953 = vrot.lane.b32.xlu0 %v4227, 98
      %v4954 = vpop.permute.xlu0 %4953
      %4955 = vrot.lane.b32.xlu0 %v4212, 98
      %v4956 = vpop.permute.xlu0 %4955
      %4957 = vrot.lane.b32.xlu0 %v4228, 98
      %v4958 = vpop.permute.xlu0 %4957
      %4959 = vrot.lane.b32.xlu0 %v4213, 98
      %v4960 = vpop.permute.xlu0 %4959
      %4961 = vrot.lane.b32.xlu0 %v4229, 98
      %v4962 = vpop.permute.xlu0 %4961
      %4963 = vrot.lane.b32.xlu0 %v4214, 98
      %v4964 = vpop.permute.xlu0 %4963
      %4965 = vrot.lane.b32.xlu0 %v4230, 98
      %v4966 = vpop.permute.xlu0 %4965
      %v4967 = vsel %vm3208, %v4960, %v4964
      %v4968 = vsel %vm3208, %v4962, %v4966
      %v4969 = vsel %vm3208, %v4956, %v4960
      %v4970 = vsel %vm3208, %v4958, %v4962
      %v4971 = vsel %vm3208, %v4952, %v4956
      %v4972 = vsel %vm3208, %v4954, %v4958
      %v4973 = vsel %vm3208, %v4948, %v4952
      %v4974 = vsel %vm3208, %v4950, %v4954
      %v4975 = vsel %vm3208, %v4944, %v4948
      %v4976 = vsel %vm3208, %v4946, %v4950
      %v4977 = vsel %vm3208, %v4940, %v4944
      %v4978 = vsel %vm3208, %v4942, %v4946
      %v4979 = vsel %vm3208, %v4936, %v4940
      %v4980 = vsel %vm3208, %v4938, %v4942
      %v4981 = vsel %vm3208, %v4932, %v4936
      %v4982 = vsel %vm3208, %v4934, %v4938
      %v4983 = vsel %vm3208, %v4928, %v4932
      %v4984 = vsel %vm3208, %v4930, %v4934
      %v4985 = vsel %vm3208, %v4924, %v4928
      %v4986 = vsel %vm3208, %v4926, %v4930
      %v4987 = vsel %vm3208, %v4920, %v4924
      %v4988 = vsel %vm3208, %v4922, %v4926
      %v4989 = vsel %vm3208, %v4916, %v4920
      %v4990 = vsel %vm3208, %v4918, %v4922
      %v4991 = vsel %vm3208, %v4912, %v4916
      %v4992 = vsel %vm3208, %v4914, %v4918
      %v4993 = vsel %vm3208, %v4908, %v4912
      %v4994 = vsel %vm3208, %v4910, %v4914
      %v4995 = vsel %vm3208, %v4904, %v4908
      %v4996 = vsel %vm3208, %v4906, %v4910
      %v4997 = vsel %vm3208, %v4964, %v4904
      %v4998 = vsel %vm3208, %v4966, %v4906
      %v4999 = vmul.f32 %v3228, %v4995
      %v5000 = vmul.f32 %v3232, %v4993
      %v5001 = vmul.f32 %v3236, %v4991
      %v5002 = vmul.f32 %v3240, %v4989
      %v5003 = vmul.f32 %v3244, %v4987
      %v5004 = vmul.f32 %v3248, %v4985
      %v5005 = vmul.f32 %v3252, %v4983
      %v5006 = vmul.f32 %v3256, %v4981
      %v5007 = vmul.f32 %v3260, %v4979
      %v5008 = vmul.f32 %v3264, %v4977
      %v5009 = vmul.f32 %v3268, %v4975
      %v5010 = vmul.f32 %v3272, %v4973
      %v5011 = vmul.f32 %v3276, %v4971
      %v5012 = vmul.f32 %v3280, %v4969
      %v5013 = vmul.f32 %v3284, %v4967
      %v5014 = vmul.f32 %v3288, %v4997
      %v5015 = vmul.f32 %v3228, %v4996
      %v5016 = vmul.f32 %v3232, %v4994
      %v5017 = vmul.f32 %v3236, %v4992
      %v5018 = vmul.f32 %v3240, %v4990
      %v5019 = vmul.f32 %v3244, %v4988
      %v5020 = vmul.f32 %v3248, %v4986
      %v5021 = vmul.f32 %v3252, %v4984
      %v5022 = vmul.f32 %v3256, %v4982
      %v5023 = vmul.f32 %v3260, %v4980
      %v5024 = vmul.f32 %v3264, %v4978
      %v5025 = vmul.f32 %v3268, %v4976
      %v5026 = vmul.f32 %v3272, %v4974
      %v5027 = vmul.f32 %v3276, %v4972
      %v5028 = vmul.f32 %v3280, %v4970
      %v5029 = vmul.f32 %v3284, %v4968
      %v5030 = vmul.f32 %v3288, %v4998
      %5031 = vrot.lane.b32.xlu0 %v4199, 96
      %v5032 = vpop.permute.xlu0 %5031
      %5033 = vrot.lane.b32.xlu0 %v4215, 96
      %v5034 = vpop.permute.xlu0 %5033
      %5035 = vrot.lane.b32.xlu0 %v4200, 96
      %v5036 = vpop.permute.xlu0 %5035
      %5037 = vrot.lane.b32.xlu0 %v4216, 96
      %v5038 = vpop.permute.xlu0 %5037
      %5039 = vrot.lane.b32.xlu0 %v4201, 96
      %v5040 = vpop.permute.xlu0 %5039
      %5041 = vrot.lane.b32.xlu0 %v4217, 96
      %v5042 = vpop.permute.xlu0 %5041
      %5043 = vrot.lane.b32.xlu0 %v4202, 96
      %v5044 = vpop.permute.xlu0 %5043
      %5045 = vrot.lane.b32.xlu0 %v4218, 96
      %v5046 = vpop.permute.xlu0 %5045
      %5047 = vrot.lane.b32.xlu0 %v4203, 96
      %v5048 = vpop.permute.xlu0 %5047
      %5049 = vrot.lane.b32.xlu0 %v4219, 96
      %v5050 = vpop.permute.xlu0 %5049
      %5051 = vrot.lane.b32.xlu0 %v4204, 96
      %v5052 = vpop.permute.xlu0 %5051
      %5053 = vrot.lane.b32.xlu0 %v4220, 96
      %v5054 = vpop.permute.xlu0 %5053
      %5055 = vrot.lane.b32.xlu0 %v4205, 96
      %v5056 = vpop.permute.xlu0 %5055
      %5057 = vrot.lane.b32.xlu0 %v4221, 96
      %v5058 = vpop.permute.xlu0 %5057
      %5059 = vrot.lane.b32.xlu0 %v4206, 96
      %v5060 = vpop.permute.xlu0 %5059
      %5061 = vrot.lane.b32.xlu0 %v4222, 96
      %v5062 = vpop.permute.xlu0 %5061
      %5063 = vrot.lane.b32.xlu0 %v4207, 96
      %v5064 = vpop.permute.xlu0 %5063
      %5065 = vrot.lane.b32.xlu0 %v4223, 96
      %v5066 = vpop.permute.xlu0 %5065
      %5067 = vrot.lane.b32.xlu0 %v4208, 96
      %v5068 = vpop.permute.xlu0 %5067
      %5069 = vrot.lane.b32.xlu0 %v4224, 96
      %v5070 = vpop.permute.xlu0 %5069
      %5071 = vrot.lane.b32.xlu0 %v4209, 96
      %v5072 = vpop.permute.xlu0 %5071
      %5073 = vrot.lane.b32.xlu0 %v4225, 96
      %v5074 = vpop.permute.xlu0 %5073
      %5075 = vrot.lane.b32.xlu0 %v4210, 96
      %v5076 = vpop.permute.xlu0 %5075
      %5077 = vrot.lane.b32.xlu0 %v4226, 96
      %v5078 = vpop.permute.xlu0 %5077
      %5079 = vrot.lane.b32.xlu0 %v4211, 96
      %v5080 = vpop.permute.xlu0 %5079
      %5081 = vrot.lane.b32.xlu0 %v4227, 96
      %v5082 = vpop.permute.xlu0 %5081
      %5083 = vrot.lane.b32.xlu0 %v4212, 96
      %v5084 = vpop.permute.xlu0 %5083
      %5085 = vrot.lane.b32.xlu0 %v4228, 96
      %v5086 = vpop.permute.xlu0 %5085
      %5087 = vrot.lane.b32.xlu0 %v4213, 96
      %v5088 = vpop.permute.xlu0 %5087
      %5089 = vrot.lane.b32.xlu0 %v4229, 96
      %v5090 = vpop.permute.xlu0 %5089
      %5091 = vrot.lane.b32.xlu0 %v4214, 96
      %v5092 = vpop.permute.xlu0 %5091
      %5093 = vrot.lane.b32.xlu0 %v4230, 96
      %v5094 = vpop.permute.xlu0 %5093
      %v5095 = vsel %vm3337, %v5088, %v5092
      %v5096 = vsel %vm3337, %v5090, %v5094
      %v5097 = vsel %vm3337, %v5084, %v5088
      %v5098 = vsel %vm3337, %v5086, %v5090
      %v5099 = vsel %vm3337, %v5080, %v5084
      %v5100 = vsel %vm3337, %v5082, %v5086
      %v5101 = vsel %vm3337, %v5076, %v5080
      %v5102 = vsel %vm3337, %v5078, %v5082
      %v5103 = vsel %vm3337, %v5072, %v5076
      %v5104 = vsel %vm3337, %v5074, %v5078
      %v5105 = vsel %vm3337, %v5068, %v5072
      %v5106 = vsel %vm3337, %v5070, %v5074
      %v5107 = vsel %vm3337, %v5064, %v5068
      %v5108 = vsel %vm3337, %v5066, %v5070
      %v5109 = vsel %vm3337, %v5060, %v5064
      %v5110 = vsel %vm3337, %v5062, %v5066
      %v5111 = vsel %vm3337, %v5056, %v5060
      %v5112 = vsel %vm3337, %v5058, %v5062
      %v5113 = vsel %vm3337, %v5052, %v5056
      %v5114 = vsel %vm3337, %v5054, %v5058
      %v5115 = vsel %vm3337, %v5048, %v5052
      %v5116 = vsel %vm3337, %v5050, %v5054
      %v5117 = vsel %vm3337, %v5044, %v5048
      %v5118 = vsel %vm3337, %v5046, %v5050
      %v5119 = vsel %vm3337, %v5040, %v5044
      %v5120 = vsel %vm3337, %v5042, %v5046
      %v5121 = vsel %vm3337, %v5036, %v5040
      %v5122 = vsel %vm3337, %v5038, %v5042
      %v5123 = vsel %vm3337, %v5032, %v5036
      %v5124 = vsel %vm3337, %v5034, %v5038
      %v5125 = vsel %vm3337, %v5092, %v5032
      %v5126 = vsel %vm3337, %v5094, %v5034
      %v5127 = vmul.f32 %v3357, %v5123
      %v5128 = vmul.f32 %v3361, %v5121
      %v5129 = vmul.f32 %v3365, %v5119
      %v5130 = vmul.f32 %v3369, %v5117
      %v5131 = vmul.f32 %v3373, %v5115
      %v5132 = vmul.f32 %v3377, %v5113
      %v5133 = vmul.f32 %v3381, %v5111
      %v5134 = vmul.f32 %v3385, %v5109
      %v5135 = vmul.f32 %v3389, %v5107
      %v5136 = vmul.f32 %v3393, %v5105
      %v5137 = vmul.f32 %v3397, %v5103
      %v5138 = vmul.f32 %v3401, %v5101
      %v5139 = vmul.f32 %v3405, %v5099
      %v5140 = vmul.f32 %v3409, %v5097
      %v5141 = vmul.f32 %v3413, %v5095
      %v5142 = vmul.f32 %v3417, %v5125
      %v5143 = vmul.f32 %v3357, %v5124
      %v5144 = vmul.f32 %v3361, %v5122
      %v5145 = vmul.f32 %v3365, %v5120
      %v5146 = vmul.f32 %v3369, %v5118
      %v5147 = vmul.f32 %v3373, %v5116
      %v5148 = vmul.f32 %v3377, %v5114
      %v5149 = vmul.f32 %v3381, %v5112
      %v5150 = vmul.f32 %v3385, %v5110
      %v5151 = vmul.f32 %v3389, %v5108
      %v5152 = vmul.f32 %v3393, %v5106
      %v5153 = vmul.f32 %v3397, %v5104
      %v5154 = vmul.f32 %v3401, %v5102
      %v5155 = vmul.f32 %v3405, %v5100
      %v5156 = vmul.f32 %v3409, %v5098
      %v5157 = vmul.f32 %v3413, %v5096
      %v5158 = vmul.f32 %v3417, %v5126
      %5159 = vrot.lane.b32.xlu0 %v4199, 94
      %v5160 = vpop.permute.xlu0 %5159
      %5161 = vrot.lane.b32.xlu0 %v4215, 94
      %v5162 = vpop.permute.xlu0 %5161
      %5163 = vrot.lane.b32.xlu0 %v4200, 94
      %v5164 = vpop.permute.xlu0 %5163
      %5165 = vrot.lane.b32.xlu0 %v4216, 94
      %v5166 = vpop.permute.xlu0 %5165
      %5167 = vrot.lane.b32.xlu0 %v4201, 94
      %v5168 = vpop.permute.xlu0 %5167
      %5169 = vrot.lane.b32.xlu0 %v4217, 94
      %v5170 = vpop.permute.xlu0 %5169
      %5171 = vrot.lane.b32.xlu0 %v4202, 94
      %v5172 = vpop.permute.xlu0 %5171
      %5173 = vrot.lane.b32.xlu0 %v4218, 94
      %v5174 = vpop.permute.xlu0 %5173
      %5175 = vrot.lane.b32.xlu0 %v4203, 94
      %v5176 = vpop.permute.xlu0 %5175
      %5177 = vrot.lane.b32.xlu0 %v4219, 94
      %v5178 = vpop.permute.xlu0 %5177
      %5179 = vrot.lane.b32.xlu0 %v4204, 94
      %v5180 = vpop.permute.xlu0 %5179
      %5181 = vrot.lane.b32.xlu0 %v4220, 94
      %v5182 = vpop.permute.xlu0 %5181
      %5183 = vrot.lane.b32.xlu0 %v4205, 94
      %v5184 = vpop.permute.xlu0 %5183
      %5185 = vrot.lane.b32.xlu0 %v4221, 94
      %v5186 = vpop.permute.xlu0 %5185
      %5187 = vrot.lane.b32.xlu0 %v4206, 94
      %v5188 = vpop.permute.xlu0 %5187
      %5189 = vrot.lane.b32.xlu0 %v4222, 94
      %v5190 = vpop.permute.xlu0 %5189
      %5191 = vrot.lane.b32.xlu0 %v4207, 94
      %v5192 = vpop.permute.xlu0 %5191
      %5193 = vrot.lane.b32.xlu0 %v4223, 94
      %v5194 = vpop.permute.xlu0 %5193
      %5195 = vrot.lane.b32.xlu0 %v4208, 94
      %v5196 = vpop.permute.xlu0 %5195
      %5197 = vrot.lane.b32.xlu0 %v4224, 94
      %v5198 = vpop.permute.xlu0 %5197
      %5199 = vrot.lane.b32.xlu0 %v4209, 94
      %v5200 = vpop.permute.xlu0 %5199
      %5201 = vrot.lane.b32.xlu0 %v4225, 94
      %v5202 = vpop.permute.xlu0 %5201
      %5203 = vrot.lane.b32.xlu0 %v4210, 94
      %v5204 = vpop.permute.xlu0 %5203
      %5205 = vrot.lane.b32.xlu0 %v4226, 94
      %v5206 = vpop.permute.xlu0 %5205
      %5207 = vrot.lane.b32.xlu0 %v4211, 94
      %v5208 = vpop.permute.xlu0 %5207
      %5209 = vrot.lane.b32.xlu0 %v4227, 94
      %v5210 = vpop.permute.xlu0 %5209
      %5211 = vrot.lane.b32.xlu0 %v4212, 94
      %v5212 = vpop.permute.xlu0 %5211
      %5213 = vrot.lane.b32.xlu0 %v4228, 94
      %v5214 = vpop.permute.xlu0 %5213
      %5215 = vrot.lane.b32.xlu0 %v4213, 94
      %v5216 = vpop.permute.xlu0 %5215
      %5217 = vrot.lane.b32.xlu0 %v4229, 94
      %v5218 = vpop.permute.xlu0 %5217
      %5219 = vrot.lane.b32.xlu0 %v4214, 94
      %v5220 = vpop.permute.xlu0 %5219
      %5221 = vrot.lane.b32.xlu0 %v4230, 94
      %v5222 = vpop.permute.xlu0 %5221
      %v5223 = vsel %vm3466, %v5216, %v5220
      %v5224 = vsel %vm3466, %v5218, %v5222
      %v5225 = vsel %vm3466, %v5212, %v5216
      %v5226 = vsel %vm3466, %v5214, %v5218
      %v5227 = vsel %vm3466, %v5208, %v5212
      %v5228 = vsel %vm3466, %v5210, %v5214
      %v5229 = vsel %vm3466, %v5204, %v5208
      %v5230 = vsel %vm3466, %v5206, %v5210
      %v5231 = vsel %vm3466, %v5200, %v5204
      %v5232 = vsel %vm3466, %v5202, %v5206
      %v5233 = vsel %vm3466, %v5196, %v5200
      %v5234 = vsel %vm3466, %v5198, %v5202
      %v5235 = vsel %vm3466, %v5192, %v5196
      %v5236 = vsel %vm3466, %v5194, %v5198
      %v5237 = vsel %vm3466, %v5188, %v5192
      %v5238 = vsel %vm3466, %v5190, %v5194
      %v5239 = vsel %vm3466, %v5184, %v5188
      %v5240 = vsel %vm3466, %v5186, %v5190
      %v5241 = vsel %vm3466, %v5180, %v5184
      %v5242 = vsel %vm3466, %v5182, %v5186
      %v5243 = vsel %vm3466, %v5176, %v5180
      %v5244 = vsel %vm3466, %v5178, %v5182
      %v5245 = vsel %vm3466, %v5172, %v5176
      %v5246 = vsel %vm3466, %v5174, %v5178
      %v5247 = vsel %vm3466, %v5168, %v5172
      %v5248 = vsel %vm3466, %v5170, %v5174
      %v5249 = vsel %vm3466, %v5164, %v5168
      %v5250 = vsel %vm3466, %v5166, %v5170
      %v5251 = vsel %vm3466, %v5160, %v5164
      %v5252 = vsel %vm3466, %v5162, %v5166
      %v5253 = vsel %vm3466, %v5220, %v5160
      %v5254 = vsel %vm3466, %v5222, %v5162
      %v5255 = vmul.f32 %v3486, %v5251
      %v5256 = vmul.f32 %v3490, %v5249
      %v5257 = vmul.f32 %v3494, %v5247
      %v5258 = vmul.f32 %v3498, %v5245
      %v5259 = vmul.f32 %v3502, %v5243
      %v5260 = vmul.f32 %v3506, %v5241
      %v5261 = vmul.f32 %v3510, %v5239
      %v5262 = vmul.f32 %v3514, %v5237
      %v5263 = vmul.f32 %v3518, %v5235
      %v5264 = vmul.f32 %v3522, %v5233
      %v5265 = vmul.f32 %v3526, %v5231
      %v5266 = vmul.f32 %v3530, %v5229
      %v5267 = vmul.f32 %v3534, %v5227
      %v5268 = vmul.f32 %v3538, %v5225
      %v5269 = vmul.f32 %v3542, %v5223
      %v5270 = vmul.f32 %v3546, %v5253
      %v5271 = vmul.f32 %v3486, %v5252
      %v5272 = vmul.f32 %v3490, %v5250
      %v5273 = vmul.f32 %v3494, %v5248
      %v5274 = vmul.f32 %v3498, %v5246
      %v5275 = vmul.f32 %v3502, %v5244
      %v5276 = vmul.f32 %v3506, %v5242
      %v5277 = vmul.f32 %v3510, %v5240
      %v5278 = vmul.f32 %v3514, %v5238
      %v5279 = vmul.f32 %v3518, %v5236
      %v5280 = vmul.f32 %v3522, %v5234
      %v5281 = vmul.f32 %v3526, %v5232
      %v5282 = vmul.f32 %v3530, %v5230
      %v5283 = vmul.f32 %v3534, %v5228
      %v5284 = vmul.f32 %v3538, %v5226
      %v5285 = vmul.f32 %v3542, %v5224
      %v5286 = vmul.f32 %v3546, %v5254
      %v5287 = vld [vmem:[%s7] sm:$0xff]
      %v5288 = vld [vmem:[%s7 + $0x8] sm:$0xff]
      %v5289 = vld [vmem:[%s7 + $0x10] sm:$0xff]
      %v5290 = vld [vmem:[%s7 + $0x18] sm:$0xff]
      %v5291 = vld [vmem:[%s8] sm:$0xff]
      %v5292 = vld [vmem:[%s8 + $0x8] sm:$0xff]
      %5294 = vset.pattern.permute.xlu0 0
      %5295 = vperm.xlu0 %5294, %v5291
      %v5296 = vpop.permute.xlu0 %5295
      %5299 = vset.pattern.permute.xlu0 0
      %5300 = vperm.xlu0 %5299, %v5292
      %v5301 = vpop.permute.xlu0 %5300
      %vm5303 = vcmask 130048
      %v5305 = vsel %vm5303, %v5288, 0
      %v5308 = vsel %vm5303, %v5290, 0
      %5310 = vmatprep.subr.mxu0 %v4328
      %5311 = vmatpush1.msra.mxu0 %v4327
      %5312 = vmatprep.subr.mxu0 %v4344
      %5313 = vmatpush1.msra.mxu0 %v4343
      %5314 = vmatprep.subr.mxu0 %v4456
      %5315 = vmatpush1.msra.mxu0 %v4455
      %5316 = vmatprep.subr.mxu0 %v4472
      %5317 = vmatpush1.msra.mxu0 %v4471
      %5318 = vmatprep.subr.mxu0 %v4584
      %5319 = vmatpush1.msra.mxu0 %v4583
      %5320 = vmatprep.subr.mxu0 %v4600
      %5321 = vmatpush1.msra.mxu0 %v4599
      %5322 = vmatprep.subr.mxu0 %v4712
      %5323 = vmatpush1.msra.mxu0 %v4711
      %5324 = vmatprep.subr.mxu0 %v4728
      %5325 = vmatpush1.msra.mxu0 %v4727
      %5326 = vmatprep.subr.mxu0 %v4744
      %5327 = vmatpush1.msra.mxu0 %v4743
      %5328 = vmatprep.subr.mxu0 %v4760
      %5329 = vmatpush1.msra.mxu0 %v4759
      %5330 = vmatprep.subr.mxu0 %v4872
      %5331 = vmatpush1.msra.mxu0 %v4871
      %5332 = vmatprep.subr.mxu0 %v4888
      %5333 = vmatpush1.msra.mxu0 %v4887
      %5334 = vmatprep.subr.mxu0 %v5000
      %5335 = vmatpush1.msra.mxu0 %v4999
      %5336 = vmatprep.subr.mxu0 %v5016
      %5337 = vmatpush1.msra.mxu0 %v5015
      %5338 = vmatprep.subr.mxu0 %v5128
      %5339 = vmatpush1.msra.mxu0 %v5127
      %5340 = vmatprep.subr.mxu0 %v5144
      %5341 = vmatpush1.msra.mxu0 %v5143
      %5342 = vmatprep.subr.mxu0 %v5256
      %5343 = vmatpush1.msra.mxu0 %v5255
      %5344 = vmatprep.subr.mxu0 %v5272
      %5345 = vmatpush1.msra.mxu0 %v5271
      %5346 = vmatprep.subr.mxu0 0.0
      %5347 = vmatpush1.msra.mxu0 0.0
      %5348 = vmatprep.subr.mxu0 0.0
      %5349 = vmatpush1.msra.mxu0 0.0
      %5350 = vmatprep.subr.mxu0 0.0
      %5351 = vmatpush1.msra.mxu0 0.0
      %5352 = vmatprep.subr.mxu0 0.0
      %5353 = vmatpush1.msra.mxu0 0.0
      %5354 = vmatprep.subr.mxu0 0.0
      %5355 = vmatpush1.msra.mxu0 0.0
      %5356 = vmatprep.subr.mxu0 0.0
      %5357 = vmatpush1.msra.mxu0 0.0
      %5358 = vmatprep.subr.mxu0 0.0
      %5359 = vmatpush1.msra.mxu0 0.0
      %5360 = vmatprep.subr.mxu0 0.0
      %5361 = vmatpush1.msra.mxu0 0.0
      %5362 = vmatprep.subr.mxu0 0.0
      %5363 = vmatpush1.msra.mxu0 0.0
      %5364 = vmatprep.subr.mxu0 0.0
      %5365 = vmatpush1.msra.mxu0 0.0
      %5366 = vmatprep.subr.mxu0 0.0
      %5367 = vmatpush1.msra.mxu0 0.0
      %5368 = vmatprep.subr.mxu0 0.0
      %5369 = vmatpush1.msra.mxu0 0.0
      %5370 = vmatprep.subr.mxu0 0.0
      %5371 = vmatpush1.msra.mxu0 0.0
      %5372 = vmatprep.subr.mxu0 0.0
      %5373 = vmatpush1.msra.mxu0 0.0
      %5374 = vmatprep.mubr.f32.mxu0 %v5305
      %5375 = vmatmul.mubr.f32.gmra.mrb[0].mxu0 %v5287
      %v5376 = vpop.f32.mrb[0].mxu0
      %v5377 = vadd.f32 %v5296, %v5376
      %v5378 = vpop.f32.mrb[0].mxu0
      %v5379 = vadd.f32 %v5296, %v5378
      %5380 = vmatprep.mubr.f32.mxu0 %v5308
      %5381 = vmatmul.mubr.f32.gmra.mrb[0].mxu0 %v5289
      %v5382 = vpop.f32.mrb[0].mxu0
      %v5383 = vadd.f32 %v5301, %v5382
      %v5384 = vpop.f32.mrb[0].mxu0
      %v5385 = vadd.f32 %v5301, %v5384
      %5386 = vdwg.mxu0
      %5387 = vmatprep.subr.mxu0 %v4330
      %5388 = vmatpush1.msra.mxu0 %v4329
      %5389 = vmatprep.subr.mxu0 %v4346
      %5390 = vmatpush1.msra.mxu0 %v4345
      %5391 = vmatprep.subr.mxu0 %v4458
      %5392 = vmatpush1.msra.mxu0 %v4457
      %5393 = vmatprep.subr.mxu0 %v4474
      %5394 = vmatpush1.msra.mxu0 %v4473
      %5395 = vmatprep.subr.mxu0 %v4586
      %5396 = vmatpush1.msra.mxu0 %v4585
      %5397 = vmatprep.subr.mxu0 %v4602
      %5398 = vmatpush1.msra.mxu0 %v4601
      %5399 = vmatprep.subr.mxu0 %v4714
      %5400 = vmatpush1.msra.mxu0 %v4713
      %5401 = vmatprep.subr.mxu0 %v4730
      %5402 = vmatpush1.msra.mxu0 %v4729
      %5403 = vmatprep.subr.mxu0 %v4746
      %5404 = vmatpush1.msra.mxu0 %v4745
      %5405 = vmatprep.subr.mxu0 %v4762
      %5406 = vmatpush1.msra.mxu0 %v4761
      %5407 = vmatprep.subr.mxu0 %v4874
      %5408 = vmatpush1.msra.mxu0 %v4873
      %5409 = vmatprep.subr.mxu0 %v4890
      %5410 = vmatpush1.msra.mxu0 %v4889
      %5411 = vmatprep.subr.mxu0 %v5002
      %5412 = vmatpush1.msra.mxu0 %v5001
      %5413 = vmatprep.subr.mxu0 %v5018
      %5414 = vmatpush1.msra.mxu0 %v5017
      %5415 = vmatprep.subr.mxu0 %v5130
      %5416 = vmatpush1.msra.mxu0 %v5129
      %5417 = vmatprep.subr.mxu0 %v5146
      %5418 = vmatpush1.msra.mxu0 %v5145
      %5419 = vmatprep.subr.mxu0 %v5258
      %5420 = vmatpush1.msra.mxu0 %v5257
      %5421 = vmatprep.subr.mxu0 %v5274
      %5422 = vmatpush1.msra.mxu0 %v5273
      %5423 = vmatprep.subr.mxu0 0.0
      %5424 = vmatpush1.msra.mxu0 0.0
      %5425 = vmatprep.subr.mxu0 0.0
      %5426 = vmatpush1.msra.mxu0 0.0
      %5427 = vmatprep.subr.mxu0 0.0
      %5428 = vmatpush1.msra.mxu0 0.0
      %5429 = vmatprep.subr.mxu0 0.0
      %5430 = vmatpush1.msra.mxu0 0.0
      %5431 = vmatprep.subr.mxu0 0.0
      %5432 = vmatpush1.msra.mxu0 0.0
      %5433 = vmatprep.subr.mxu0 0.0
      %5434 = vmatpush1.msra.mxu0 0.0
      %5435 = vmatprep.subr.mxu0 0.0
      %5436 = vmatpush1.msra.mxu0 0.0
      %5437 = vmatprep.subr.mxu0 0.0
      %5438 = vmatpush1.msra.mxu0 0.0
      %5439 = vmatprep.subr.mxu0 0.0
      %5440 = vmatpush1.msra.mxu0 0.0
      %5441 = vmatprep.subr.mxu0 0.0
      %5442 = vmatpush1.msra.mxu0 0.0
      %5443 = vmatprep.subr.mxu0 0.0
      %5444 = vmatpush1.msra.mxu0 0.0
      %5445 = vmatprep.subr.mxu0 0.0
      %5446 = vmatpush1.msra.mxu0 0.0
      %5447 = vmatprep.subr.mxu0 0.0
      %5448 = vmatpush1.msra.mxu0 0.0
      %5449 = vmatprep.subr.mxu0 0.0
      %5450 = vmatpush1.msra.mxu0 0.0
      %5451 = vmatprep.mubr.f32.mxu0 %v5305
      %5452 = vmatmul.mubr.f32.gmra.mrb[0].mxu0 %v5287
      %v5453 = vpop.f32.mrb[0].mxu0
      %v5454 = vadd.f32 %v5296, %v5453
      %v5455 = vpop.f32.mrb[0].mxu0
      %v5456 = vadd.f32 %v5296, %v5455
      %5457 = vmatprep.mubr.f32.mxu0 %v5308
      %5458 = vmatmul.mubr.f32.gmra.mrb[0].mxu0 %v5289
      %v5459 = vpop.f32.mrb[0].mxu0
      %v5460 = vadd.f32 %v5301, %v5459
      %v5461 = vpop.f32.mrb[0].mxu0
      %v5462 = vadd.f32 %v5301, %v5461
      %5463 = vdwg.mxu0
      %5464 = vmatprep.subr.mxu0 %v4332
      %5465 = vmatpush1.msra.mxu0 %v4331
      %5466 = vmatprep.subr.mxu0 %v4348
      %5467 = vmatpush1.msra.mxu0 %v4347
      %5468 = vmatprep.subr.mxu0 %v4460
      %5469 = vmatpush1.msra.mxu0 %v4459
      %5470 = vmatprep.subr.mxu0 %v4476
      %5471 = vmatpush1.msra.mxu0 %v4475
      %5472 = vmatprep.subr.mxu0 %v4588
      %5473 = vmatpush1.msra.mxu0 %v4587
      %5474 = vmatprep.subr.mxu0 %v4604
      %5475 = vmatpush1.msra.mxu0 %v4603
      %5476 = vmatprep.subr.mxu0 %v4716
      %5477 = vmatpush1.msra.mxu0 %v4715
      %5478 = vmatprep.subr.mxu0 %v4732
      %5479 = vmatpush1.msra.mxu0 %v4731
      %5480 = vmatprep.subr.mxu0 %v4748
      %5481 = vmatpush1.msra.mxu0 %v4747
      %5482 = vmatprep.subr.mxu0 %v4764
      %5483 = vmatpush1.msra.mxu0 %v4763
      %5484 = vmatprep.subr.mxu0 %v4876
      %5485 = vmatpush1.msra.mxu0 %v4875
      %5486 = vmatprep.subr.mxu0 %v4892
      %5487 = vmatpush1.msra.mxu0 %v4891
      %5488 = vmatprep.subr.mxu0 %v5004
      %5489 = vmatpush1.msra.mxu0 %v5003
      %5490 = vmatprep.subr.mxu0 %v5020
      %5491 = vmatpush1.msra.mxu0 %v5019
      %5492 = vmatprep.subr.mxu0 %v5132
      %5493 = vmatpush1.msra.mxu0 %v5131
      %5494 = vmatprep.subr.mxu0 %v5148
      %5495 = vmatpush1.msra.mxu0 %v5147
      %5496 = vmatprep.subr.mxu0 %v5260
      %5497 = vmatpush1.msra.mxu0 %v5259
      %5498 = vmatprep.subr.mxu0 %v5276
      %5499 = vmatpush1.msra.mxu0 %v5275
      %5500 = vmatprep.subr.mxu0 0.0
      %5501 = vmatpush1.msra.mxu0 0.0
      %5502 = vmatprep.subr.mxu0 0.0
      %5503 = vmatpush1.msra.mxu0 0.0
      %5504 = vmatprep.subr.mxu0 0.0
      %5505 = vmatpush1.msra.mxu0 0.0
      %5506 = vmatprep.subr.mxu0 0.0
      %5507 = vmatpush1.msra.mxu0 0.0
      %5508 = vmatprep.subr.mxu0 0.0
      %5509 = vmatpush1.msra.mxu0 0.0
      %5510 = vmatprep.subr.mxu0 0.0
      %5511 = vmatpush1.msra.mxu0 0.0
      %5512 = vmatprep.subr.mxu0 0.0
      %5513 = vmatpush1.msra.mxu0 0.0
      %5514 = vmatprep.subr.mxu0 0.0
      %5515 = vmatpush1.msra.mxu0 0.0
      %5516 = vmatprep.subr.mxu0 0.0
      %5517 = vmatpush1.msra.mxu0 0.0
      %5518 = vmatprep.subr.mxu0 0.0
      %5519 = vmatpush1.msra.mxu0 0.0
      %5520 = vmatprep.subr.mxu0 0.0
      %5521 = vmatpush1.msra.mxu0 0.0
      %5522 = vmatprep.subr.mxu0 0.0
      %5523 = vmatpush1.msra.mxu0 0.0
      %5524 = vmatprep.subr.mxu0 0.0
      %5525 = vmatpush1.msra.mxu0 0.0
      %5526 = vmatprep.subr.mxu0 0.0
      %5527 = vmatpush1.msra.mxu0 0.0
      %5528 = vmatprep.mubr.f32.mxu0 %v5305
      %5529 = vmatmul.mubr.f32.gmra.mrb[0].mxu0 %v5287
      %v5530 = vpop.f32.mrb[0].mxu0
      %v5531 = vadd.f32 %v5296, %v5530
      %v5532 = vpop.f32.mrb[0].mxu0
      %v5533 = vadd.f32 %v5296, %v5532
      %5534 = vmatprep.mubr.f32.mxu0 %v5308
      %5535 = vmatmul.mubr.f32.gmra.mrb[0].mxu0 %v5289
      %v5536 = vpop.f32.mrb[0].mxu0
      %v5537 = vadd.f32 %v5301, %v5536
      %v5538 = vpop.f32.mrb[0].mxu0
      %v5539 = vadd.f32 %v5301, %v5538
      %5540 = vdwg.mxu0
      %5541 = vmatprep.subr.mxu0 %v4334
      %5542 = vmatpush1.msra.mxu0 %v4333
      %5543 = vmatprep.subr.mxu0 %v4350
      %5544 = vmatpush1.msra.mxu0 %v4349
      %5545 = vmatprep.subr.mxu0 %v4462
      %5546 = vmatpush1.msra.mxu0 %v4461
      %5547 = vmatprep.subr.mxu0 %v4478
      %5548 = vmatpush1.msra.mxu0 %v4477
      %5549 = vmatprep.subr.mxu0 %v4590
      %5550 = vmatpush1.msra.mxu0 %v4589
      %5551 = vmatprep.subr.mxu0 %v4606
      %5552 = vmatpush1.msra.mxu0 %v4605
      %5553 = vmatprep.subr.mxu0 %v4718
      %5554 = vmatpush1.msra.mxu0 %v4717
      %5555 = vmatprep.subr.mxu0 %v4734
      %5556 = vmatpush1.msra.mxu0 %v4733
      %5557 = vmatprep.subr.mxu0 %v4750
      %5558 = vmatpush1.msra.mxu0 %v4749
      %5559 = vmatprep.subr.mxu0 %v4766
      %5560 = vmatpush1.msra.mxu0 %v4765
      %5561 = vmatprep.subr.mxu0 %v4878
      %5562 = vmatpush1.msra.mxu0 %v4877
      %5563 = vmatprep.subr.mxu0 %v4894
      %5564 = vmatpush1.msra.mxu0 %v4893
      %5565 = vmatprep.subr.mxu0 %v5006
      %5566 = vmatpush1.msra.mxu0 %v5005
      %5567 = vmatprep.subr.mxu0 %v5022
      %5568 = vmatpush1.msra.mxu0 %v5021
      %5569 = vmatprep.subr.mxu0 %v5134
      %5570 = vmatpush1.msra.mxu0 %v5133
      %5571 = vmatprep.subr.mxu0 %v5150
      %5572 = vmatpush1.msra.mxu0 %v5149
      %5573 = vmatprep.subr.mxu0 %v5262
      %5574 = vmatpush1.msra.mxu0 %v5261
      %5575 = vmatprep.subr.mxu0 %v5278
      %5576 = vmatpush1.msra.mxu0 %v5277
      %5577 = vmatprep.subr.mxu0 0.0
      %5578 = vmatpush1.msra.mxu0 0.0
      %5579 = vmatprep.subr.mxu0 0.0
      %5580 = vmatpush1.msra.mxu0 0.0
      %5581 = vmatprep.subr.mxu0 0.0
      %5582 = vmatpush1.msra.mxu0 0.0
      %5583 = vmatprep.subr.mxu0 0.0
      %5584 = vmatpush1.msra.mxu0 0.0
      %5585 = vmatprep.subr.mxu0 0.0
      %5586 = vmatpush1.msra.mxu0 0.0
      %5587 = vmatprep.subr.mxu0 0.0
      %5588 = vmatpush1.msra.mxu0 0.0
      %5589 = vmatprep.subr.mxu0 0.0
      %5590 = vmatpush1.msra.mxu0 0.0
      %5591 = vmatprep.subr.mxu0 0.0
      %5592 = vmatpush1.msra.mxu0 0.0
      %5593 = vmatprep.subr.mxu0 0.0
      %5594 = vmatpush1.msra.mxu0 0.0
      %5595 = vmatprep.subr.mxu0 0.0
      %5596 = vmatpush1.msra.mxu0 0.0
      %5597 = vmatprep.subr.mxu0 0.0
      %5598 = vmatpush1.msra.mxu0 0.0
      %5599 = vmatprep.subr.mxu0 0.0
      %5600 = vmatpush1.msra.mxu0 0.0
      %5601 = vmatprep.subr.mxu0 0.0
      %5602 = vmatpush1.msra.mxu0 0.0
      %5603 = vmatprep.subr.mxu0 0.0
      %5604 = vmatpush1.msra.mxu0 0.0
      %5605 = vmatprep.mubr.f32.mxu0 %v5305
      %5606 = vmatmul.mubr.f32.gmra.mrb[0].mxu0 %v5287
      %v5607 = vpop.f32.mrb[0].mxu0
      %v5608 = vadd.f32 %v5296, %v5607
      %v5609 = vpop.f32.mrb[0].mxu0
      %v5610 = vadd.f32 %v5296, %v5609
      %5611 = vmatprep.mubr.f32.mxu0 %v5308
      %5612 = vmatmul.mubr.f32.gmra.mrb[0].mxu0 %v5289
      %v5613 = vpop.f32.mrb[0].mxu0
      %v5614 = vadd.f32 %v5301, %v5613
      %v5615 = vpop.f32.mrb[0].mxu0
      %v5616 = vadd.f32 %v5301, %v5615
      %5617 = vdwg.mxu0
      %5618 = vmatprep.subr.mxu0 %v4336
      %5619 = vmatpush1.msra.mxu0 %v4335
      %5620 = vmatprep.subr.mxu0 %v4352
      %5621 = vmatpush1.msra.mxu0 %v4351
      %5622 = vmatprep.subr.mxu0 %v4464
      %5623 = vmatpush1.msra.mxu0 %v4463
      %5624 = vmatprep.subr.mxu0 %v4480
      %5625 = vmatpush1.msra.mxu0 %v4479
      %5626 = vmatprep.subr.mxu0 %v4592
      %5627 = vmatpush1.msra.mxu0 %v4591
      %5628 = vmatprep.subr.mxu0 %v4608
      %5629 = vmatpush1.msra.mxu0 %v4607
      %5630 = vmatprep.subr.mxu0 %v4720
      %5631 = vmatpush1.msra.mxu0 %v4719
      %5632 = vmatprep.subr.mxu0 %v4736
      %5633 = vmatpush1.msra.mxu0 %v4735
      %5634 = vmatprep.subr.mxu0 %v4752
      %5635 = vmatpush1.msra.mxu0 %v4751
      %5636 = vmatprep.subr.mxu0 %v4768
      %5637 = vmatpush1.msra.mxu0 %v4767
      %5638 = vmatprep.subr.mxu0 %v4880
      %5639 = vmatpush1.msra.mxu0 %v4879
      %5640 = vmatprep.subr.mxu0 %v4896
      %5641 = vmatpush1.msra.mxu0 %v4895
      %5642 = vmatprep.subr.mxu0 %v5008
      %5643 = vmatpush1.msra.mxu0 %v5007
      %5644 = vmatprep.subr.mxu0 %v5024
      %5645 = vmatpush1.msra.mxu0 %v5023
      %5646 = vmatprep.subr.mxu0 %v5136
      %5647 = vmatpush1.msra.mxu0 %v5135
      %5648 = vmatprep.subr.mxu0 %v5152
      %5649 = vmatpush1.msra.mxu0 %v5151
      %5650 = vmatprep.subr.mxu0 %v5264
      %5651 = vmatpush1.msra.mxu0 %v5263
      %5652 = vmatprep.subr.mxu0 %v5280
      %5653 = vmatpush1.msra.mxu0 %v5279
      %5654 = vmatprep.subr.mxu0 0.0
      %5655 = vmatpush1.msra.mxu0 0.0
      %5656 = vmatprep.subr.mxu0 0.0
      %5657 = vmatpush1.msra.mxu0 0.0
      %5658 = vmatprep.subr.mxu0 0.0
      %5659 = vmatpush1.msra.mxu0 0.0
      %5660 = vmatprep.subr.mxu0 0.0
      %5661 = vmatpush1.msra.mxu0 0.0
      %5662 = vmatprep.subr.mxu0 0.0
      %5663 = vmatpush1.msra.mxu0 0.0
      %5664 = vmatprep.subr.mxu0 0.0
      %5665 = vmatpush1.msra.mxu0 0.0
      %5666 = vmatprep.subr.mxu0 0.0
      %5667 = vmatpush1.msra.mxu0 0.0
      %5668 = vmatprep.subr.mxu0 0.0
      %5669 = vmatpush1.msra.mxu0 0.0
      %5670 = vmatprep.subr.mxu0 0.0
      %5671 = vmatpush1.msra.mxu0 0.0
      %5672 = vmatprep.subr.mxu0 0.0
      %5673 = vmatpush1.msra.mxu0 0.0
      %5674 = vmatprep.subr.mxu0 0.0
      %5675 = vmatpush1.msra.mxu0 0.0
      %5676 = vmatprep.subr.mxu0 0.0
      %5677 = vmatpush1.msra.mxu0 0.0
      %5678 = vmatprep.subr.mxu0 0.0
      %5679 = vmatpush1.msra.mxu0 0.0
      %5680 = vmatprep.subr.mxu0 0.0
      %5681 = vmatpush1.msra.mxu0 0.0
      %5682 = vmatprep.mubr.f32.mxu0 %v5305
      %5683 = vmatmul.mubr.f32.gmra.mrb[0].mxu0 %v5287
      %v5684 = vpop.f32.mrb[0].mxu0
      %v5685 = vadd.f32 %v5296, %v5684
      %v5686 = vpop.f32.mrb[0].mxu0
      %v5687 = vadd.f32 %v5296, %v5686
      %5688 = vmatprep.mubr.f32.mxu0 %v5308
      %5689 = vmatmul.mubr.f32.gmra.mrb[0].mxu0 %v5289
      %v5690 = vpop.f32.mrb[0].mxu0
      %v5691 = vadd.f32 %v5301, %v5690
      %v5692 = vpop.f32.mrb[0].mxu0
      %v5693 = vadd.f32 %v5301, %v5692
      %5694 = vdwg.mxu0
      %5695 = vmatprep.subr.mxu0 %v4338
      %5696 = vmatpush1.msra.mxu0 %v4337
      %5697 = vmatprep.subr.mxu0 %v4354
      %5698 = vmatpush1.msra.mxu0 %v4353
      %5699 = vmatprep.subr.mxu0 %v4466
      %5700 = vmatpush1.msra.mxu0 %v4465
      %5701 = vmatprep.subr.mxu0 %v4482
      %5702 = vmatpush1.msra.mxu0 %v4481
      %5703 = vmatprep.subr.mxu0 %v4594
      %5704 = vmatpush1.msra.mxu0 %v4593
      %5705 = vmatprep.subr.mxu0 %v4610
      %5706 = vmatpush1.msra.mxu0 %v4609
      %5707 = vmatprep.subr.mxu0 %v4722
      %5708 = vmatpush1.msra.mxu0 %v4721
      %5709 = vmatprep.subr.mxu0 %v4738
      %5710 = vmatpush1.msra.mxu0 %v4737
      %5711 = vmatprep.subr.mxu0 %v4754
      %5712 = vmatpush1.msra.mxu0 %v4753
      %5713 = vmatprep.subr.mxu0 %v4770
      %5714 = vmatpush1.msra.mxu0 %v4769
      %5715 = vmatprep.subr.mxu0 %v4882
      %5716 = vmatpush1.msra.mxu0 %v4881
      %5717 = vmatprep.subr.mxu0 %v4898
      %5718 = vmatpush1.msra.mxu0 %v4897
      %5719 = vmatprep.subr.mxu0 %v5010
      %5720 = vmatpush1.msra.mxu0 %v5009
      %5721 = vmatprep.subr.mxu0 %v5026
      %5722 = vmatpush1.msra.mxu0 %v5025
      %5723 = vmatprep.subr.mxu0 %v5138
      %5724 = vmatpush1.msra.mxu0 %v5137
      %5725 = vmatprep.subr.mxu0 %v5154
      %5726 = vmatpush1.msra.mxu0 %v5153
      %5727 = vmatprep.subr.mxu0 %v5266
      %5728 = vmatpush1.msra.mxu0 %v5265
      %5729 = vmatprep.subr.mxu0 %v5282
      %5730 = vmatpush1.msra.mxu0 %v5281
      %5731 = vmatprep.subr.mxu0 0.0
      %5732 = vmatpush1.msra.mxu0 0.0
      %5733 = vmatprep.subr.mxu0 0.0
      %5734 = vmatpush1.msra.mxu0 0.0
      %5735 = vmatprep.subr.mxu0 0.0
      %5736 = vmatpush1.msra.mxu0 0.0
      %5737 = vmatprep.subr.mxu0 0.0
      %5738 = vmatpush1.msra.mxu0 0.0
      %5739 = vmatprep.subr.mxu0 0.0
      %5740 = vmatpush1.msra.mxu0 0.0
      %5741 = vmatprep.subr.mxu0 0.0
      %5742 = vmatpush1.msra.mxu0 0.0
      %5743 = vmatprep.subr.mxu0 0.0
      %5744 = vmatpush1.msra.mxu0 0.0
      %5745 = vmatprep.subr.mxu0 0.0
      %5746 = vmatpush1.msra.mxu0 0.0
      %5747 = vmatprep.subr.mxu0 0.0
      %5748 = vmatpush1.msra.mxu0 0.0
      %5749 = vmatprep.subr.mxu0 0.0
      %5750 = vmatpush1.msra.mxu0 0.0
      %5751 = vmatprep.subr.mxu0 0.0
      %5752 = vmatpush1.msra.mxu0 0.0
      %5753 = vmatprep.subr.mxu0 0.0
      %5754 = vmatpush1.msra.mxu0 0.0
      %5755 = vmatprep.subr.mxu0 0.0
      %5756 = vmatpush1.msra.mxu0 0.0
      %5757 = vmatprep.subr.mxu0 0.0
      %5758 = vmatpush1.msra.mxu0 0.0
      %5759 = vmatprep.mubr.f32.mxu0 %v5305
      %5760 = vmatmul.mubr.f32.gmra.mrb[0].mxu0 %v5287
      %v5761 = vpop.f32.mrb[0].mxu0
      %v5762 = vadd.f32 %v5296, %v5761
      %v5763 = vpop.f32.mrb[0].mxu0
      %v5764 = vadd.f32 %v5296, %v5763
      %5765 = vmatprep.mubr.f32.mxu0 %v5308
      %5766 = vmatmul.mubr.f32.gmra.mrb[0].mxu0 %v5289
      %v5767 = vpop.f32.mrb[0].mxu0
      %v5768 = vadd.f32 %v5301, %v5767
      %v5769 = vpop.f32.mrb[0].mxu0
      %v5770 = vadd.f32 %v5301, %v5769
      %5771 = vdwg.mxu0
      %5772 = vmatprep.subr.mxu0 %v4340
      %5773 = vmatpush1.msra.mxu0 %v4339
      %5774 = vmatprep.subr.mxu0 %v4356
      %5775 = vmatpush1.msra.mxu0 %v4355
      %5776 = vmatprep.subr.mxu0 %v4468
      %5777 = vmatpush1.msra.mxu0 %v4467
      %5778 = vmatprep.subr.mxu0 %v4484
      %5779 = vmatpush1.msra.mxu0 %v4483
      %5780 = vmatprep.subr.mxu0 %v4596
      %5781 = vmatpush1.msra.mxu0 %v4595
      %5782 = vmatprep.subr.mxu0 %v4612
      %5783 = vmatpush1.msra.mxu0 %v4611
      %5784 = vmatprep.subr.mxu0 %v4724
      %5785 = vmatpush1.msra.mxu0 %v4723
      %5786 = vmatprep.subr.mxu0 %v4740
      %5787 = vmatpush1.msra.mxu0 %v4739
      %5788 = vmatprep.subr.mxu0 %v4756
      %5789 = vmatpush1.msra.mxu0 %v4755
      %5790 = vmatprep.subr.mxu0 %v4772
      %5791 = vmatpush1.msra.mxu0 %v4771
      %5792 = vmatprep.subr.mxu0 %v4884
      %5793 = vmatpush1.msra.mxu0 %v4883
      %5794 = vmatprep.subr.mxu0 %v4900
      %5795 = vmatpush1.msra.mxu0 %v4899
      %5796 = vmatprep.subr.mxu0 %v5012
      %5797 = vmatpush1.msra.mxu0 %v5011
      %5798 = vmatprep.subr.mxu0 %v5028
      %5799 = vmatpush1.msra.mxu0 %v5027
      %5800 = vmatprep.subr.mxu0 %v5140
      %5801 = vmatpush1.msra.mxu0 %v5139
      %5802 = vmatprep.subr.mxu0 %v5156
      %5803 = vmatpush1.msra.mxu0 %v5155
      %5804 = vmatprep.subr.mxu0 %v5268
      %5805 = vmatpush1.msra.mxu0 %v5267
      %5806 = vmatprep.subr.mxu0 %v5284
      %5807 = vmatpush1.msra.mxu0 %v5283
      %5808 = vmatprep.subr.mxu0 0.0
      %5809 = vmatpush1.msra.mxu0 0.0
      %5810 = vmatprep.subr.mxu0 0.0
      %5811 = vmatpush1.msra.mxu0 0.0
      %5812 = vmatprep.subr.mxu0 0.0
      %5813 = vmatpush1.msra.mxu0 0.0
      %5814 = vmatprep.subr.mxu0 0.0
      %5815 = vmatpush1.msra.mxu0 0.0
      %5816 = vmatprep.subr.mxu0 0.0
      %5817 = vmatpush1.msra.mxu0 0.0
      %5818 = vmatprep.subr.mxu0 0.0
      %5819 = vmatpush1.msra.mxu0 0.0
      %5820 = vmatprep.subr.mxu0 0.0
      %5821 = vmatpush1.msra.mxu0 0.0
      %5822 = vmatprep.subr.mxu0 0.0
      %5823 = vmatpush1.msra.mxu0 0.0
      %5824 = vmatprep.subr.mxu0 0.0
      %5825 = vmatpush1.msra.mxu0 0.0
      %5826 = vmatprep.subr.mxu0 0.0
      %5827 = vmatpush1.msra.mxu0 0.0
      %5828 = vmatprep.subr.mxu0 0.0
      %5829 = vmatpush1.msra.mxu0 0.0
      %5830 = vmatprep.subr.mxu0 0.0
      %5831 = vmatpush1.msra.mxu0 0.0
      %5832 = vmatprep.subr.mxu0 0.0
      %5833 = vmatpush1.msra.mxu0 0.0
      %5834 = vmatprep.subr.mxu0 0.0
      %5835 = vmatpush1.msra.mxu0 0.0
      %5836 = vmatprep.mubr.f32.mxu0 %v5305
      %5837 = vmatmul.mubr.f32.gmra.mrb[0].mxu0 %v5287
      %v5838 = vpop.f32.mrb[0].mxu0
      %v5839 = vadd.f32 %v5296, %v5838
      %v5840 = vpop.f32.mrb[0].mxu0
      %v5841 = vadd.f32 %v5296, %v5840
      %5842 = vmatprep.mubr.f32.mxu0 %v5308
      %5843 = vmatmul.mubr.f32.gmra.mrb[0].mxu0 %v5289
      %v5844 = vpop.f32.mrb[0].mxu0
      %v5845 = vadd.f32 %v5301, %v5844
      %v5846 = vpop.f32.mrb[0].mxu0
      %v5847 = vadd.f32 %v5301, %v5846
      %5848 = vdwg.mxu0
      %5849 = vmatprep.subr.mxu0 %v4342
      %5850 = vmatpush1.msra.mxu0 %v4341
      %5851 = vmatprep.subr.mxu0 %v4358
      %5852 = vmatpush1.msra.mxu0 %v4357
      %5853 = vmatprep.subr.mxu0 %v4470
      %5854 = vmatpush1.msra.mxu0 %v4469
      %5855 = vmatprep.subr.mxu0 %v4486
      %5856 = vmatpush1.msra.mxu0 %v4485
      %5857 = vmatprep.subr.mxu0 %v4598
      %5858 = vmatpush1.msra.mxu0 %v4597
      %5859 = vmatprep.subr.mxu0 %v4614
      %5860 = vmatpush1.msra.mxu0 %v4613
      %5861 = vmatprep.subr.mxu0 %v4726
      %5862 = vmatpush1.msra.mxu0 %v4725
      %5863 = vmatprep.subr.mxu0 %v4742
      %5864 = vmatpush1.msra.mxu0 %v4741
      %5865 = vmatprep.subr.mxu0 %v4758
      %5866 = vmatpush1.msra.mxu0 %v4757
      %5867 = vmatprep.subr.mxu0 %v4774
      %5868 = vmatpush1.msra.mxu0 %v4773
      %5869 = vmatprep.subr.mxu0 %v4886
      %5870 = vmatpush1.msra.mxu0 %v4885
      %5871 = vmatprep.subr.mxu0 %v4902
      %5872 = vmatpush1.msra.mxu0 %v4901
      %5873 = vmatprep.subr.mxu0 %v5014
      %5874 = vmatpush1.msra.mxu0 %v5013
      %5875 = vmatprep.subr.mxu0 %v5030
      %5876 = vmatpush1.msra.mxu0 %v5029
      %5877 = vmatprep.subr.mxu0 %v5142
      %5878 = vmatpush1.msra.mxu0 %v5141
      %5879 = vmatprep.subr.mxu0 %v5158
      %5880 = vmatpush1.msra.mxu0 %v5157
      %5881 = vmatprep.subr.mxu0 %v5270
      %5882 = vmatpush1.msra.mxu0 %v5269
      %5883 = vmatprep.subr.mxu0 %v5286
      %5884 = vmatpush1.msra.mxu0 %v5285
      %5885 = vmatprep.subr.mxu0 0.0
      %5886 = vmatpush1.msra.mxu0 0.0
      %5887 = vmatprep.subr.mxu0 0.0
      %5888 = vmatpush1.msra.mxu0 0.0
      %5889 = vmatprep.subr.mxu0 0.0
      %5890 = vmatpush1.msra.mxu0 0.0
      %5891 = vmatprep.subr.mxu0 0.0
      %5892 = vmatpush1.msra.mxu0 0.0
      %5893 = vmatprep.subr.mxu0 0.0
      %5894 = vmatpush1.msra.mxu0 0.0
      %5895 = vmatprep.subr.mxu0 0.0
      %5896 = vmatpush1.msra.mxu0 0.0
      %5897 = vmatprep.subr.mxu0 0.0
      %5898 = vmatpush1.msra.mxu0 0.0
      %5899 = vmatprep.subr.mxu0 0.0
      %5900 = vmatpush1.msra.mxu0 0.0
      %5901 = vmatprep.subr.mxu0 0.0
      %5902 = vmatpush1.msra.mxu0 0.0
      %5903 = vmatprep.subr.mxu0 0.0
      %5904 = vmatpush1.msra.mxu0 0.0
      %5905 = vmatprep.subr.mxu0 0.0
      %5906 = vmatpush1.msra.mxu0 0.0
      %5907 = vmatprep.subr.mxu0 0.0
      %5908 = vmatpush1.msra.mxu0 0.0
      %5909 = vmatprep.subr.mxu0 0.0
      %5910 = vmatpush1.msra.mxu0 0.0
      %5911 = vmatprep.subr.mxu0 0.0
      %5912 = vmatpush1.msra.mxu0 0.0
      %5913 = vmatprep.mubr.f32.mxu0 %v5305
      %5914 = vmatmul.mubr.f32.gmra.mrb[0].mxu0 %v5287
      %v5915 = vpop.f32.mrb[0].mxu0
      %v5916 = vadd.f32 %v5296, %v5915
      %v5917 = vpop.f32.mrb[0].mxu0
      %v5918 = vadd.f32 %v5296, %v5917
      %5919 = vmatprep.mubr.f32.mxu0 %v5308
      %5920 = vmatmul.mubr.f32.gmra.mrb[0].mxu0 %v5289
      %v5921 = vpop.f32.mrb[0].mxu0
      %v5922 = vadd.f32 %v5301, %v5921
      %v5923 = vpop.f32.mrb[0].mxu0
      %v5924 = vadd.f32 %v5301, %v5923
      %5925 = vdwg.mxu0
      %5926 = vrot.lane.b32.xlu0 %v5377, 126
      %v5927 = vpop.permute.xlu0 %5926
      %5928 = vrot.lane.b32.xlu0 %v5383, 126
      %v5929 = vpop.permute.xlu0 %5928
      %5930 = vrot.lane.b32.xlu0 %v5379, 126
      %v5931 = vpop.permute.xlu0 %5930
      %5932 = vrot.lane.b32.xlu0 %v5385, 126
      %v5933 = vpop.permute.xlu0 %5932
      %5934 = vrot.lane.b32.xlu0 %v5454, 126
      %v5935 = vpop.permute.xlu0 %5934
      %5936 = vrot.lane.b32.xlu0 %v5460, 126
      %v5937 = vpop.permute.xlu0 %5936
      %5938 = vrot.lane.b32.xlu0 %v5456, 126
      %v5939 = vpop.permute.xlu0 %5938
      %5940 = vrot.lane.b32.xlu0 %v5462, 126
      %v5941 = vpop.permute.xlu0 %5940
      %5942 = vrot.lane.b32.xlu0 %v5531, 126
      %v5943 = vpop.permute.xlu0 %5942
      %5944 = vrot.lane.b32.xlu0 %v5537, 126
      %v5945 = vpop.permute.xlu0 %5944
      %5946 = vrot.lane.b32.xlu0 %v5533, 126
      %v5947 = vpop.permute.xlu0 %5946
      %5948 = vrot.lane.b32.xlu0 %v5539, 126
      %v5949 = vpop.permute.xlu0 %5948
      %5950 = vrot.lane.b32.xlu0 %v5608, 126
      %v5951 = vpop.permute.xlu0 %5950
      %5952 = vrot.lane.b32.xlu0 %v5614, 126
      %v5953 = vpop.permute.xlu0 %5952
      %5954 = vrot.lane.b32.xlu0 %v5610, 126
      %v5955 = vpop.permute.xlu0 %5954
      %5956 = vrot.lane.b32.xlu0 %v5616, 126
      %v5957 = vpop.permute.xlu0 %5956
      %5958 = vrot.lane.b32.xlu0 %v5685, 126
      %v5959 = vpop.permute.xlu0 %5958
      %5960 = vrot.lane.b32.xlu0 %v5691, 126
      %v5961 = vpop.permute.xlu0 %5960
      %5962 = vrot.lane.b32.xlu0 %v5687, 126
      %v5963 = vpop.permute.xlu0 %5962
      %5964 = vrot.lane.b32.xlu0 %v5693, 126
      %v5965 = vpop.permute.xlu0 %5964
      %5966 = vrot.lane.b32.xlu0 %v5762, 126
      %v5967 = vpop.permute.xlu0 %5966
      %5968 = vrot.lane.b32.xlu0 %v5768, 126
      %v5969 = vpop.permute.xlu0 %5968
      %5970 = vrot.lane.b32.xlu0 %v5764, 126
      %v5971 = vpop.permute.xlu0 %5970
      %5972 = vrot.lane.b32.xlu0 %v5770, 126
      %v5973 = vpop.permute.xlu0 %5972
      %5974 = vrot.lane.b32.xlu0 %v5839, 126
      %v5975 = vpop.permute.xlu0 %5974
      %5976 = vrot.lane.b32.xlu0 %v5845, 126
      %v5977 = vpop.permute.xlu0 %5976
      %5978 = vrot.lane.b32.xlu0 %v5841, 126
      %v5979 = vpop.permute.xlu0 %5978
      %5980 = vrot.lane.b32.xlu0 %v5847, 126
      %v5981 = vpop.permute.xlu0 %5980
      %5982 = vrot.lane.b32.xlu0 %v5916, 126
      %v5983 = vpop.permute.xlu0 %5982
      %5984 = vrot.lane.b32.xlu0 %v5922, 126
      %v5985 = vpop.permute.xlu0 %5984
      %5986 = vrot.lane.b32.xlu0 %v5918, 126
      %v5987 = vpop.permute.xlu0 %5986
      %5988 = vrot.lane.b32.xlu0 %v5924, 126
      %v5989 = vpop.permute.xlu0 %5988
      %v5990 = vsel %vm3079, %v5983, %v5987
      %v5991 = vsel %vm3079, %v5985, %v5989
      %v5992 = vsel %vm3079, %v5979, %v5983
      %v5993 = vsel %vm3079, %v5981, %v5985
      %v5994 = vsel %vm3079, %v5975, %v5979
      %v5995 = vsel %vm3079, %v5977, %v5981
      %v5996 = vsel %vm3079, %v5971, %v5975
      %v5997 = vsel %vm3079, %v5973, %v5977
      %v5998 = vsel %vm3079, %v5967, %v5971
      %v5999 = vsel %vm3079, %v5969, %v5973
      %v6000 = vsel %vm3079, %v5963, %v5967
      %v6001 = vsel %vm3079, %v5965, %v5969
      %v6002 = vsel %vm3079, %v5959, %v5963
      %v6003 = vsel %vm3079, %v5961, %v5965
      %v6004 = vsel %vm3079, %v5955, %v5959
      %v6005 = vsel %vm3079, %v5957, %v5961
      %v6006 = vsel %vm3079, %v5951, %v5955
      %v6007 = vsel %vm3079, %v5953, %v5957
      %v6008 = vsel %vm3079, %v5947, %v5951
      %v6009 = vsel %vm3079, %v5949, %v5953
      %v6010 = vsel %vm3079, %v5943, %v5947
      %v6011 = vsel %vm3079, %v5945, %v5949
      %v6012 = vsel %vm3079, %v5939, %v5943
      %v6013 = vsel %vm3079, %v5941, %v5945
      %v6014 = vsel %vm3079, %v5935, %v5939
      %v6015 = vsel %vm3079, %v5937, %v5941
      %v6016 = vsel %vm3079, %v5931, %v5935
      %v6017 = vsel %vm3079, %v5933, %v5937
      %v6018 = vsel %vm3079, %v5927, %v5931
      %v6019 = vsel %vm3079, %v5929, %v5933
      %v6020 = vsel %vm3079, %v5987, %v5927
      %v6021 = vsel %vm3079, %v5989, %v5929
      %v6022 = vmax.f32 %v5377, %v6018
      %v6023 = vmax.f32 %v5379, %v6016
      %v6024 = vmax.f32 %v5454, %v6014
      %v6025 = vmax.f32 %v5456, %v6012
      %v6026 = vmax.f32 %v5531, %v6010
      %v6027 = vmax.f32 %v5533, %v6008
      %v6028 = vmax.f32 %v5608, %v6006
      %v6029 = vmax.f32 %v5610, %v6004
      %v6030 = vmax.f32 %v5685, %v6002
      %v6031 = vmax.f32 %v5687, %v6000
      %v6032 = vmax.f32 %v5762, %v5998
      %v6033 = vmax.f32 %v5764, %v5996
      %v6034 = vmax.f32 %v5839, %v5994
      %v6035 = vmax.f32 %v5841, %v5992
      %v6036 = vmax.f32 %v5916, %v5990
      %v6037 = vmax.f32 %v5918, %v6020
      %v6038 = vmax.f32 %v5383, %v6019
      %v6039 = vmax.f32 %v5385, %v6017
      %v6040 = vmax.f32 %v5460, %v6015
      %v6041 = vmax.f32 %v5462, %v6013
      %v6042 = vmax.f32 %v5537, %v6011
      %v6043 = vmax.f32 %v5539, %v6009
      %v6044 = vmax.f32 %v5614, %v6007
      %v6045 = vmax.f32 %v5616, %v6005
      %v6046 = vmax.f32 %v5691, %v6003
      %v6047 = vmax.f32 %v5693, %v6001
      %v6048 = vmax.f32 %v5768, %v5999
      %v6049 = vmax.f32 %v5770, %v5997
      %v6050 = vmax.f32 %v5845, %v5995
      %v6051 = vmax.f32 %v5847, %v5993
      %v6052 = vmax.f32 %v5922, %v5991
      %v6053 = vmax.f32 %v5924, %v6021
      %6054 = vrot.lane.b32.xlu0 %v5377, 96
      %v6055 = vpop.permute.xlu0 %6054
      %6056 = vrot.lane.b32.xlu0 %v5383, 96
      %v6057 = vpop.permute.xlu0 %6056
      %6058 = vrot.lane.b32.xlu0 %v5379, 96
      %v6059 = vpop.permute.xlu0 %6058
      %6060 = vrot.lane.b32.xlu0 %v5385, 96
      %v6061 = vpop.permute.xlu0 %6060
      %6062 = vrot.lane.b32.xlu0 %v5454, 96
      %v6063 = vpop.permute.xlu0 %6062
      %6064 = vrot.lane.b32.xlu0 %v5460, 96
      %v6065 = vpop.permute.xlu0 %6064
      %6066 = vrot.lane.b32.xlu0 %v5456, 96
      %v6067 = vpop.permute.xlu0 %6066
      %6068 = vrot.lane.b32.xlu0 %v5462, 96
      %v6069 = vpop.permute.xlu0 %6068
      %6070 = vrot.lane.b32.xlu0 %v5531, 96
      %v6071 = vpop.permute.xlu0 %6070
      %6072 = vrot.lane.b32.xlu0 %v5537, 96
      %v6073 = vpop.permute.xlu0 %6072
      %6074 = vrot.lane.b32.xlu0 %v5533, 96
      %v6075 = vpop.permute.xlu0 %6074
      %6076 = vrot.lane.b32.xlu0 %v5539, 96
      %v6077 = vpop.permute.xlu0 %6076
      %6078 = vrot.lane.b32.xlu0 %v5608, 96
      %v6079 = vpop.permute.xlu0 %6078
      %6080 = vrot.lane.b32.xlu0 %v5614, 96
      %v6081 = vpop.permute.xlu0 %6080
      %6082 = vrot.lane.b32.xlu0 %v5610, 96
      %v6083 = vpop.permute.xlu0 %6082
      %6084 = vrot.lane.b32.xlu0 %v5616, 96
      %v6085 = vpop.permute.xlu0 %6084
      %6086 = vrot.lane.b32.xlu0 %v5685, 96
      %v6087 = vpop.permute.xlu0 %6086
      %6088 = vrot.lane.b32.xlu0 %v5691, 96
      %v6089 = vpop.permute.xlu0 %6088
      %6090 = vrot.lane.b32.xlu0 %v5687, 96
      %v6091 = vpop.permute.xlu0 %6090
      %6092 = vrot.lane.b32.xlu0 %v5693, 96
      %v6093 = vpop.permute.xlu0 %6092
      %6094 = vrot.lane.b32.xlu0 %v5762, 96
      %v6095 = vpop.permute.xlu0 %6094
      %6096 = vrot.lane.b32.xlu0 %v5768, 96
      %v6097 = vpop.permute.xlu0 %6096
      %6098 = vrot.lane.b32.xlu0 %v5764, 96
      %v6099 = vpop.permute.xlu0 %6098
      %6100 = vrot.lane.b32.xlu0 %v5770, 96
      %v6101 = vpop.permute.xlu0 %6100
      %6102 = vrot.lane.b32.xlu0 %v5839, 96
      %v6103 = vpop.permute.xlu0 %6102
      %6104 = vrot.lane.b32.xlu0 %v5845, 96
      %v6105 = vpop.permute.xlu0 %6104
      %6106 = vrot.lane.b32.xlu0 %v5841, 96
      %v6107 = vpop.permute.xlu0 %6106
      %6108 = vrot.lane.b32.xlu0 %v5847, 96
      %v6109 = vpop.permute.xlu0 %6108
      %6110 = vrot.lane.b32.xlu0 %v5916, 96
      %v6111 = vpop.permute.xlu0 %6110
      %6112 = vrot.lane.b32.xlu0 %v5922, 96
      %v6113 = vpop.permute.xlu0 %6112
      %6114 = vrot.lane.b32.xlu0 %v5918, 96
      %v6115 = vpop.permute.xlu0 %6114
      %6116 = vrot.lane.b32.xlu0 %v5924, 96
      %v6117 = vpop.permute.xlu0 %6116
      %v6118 = vsel %vm3337, %v6111, %v6115
      %v6119 = vsel %vm3337, %v6113, %v6117
      %v6120 = vsel %vm3337, %v6107, %v6111
      %v6121 = vsel %vm3337, %v6109, %v6113
      %v6122 = vsel %vm3337, %v6103, %v6107
      %v6123 = vsel %vm3337, %v6105, %v6109
      %v6124 = vsel %vm3337, %v6099, %v6103
      %v6125 = vsel %vm3337, %v6101, %v6105
      %v6126 = vsel %vm3337, %v6095, %v6099
      %v6127 = vsel %vm3337, %v6097, %v6101
      %v6128 = vsel %vm3337, %v6091, %v6095
      %v6129 = vsel %vm3337, %v6093, %v6097
      %v6130 = vsel %vm3337, %v6087, %v6091
      %v6131 = vsel %vm3337, %v6089, %v6093
      %v6132 = vsel %vm3337, %v6083, %v6087
      %v6133 = vsel %vm3337, %v6085, %v6089
      %v6134 = vsel %vm3337, %v6079, %v6083
      %v6135 = vsel %vm3337, %v6081, %v6085
      %v6136 = vsel %vm3337, %v6075, %v6079
      %v6137 = vsel %vm3337, %v6077, %v6081
      %v6138 = vsel %vm3337, %v6071, %v6075
      %v6139 = vsel %vm3337, %v6073, %v6077
      %v6140 = vsel %vm3337, %v6067, %v6071
      %v6141 = vsel %vm3337, %v6069, %v6073
      %v6142 = vsel %vm3337, %v6063, %v6067
      %v6143 = vsel %vm3337, %v6065, %v6069
      %v6144 = vsel %vm3337, %v6059, %v6063
      %v6145 = vsel %vm3337, %v6061, %v6065
      %v6146 = vsel %vm3337, %v6055, %v6059
      %v6147 = vsel %vm3337, %v6057, %v6061
      %v6148 = vsel %vm3337, %v6115, %v6055
      %v6149 = vsel %vm3337, %v6117, %v6057
      %6150 = vrot.lane.b32.xlu0 %v5377, 94
      %v6151 = vpop.permute.xlu0 %6150
      %6152 = vrot.lane.b32.xlu0 %v5383, 94
      %v6153 = vpop.permute.xlu0 %6152
      %6154 = vrot.lane.b32.xlu0 %v5379, 94
      %v6155 = vpop.permute.xlu0 %6154
      %6156 = vrot.lane.b32.xlu0 %v5385, 94
      %v6157 = vpop.permute.xlu0 %6156
      %6158 = vrot.lane.b32.xlu0 %v5454, 94
      %v6159 = vpop.permute.xlu0 %6158
      %6160 = vrot.lane.b32.xlu0 %v5460, 94
      %v6161 = vpop.permute.xlu0 %6160
      %6162 = vrot.lane.b32.xlu0 %v5456, 94
      %v6163 = vpop.permute.xlu0 %6162
      %6164 = vrot.lane.b32.xlu0 %v5462, 94
      %v6165 = vpop.permute.xlu0 %6164
      %6166 = vrot.lane.b32.xlu0 %v5531, 94
      %v6167 = vpop.permute.xlu0 %6166
      %6168 = vrot.lane.b32.xlu0 %v5537, 94
      %v6169 = vpop.permute.xlu0 %6168
      %6170 = vrot.lane.b32.xlu0 %v5533, 94
      %v6171 = vpop.permute.xlu0 %6170
      %6172 = vrot.lane.b32.xlu0 %v5539, 94
      %v6173 = vpop.permute.xlu0 %6172
      %6174 = vrot.lane.b32.xlu0 %v5608, 94
      %v6175 = vpop.permute.xlu0 %6174
      %6176 = vrot.lane.b32.xlu0 %v5614, 94
      %v6177 = vpop.permute.xlu0 %6176
      %6178 = vrot.lane.b32.xlu0 %v5610, 94
      %v6179 = vpop.permute.xlu0 %6178
      %6180 = vrot.lane.b32.xlu0 %v5616, 94
      %v6181 = vpop.permute.xlu0 %6180
      %6182 = vrot.lane.b32.xlu0 %v5685, 94
      %v6183 = vpop.permute.xlu0 %6182
      %6184 = vrot.lane.b32.xlu0 %v5691, 94
      %v6185 = vpop.permute.xlu0 %6184
      %6186 = vrot.lane.b32.xlu0 %v5687, 94
      %v6187 = vpop.permute.xlu0 %6186
      %6188 = vrot.lane.b32.xlu0 %v5693, 94
      %v6189 = vpop.permute.xlu0 %6188
      %6190 = vrot.lane.b32.xlu0 %v5762, 94
      %v6191 = vpop.permute.xlu0 %6190
      %6192 = vrot.lane.b32.xlu0 %v5768, 94
      %v6193 = vpop.permute.xlu0 %6192
      %6194 = vrot.lane.b32.xlu0 %v5764, 94
      %v6195 = vpop.permute.xlu0 %6194
      %6196 = vrot.lane.b32.xlu0 %v5770, 94
      %v6197 = vpop.permute.xlu0 %6196
      %6198 = vrot.lane.b32.xlu0 %v5839, 94
      %v6199 = vpop.permute.xlu0 %6198
      %6200 = vrot.lane.b32.xlu0 %v5845, 94
      %v6201 = vpop.permute.xlu0 %6200
      %6202 = vrot.lane.b32.xlu0 %v5841, 94
      %v6203 = vpop.permute.xlu0 %6202
      %6204 = vrot.lane.b32.xlu0 %v5847, 94
      %v6205 = vpop.permute.xlu0 %6204
      %6206 = vrot.lane.b32.xlu0 %v5916, 94
      %v6207 = vpop.permute.xlu0 %6206
      %6208 = vrot.lane.b32.xlu0 %v5922, 94
      %v6209 = vpop.permute.xlu0 %6208
      %6210 = vrot.lane.b32.xlu0 %v5918, 94
      %v6211 = vpop.permute.xlu0 %6210
      %6212 = vrot.lane.b32.xlu0 %v5924, 94
      %v6213 = vpop.permute.xlu0 %6212
      %v6214 = vsel %vm3466, %v6207, %v6211
      %v6215 = vsel %vm3466, %v6209, %v6213
      %v6216 = vsel %vm3466, %v6203, %v6207
      %v6217 = vsel %vm3466, %v6205, %v6209
      %v6218 = vsel %vm3466, %v6199, %v6203
      %v6219 = vsel %vm3466, %v6201, %v6205
      %v6220 = vsel %vm3466, %v6195, %v6199
      %v6221 = vsel %vm3466, %v6197, %v6201
      %v6222 = vsel %vm3466, %v6191, %v6195
      %v6223 = vsel %vm3466, %v6193, %v6197
      %v6224 = vsel %vm3466, %v6187, %v6191
      %v6225 = vsel %vm3466, %v6189, %v6193
      %v6226 = vsel %vm3466, %v6183, %v6187
      %v6227 = vsel %vm3466, %v6185, %v6189
      %v6228 = vsel %vm3466, %v6179, %v6183
      %v6229 = vsel %vm3466, %v6181, %v6185
      %v6230 = vsel %vm3466, %v6175, %v6179
      %v6231 = vsel %vm3466, %v6177, %v6181
      %v6232 = vsel %vm3466, %v6171, %v6175
      %v6233 = vsel %vm3466, %v6173, %v6177
      %v6234 = vsel %vm3466, %v6167, %v6171
      %v6235 = vsel %vm3466, %v6169, %v6173
      %v6236 = vsel %vm3466, %v6163, %v6167
      %v6237 = vsel %vm3466, %v6165, %v6169
      %v6238 = vsel %vm3466, %v6159, %v6163
      %v6239 = vsel %vm3466, %v6161, %v6165
      %v6240 = vsel %vm3466, %v6155, %v6159
      %v6241 = vsel %vm3466, %v6157, %v6161
      %v6242 = vsel %vm3466, %v6151, %v6155
      %v6243 = vsel %vm3466, %v6153, %v6157
      %v6244 = vsel %vm3466, %v6211, %v6151
      %v6245 = vsel %vm3466, %v6213, %v6153
      %v6246 = vmax.f32 %v6146, %v6242
      %v6247 = vmax.f32 %v6144, %v6240
      %v6248 = vmax.f32 %v6142, %v6238
      %v6249 = vmax.f32 %v6140, %v6236
      %v6250 = vmax.f32 %v6138, %v6234
      %v6251 = vmax.f32 %v6136, %v6232
      %v6252 = vmax.f32 %v6134, %v6230
      %v6253 = vmax.f32 %v6132, %v6228
      %v6254 = vmax.f32 %v6130, %v6226
      %v6255 = vmax.f32 %v6128, %v6224
      %v6256 = vmax.f32 %v6126, %v6222
      %v6257 = vmax.f32 %v6124, %v6220
      %v6258 = vmax.f32 %v6122, %v6218
      %v6259 = vmax.f32 %v6120, %v6216
      %v6260 = vmax.f32 %v6118, %v6214
      %v6261 = vmax.f32 %v6148, %v6244
      %v6262 = vmax.f32 %v6147, %v6243
      %v6263 = vmax.f32 %v6145, %v6241
      %v6264 = vmax.f32 %v6143, %v6239
      %v6265 = vmax.f32 %v6141, %v6237
      %v6266 = vmax.f32 %v6139, %v6235
      %v6267 = vmax.f32 %v6137, %v6233
      %v6268 = vmax.f32 %v6135, %v6231
      %v6269 = vmax.f32 %v6133, %v6229
      %v6270 = vmax.f32 %v6131, %v6227
      %v6271 = vmax.f32 %v6129, %v6225
      %v6272 = vmax.f32 %v6127, %v6223
      %v6273 = vmax.f32 %v6125, %v6221
      %v6274 = vmax.f32 %v6123, %v6219
      %v6275 = vmax.f32 %v6121, %v6217
      %v6276 = vmax.f32 %v6119, %v6215
      %v6277 = vmax.f32 %v6149, %v6245
      %v6278 = vmax.f32 %v6022, %v6246
      %v6279 = vmax.f32 %v6023, %v6247
      %v6280 = vmax.f32 %v6024, %v6248
      %v6281 = vmax.f32 %v6025, %v6249
      %v6282 = vmax.f32 %v6026, %v6250
      %v6283 = vmax.f32 %v6027, %v6251
      %v6284 = vmax.f32 %v6028, %v6252
      %v6285 = vmax.f32 %v6029, %v6253
      %v6286 = vmax.f32 %v6030, %v6254
      %v6287 = vmax.f32 %v6031, %v6255
      %v6288 = vmax.f32 %v6032, %v6256
      %v6289 = vmax.f32 %v6033, %v6257
      %v6290 = vmax.f32 %v6034, %v6258
      %v6291 = vmax.f32 %v6035, %v6259
      %v6292 = vmax.f32 %v6036, %v6260
      %v6293 = vmax.f32 %v6037, %v6261
      %v6294 = vmax.f32 %v6038, %v6262
      %v6295 = vmax.f32 %v6039, %v6263
      %v6296 = vmax.f32 %v6040, %v6264
      %v6297 = vmax.f32 %v6041, %v6265
      %v6298 = vmax.f32 %v6042, %v6266
      %v6299 = vmax.f32 %v6043, %v6267
      %v6300 = vmax.f32 %v6044, %v6268
      %v6301 = vmax.f32 %v6045, %v6269
      %v6302 = vmax.f32 %v6046, %v6270
      %v6303 = vmax.f32 %v6047, %v6271
      %v6304 = vmax.f32 %v6048, %v6272
      %v6305 = vmax.f32 %v6049, %v6273
      %v6306 = vmax.f32 %v6050, %v6274
      %v6307 = vmax.f32 %v6051, %v6275
      %v6308 = vmax.f32 %v6052, %v6276
      %v6309 = vmax.f32 %v6053, %v6277
      %v6310 = vmax.f32 %v6278, 0.0
      %v6311 = vmax.f32 %v6279, 0.0
      %v6312 = vmax.f32 %v6280, 0.0
      %v6313 = vmax.f32 %v6281, 0.0
      %v6314 = vmax.f32 %v6282, 0.0
      %v6315 = vmax.f32 %v6283, 0.0
      %v6316 = vmax.f32 %v6284, 0.0
      %v6317 = vmax.f32 %v6285, 0.0
      %v6318 = vmax.f32 %v6286, 0.0
      %v6319 = vmax.f32 %v6287, 0.0
      %v6320 = vmax.f32 %v6288, 0.0
      %v6321 = vmax.f32 %v6289, 0.0
      %v6322 = vmax.f32 %v6290, 0.0
      %v6323 = vmax.f32 %v6291, 0.0
      %v6324 = vmax.f32 %v6292, 0.0
      %v6325 = vmax.f32 %v6293, 0.0
      %v6326 = vmax.f32 %v6294, 0.0
      %v6327 = vmax.f32 %v6295, 0.0
      %v6328 = vmax.f32 %v6296, 0.0
      %v6329 = vmax.f32 %v6297, 0.0
      %v6330 = vmax.f32 %v6298, 0.0
      %v6331 = vmax.f32 %v6299, 0.0
      %v6332 = vmax.f32 %v6300, 0.0
      %v6333 = vmax.f32 %v6301, 0.0
      %v6334 = vmax.f32 %v6302, 0.0
      %v6335 = vmax.f32 %v6303, 0.0
      %v6336 = vmax.f32 %v6304, 0.0
      %v6337 = vmax.f32 %v6305, 0.0
      %v6338 = vmax.f32 %v6306, 0.0
      %v6339 = vmax.f32 %v6307, 0.0
      %v6340 = vmax.f32 %v6308, 0.0
      %v6341 = vmax.f32 %v6309, 0.0
      %6342 = vrot.lane.b32.xlu0 %v6310, 124
      %v6343 = vpop.permute.xlu0 %6342
      %6344 = vrot.lane.b32.xlu0 %v6326, 124
      %v6345 = vpop.permute.xlu0 %6344
      %6346 = vrot.lane.b32.xlu0 %v6311, 124
      %v6347 = vpop.permute.xlu0 %6346
      %6348 = vrot.lane.b32.xlu0 %v6327, 124
      %v6349 = vpop.permute.xlu0 %6348
      %6350 = vrot.lane.b32.xlu0 %v6312, 124
      %v6351 = vpop.permute.xlu0 %6350
      %6352 = vrot.lane.b32.xlu0 %v6328, 124
      %v6353 = vpop.permute.xlu0 %6352
      %6354 = vrot.lane.b32.xlu0 %v6313, 124
      %v6355 = vpop.permute.xlu0 %6354
      %6356 = vrot.lane.b32.xlu0 %v6329, 124
      %v6357 = vpop.permute.xlu0 %6356
      %6358 = vrot.lane.b32.xlu0 %v6314, 124
      %v6359 = vpop.permute.xlu0 %6358
      %6360 = vrot.lane.b32.xlu0 %v6330, 124
      %v6361 = vpop.permute.xlu0 %6360
      %6362 = vrot.lane.b32.xlu0 %v6315, 124
      %v6363 = vpop.permute.xlu0 %6362
      %6364 = vrot.lane.b32.xlu0 %v6331, 124
      %v6365 = vpop.permute.xlu0 %6364
      %6366 = vrot.lane.b32.xlu0 %v6316, 124
      %v6367 = vpop.permute.xlu0 %6366
      %6368 = vrot.lane.b32.xlu0 %v6332, 124
      %v6369 = vpop.permute.xlu0 %6368
      %6370 = vrot.lane.b32.xlu0 %v6317, 124
      %v6371 = vpop.permute.xlu0 %6370
      %6372 = vrot.lane.b32.xlu0 %v6333, 124
      %v6373 = vpop.permute.xlu0 %6372
      %6374 = vrot.lane.b32.xlu0 %v6318, 124
      %v6375 = vpop.permute.xlu0 %6374
      %6376 = vrot.lane.b32.xlu0 %v6334, 124
      %v6377 = vpop.permute.xlu0 %6376
      %6378 = vrot.lane.b32.xlu0 %v6319, 124
      %v6379 = vpop.permute.xlu0 %6378
      %6380 = vrot.lane.b32.xlu0 %v6335, 124
      %v6381 = vpop.permute.xlu0 %6380
      %6382 = vrot.lane.b32.xlu0 %v6320, 124
      %v6383 = vpop.permute.xlu0 %6382
      %6384 = vrot.lane.b32.xlu0 %v6336, 124
      %v6385 = vpop.permute.xlu0 %6384
      %6386 = vrot.lane.b32.xlu0 %v6321, 124
      %v6387 = vpop.permute.xlu0 %6386
      %6388 = vrot.lane.b32.xlu0 %v6337, 124
      %v6389 = vpop.permute.xlu0 %6388
      %6390 = vrot.lane.b32.xlu0 %v6322, 124
      %v6391 = vpop.permute.xlu0 %6390
      %6392 = vrot.lane.b32.xlu0 %v6338, 124
      %v6393 = vpop.permute.xlu0 %6392
      %6394 = vrot.lane.b32.xlu0 %v6323, 124
      %v6395 = vpop.permute.xlu0 %6394
      %6396 = vrot.lane.b32.xlu0 %v6339, 124
      %v6397 = vpop.permute.xlu0 %6396
      %6398 = vrot.lane.b32.xlu0 %v6324, 124
      %v6399 = vpop.permute.xlu0 %6398
      %6400 = vrot.lane.b32.xlu0 %v6340, 124
      %v6401 = vpop.permute.xlu0 %6400
      %6402 = vrot.lane.b32.xlu0 %v6325, 124
      %v6403 = vpop.permute.xlu0 %6402
      %6404 = vrot.lane.b32.xlu0 %v6341, 124
      %v6405 = vpop.permute.xlu0 %6404
      %vm6406 = vcmp.lt.s32.totalorder %v583, 124
      %v6407 = vsel %vm6406, %v6399, %v6403
      %v6408 = vsel %vm6406, %v6401, %v6405
      %v6409 = vsel %vm6406, %v6395, %v6399
      %v6410 = vsel %vm6406, %v6397, %v6401
      %v6411 = vsel %vm6406, %v6391, %v6395
      %v6412 = vsel %vm6406, %v6393, %v6397
      %v6413 = vsel %vm6406, %v6387, %v6391
      %v6414 = vsel %vm6406, %v6389, %v6393
      %v6415 = vsel %vm6406, %v6383, %v6387
      %v6416 = vsel %vm6406, %v6385, %v6389
      %v6417 = vsel %vm6406, %v6379, %v6383
      %v6418 = vsel %vm6406, %v6381, %v6385
      %v6419 = vsel %vm6406, %v6375, %v6379
      %v6420 = vsel %vm6406, %v6377, %v6381
      %v6421 = vsel %vm6406, %v6371, %v6375
      %v6422 = vsel %vm6406, %v6373, %v6377
      %v6423 = vsel %vm6406, %v6367, %v6371
      %v6424 = vsel %vm6406, %v6369, %v6373
      %v6425 = vsel %vm6406, %v6363, %v6367
      %v6426 = vsel %vm6406, %v6365, %v6369
      %v6427 = vsel %vm6406, %v6359, %v6363
      %v6428 = vsel %vm6406, %v6361, %v6365
      %v6429 = vsel %vm6406, %v6355, %v6359
      %v6430 = vsel %vm6406, %v6357, %v6361
      %v6431 = vsel %vm6406, %v6351, %v6355
      %v6432 = vsel %vm6406, %v6353, %v6357
      %v6433 = vsel %vm6406, %v6347, %v6351
      %v6434 = vsel %vm6406, %v6349, %v6353
      %v6435 = vsel %vm6406, %v6343, %v6347
      %v6436 = vsel %vm6406, %v6345, %v6349
      %v6437 = vsel %vm6406, %v6403, %v6343
      %v6438 = vsel %vm6406, %v6405, %v6345
      %6439 = vrot.lane.b32.xlu0 %v6310, 120
      %v6440 = vpop.permute.xlu0 %6439
      %6441 = vrot.lane.b32.xlu0 %v6326, 120
      %v6442 = vpop.permute.xlu0 %6441
      %6443 = vrot.lane.b32.xlu0 %v6311, 120
      %v6444 = vpop.permute.xlu0 %6443
      %6445 = vrot.lane.b32.xlu0 %v6327, 120
      %v6446 = vpop.permute.xlu0 %6445
      %6447 = vrot.lane.b32.xlu0 %v6312, 120
      %v6448 = vpop.permute.xlu0 %6447
      %6449 = vrot.lane.b32.xlu0 %v6328, 120
      %v6450 = vpop.permute.xlu0 %6449
      %6451 = vrot.lane.b32.xlu0 %v6313, 120
      %v6452 = vpop.permute.xlu0 %6451
      %6453 = vrot.lane.b32.xlu0 %v6329, 120
      %v6454 = vpop.permute.xlu0 %6453
      %6455 = vrot.lane.b32.xlu0 %v6314, 120
      %v6456 = vpop.permute.xlu0 %6455
      %6457 = vrot.lane.b32.xlu0 %v6330, 120
      %v6458 = vpop.permute.xlu0 %6457
      %6459 = vrot.lane.b32.xlu0 %v6315, 120
      %v6460 = vpop.permute.xlu0 %6459
      %6461 = vrot.lane.b32.xlu0 %v6331, 120
      %v6462 = vpop.permute.xlu0 %6461
      %6463 = vrot.lane.b32.xlu0 %v6316, 120
      %v6464 = vpop.permute.xlu0 %6463
      %6465 = vrot.lane.b32.xlu0 %v6332, 120
      %v6466 = vpop.permute.xlu0 %6465
      %6467 = vrot.lane.b32.xlu0 %v6317, 120
      %v6468 = vpop.permute.xlu0 %6467
      %6469 = vrot.lane.b32.xlu0 %v6333, 120
      %v6470 = vpop.permute.xlu0 %6469
      %6471 = vrot.lane.b32.xlu0 %v6318, 120
      %v6472 = vpop.permute.xlu0 %6471
      %6473 = vrot.lane.b32.xlu0 %v6334, 120
      %v6474 = vpop.permute.xlu0 %6473
      %6475 = vrot.lane.b32.xlu0 %v6319, 120
      %v6476 = vpop.permute.xlu0 %6475
      %6477 = vrot.lane.b32.xlu0 %v6335, 120
      %v6478 = vpop.permute.xlu0 %6477
      %6479 = vrot.lane.b32.xlu0 %v6320, 120
      %v6480 = vpop.permute.xlu0 %6479
      %6481 = vrot.lane.b32.xlu0 %v6336, 120
      %v6482 = vpop.permute.xlu0 %6481
      %6483 = vrot.lane.b32.xlu0 %v6321, 120
      %v6484 = vpop.permute.xlu0 %6483
      %6485 = vrot.lane.b32.xlu0 %v6337, 120
      %v6486 = vpop.permute.xlu0 %6485
      %6487 = vrot.lane.b32.xlu0 %v6322, 120
      %v6488 = vpop.permute.xlu0 %6487
      %6489 = vrot.lane.b32.xlu0 %v6338, 120
      %v6490 = vpop.permute.xlu0 %6489
      %6491 = vrot.lane.b32.xlu0 %v6323, 120
      %v6492 = vpop.permute.xlu0 %6491
      %6493 = vrot.lane.b32.xlu0 %v6339, 120
      %v6494 = vpop.permute.xlu0 %6493
      %6495 = vrot.lane.b32.xlu0 %v6324, 120
      %v6496 = vpop.permute.xlu0 %6495
      %6497 = vrot.lane.b32.xlu0 %v6340, 120
      %v6498 = vpop.permute.xlu0 %6497
      %6499 = vrot.lane.b32.xlu0 %v6325, 120
      %v6500 = vpop.permute.xlu0 %6499
      %6501 = vrot.lane.b32.xlu0 %v6341, 120
      %v6502 = vpop.permute.xlu0 %6501
      %vm6503 = vcmp.lt.s32.totalorder %v583, 120
      %v6504 = vsel %vm6503, %v6496, %v6500
      %v6505 = vsel %vm6503, %v6498, %v6502
      %v6506 = vsel %vm6503, %v6492, %v6496
      %v6507 = vsel %vm6503, %v6494, %v6498
      %v6508 = vsel %vm6503, %v6488, %v6492
      %v6509 = vsel %vm6503, %v6490, %v6494
      %v6510 = vsel %vm6503, %v6484, %v6488
      %v6511 = vsel %vm6503, %v6486, %v6490
      %v6512 = vsel %vm6503, %v6480, %v6484
      %v6513 = vsel %vm6503, %v6482, %v6486
      %v6514 = vsel %vm6503, %v6476, %v6480
      %v6515 = vsel %vm6503, %v6478, %v6482
      %v6516 = vsel %vm6503, %v6472, %v6476
      %v6517 = vsel %vm6503, %v6474, %v6478
      %v6518 = vsel %vm6503, %v6468, %v6472
      %v6519 = vsel %vm6503, %v6470, %v6474
      %v6520 = vsel %vm6503, %v6464, %v6468
      %v6521 = vsel %vm6503, %v6466, %v6470
      %v6522 = vsel %vm6503, %v6460, %v6464
      %v6523 = vsel %vm6503, %v6462, %v6466
      %v6524 = vsel %vm6503, %v6456, %v6460
      %v6525 = vsel %vm6503, %v6458, %v6462
      %v6526 = vsel %vm6503, %v6452, %v6456
      %v6527 = vsel %vm6503, %v6454, %v6458
      %v6528 = vsel %vm6503, %v6448, %v6452
      %v6529 = vsel %vm6503, %v6450, %v6454
      %v6530 = vsel %vm6503, %v6444, %v6448
      %v6531 = vsel %vm6503, %v6446, %v6450
      %v6532 = vsel %vm6503, %v6440, %v6444
      %v6533 = vsel %vm6503, %v6442, %v6446
      %v6534 = vsel %vm6503, %v6500, %v6440
      %v6535 = vsel %vm6503, %v6502, %v6442
      %6536 = vrot.lane.b32.xlu0 %v6310, 116
      %v6537 = vpop.permute.xlu0 %6536
      %6538 = vrot.lane.b32.xlu0 %v6326, 116
      %v6539 = vpop.permute.xlu0 %6538
      %6540 = vrot.lane.b32.xlu0 %v6311, 116
      %v6541 = vpop.permute.xlu0 %6540
      %6542 = vrot.lane.b32.xlu0 %v6327, 116
      %v6543 = vpop.permute.xlu0 %6542
      %6544 = vrot.lane.b32.xlu0 %v6312, 116
      %v6545 = vpop.permute.xlu0 %6544
      %6546 = vrot.lane.b32.xlu0 %v6328, 116
      %v6547 = vpop.permute.xlu0 %6546
      %6548 = vrot.lane.b32.xlu0 %v6313, 116
      %v6549 = vpop.permute.xlu0 %6548
      %6550 = vrot.lane.b32.xlu0 %v6329, 116
      %v6551 = vpop.permute.xlu0 %6550
      %6552 = vrot.lane.b32.xlu0 %v6314, 116
      %v6553 = vpop.permute.xlu0 %6552
      %6554 = vrot.lane.b32.xlu0 %v6330, 116
      %v6555 = vpop.permute.xlu0 %6554
      %6556 = vrot.lane.b32.xlu0 %v6315, 116
      %v6557 = vpop.permute.xlu0 %6556
      %6558 = vrot.lane.b32.xlu0 %v6331, 116
      %v6559 = vpop.permute.xlu0 %6558
      %6560 = vrot.lane.b32.xlu0 %v6316, 116
      %v6561 = vpop.permute.xlu0 %6560
      %6562 = vrot.lane.b32.xlu0 %v6332, 116
      %v6563 = vpop.permute.xlu0 %6562
      %6564 = vrot.lane.b32.xlu0 %v6317, 116
      %v6565 = vpop.permute.xlu0 %6564
      %6566 = vrot.lane.b32.xlu0 %v6333, 116
      %v6567 = vpop.permute.xlu0 %6566
      %6568 = vrot.lane.b32.xlu0 %v6318, 116
      %v6569 = vpop.permute.xlu0 %6568
      %6570 = vrot.lane.b32.xlu0 %v6334, 116
      %v6571 = vpop.permute.xlu0 %6570
      %6572 = vrot.lane.b32.xlu0 %v6319, 116
      %v6573 = vpop.permute.xlu0 %6572
      %6574 = vrot.lane.b32.xlu0 %v6335, 116
      %v6575 = vpop.permute.xlu0 %6574
      %6576 = vrot.lane.b32.xlu0 %v6320, 116
      %v6577 = vpop.permute.xlu0 %6576
      %6578 = vrot.lane.b32.xlu0 %v6336, 116
      %v6579 = vpop.permute.xlu0 %6578
      %6580 = vrot.lane.b32.xlu0 %v6321, 116
      %v6581 = vpop.permute.xlu0 %6580
      %6582 = vrot.lane.b32.xlu0 %v6337, 116
      %v6583 = vpop.permute.xlu0 %6582
      %6584 = vrot.lane.b32.xlu0 %v6322, 116
      %v6585 = vpop.permute.xlu0 %6584
      %6586 = vrot.lane.b32.xlu0 %v6338, 116
      %v6587 = vpop.permute.xlu0 %6586
      %6588 = vrot.lane.b32.xlu0 %v6323, 116
      %v6589 = vpop.permute.xlu0 %6588
      %6590 = vrot.lane.b32.xlu0 %v6339, 116
      %v6591 = vpop.permute.xlu0 %6590
      %6592 = vrot.lane.b32.xlu0 %v6324, 116
      %v6593 = vpop.permute.xlu0 %6592
      %6594 = vrot.lane.b32.xlu0 %v6340, 116
      %v6595 = vpop.permute.xlu0 %6594
      %6596 = vrot.lane.b32.xlu0 %v6325, 116
      %v6597 = vpop.permute.xlu0 %6596
      %6598 = vrot.lane.b32.xlu0 %v6341, 116
      %v6599 = vpop.permute.xlu0 %6598
      %vm6600 = vcmp.lt.s32.totalorder %v583, 116
      %v6601 = vsel %vm6600, %v6593, %v6597
      %v6602 = vsel %vm6600, %v6595, %v6599
      %v6603 = vsel %vm6600, %v6589, %v6593
      %v6604 = vsel %vm6600, %v6591, %v6595
      %v6605 = vsel %vm6600, %v6585, %v6589
      %v6606 = vsel %vm6600, %v6587, %v6591
      %v6607 = vsel %vm6600, %v6581, %v6585
      %v6608 = vsel %vm6600, %v6583, %v6587
      %v6609 = vsel %vm6600, %v6577, %v6581
      %v6610 = vsel %vm6600, %v6579, %v6583
      %v6611 = vsel %vm6600, %v6573, %v6577
      %v6612 = vsel %vm6600, %v6575, %v6579
      %v6613 = vsel %vm6600, %v6569, %v6573
      %v6614 = vsel %vm6600, %v6571, %v6575
      %v6615 = vsel %vm6600, %v6565, %v6569
      %v6616 = vsel %vm6600, %v6567, %v6571
      %v6617 = vsel %vm6600, %v6561, %v6565
      %v6618 = vsel %vm6600, %v6563, %v6567
      %v6619 = vsel %vm6600, %v6557, %v6561
      %v6620 = vsel %vm6600, %v6559, %v6563
      %v6621 = vsel %vm6600, %v6553, %v6557
      %v6622 = vsel %vm6600, %v6555, %v6559
      %v6623 = vsel %vm6600, %v6549, %v6553
      %v6624 = vsel %vm6600, %v6551, %v6555
      %v6625 = vsel %vm6600, %v6545, %v6549
      %v6626 = vsel %vm6600, %v6547, %v6551
      %v6627 = vsel %vm6600, %v6541, %v6545
      %v6628 = vsel %vm6600, %v6543, %v6547
      %v6629 = vsel %vm6600, %v6537, %v6541
      %v6630 = vsel %vm6600, %v6539, %v6543
      %v6631 = vsel %vm6600, %v6597, %v6537
      %v6632 = vsel %vm6600, %v6599, %v6539
      %6633 = vrot.lane.b32.xlu0 %v6310, 64
      %v6634 = vpop.permute.xlu0 %6633
      %6635 = vrot.lane.b32.xlu0 %v6326, 64
      %v6636 = vpop.permute.xlu0 %6635
      %6637 = vrot.lane.b32.xlu0 %v6311, 64
      %v6638 = vpop.permute.xlu0 %6637
      %6639 = vrot.lane.b32.xlu0 %v6327, 64
      %v6640 = vpop.permute.xlu0 %6639
      %6641 = vrot.lane.b32.xlu0 %v6312, 64
      %v6642 = vpop.permute.xlu0 %6641
      %6643 = vrot.lane.b32.xlu0 %v6328, 64
      %v6644 = vpop.permute.xlu0 %6643
      %6645 = vrot.lane.b32.xlu0 %v6313, 64
      %v6646 = vpop.permute.xlu0 %6645
      %6647 = vrot.lane.b32.xlu0 %v6329, 64
      %v6648 = vpop.permute.xlu0 %6647
      %6649 = vrot.lane.b32.xlu0 %v6314, 64
      %v6650 = vpop.permute.xlu0 %6649
      %6651 = vrot.lane.b32.xlu0 %v6330, 64
      %v6652 = vpop.permute.xlu0 %6651
      %6653 = vrot.lane.b32.xlu0 %v6315, 64
      %v6654 = vpop.permute.xlu0 %6653
      %6655 = vrot.lane.b32.xlu0 %v6331, 64
      %v6656 = vpop.permute.xlu0 %6655
      %6657 = vrot.lane.b32.xlu0 %v6316, 64
      %v6658 = vpop.permute.xlu0 %6657
      %6659 = vrot.lane.b32.xlu0 %v6332, 64
      %v6660 = vpop.permute.xlu0 %6659
      %6661 = vrot.lane.b32.xlu0 %v6317, 64
      %v6662 = vpop.permute.xlu0 %6661
      %6663 = vrot.lane.b32.xlu0 %v6333, 64
      %v6664 = vpop.permute.xlu0 %6663
      %6665 = vrot.lane.b32.xlu0 %v6318, 64
      %v6666 = vpop.permute.xlu0 %6665
      %6667 = vrot.lane.b32.xlu0 %v6334, 64
      %v6668 = vpop.permute.xlu0 %6667
      %6669 = vrot.lane.b32.xlu0 %v6319, 64
      %v6670 = vpop.permute.xlu0 %6669
      %6671 = vrot.lane.b32.xlu0 %v6335, 64
      %v6672 = vpop.permute.xlu0 %6671
      %6673 = vrot.lane.b32.xlu0 %v6320, 64
      %v6674 = vpop.permute.xlu0 %6673
      %6675 = vrot.lane.b32.xlu0 %v6336, 64
      %v6676 = vpop.permute.xlu0 %6675
      %6677 = vrot.lane.b32.xlu0 %v6321, 64
      %v6678 = vpop.permute.xlu0 %6677
      %6679 = vrot.lane.b32.xlu0 %v6337, 64
      %v6680 = vpop.permute.xlu0 %6679
      %6681 = vrot.lane.b32.xlu0 %v6322, 64
      %v6682 = vpop.permute.xlu0 %6681
      %6683 = vrot.lane.b32.xlu0 %v6338, 64
      %v6684 = vpop.permute.xlu0 %6683
      %6685 = vrot.lane.b32.xlu0 %v6323, 64
      %v6686 = vpop.permute.xlu0 %6685
      %6687 = vrot.lane.b32.xlu0 %v6339, 64
      %v6688 = vpop.permute.xlu0 %6687
      %6689 = vrot.lane.b32.xlu0 %v6324, 64
      %v6690 = vpop.permute.xlu0 %6689
      %6691 = vrot.lane.b32.xlu0 %v6340, 64
      %v6692 = vpop.permute.xlu0 %6691
      %6693 = vrot.lane.b32.xlu0 %v6325, 64
      %v6694 = vpop.permute.xlu0 %6693
      %6695 = vrot.lane.b32.xlu0 %v6341, 64
      %v6696 = vpop.permute.xlu0 %6695
      %vm6697 = vcmp.lt.s32.totalorder %v583, 64
      %v6698 = vsel %vm6697, %v6690, %v6694
      %v6699 = vsel %vm6697, %v6692, %v6696
      %v6700 = vsel %vm6697, %v6686, %v6690
      %v6701 = vsel %vm6697, %v6688, %v6692
      %v6702 = vsel %vm6697, %v6682, %v6686
      %v6703 = vsel %vm6697, %v6684, %v6688
      %v6704 = vsel %vm6697, %v6678, %v6682
      %v6705 = vsel %vm6697, %v6680, %v6684
      %v6706 = vsel %vm6697, %v6674, %v6678
      %v6707 = vsel %vm6697, %v6676, %v6680
      %v6708 = vsel %vm6697, %v6670, %v6674
      %v6709 = vsel %vm6697, %v6672, %v6676
      %v6710 = vsel %vm6697, %v6666, %v6670
      %v6711 = vsel %vm6697, %v6668, %v6672
      %v6712 = vsel %vm6697, %v6662, %v6666
      %v6713 = vsel %vm6697, %v6664, %v6668
      %v6714 = vsel %vm6697, %v6658, %v6662
      %v6715 = vsel %vm6697, %v6660, %v6664
      %v6716 = vsel %vm6697, %v6654, %v6658
      %v6717 = vsel %vm6697, %v6656, %v6660
      %v6718 = vsel %vm6697, %v6650, %v6654
      %v6719 = vsel %vm6697, %v6652, %v6656
      %v6720 = vsel %vm6697, %v6646, %v6650
      %v6721 = vsel %vm6697, %v6648, %v6652
      %v6722 = vsel %vm6697, %v6642, %v6646
      %v6723 = vsel %vm6697, %v6644, %v6648
      %v6724 = vsel %vm6697, %v6638, %v6642
      %v6725 = vsel %vm6697, %v6640, %v6644
      %v6726 = vsel %vm6697, %v6634, %v6638
      %v6727 = vsel %vm6697, %v6636, %v6640
      %v6728 = vsel %vm6697, %v6694, %v6634
      %v6729 = vsel %vm6697, %v6696, %v6636
      %6730 = vrot.lane.b32.xlu0 %v6310, 60
      %v6731 = vpop.permute.xlu0 %6730
      %6732 = vrot.lane.b32.xlu0 %v6326, 60
      %v6733 = vpop.permute.xlu0 %6732
      %6734 = vrot.lane.b32.xlu0 %v6311, 60
      %v6735 = vpop.permute.xlu0 %6734
      %6736 = vrot.lane.b32.xlu0 %v6327, 60
      %v6737 = vpop.permute.xlu0 %6736
      %6738 = vrot.lane.b32.xlu0 %v6312, 60
      %v6739 = vpop.permute.xlu0 %6738
      %6740 = vrot.lane.b32.xlu0 %v6328, 60
      %v6741 = vpop.permute.xlu0 %6740
      %6742 = vrot.lane.b32.xlu0 %v6313, 60
      %v6743 = vpop.permute.xlu0 %6742
      %6744 = vrot.lane.b32.xlu0 %v6329, 60
      %v6745 = vpop.permute.xlu0 %6744
      %6746 = vrot.lane.b32.xlu0 %v6314, 60
      %v6747 = vpop.permute.xlu0 %6746
      %6748 = vrot.lane.b32.xlu0 %v6330, 60
      %v6749 = vpop.permute.xlu0 %6748
      %6750 = vrot.lane.b32.xlu0 %v6315, 60
      %v6751 = vpop.permute.xlu0 %6750
      %6752 = vrot.lane.b32.xlu0 %v6331, 60
      %v6753 = vpop.permute.xlu0 %6752
      %6754 = vrot.lane.b32.xlu0 %v6316, 60
      %v6755 = vpop.permute.xlu0 %6754
      %6756 = vrot.lane.b32.xlu0 %v6332, 60
      %v6757 = vpop.permute.xlu0 %6756
      %6758 = vrot.lane.b32.xlu0 %v6317, 60
      %v6759 = vpop.permute.xlu0 %6758
      %6760 = vrot.lane.b32.xlu0 %v6333, 60
      %v6761 = vpop.permute.xlu0 %6760
      %6762 = vrot.lane.b32.xlu0 %v6318, 60
      %v6763 = vpop.permute.xlu0 %6762
      %6764 = vrot.lane.b32.xlu0 %v6334, 60
      %v6765 = vpop.permute.xlu0 %6764
      %6766 = vrot.lane.b32.xlu0 %v6319, 60
      %v6767 = vpop.permute.xlu0 %6766
      %6768 = vrot.lane.b32.xlu0 %v6335, 60
      %v6769 = vpop.permute.xlu0 %6768
      %6770 = vrot.lane.b32.xlu0 %v6320, 60
      %v6771 = vpop.permute.xlu0 %6770
      %6772 = vrot.lane.b32.xlu0 %v6336, 60
      %v6773 = vpop.permute.xlu0 %6772
      %6774 = vrot.lane.b32.xlu0 %v6321, 60
      %v6775 = vpop.permute.xlu0 %6774
      %6776 = vrot.lane.b32.xlu0 %v6337, 60
      %v6777 = vpop.permute.xlu0 %6776
      %6778 = vrot.lane.b32.xlu0 %v6322, 60
      %v6779 = vpop.permute.xlu0 %6778
      %6780 = vrot.lane.b32.xlu0 %v6338, 60
      %v6781 = vpop.permute.xlu0 %6780
      %6782 = vrot.lane.b32.xlu0 %v6323, 60
      %v6783 = vpop.permute.xlu0 %6782
      %6784 = vrot.lane.b32.xlu0 %v6339, 60
      %v6785 = vpop.permute.xlu0 %6784
      %6786 = vrot.lane.b32.xlu0 %v6324, 60
      %v6787 = vpop.permute.xlu0 %6786
      %6788 = vrot.lane.b32.xlu0 %v6340, 60
      %v6789 = vpop.permute.xlu0 %6788
      %6790 = vrot.lane.b32.xlu0 %v6325, 60
      %v6791 = vpop.permute.xlu0 %6790
      %6792 = vrot.lane.b32.xlu0 %v6341, 60
      %v6793 = vpop.permute.xlu0 %6792
      %vm6794 = vcmp.lt.s32.totalorder %v583, 60
      %v6795 = vsel %vm6794, %v6787, %v6791
      %v6796 = vsel %vm6794, %v6789, %v6793
      %v6797 = vsel %vm6794, %v6783, %v6787
      %v6798 = vsel %vm6794, %v6785, %v6789
      %v6799 = vsel %vm6794, %v6779, %v6783
      %v6800 = vsel %vm6794, %v6781, %v6785
      %v6801 = vsel %vm6794, %v6775, %v6779
      %v6802 = vsel %vm6794, %v6777, %v6781
      %v6803 = vsel %vm6794, %v6771, %v6775
      %v6804 = vsel %vm6794, %v6773, %v6777
      %v6805 = vsel %vm6794, %v6767, %v6771
      %v6806 = vsel %vm6794, %v6769, %v6773
      %v6807 = vsel %vm6794, %v6763, %v6767
      %v6808 = vsel %vm6794, %v6765, %v6769
      %v6809 = vsel %vm6794, %v6759, %v6763
      %v6810 = vsel %vm6794, %v6761, %v6765
      %v6811 = vsel %vm6794, %v6755, %v6759
      %v6812 = vsel %vm6794, %v6757, %v6761
      %v6813 = vsel %vm6794, %v6751, %v6755
      %v6814 = vsel %vm6794, %v6753, %v6757
      %v6815 = vsel %vm6794, %v6747, %v6751
      %v6816 = vsel %vm6794, %v6749, %v6753
      %v6817 = vsel %vm6794, %v6743, %v6747
      %v6818 = vsel %vm6794, %v6745, %v6749
      %v6819 = vsel %vm6794, %v6739, %v6743
      %v6820 = vsel %vm6794, %v6741, %v6745
      %v6821 = vsel %vm6794, %v6735, %v6739
      %v6822 = vsel %vm6794, %v6737, %v6741
      %v6823 = vsel %vm6794, %v6731, %v6735
      %v6824 = vsel %vm6794, %v6733, %v6737
      %v6825 = vsel %vm6794, %v6791, %v6731
      %v6826 = vsel %vm6794, %v6793, %v6733
      %6827 = vrot.lane.b32.xlu0 %v6310, 56
      %v6828 = vpop.permute.xlu0 %6827
      %6829 = vrot.lane.b32.xlu0 %v6326, 56
      %v6830 = vpop.permute.xlu0 %6829
      %6831 = vrot.lane.b32.xlu0 %v6311, 56
      %v6832 = vpop.permute.xlu0 %6831
      %6833 = vrot.lane.b32.xlu0 %v6327, 56
      %v6834 = vpop.permute.xlu0 %6833
      %6835 = vrot.lane.b32.xlu0 %v6312, 56
      %v6836 = vpop.permute.xlu0 %6835
      %6837 = vrot.lane.b32.xlu0 %v6328, 56
      %v6838 = vpop.permute.xlu0 %6837
      %6839 = vrot.lane.b32.xlu0 %v6313, 56
      %v6840 = vpop.permute.xlu0 %6839
      %6841 = vrot.lane.b32.xlu0 %v6329, 56
      %v6842 = vpop.permute.xlu0 %6841
      %6843 = vrot.lane.b32.xlu0 %v6314, 56
      %v6844 = vpop.permute.xlu0 %6843
      %6845 = vrot.lane.b32.xlu0 %v6330, 56
      %v6846 = vpop.permute.xlu0 %6845
      %6847 = vrot.lane.b32.xlu0 %v6315, 56
      %v6848 = vpop.permute.xlu0 %6847
      %6849 = vrot.lane.b32.xlu0 %v6331, 56
      %v6850 = vpop.permute.xlu0 %6849
      %6851 = vrot.lane.b32.xlu0 %v6316, 56
      %v6852 = vpop.permute.xlu0 %6851
      %6853 = vrot.lane.b32.xlu0 %v6332, 56
      %v6854 = vpop.permute.xlu0 %6853
      %6855 = vrot.lane.b32.xlu0 %v6317, 56
      %v6856 = vpop.permute.xlu0 %6855
      %6857 = vrot.lane.b32.xlu0 %v6333, 56
      %v6858 = vpop.permute.xlu0 %6857
      %6859 = vrot.lane.b32.xlu0 %v6318, 56
      %v6860 = vpop.permute.xlu0 %6859
      %6861 = vrot.lane.b32.xlu0 %v6334, 56
      %v6862 = vpop.permute.xlu0 %6861
      %6863 = vrot.lane.b32.xlu0 %v6319, 56
      %v6864 = vpop.permute.xlu0 %6863
      %6865 = vrot.lane.b32.xlu0 %v6335, 56
      %v6866 = vpop.permute.xlu0 %6865
      %6867 = vrot.lane.b32.xlu0 %v6320, 56
      %v6868 = vpop.permute.xlu0 %6867
      %6869 = vrot.lane.b32.xlu0 %v6336, 56
      %v6870 = vpop.permute.xlu0 %6869
      %6871 = vrot.lane.b32.xlu0 %v6321, 56
      %v6872 = vpop.permute.xlu0 %6871
      %6873 = vrot.lane.b32.xlu0 %v6337, 56
      %v6874 = vpop.permute.xlu0 %6873
      %6875 = vrot.lane.b32.xlu0 %v6322, 56
      %v6876 = vpop.permute.xlu0 %6875
      %6877 = vrot.lane.b32.xlu0 %v6338, 56
      %v6878 = vpop.permute.xlu0 %6877
      %6879 = vrot.lane.b32.xlu0 %v6323, 56
      %v6880 = vpop.permute.xlu0 %6879
      %6881 = vrot.lane.b32.xlu0 %v6339, 56
      %v6882 = vpop.permute.xlu0 %6881
      %6883 = vrot.lane.b32.xlu0 %v6324, 56
      %v6884 = vpop.permute.xlu0 %6883
      %6885 = vrot.lane.b32.xlu0 %v6340, 56
      %v6886 = vpop.permute.xlu0 %6885
      %6887 = vrot.lane.b32.xlu0 %v6325, 56
      %v6888 = vpop.permute.xlu0 %6887
      %6889 = vrot.lane.b32.xlu0 %v6341, 56
      %v6890 = vpop.permute.xlu0 %6889
      %vm6891 = vcmp.lt.s32.totalorder %v583, 56
      %v6892 = vsel %vm6891, %v6884, %v6888
      %v6893 = vsel %vm6891, %v6886, %v6890
      %v6894 = vsel %vm6891, %v6880, %v6884
      %v6895 = vsel %vm6891, %v6882, %v6886
      %v6896 = vsel %vm6891, %v6876, %v6880
      %v6897 = vsel %vm6891, %v6878, %v6882
      %v6898 = vsel %vm6891, %v6872, %v6876
      %v6899 = vsel %vm6891, %v6874, %v6878
      %v6900 = vsel %vm6891, %v6868, %v6872
      %v6901 = vsel %vm6891, %v6870, %v6874
      %v6902 = vsel %vm6891, %v6864, %v6868
      %v6903 = vsel %vm6891, %v6866, %v6870
      %v6904 = vsel %vm6891, %v6860, %v6864
      %v6905 = vsel %vm6891, %v6862, %v6866
      %v6906 = vsel %vm6891, %v6856, %v6860
      %v6907 = vsel %vm6891, %v6858, %v6862
      %v6908 = vsel %vm6891, %v6852, %v6856
      %v6909 = vsel %vm6891, %v6854, %v6858
      %v6910 = vsel %vm6891, %v6848, %v6852
      %v6911 = vsel %vm6891, %v6850, %v6854
      %v6912 = vsel %vm6891, %v6844, %v6848
      %v6913 = vsel %vm6891, %v6846, %v6850
      %v6914 = vsel %vm6891, %v6840, %v6844
      %v6915 = vsel %vm6891, %v6842, %v6846
      %v6916 = vsel %vm6891, %v6836, %v6840
      %v6917 = vsel %vm6891, %v6838, %v6842
      %v6918 = vsel %vm6891, %v6832, %v6836
      %v6919 = vsel %vm6891, %v6834, %v6838
      %v6920 = vsel %vm6891, %v6828, %v6832
      %v6921 = vsel %vm6891, %v6830, %v6834
      %v6922 = vsel %vm6891, %v6888, %v6828
      %v6923 = vsel %vm6891, %v6890, %v6830
      %6924 = vrot.lane.b32.xlu0 %v6310, 52
      %v6925 = vpop.permute.xlu0 %6924
      %6926 = vrot.lane.b32.xlu0 %v6326, 52
      %v6927 = vpop.permute.xlu0 %6926
      %6928 = vrot.lane.b32.xlu0 %v6311, 52
      %v6929 = vpop.permute.xlu0 %6928
      %6930 = vrot.lane.b32.xlu0 %v6327, 52
      %v6931 = vpop.permute.xlu0 %6930
      %6932 = vrot.lane.b32.xlu0 %v6312, 52
      %v6933 = vpop.permute.xlu0 %6932
      %6934 = vrot.lane.b32.xlu0 %v6328, 52
      %v6935 = vpop.permute.xlu0 %6934
      %6936 = vrot.lane.b32.xlu0 %v6313, 52
      %v6937 = vpop.permute.xlu0 %6936
      %6938 = vrot.lane.b32.xlu0 %v6329, 52
      %v6939 = vpop.permute.xlu0 %6938
      %6940 = vrot.lane.b32.xlu0 %v6314, 52
      %v6941 = vpop.permute.xlu0 %6940
      %6942 = vrot.lane.b32.xlu0 %v6330, 52
      %v6943 = vpop.permute.xlu0 %6942
      %6944 = vrot.lane.b32.xlu0 %v6315, 52
      %v6945 = vpop.permute.xlu0 %6944
      %6946 = vrot.lane.b32.xlu0 %v6331, 52
      %v6947 = vpop.permute.xlu0 %6946
      %6948 = vrot.lane.b32.xlu0 %v6316, 52
      %v6949 = vpop.permute.xlu0 %6948
      %6950 = vrot.lane.b32.xlu0 %v6332, 52
      %v6951 = vpop.permute.xlu0 %6950
      %6952 = vrot.lane.b32.xlu0 %v6317, 52
      %v6953 = vpop.permute.xlu0 %6952
      %6954 = vrot.lane.b32.xlu0 %v6333, 52
      %v6955 = vpop.permute.xlu0 %6954
      %6956 = vrot.lane.b32.xlu0 %v6318, 52
      %v6957 = vpop.permute.xlu0 %6956
      %6958 = vrot.lane.b32.xlu0 %v6334, 52
      %v6959 = vpop.permute.xlu0 %6958
      %6960 = vrot.lane.b32.xlu0 %v6319, 52
      %v6961 = vpop.permute.xlu0 %6960
      %6962 = vrot.lane.b32.xlu0 %v6335, 52
      %v6963 = vpop.permute.xlu0 %6962
      %6964 = vrot.lane.b32.xlu0 %v6320, 52
      %v6965 = vpop.permute.xlu0 %6964
      %6966 = vrot.lane.b32.xlu0 %v6336, 52
      %v6967 = vpop.permute.xlu0 %6966
      %6968 = vrot.lane.b32.xlu0 %v6321, 52
      %v6969 = vpop.permute.xlu0 %6968
      %6970 = vrot.lane.b32.xlu0 %v6337, 52
      %v6971 = vpop.permute.xlu0 %6970
      %6972 = vrot.lane.b32.xlu0 %v6322, 52
      %v6973 = vpop.permute.xlu0 %6972
      %6974 = vrot.lane.b32.xlu0 %v6338, 52
      %v6975 = vpop.permute.xlu0 %6974
      %6976 = vrot.lane.b32.xlu0 %v6323, 52
      %v6977 = vpop.permute.xlu0 %6976
      %6978 = vrot.lane.b32.xlu0 %v6339, 52
      %v6979 = vpop.permute.xlu0 %6978
      %6980 = vrot.lane.b32.xlu0 %v6324, 52
      %v6981 = vpop.permute.xlu0 %6980
      %6982 = vrot.lane.b32.xlu0 %v6340, 52
      %v6983 = vpop.permute.xlu0 %6982
      %6984 = vrot.lane.b32.xlu0 %v6325, 52
      %v6985 = vpop.permute.xlu0 %6984
      %6986 = vrot.lane.b32.xlu0 %v6341, 52
      %v6987 = vpop.permute.xlu0 %6986
      %vm6988 = vcmp.lt.s32.totalorder %v583, 52
      %v6989 = vsel %vm6988, %v6981, %v6985
      %v6990 = vsel %vm6988, %v6983, %v6987
      %v6991 = vsel %vm6988, %v6977, %v6981
      %v6992 = vsel %vm6988, %v6979, %v6983
      %v6993 = vsel %vm6988, %v6973, %v6977
      %v6994 = vsel %vm6988, %v6975, %v6979
      %v6995 = vsel %vm6988, %v6969, %v6973
      %v6996 = vsel %vm6988, %v6971, %v6975
      %v6997 = vsel %vm6988, %v6965, %v6969
      %v6998 = vsel %vm6988, %v6967, %v6971
      %v6999 = vsel %vm6988, %v6961, %v6965
      %v7000 = vsel %vm6988, %v6963, %v6967
      %v7001 = vsel %vm6988, %v6957, %v6961
      %v7002 = vsel %vm6988, %v6959, %v6963
      %v7003 = vsel %vm6988, %v6953, %v6957
      %v7004 = vsel %vm6988, %v6955, %v6959
      %v7005 = vsel %vm6988, %v6949, %v6953
      %v7006 = vsel %vm6988, %v6951, %v6955
      %v7007 = vsel %vm6988, %v6945, %v6949
      %v7008 = vsel %vm6988, %v6947, %v6951
      %v7009 = vsel %vm6988, %v6941, %v6945
      %v7010 = vsel %vm6988, %v6943, %v6947
      %v7011 = vsel %vm6988, %v6937, %v6941
      %v7012 = vsel %vm6988, %v6939, %v6943
      %v7013 = vsel %vm6988, %v6933, %v6937
      %v7014 = vsel %vm6988, %v6935, %v6939
      %v7015 = vsel %vm6988, %v6929, %v6933
      %v7016 = vsel %vm6988, %v6931, %v6935
      %v7017 = vsel %vm6988, %v6925, %v6929
      %v7018 = vsel %vm6988, %v6927, %v6931
      %v7019 = vsel %vm6988, %v6985, %v6925
      %v7020 = vsel %vm6988, %v6987, %v6927
      %v7021 = vld [vmem:[%s9] sm:$0xff]
      %v7022 = vld [vmem:[%s9 + $0x8] sm:$0xff]
      %v7023 = vld [vmem:[%s10] sm:$0xff]
      %7025 = vset.pattern.permute.xlu0 0
      %7026 = vperm.xlu0 %7025, %v7023
      %v7027 = vpop.permute.xlu0 %7026
      %7029 = vmatprep.subr.mxu0 %v6311
      %7030 = vmatpush1.msra.mxu0 %v6310
      %7031 = vmatprep.subr.mxu0 %v6327
      %7032 = vmatpush1.msra.mxu0 %v6326
      %7033 = vmatprep.subr.mxu0 %v6433
      %7034 = vmatpush1.msra.mxu0 %v6435
      %7035 = vmatprep.subr.mxu0 %v6434
      %7036 = vmatpush1.msra.mxu0 %v6436
      %7037 = vmatprep.subr.mxu0 %v6530
      %7038 = vmatpush1.msra.mxu0 %v6532
      %7039 = vmatprep.subr.mxu0 %v6531
      %7040 = vmatpush1.msra.mxu0 %v6533
      %7041 = vmatprep.subr.mxu0 %v6627
      %7042 = vmatpush1.msra.mxu0 %v6629
      %7043 = vmatprep.subr.mxu0 %v6628
      %7044 = vmatpush1.msra.mxu0 %v6630
      %7045 = vmatprep.subr.mxu0 %v6724
      %7046 = vmatpush1.msra.mxu0 %v6726
      %7047 = vmatprep.subr.mxu0 %v6725
      %7048 = vmatpush1.msra.mxu0 %v6727
      %7049 = vmatprep.subr.mxu0 %v6821
      %7050 = vmatpush1.msra.mxu0 %v6823
      %7051 = vmatprep.subr.mxu0 %v6822
      %7052 = vmatpush1.msra.mxu0 %v6824
      %7053 = vmatprep.subr.mxu0 %v6918
      %7054 = vmatpush1.msra.mxu0 %v6920
      %7055 = vmatprep.subr.mxu0 %v6919
      %7056 = vmatpush1.msra.mxu0 %v6921
      %7057 = vmatprep.subr.mxu0 %v7015
      %7058 = vmatpush1.msra.mxu0 %v7017
      %7059 = vmatprep.subr.mxu0 %v7016
      %7060 = vmatpush1.msra.mxu0 %v7018
      %7061 = vmatprep.subr.mxu0 %v6312
      %7062 = vmatpush1.msra.mxu0 %v6311
      %7063 = vmatprep.subr.mxu0 %v6328
      %7064 = vmatpush1.msra.mxu0 %v6327
      %7065 = vmatprep.subr.mxu0 %v6431
      %7066 = vmatpush1.msra.mxu0 %v6433
      %7067 = vmatprep.subr.mxu0 %v6432
      %7068 = vmatpush1.msra.mxu0 %v6434
      %7069 = vmatprep.subr.mxu0 %v6528
      %7070 = vmatpush1.msra.mxu0 %v6530
      %7071 = vmatprep.subr.mxu0 %v6529
      %7072 = vmatpush1.msra.mxu0 %v6531
      %7073 = vmatprep.subr.mxu0 %v6625
      %7074 = vmatpush1.msra.mxu0 %v6627
      %7075 = vmatprep.subr.mxu0 %v6626
      %7076 = vmatpush1.msra.mxu0 %v6628
      %7077 = vmatprep.subr.mxu0 %v6722
      %7078 = vmatpush1.msra.mxu0 %v6724
      %7079 = vmatprep.subr.mxu0 %v6723
      %7080 = vmatpush1.msra.mxu0 %v6725
      %7081 = vmatprep.subr.mxu0 %v6819
      %7082 = vmatpush1.msra.mxu0 %v6821
      %7083 = vmatprep.subr.mxu0 %v6820
      %7084 = vmatpush1.msra.mxu0 %v6822
      %7085 = vmatprep.subr.mxu0 %v6916
      %7086 = vmatpush1.msra.mxu0 %v6918
      %7087 = vmatprep.subr.mxu0 %v6917
      %7088 = vmatpush1.msra.mxu0 %v6919
      %7089 = vmatprep.subr.mxu0 %v7013
      %7090 = vmatpush1.msra.mxu0 %v7015
      %7091 = vmatprep.subr.mxu0 %v7014
      %7092 = vmatpush1.msra.mxu0 %v7016
      %7093 = vmatprep.mubr.f32.mxu0 %v7022
      %7094 = vmatmul.mubr.f32.gmra.mrb[0].mxu0 %v7021
      %v7095 = vpop.f32.mrb[0].mxu0
      %v7096 = vadd.f32 %v7027, %v7095
      %v7097 = vpop.f32.mrb[0].mxu0
      %v7098 = vadd.f32 %v7027, %v7097
      %7099 = vdwg.mxu0
      %7100 = vmatprep.subr.mxu0 %v6313
      %7101 = vmatpush1.msra.mxu0 %v6312
      %7102 = vmatprep.subr.mxu0 %v6329
      %7103 = vmatpush1.msra.mxu0 %v6328
      %7104 = vmatprep.subr.mxu0 %v6429
      %7105 = vmatpush1.msra.mxu0 %v6431
      %7106 = vmatprep.subr.mxu0 %v6430
      %7107 = vmatpush1.msra.mxu0 %v6432
      %7108 = vmatprep.subr.mxu0 %v6526
      %7109 = vmatpush1.msra.mxu0 %v6528
      %7110 = vmatprep.subr.mxu0 %v6527
      %7111 = vmatpush1.msra.mxu0 %v6529
      %7112 = vmatprep.subr.mxu0 %v6623
      %7113 = vmatpush1.msra.mxu0 %v6625
      %7114 = vmatprep.subr.mxu0 %v6624
      %7115 = vmatpush1.msra.mxu0 %v6626
      %7116 = vmatprep.subr.mxu0 %v6720
      %7117 = vmatpush1.msra.mxu0 %v6722
      %7118 = vmatprep.subr.mxu0 %v6721
      %7119 = vmatpush1.msra.mxu0 %v6723
      %7120 = vmatprep.subr.mxu0 %v6817
      %7121 = vmatpush1.msra.mxu0 %v6819
      %7122 = vmatprep.subr.mxu0 %v6818
      %7123 = vmatpush1.msra.mxu0 %v6820
      %7124 = vmatprep.subr.mxu0 %v6914
      %7125 = vmatpush1.msra.mxu0 %v6916
      %7126 = vmatprep.subr.mxu0 %v6915
      %7127 = vmatpush1.msra.mxu0 %v6917
      %7128 = vmatprep.subr.mxu0 %v7011
      %7129 = vmatpush1.msra.mxu0 %v7013
      %7130 = vmatprep.subr.mxu0 %v7012
      %7131 = vmatpush1.msra.mxu0 %v7014
      %7132 = vmatprep.subr.mxu0 %v6314
      %7133 = vmatpush1.msra.mxu0 %v6313
      %7134 = vmatprep.subr.mxu0 %v6330
      %7135 = vmatpush1.msra.mxu0 %v6329
      %7136 = vmatprep.subr.mxu0 %v6427
      %7137 = vmatpush1.msra.mxu0 %v6429
      %7138 = vmatprep.subr.mxu0 %v6428
      %7139 = vmatpush1.msra.mxu0 %v6430
      %7140 = vmatprep.subr.mxu0 %v6524
      %7141 = vmatpush1.msra.mxu0 %v6526
      %7142 = vmatprep.subr.mxu0 %v6525
      %7143 = vmatpush1.msra.mxu0 %v6527
      %7144 = vmatprep.subr.mxu0 %v6621
      %7145 = vmatpush1.msra.mxu0 %v6623
      %7146 = vmatprep.subr.mxu0 %v6622
      %7147 = vmatpush1.msra.mxu0 %v6624
      %7148 = vmatprep.subr.mxu0 %v6718
      %7149 = vmatpush1.msra.mxu0 %v6720
      %7150 = vmatprep.subr.mxu0 %v6719
      %7151 = vmatpush1.msra.mxu0 %v6721
      %7152 = vmatprep.subr.mxu0 %v6815
      %7153 = vmatpush1.msra.mxu0 %v6817
      %7154 = vmatprep.subr.mxu0 %v6816
      %7155 = vmatpush1.msra.mxu0 %v6818
      %7156 = vmatprep.subr.mxu0 %v6912
      %7157 = vmatpush1.msra.mxu0 %v6914
      %7158 = vmatprep.subr.mxu0 %v6913
      %7159 = vmatpush1.msra.mxu0 %v6915
      %7160 = vmatprep.subr.mxu0 %v7009
      %7161 = vmatpush1.msra.mxu0 %v7011
      %7162 = vmatprep.subr.mxu0 %v7010
      %7163 = vmatpush1.msra.mxu0 %v7012
      %7164 = vmatprep.mubr.f32.mxu0 %v7022
      %7165 = vmatmul.mubr.f32.gmra.mrb[0].mxu0 %v7021
      %v7166 = vpop.f32.mrb[0].mxu0
      %v7167 = vadd.f32 %v7027, %v7166
      %v7168 = vpop.f32.mrb[0].mxu0
      %v7169 = vadd.f32 %v7027, %v7168
      %7170 = vdwg.mxu0
      %7171 = vmatprep.subr.mxu0 %v6315
      %7172 = vmatpush1.msra.mxu0 %v6314
      %7173 = vmatprep.subr.mxu0 %v6331
      %7174 = vmatpush1.msra.mxu0 %v6330
      %7175 = vmatprep.subr.mxu0 %v6425
      %7176 = vmatpush1.msra.mxu0 %v6427
      %7177 = vmatprep.subr.mxu0 %v6426
      %7178 = vmatpush1.msra.mxu0 %v6428
      %7179 = vmatprep.subr.mxu0 %v6522
      %7180 = vmatpush1.msra.mxu0 %v6524
      %7181 = vmatprep.subr.mxu0 %v6523
      %7182 = vmatpush1.msra.mxu0 %v6525
      %7183 = vmatprep.subr.mxu0 %v6619
      %7184 = vmatpush1.msra.mxu0 %v6621
      %7185 = vmatprep.subr.mxu0 %v6620
      %7186 = vmatpush1.msra.mxu0 %v6622
      %7187 = vmatprep.subr.mxu0 %v6716
      %7188 = vmatpush1.msra.mxu0 %v6718
      %7189 = vmatprep.subr.mxu0 %v6717
      %7190 = vmatpush1.msra.mxu0 %v6719
      %7191 = vmatprep.subr.mxu0 %v6813
      %7192 = vmatpush1.msra.mxu0 %v6815
      %7193 = vmatprep.subr.mxu0 %v6814
      %7194 = vmatpush1.msra.mxu0 %v6816
      %7195 = vmatprep.subr.mxu0 %v6910
      %7196 = vmatpush1.msra.mxu0 %v6912
      %7197 = vmatprep.subr.mxu0 %v6911
      %7198 = vmatpush1.msra.mxu0 %v6913
      %7199 = vmatprep.subr.mxu0 %v7007
      %7200 = vmatpush1.msra.mxu0 %v7009
      %7201 = vmatprep.subr.mxu0 %v7008
      %7202 = vmatpush1.msra.mxu0 %v7010
      %7203 = vmatprep.subr.mxu0 %v6316
      %7204 = vmatpush1.msra.mxu0 %v6315
      %7205 = vmatprep.subr.mxu0 %v6332
      %7206 = vmatpush1.msra.mxu0 %v6331
      %7207 = vmatprep.subr.mxu0 %v6423
      %7208 = vmatpush1.msra.mxu0 %v6425
      %7209 = vmatprep.subr.mxu0 %v6424
      %7210 = vmatpush1.msra.mxu0 %v6426
      %7211 = vmatprep.subr.mxu0 %v6520
      %7212 = vmatpush1.msra.mxu0 %v6522
      %7213 = vmatprep.subr.mxu0 %v6521
      %7214 = vmatpush1.msra.mxu0 %v6523
      %7215 = vmatprep.subr.mxu0 %v6617
      %7216 = vmatpush1.msra.mxu0 %v6619
      %7217 = vmatprep.subr.mxu0 %v6618
      %7218 = vmatpush1.msra.mxu0 %v6620
      %7219 = vmatprep.subr.mxu0 %v6714
      %7220 = vmatpush1.msra.mxu0 %v6716
      %7221 = vmatprep.subr.mxu0 %v6715
      %7222 = vmatpush1.msra.mxu0 %v6717
      %7223 = vmatprep.subr.mxu0 %v6811
      %7224 = vmatpush1.msra.mxu0 %v6813
      %7225 = vmatprep.subr.mxu0 %v6812
      %7226 = vmatpush1.msra.mxu0 %v6814
      %7227 = vmatprep.subr.mxu0 %v6908
      %7228 = vmatpush1.msra.mxu0 %v6910
      %7229 = vmatprep.subr.mxu0 %v6909
      %7230 = vmatpush1.msra.mxu0 %v6911
      %7231 = vmatprep.subr.mxu0 %v7005
      %7232 = vmatpush1.msra.mxu0 %v7007
      %7233 = vmatprep.subr.mxu0 %v7006
      %7234 = vmatpush1.msra.mxu0 %v7008
      %7235 = vmatprep.mubr.f32.mxu0 %v7022
      %7236 = vmatmul.mubr.f32.gmra.mrb[0].mxu0 %v7021
      %v7237 = vpop.f32.mrb[0].mxu0
      %v7238 = vadd.f32 %v7027, %v7237
      %v7239 = vpop.f32.mrb[0].mxu0
      %v7240 = vadd.f32 %v7027, %v7239
      %7241 = vdwg.mxu0
      %7242 = vmatprep.subr.mxu0 %v6317
      %7243 = vmatpush1.msra.mxu0 %v6316
      %7244 = vmatprep.subr.mxu0 %v6333
      %7245 = vmatpush1.msra.mxu0 %v6332
      %7246 = vmatprep.subr.mxu0 %v6421
      %7247 = vmatpush1.msra.mxu0 %v6423
      %7248 = vmatprep.subr.mxu0 %v6422
      %7249 = vmatpush1.msra.mxu0 %v6424
      %7250 = vmatprep.subr.mxu0 %v6518
      %7251 = vmatpush1.msra.mxu0 %v6520
      %7252 = vmatprep.subr.mxu0 %v6519
      %7253 = vmatpush1.msra.mxu0 %v6521
      %7254 = vmatprep.subr.mxu0 %v6615
      %7255 = vmatpush1.msra.mxu0 %v6617
      %7256 = vmatprep.subr.mxu0 %v6616
      %7257 = vmatpush1.msra.mxu0 %v6618
      %7258 = vmatprep.subr.mxu0 %v6712
      %7259 = vmatpush1.msra.mxu0 %v6714
      %7260 = vmatprep.subr.mxu0 %v6713
      %7261 = vmatpush1.msra.mxu0 %v6715
      %7262 = vmatprep.subr.mxu0 %v6809
      %7263 = vmatpush1.msra.mxu0 %v6811
      %7264 = vmatprep.subr.mxu0 %v6810
      %7265 = vmatpush1.msra.mxu0 %v6812
      %7266 = vmatprep.subr.mxu0 %v6906
      %7267 = vmatpush1.msra.mxu0 %v6908
      %7268 = vmatprep.subr.mxu0 %v6907
      %7269 = vmatpush1.msra.mxu0 %v6909
      %7270 = vmatprep.subr.mxu0 %v7003
      %7271 = vmatpush1.msra.mxu0 %v7005
      %7272 = vmatprep.subr.mxu0 %v7004
      %7273 = vmatpush1.msra.mxu0 %v7006
      %7274 = vmatprep.subr.mxu0 %v6318
      %7275 = vmatpush1.msra.mxu0 %v6317
      %7276 = vmatprep.subr.mxu0 %v6334
      %7277 = vmatpush1.msra.mxu0 %v6333
      %7278 = vmatprep.subr.mxu0 %v6419
      %7279 = vmatpush1.msra.mxu0 %v6421
      %7280 = vmatprep.subr.mxu0 %v6420
      %7281 = vmatpush1.msra.mxu0 %v6422
      %7282 = vmatprep.subr.mxu0 %v6516
      %7283 = vmatpush1.msra.mxu0 %v6518
      %7284 = vmatprep.subr.mxu0 %v6517
      %7285 = vmatpush1.msra.mxu0 %v6519
      %7286 = vmatprep.subr.mxu0 %v6613
      %7287 = vmatpush1.msra.mxu0 %v6615
      %7288 = vmatprep.subr.mxu0 %v6614
      %7289 = vmatpush1.msra.mxu0 %v6616
      %7290 = vmatprep.subr.mxu0 %v6710
      %7291 = vmatpush1.msra.mxu0 %v6712
      %7292 = vmatprep.subr.mxu0 %v6711
      %7293 = vmatpush1.msra.mxu0 %v6713
      %7294 = vmatprep.subr.mxu0 %v6807
      %7295 = vmatpush1.msra.mxu0 %v6809
      %7296 = vmatprep.subr.mxu0 %v6808
      %7297 = vmatpush1.msra.mxu0 %v6810
      %7298 = vmatprep.subr.mxu0 %v6904
      %7299 = vmatpush1.msra.mxu0 %v6906
      %7300 = vmatprep.subr.mxu0 %v6905
      %7301 = vmatpush1.msra.mxu0 %v6907
      %7302 = vmatprep.subr.mxu0 %v7001
      %7303 = vmatpush1.msra.mxu0 %v7003
      %7304 = vmatprep.subr.mxu0 %v7002
      %7305 = vmatpush1.msra.mxu0 %v7004
      %7306 = vmatprep.mubr.f32.mxu0 %v7022
      %7307 = vmatmul.mubr.f32.gmra.mrb[0].mxu0 %v7021
      %v7308 = vpop.f32.mrb[0].mxu0
      %v7309 = vadd.f32 %v7027, %v7308
      %v7310 = vpop.f32.mrb[0].mxu0
      %v7311 = vadd.f32 %v7027, %v7310
      %7312 = vdwg.mxu0
      %7313 = vmatprep.subr.mxu0 %v6319
      %7314 = vmatpush1.msra.mxu0 %v6318
      %7315 = vmatprep.subr.mxu0 %v6335
      %7316 = vmatpush1.msra.mxu0 %v6334
      %7317 = vmatprep.subr.mxu0 %v6417
      %7318 = vmatpush1.msra.mxu0 %v6419
      %7319 = vmatprep.subr.mxu0 %v6418
      %7320 = vmatpush1.msra.mxu0 %v6420
      %7321 = vmatprep.subr.mxu0 %v6514
      %7322 = vmatpush1.msra.mxu0 %v6516
      %7323 = vmatprep.subr.mxu0 %v6515
      %7324 = vmatpush1.msra.mxu0 %v6517
      %7325 = vmatprep.subr.mxu0 %v6611
      %7326 = vmatpush1.msra.mxu0 %v6613
      %7327 = vmatprep.subr.mxu0 %v6612
      %7328 = vmatpush1.msra.mxu0 %v6614
      %7329 = vmatprep.subr.mxu0 %v6708
      %7330 = vmatpush1.msra.mxu0 %v6710
      %7331 = vmatprep.subr.mxu0 %v6709
      %7332 = vmatpush1.msra.mxu0 %v6711
      %7333 = vmatprep.subr.mxu0 %v6805
      %7334 = vmatpush1.msra.mxu0 %v6807
      %7335 = vmatprep.subr.mxu0 %v6806
      %7336 = vmatpush1.msra.mxu0 %v6808
      %7337 = vmatprep.subr.mxu0 %v6902
      %7338 = vmatpush1.msra.mxu0 %v6904
      %7339 = vmatprep.subr.mxu0 %v6903
      %7340 = vmatpush1.msra.mxu0 %v6905
      %7341 = vmatprep.subr.mxu0 %v6999
      %7342 = vmatpush1.msra.mxu0 %v7001
      %7343 = vmatprep.subr.mxu0 %v7000
      %7344 = vmatpush1.msra.mxu0 %v7002
      %7345 = vmatprep.subr.mxu0 %v6320
      %7346 = vmatpush1.msra.mxu0 %v6319
      %7347 = vmatprep.subr.mxu0 %v6336
      %7348 = vmatpush1.msra.mxu0 %v6335
      %7349 = vmatprep.subr.mxu0 %v6415
      %7350 = vmatpush1.msra.mxu0 %v6417
      %7351 = vmatprep.subr.mxu0 %v6416
      %7352 = vmatpush1.msra.mxu0 %v6418
      %7353 = vmatprep.subr.mxu0 %v6512
      %7354 = vmatpush1.msra.mxu0 %v6514
      %7355 = vmatprep.subr.mxu0 %v6513
      %7356 = vmatpush1.msra.mxu0 %v6515
      %7357 = vmatprep.subr.mxu0 %v6609
      %7358 = vmatpush1.msra.mxu0 %v6611
      %7359 = vmatprep.subr.mxu0 %v6610
      %7360 = vmatpush1.msra.mxu0 %v6612
      %7361 = vmatprep.subr.mxu0 %v6706
      %7362 = vmatpush1.msra.mxu0 %v6708
      %7363 = vmatprep.subr.mxu0 %v6707
      %7364 = vmatpush1.msra.mxu0 %v6709
      %7365 = vmatprep.subr.mxu0 %v6803
      %7366 = vmatpush1.msra.mxu0 %v6805
      %7367 = vmatprep.subr.mxu0 %v6804
      %7368 = vmatpush1.msra.mxu0 %v6806
      %7369 = vmatprep.subr.mxu0 %v6900
      %7370 = vmatpush1.msra.mxu0 %v6902
      %7371 = vmatprep.subr.mxu0 %v6901
      %7372 = vmatpush1.msra.mxu0 %v6903
      %7373 = vmatprep.subr.mxu0 %v6997
      %7374 = vmatpush1.msra.mxu0 %v6999
      %7375 = vmatprep.subr.mxu0 %v6998
      %7376 = vmatpush1.msra.mxu0 %v7000
      %7377 = vmatprep.mubr.f32.mxu0 %v7022
      %7378 = vmatmul.mubr.f32.gmra.mrb[0].mxu0 %v7021
      %v7379 = vpop.f32.mrb[0].mxu0
      %v7380 = vadd.f32 %v7027, %v7379
      %v7381 = vpop.f32.mrb[0].mxu0
      %v7382 = vadd.f32 %v7027, %v7381
      %7383 = vdwg.mxu0
      %7384 = vmatprep.subr.mxu0 %v6321
      %7385 = vmatpush1.msra.mxu0 %v6320
      %7386 = vmatprep.subr.mxu0 %v6337
      %7387 = vmatpush1.msra.mxu0 %v6336
      %7388 = vmatprep.subr.mxu0 %v6413
      %7389 = vmatpush1.msra.mxu0 %v6415
      %7390 = vmatprep.subr.mxu0 %v6414
      %7391 = vmatpush1.msra.mxu0 %v6416
      %7392 = vmatprep.subr.mxu0 %v6510
      %7393 = vmatpush1.msra.mxu0 %v6512
      %7394 = vmatprep.subr.mxu0 %v6511
      %7395 = vmatpush1.msra.mxu0 %v6513
      %7396 = vmatprep.subr.mxu0 %v6607
      %7397 = vmatpush1.msra.mxu0 %v6609
      %7398 = vmatprep.subr.mxu0 %v6608
      %7399 = vmatpush1.msra.mxu0 %v6610
      %7400 = vmatprep.subr.mxu0 %v6704
      %7401 = vmatpush1.msra.mxu0 %v6706
      %7402 = vmatprep.subr.mxu0 %v6705
      %7403 = vmatpush1.msra.mxu0 %v6707
      %7404 = vmatprep.subr.mxu0 %v6801
      %7405 = vmatpush1.msra.mxu0 %v6803
      %7406 = vmatprep.subr.mxu0 %v6802
      %7407 = vmatpush1.msra.mxu0 %v6804
      %7408 = vmatprep.subr.mxu0 %v6898
      %7409 = vmatpush1.msra.mxu0 %v6900
      %7410 = vmatprep.subr.mxu0 %v6899
      %7411 = vmatpush1.msra.mxu0 %v6901
      %7412 = vmatprep.subr.mxu0 %v6995
      %7413 = vmatpush1.msra.mxu0 %v6997
      %7414 = vmatprep.subr.mxu0 %v6996
      %7415 = vmatpush1.msra.mxu0 %v6998
      %7416 = vmatprep.subr.mxu0 %v6322
      %7417 = vmatpush1.msra.mxu0 %v6321
      %7418 = vmatprep.subr.mxu0 %v6338
      %7419 = vmatpush1.msra.mxu0 %v6337
      %7420 = vmatprep.subr.mxu0 %v6411
      %7421 = vmatpush1.msra.mxu0 %v6413
      %7422 = vmatprep.subr.mxu0 %v6412
      %7423 = vmatpush1.msra.mxu0 %v6414
      %7424 = vmatprep.subr.mxu0 %v6508
      %7425 = vmatpush1.msra.mxu0 %v6510
      %7426 = vmatprep.subr.mxu0 %v6509
      %7427 = vmatpush1.msra.mxu0 %v6511
      %7428 = vmatprep.subr.mxu0 %v6605
      %7429 = vmatpush1.msra.mxu0 %v6607
      %7430 = vmatprep.subr.mxu0 %v6606
      %7431 = vmatpush1.msra.mxu0 %v6608
      %7432 = vmatprep.subr.mxu0 %v6702
      %7433 = vmatpush1.msra.mxu0 %v6704
      %7434 = vmatprep.subr.mxu0 %v6703
      %7435 = vmatpush1.msra.mxu0 %v6705
      %7436 = vmatprep.subr.mxu0 %v6799
      %7437 = vmatpush1.msra.mxu0 %v6801
      %7438 = vmatprep.subr.mxu0 %v6800
      %7439 = vmatpush1.msra.mxu0 %v6802
      %7440 = vmatprep.subr.mxu0 %v6896
      %7441 = vmatpush1.msra.mxu0 %v6898
      %7442 = vmatprep.subr.mxu0 %v6897
      %7443 = vmatpush1.msra.mxu0 %v6899
      %7444 = vmatprep.subr.mxu0 %v6993
      %7445 = vmatpush1.msra.mxu0 %v6995
      %7446 = vmatprep.subr.mxu0 %v6994
      %7447 = vmatpush1.msra.mxu0 %v6996
      %7448 = vmatprep.mubr.f32.mxu0 %v7022
      %7449 = vmatmul.mubr.f32.gmra.mrb[0].mxu0 %v7021
      %v7450 = vpop.f32.mrb[0].mxu0
      %v7451 = vadd.f32 %v7027, %v7450
      %v7452 = vpop.f32.mrb[0].mxu0
      %v7453 = vadd.f32 %v7027, %v7452
      %7454 = vdwg.mxu0
      %7455 = vmatprep.subr.mxu0 %v6323
      %7456 = vmatpush1.msra.mxu0 %v6322
      %7457 = vmatprep.subr.mxu0 %v6339
      %7458 = vmatpush1.msra.mxu0 %v6338
      %7459 = vmatprep.subr.mxu0 %v6409
      %7460 = vmatpush1.msra.mxu0 %v6411
      %7461 = vmatprep.subr.mxu0 %v6410
      %7462 = vmatpush1.msra.mxu0 %v6412
      %7463 = vmatprep.subr.mxu0 %v6506
      %7464 = vmatpush1.msra.mxu0 %v6508
      %7465 = vmatprep.subr.mxu0 %v6507
      %7466 = vmatpush1.msra.mxu0 %v6509
      %7467 = vmatprep.subr.mxu0 %v6603
      %7468 = vmatpush1.msra.mxu0 %v6605
      %7469 = vmatprep.subr.mxu0 %v6604
      %7470 = vmatpush1.msra.mxu0 %v6606
      %7471 = vmatprep.subr.mxu0 %v6700
      %7472 = vmatpush1.msra.mxu0 %v6702
      %7473 = vmatprep.subr.mxu0 %v6701
      %7474 = vmatpush1.msra.mxu0 %v6703
      %7475 = vmatprep.subr.mxu0 %v6797
      %7476 = vmatpush1.msra.mxu0 %v6799
      %7477 = vmatprep.subr.mxu0 %v6798
      %7478 = vmatpush1.msra.mxu0 %v6800
      %7479 = vmatprep.subr.mxu0 %v6894
      %7480 = vmatpush1.msra.mxu0 %v6896
      %7481 = vmatprep.subr.mxu0 %v6895
      %7482 = vmatpush1.msra.mxu0 %v6897
      %7483 = vmatprep.subr.mxu0 %v6991
      %7484 = vmatpush1.msra.mxu0 %v6993
      %7485 = vmatprep.subr.mxu0 %v6992
      %7486 = vmatpush1.msra.mxu0 %v6994
      %7487 = vmatprep.subr.mxu0 %v6324
      %7488 = vmatpush1.msra.mxu0 %v6323
      %7489 = vmatprep.subr.mxu0 %v6340
      %7490 = vmatpush1.msra.mxu0 %v6339
      %7491 = vmatprep.subr.mxu0 %v6407
      %7492 = vmatpush1.msra.mxu0 %v6409
      %7493 = vmatprep.subr.mxu0 %v6408
      %7494 = vmatpush1.msra.mxu0 %v6410
      %7495 = vmatprep.subr.mxu0 %v6504
      %7496 = vmatpush1.msra.mxu0 %v6506
      %7497 = vmatprep.subr.mxu0 %v6505
      %7498 = vmatpush1.msra.mxu0 %v6507
      %7499 = vmatprep.subr.mxu0 %v6601
      %7500 = vmatpush1.msra.mxu0 %v6603
      %7501 = vmatprep.subr.mxu0 %v6602
      %7502 = vmatpush1.msra.mxu0 %v6604
      %7503 = vmatprep.subr.mxu0 %v6698
      %7504 = vmatpush1.msra.mxu0 %v6700
      %7505 = vmatprep.subr.mxu0 %v6699
      %7506 = vmatpush1.msra.mxu0 %v6701
      %7507 = vmatprep.subr.mxu0 %v6795
      %7508 = vmatpush1.msra.mxu0 %v6797
      %7509 = vmatprep.subr.mxu0 %v6796
      %7510 = vmatpush1.msra.mxu0 %v6798
      %7511 = vmatprep.subr.mxu0 %v6892
      %7512 = vmatpush1.msra.mxu0 %v6894
      %7513 = vmatprep.subr.mxu0 %v6893
      %7514 = vmatpush1.msra.mxu0 %v6895
      %7515 = vmatprep.subr.mxu0 %v6989
      %7516 = vmatpush1.msra.mxu0 %v6991
      %7517 = vmatprep.subr.mxu0 %v6990
      %7518 = vmatpush1.msra.mxu0 %v6992
      %7519 = vmatprep.mubr.f32.mxu0 %v7022
      %7520 = vmatmul.mubr.f32.gmra.mrb[0].mxu0 %v7021
      %v7521 = vpop.f32.mrb[0].mxu0
      %v7522 = vadd.f32 %v7027, %v7521
      %v7523 = vpop.f32.mrb[0].mxu0
      %v7524 = vadd.f32 %v7027, %v7523
      %7525 = vdwg.mxu0
      %7526 = vmatprep.subr.mxu0 %v6325
      %7527 = vmatpush1.msra.mxu0 %v6324
      %7528 = vmatprep.subr.mxu0 %v6341
      %7529 = vmatpush1.msra.mxu0 %v6340
      %7530 = vmatprep.subr.mxu0 %v6437
      %7531 = vmatpush1.msra.mxu0 %v6407
      %7532 = vmatprep.subr.mxu0 %v6438
      %7533 = vmatpush1.msra.mxu0 %v6408
      %7534 = vmatprep.subr.mxu0 %v6534
      %7535 = vmatpush1.msra.mxu0 %v6504
      %7536 = vmatprep.subr.mxu0 %v6535
      %7537 = vmatpush1.msra.mxu0 %v6505
      %7538 = vmatprep.subr.mxu0 %v6631
      %7539 = vmatpush1.msra.mxu0 %v6601
      %7540 = vmatprep.subr.mxu0 %v6632
      %7541 = vmatpush1.msra.mxu0 %v6602
      %7542 = vmatprep.subr.mxu0 %v6728
      %7543 = vmatpush1.msra.mxu0 %v6698
      %7544 = vmatprep.subr.mxu0 %v6729
      %7545 = vmatpush1.msra.mxu0 %v6699
      %7546 = vmatprep.subr.mxu0 %v6825
      %7547 = vmatpush1.msra.mxu0 %v6795
      %7548 = vmatprep.subr.mxu0 %v6826
      %7549 = vmatpush1.msra.mxu0 %v6796
      %7550 = vmatprep.subr.mxu0 %v6922
      %7551 = vmatpush1.msra.mxu0 %v6892
      %7552 = vmatprep.subr.mxu0 %v6923
      %7553 = vmatpush1.msra.mxu0 %v6893
      %7554 = vmatprep.subr.mxu0 %v7019
      %7555 = vmatpush1.msra.mxu0 %v6989
      %7556 = vmatprep.subr.mxu0 %v7020
      %7557 = vmatpush1.msra.mxu0 %v6990
      %7558 = vmatprep.subr.mxu0 %v6310
      %7559 = vmatpush1.msra.mxu0 %v6325
      %7560 = vmatprep.subr.mxu0 %v6326
      %7561 = vmatpush1.msra.mxu0 %v6341
      %7562 = vmatprep.subr.mxu0 %v6435
      %7563 = vmatpush1.msra.mxu0 %v6437
      %7564 = vmatprep.subr.mxu0 %v6436
      %7565 = vmatpush1.msra.mxu0 %v6438
      %7566 = vmatprep.subr.mxu0 %v6532
      %7567 = vmatpush1.msra.mxu0 %v6534
      %7568 = vmatprep.subr.mxu0 %v6533
      %7569 = vmatpush1.msra.mxu0 %v6535
      %7570 = vmatprep.subr.mxu0 %v6629
      %7571 = vmatpush1.msra.mxu0 %v6631
      %7572 = vmatprep.subr.mxu0 %v6630
      %7573 = vmatpush1.msra.mxu0 %v6632
      %7574 = vmatprep.subr.mxu0 %v6726
      %7575 = vmatpush1.msra.mxu0 %v6728
      %7576 = vmatprep.subr.mxu0 %v6727
      %7577 = vmatpush1.msra.mxu0 %v6729
      %7578 = vmatprep.subr.mxu0 %v6823
      %7579 = vmatpush1.msra.mxu0 %v6825
      %7580 = vmatprep.subr.mxu0 %v6824
      %7581 = vmatpush1.msra.mxu0 %v6826
      %7582 = vmatprep.subr.mxu0 %v6920
      %7583 = vmatpush1.msra.mxu0 %v6922
      %7584 = vmatprep.subr.mxu0 %v6921
      %7585 = vmatpush1.msra.mxu0 %v6923
      %7586 = vmatprep.subr.mxu0 %v7017
      %7587 = vmatpush1.msra.mxu0 %v7019
      %7588 = vmatprep.subr.mxu0 %v7018
      %7589 = vmatpush1.msra.mxu0 %v7020
      %7590 = vmatprep.mubr.f32.mxu0 %v7022
      %7591 = vmatmul.mubr.f32.gmra.mrb[0].mxu0 %v7021
      %v7592 = vpop.f32.mrb[0].mxu0
      %v7593 = vadd.f32 %v7027, %v7592
      %v7594 = vpop.f32.mrb[0].mxu0
      %v7595 = vadd.f32 %v7027, %v7594
      %7596 = vdwg.mxu0
      %v7597 = vld [vmem:[%s13] sm:$0xff]
      %v7598 = vld [vmem:[%s13 + $0x8] sm:$0xff]
      %v7599 = vld [vmem:[%s13 + $0x10] sm:$0xff]
      %v7600 = vld [vmem:[%s13 + $0x18] sm:$0xff]
      %v7601 = vld [vmem:[%s13 + $0x20] sm:$0xff]
      %v7602 = vld [vmem:[%s13 + $0x28] sm:$0xff]
      %v7603 = vld [vmem:[%s13 + $0x30] sm:$0xff]
      %v7604 = vld [vmem:[%s13 + $0x38] sm:$0xff]
      %v7605 = vld [vmem:[%s13 + $0x40] sm:$0xff]
      %v7606 = vld [vmem:[%s13 + $0x48] sm:$0xff]
      %v7607 = vld [vmem:[%s13 + $0x50] sm:$0xff]
      %v7608 = vld [vmem:[%s13 + $0x58] sm:$0xff]
      %v7609 = vld [vmem:[%s13 + $0x60] sm:$0xff]
      %v7610 = vld [vmem:[%s13 + $0x68] sm:$0xff]
      %v7611 = vld [vmem:[%s13 + $0x70] sm:$0xff]
      %v7612 = vld [vmem:[%s13 + $0x78] sm:$0xff]
      %v7613 = vld [vmem:[%s13 + $0x80] sm:$0xff]
      %v7614 = vld [vmem:[%s13 + $0x88] sm:$0xff]
      %v7615 = vld [vmem:[%s13 + $0x90] sm:$0xff]
      %v7616 = vld [vmem:[%s13 + $0x98] sm:$0xff]
      %v7617 = vld [vmem:[%s13 + $0xa0] sm:$0xff]
      %v7618 = vld [vmem:[%s13 + $0xa8] sm:$0xff]
      %v7619 = vld [vmem:[%s13 + $0xb0] sm:$0xff]
      %v7620 = vld [vmem:[%s13 + $0xb8] sm:$0xff]
      %v7621 = vld [vmem:[%s13 + $0xc0] sm:$0xff]
      %v7622 = vld [vmem:[%s13 + $0xc8] sm:$0xff]
      %v7623 = vld [vmem:[%s13 + $0xd0] sm:$0xff]
      %v7624 = vld [vmem:[%s13 + $0xd8] sm:$0xff]
      %v7625 = vld [vmem:[%s13 + $0xe0] sm:$0xff]
      %v7626 = vld [vmem:[%s13 + $0xe8] sm:$0xff]
      %v7627 = vld [vmem:[%s13 + $0xf0] sm:$0xff]
      %v7628 = vld [vmem:[%s13 + $0xf8] sm:$0xff]
      %v7629 = vld [vmem:[%s13 + $0x100] sm:$0xff]
      %v7630 = vld [vmem:[%s13 + $0x108] sm:$0xff]
      %v7631 = vld [vmem:[%s13 + $0x110] sm:$0xff]
      %v7632 = vld [vmem:[%s13 + $0x118] sm:$0xff]
      %v7633 = vld [vmem:[%s13 + $0x120] sm:$0xff]
      %v7634 = vld [vmem:[%s13 + $0x128] sm:$0xff]
      %v7635 = vld [vmem:[%s13 + $0x130] sm:$0xff]
      %v7636 = vld [vmem:[%s13 + $0x138] sm:$0xff]
      %v7637 = vld [vmem:[%s13 + $0x140] sm:$0xff]
      %v7638 = vld [vmem:[%s13 + $0x148] sm:$0xff]
      %v7639 = vld [vmem:[%s13 + $0x150] sm:$0xff]
      %v7640 = vld [vmem:[%s13 + $0x158] sm:$0xff]
      %v7641 = vld [vmem:[%s13 + $0x160] sm:$0xff]
      %v7642 = vld [vmem:[%s13 + $0x168] sm:$0xff]
      %v7643 = vld [vmem:[%s13 + $0x170] sm:$0xff]
      %v7644 = vld [vmem:[%s13 + $0x178] sm:$0xff]
      %v7645 = vld [vmem:[%s13 + $0x180] sm:$0xff]
      %v7646 = vld [vmem:[%s13 + $0x188] sm:$0xff]
      %v7647 = vld [vmem:[%s13 + $0x190] sm:$0xff]
      %v7648 = vld [vmem:[%s13 + $0x198] sm:$0xff]
      %v7649 = vld [vmem:[%s13 + $0x1a0] sm:$0xff]
      %v7650 = vld [vmem:[%s13 + $0x1a8] sm:$0xff]
      %v7651 = vld [vmem:[%s13 + $0x1b0] sm:$0xff]
      %v7652 = vld [vmem:[%s13 + $0x1b8] sm:$0xff]
      %v7653 = vld [vmem:[%s13 + $0x1c0] sm:$0xff]
      %v7654 = vld [vmem:[%s13 + $0x1c8] sm:$0xff]
      %v7655 = vld [vmem:[%s13 + $0x1d0] sm:$0xff]
      %v7656 = vld [vmem:[%s13 + $0x1d8] sm:$0xff]
      %v7657 = vld [vmem:[%s13 + $0x1e0] sm:$0xff]
      %v7658 = vld [vmem:[%s13 + $0x1e8] sm:$0xff]
      %v7659 = vld [vmem:[%s13 + $0x1f0] sm:$0xff]
      %v7660 = vld [vmem:[%s13 + $0x1f8] sm:$0xff]
      %v7661 = vld [vmem:[%s13 + $0x200] sm:$0xff]
      %v7662 = vld [vmem:[%s13 + $0x208] sm:$0xff]
      %v7663 = vld [vmem:[%s13 + $0x210] sm:$0xff]
      %v7664 = vld [vmem:[%s13 + $0x218] sm:$0xff]
      %v7665 = vld [vmem:[%s13 + $0x220] sm:$0xff]
      %v7666 = vld [vmem:[%s13 + $0x228] sm:$0xff]
      %v7667 = vld [vmem:[%s13 + $0x230] sm:$0xff]
      %v7668 = vld [vmem:[%s13 + $0x238] sm:$0xff]
      %v7669 = vld [vmem:[%s13 + $0x240] sm:$0xff]
      %v7670 = vld [vmem:[%s13 + $0x248] sm:$0xff]
      %v7671 = vld [vmem:[%s13 + $0x250] sm:$0xff]
      %v7672 = vld [vmem:[%s13 + $0x258] sm:$0xff]
      %v7673 = vld [vmem:[%s13 + $0x260] sm:$0xff]
      %v7674 = vld [vmem:[%s13 + $0x268] sm:$0xff]
      %v7675 = vld [vmem:[%s13 + $0x270] sm:$0xff]
      %v7676 = vld [vmem:[%s13 + $0x278] sm:$0xff]
      %v7677 = vld [vmem:[%s13 + $0x280] sm:$0xff]
      %v7678 = vld [vmem:[%s13 + $0x288] sm:$0xff]
      %v7679 = vld [vmem:[%s13 + $0x290] sm:$0xff]
      %v7680 = vld [vmem:[%s13 + $0x298] sm:$0xff]
      %v7681 = vld [vmem:[%s13 + $0x2a0] sm:$0xff]
      %v7682 = vld [vmem:[%s13 + $0x2a8] sm:$0xff]
      %v7683 = vld [vmem:[%s13 + $0x2b0] sm:$0xff]
      %v7684 = vld [vmem:[%s13 + $0x2b8] sm:$0xff]
      %v7685 = vld [vmem:[%s13 + $0x2c0] sm:$0xff]
      %v7686 = vld [vmem:[%s13 + $0x2c8] sm:$0xff]
      %v7687 = vld [vmem:[%s13 + $0x2d0] sm:$0xff]
      %v7688 = vld [vmem:[%s13 + $0x2d8] sm:$0xff]
      %v7689 = vld [vmem:[%s13 + $0x2e0] sm:$0xff]
      %v7690 = vld [vmem:[%s13 + $0x2e8] sm:$0xff]
      %v7691 = vld [vmem:[%s13 + $0x2f0] sm:$0xff]
      %v7692 = vld [vmem:[%s13 + $0x2f8] sm:$0xff]
      %v7693 = vld [vmem:[%s13 + $0x300] sm:$0xff]
      %v7694 = vld [vmem:[%s13 + $0x308] sm:$0xff]
      %v7695 = vld [vmem:[%s13 + $0x310] sm:$0xff]
      %v7696 = vld [vmem:[%s13 + $0x318] sm:$0xff]
      %v7697 = vld [vmem:[%s13 + $0x320] sm:$0xff]
      %v7698 = vld [vmem:[%s13 + $0x328] sm:$0xff]
      %v7699 = vld [vmem:[%s13 + $0x330] sm:$0xff]
      %v7700 = vld [vmem:[%s13 + $0x338] sm:$0xff]
      %v7701 = vld [vmem:[%s13 + $0x340] sm:$0xff]
      %v7702 = vld [vmem:[%s13 + $0x348] sm:$0xff]
      %v7703 = vld [vmem:[%s13 + $0x350] sm:$0xff]
      %v7704 = vld [vmem:[%s13 + $0x358] sm:$0xff]
      %v7705 = vld [vmem:[%s13 + $0x360] sm:$0xff]
      %v7706 = vld [vmem:[%s13 + $0x368] sm:$0xff]
      %v7707 = vld [vmem:[%s13 + $0x370] sm:$0xff]
      %v7708 = vld [vmem:[%s13 + $0x378] sm:$0xff]
      %v7709 = vld [vmem:[%s13 + $0x380] sm:$0xff]
      %v7710 = vld [vmem:[%s13 + $0x388] sm:$0xff]
      %v7711 = vld [vmem:[%s13 + $0x390] sm:$0xff]
      %v7712 = vld [vmem:[%s13 + $0x398] sm:$0xff]
      %v7713 = vld [vmem:[%s13 + $0x3a0] sm:$0xff]
      %v7714 = vld [vmem:[%s13 + $0x3a8] sm:$0xff]
      %v7715 = vld [vmem:[%s13 + $0x3b0] sm:$0xff]
      %v7716 = vld [vmem:[%s13 + $0x3b8] sm:$0xff]
      %v7717 = vld [vmem:[%s13 + $0x3c0] sm:$0xff]
      %v7718 = vld [vmem:[%s13 + $0x3c8] sm:$0xff]
      %v7719 = vld [vmem:[%s13 + $0x3d0] sm:$0xff]
      %v7720 = vld [vmem:[%s13 + $0x3d8] sm:$0xff]
      %v7721 = vld [vmem:[%s13 + $0x3e0] sm:$0xff]
      %v7722 = vld [vmem:[%s13 + $0x3e8] sm:$0xff]
      %v7723 = vld [vmem:[%s13 + $0x3f0] sm:$0xff]
      %v7724 = vld [vmem:[%s13 + $0x3f8] sm:$0xff]
      %v7725 = vld [vmem:[%s13 + $0x400] sm:$0xff]
      %v7726 = vld [vmem:[%s13 + $0x408] sm:$0xff]
      %v7727 = vld [vmem:[%s13 + $0x410] sm:$0xff]
      %v7728 = vld [vmem:[%s13 + $0x418] sm:$0xff]
      %v7729 = vld [vmem:[%s13 + $0x420] sm:$0xff]
      %v7730 = vld [vmem:[%s13 + $0x428] sm:$0xff]
      %v7731 = vld [vmem:[%s13 + $0x430] sm:$0xff]
      %v7732 = vld [vmem:[%s13 + $0x438] sm:$0xff]
      %v7733 = vld [vmem:[%s13 + $0x440] sm:$0xff]
      %v7734 = vld [vmem:[%s13 + $0x448] sm:$0xff]
      %v7735 = vld [vmem:[%s13 + $0x450] sm:$0xff]
      %v7736 = vld [vmem:[%s13 + $0x458] sm:$0xff]
      %v7737 = vld [vmem:[%s13 + $0x460] sm:$0xff]
      %v7738 = vld [vmem:[%s13 + $0x468] sm:$0xff]
      %v7739 = vld [vmem:[%s13 + $0x470] sm:$0xff]
      %v7740 = vld [vmem:[%s13 + $0x478] sm:$0xff]
      %v7741 = vld [vmem:[%s13 + $0x480] sm:$0xff]
      %v7742 = vld [vmem:[%s13 + $0x488] sm:$0xff]
      %v7743 = vld [vmem:[%s13 + $0x490] sm:$0xff]
      %v7744 = vld [vmem:[%s13 + $0x498] sm:$0xff]
      %v7745 = vld [vmem:[%s13 + $0x4a0] sm:$0xff]
      %v7746 = vld [vmem:[%s13 + $0x4a8] sm:$0xff]
      %v7747 = vld [vmem:[%s13 + $0x4b0] sm:$0xff]
      %v7748 = vld [vmem:[%s13 + $0x4b8] sm:$0xff]
      %v7749 = vld [vmem:[%s13 + $0x4c0] sm:$0xff]
      %v7750 = vld [vmem:[%s13 + $0x4c8] sm:$0xff]
      %v7751 = vld [vmem:[%s13 + $0x4d0] sm:$0xff]
      %v7752 = vld [vmem:[%s13 + $0x4d8] sm:$0xff]
      %v7753 = vld [vmem:[%s13 + $0x4e0] sm:$0xff]
      %v7754 = vld [vmem:[%s13 + $0x4e8] sm:$0xff]
      %v7755 = vld [vmem:[%s13 + $0x4f0] sm:$0xff]
      %v7756 = vld [vmem:[%s13 + $0x4f8] sm:$0xff]
      %v7757 = vld [vmem:[%s13 + $0x500] sm:$0xff]
      %v7758 = vld [vmem:[%s13 + $0x508] sm:$0xff]
      %v7759 = vld [vmem:[%s13 + $0x510] sm:$0xff]
      %v7760 = vld [vmem:[%s13 + $0x518] sm:$0xff]
      %v7761 = vld [vmem:[%s13 + $0x520] sm:$0xff]
      %v7762 = vld [vmem:[%s13 + $0x528] sm:$0xff]
      %v7763 = vld [vmem:[%s13 + $0x530] sm:$0xff]
      %v7764 = vld [vmem:[%s13 + $0x538] sm:$0xff]
      %v7765 = vld [vmem:[%s13 + $0x540] sm:$0xff]
      %v7766 = vld [vmem:[%s13 + $0x548] sm:$0xff]
      %v7767 = vld [vmem:[%s13 + $0x550] sm:$0xff]
      %v7768 = vld [vmem:[%s13 + $0x558] sm:$0xff]
      %v7769 = vld [vmem:[%s13 + $0x560] sm:$0xff]
      %v7770 = vld [vmem:[%s13 + $0x568] sm:$0xff]
      %v7771 = vld [vmem:[%s13 + $0x570] sm:$0xff]
      %v7772 = vld [vmem:[%s13 + $0x578] sm:$0xff]
      %v7773 = vld [vmem:[%s13 + $0x580] sm:$0xff]
      %v7774 = vld [vmem:[%s13 + $0x588] sm:$0xff]
      %v7775 = vld [vmem:[%s13 + $0x590] sm:$0xff]
      %v7776 = vld [vmem:[%s13 + $0x598] sm:$0xff]
      %v7777 = vld [vmem:[%s13 + $0x5a0] sm:$0xff]
      %v7778 = vld [vmem:[%s13 + $0x5a8] sm:$0xff]
      %v7779 = vld [vmem:[%s13 + $0x5b0] sm:$0xff]
      %v7780 = vld [vmem:[%s13 + $0x5b8] sm:$0xff]
      %v7781 = vld [vmem:[%s13 + $0x5c0] sm:$0xff]
      %v7782 = vld [vmem:[%s13 + $0x5c8] sm:$0xff]
      %v7783 = vld [vmem:[%s13 + $0x5d0] sm:$0xff]
      %v7784 = vld [vmem:[%s13 + $0x5d8] sm:$0xff]
      %v7785 = vld [vmem:[%s13 + $0x5e0] sm:$0xff]
      %v7786 = vld [vmem:[%s13 + $0x5e8] sm:$0xff]
      %v7787 = vld [vmem:[%s13 + $0x5f0] sm:$0xff]
      %v7788 = vld [vmem:[%s13 + $0x5f8] sm:$0xff]
      %v7789 = vld [vmem:[%s13 + $0x600] sm:$0xff]
      %v7790 = vld [vmem:[%s13 + $0x608] sm:$0xff]
      %v7791 = vld [vmem:[%s13 + $0x610] sm:$0xff]
      %v7792 = vld [vmem:[%s13 + $0x618] sm:$0xff]
      %v7793 = vld [vmem:[%s13 + $0x620] sm:$0xff]
      %v7794 = vld [vmem:[%s13 + $0x628] sm:$0xff]
      %v7795 = vld [vmem:[%s13 + $0x630] sm:$0xff]
      %v7796 = vld [vmem:[%s13 + $0x638] sm:$0xff]
      %v7797 = vld [vmem:[%s13 + $0x640] sm:$0xff]
      %v7798 = vld [vmem:[%s13 + $0x648] sm:$0xff]
      %v7799 = vld [vmem:[%s13 + $0x650] sm:$0xff]
      %v7800 = vld [vmem:[%s13 + $0x658] sm:$0xff]
      %v7801 = vld [vmem:[%s13 + $0x660] sm:$0xff]
      %v7802 = vld [vmem:[%s13 + $0x668] sm:$0xff]
      %v7803 = vld [vmem:[%s13 + $0x670] sm:$0xff]
      %v7804 = vld [vmem:[%s13 + $0x678] sm:$0xff]
      %v7805 = vld [vmem:[%s13 + $0x680] sm:$0xff]
      %v7806 = vld [vmem:[%s13 + $0x688] sm:$0xff]
      %v7807 = vld [vmem:[%s13 + $0x690] sm:$0xff]
      %v7808 = vld [vmem:[%s13 + $0x698] sm:$0xff]
      %v7809 = vld [vmem:[%s13 + $0x6a0] sm:$0xff]
      %v7810 = vld [vmem:[%s13 + $0x6a8] sm:$0xff]
      %v7811 = vld [vmem:[%s13 + $0x6b0] sm:$0xff]
      %v7812 = vld [vmem:[%s13 + $0x6b8] sm:$0xff]
      %v7813 = vld [vmem:[%s13 + $0x6c0] sm:$0xff]
      %v7814 = vld [vmem:[%s13 + $0x6c8] sm:$0xff]
      %v7815 = vld [vmem:[%s13 + $0x6d0] sm:$0xff]
      %v7816 = vld [vmem:[%s13 + $0x6d8] sm:$0xff]
      %v7817 = vld [vmem:[%s13 + $0x6e0] sm:$0xff]
      %v7818 = vld [vmem:[%s13 + $0x6e8] sm:$0xff]
      %v7819 = vld [vmem:[%s13 + $0x6f0] sm:$0xff]
      %v7820 = vld [vmem:[%s13 + $0x6f8] sm:$0xff]
      %v7821 = vld [vmem:[%s13 + $0x700] sm:$0xff]
      %v7822 = vld [vmem:[%s13 + $0x708] sm:$0xff]
      %v7823 = vld [vmem:[%s13 + $0x710] sm:$0xff]
      %v7824 = vld [vmem:[%s13 + $0x718] sm:$0xff]
      %v7825 = vld [vmem:[%s13 + $0x720] sm:$0xff]
      %v7826 = vld [vmem:[%s13 + $0x728] sm:$0xff]
      %v7827 = vld [vmem:[%s13 + $0x730] sm:$0xff]
      %v7828 = vld [vmem:[%s13 + $0x738] sm:$0xff]
      %v7829 = vld [vmem:[%s13 + $0x740] sm:$0xff]
      %v7830 = vld [vmem:[%s13 + $0x748] sm:$0xff]
      %v7831 = vld [vmem:[%s13 + $0x750] sm:$0xff]
      %v7832 = vld [vmem:[%s13 + $0x758] sm:$0xff]
      %v7833 = vld [vmem:[%s13 + $0x760] sm:$0xff]
      %v7834 = vld [vmem:[%s13 + $0x768] sm:$0xff]
      %v7835 = vld [vmem:[%s13 + $0x770] sm:$0xff]
      %v7836 = vld [vmem:[%s13 + $0x778] sm:$0xff]
      %v7837 = vld [vmem:[%s13 + $0x780] sm:$0xff]
      %v7838 = vld [vmem:[%s13 + $0x788] sm:$0xff]
      %v7839 = vld [vmem:[%s13 + $0x790] sm:$0xff]
      %v7840 = vld [vmem:[%s13 + $0x798] sm:$0xff]
      %v7841 = vld [vmem:[%s13 + $0x7a0] sm:$0xff]
      %v7842 = vld [vmem:[%s13 + $0x7a8] sm:$0xff]
      %v7843 = vld [vmem:[%s13 + $0x7b0] sm:$0xff]
      %v7844 = vld [vmem:[%s13 + $0x7b8] sm:$0xff]
      %v7845 = vld [vmem:[%s13 + $0x7c0] sm:$0xff]
      %v7846 = vld [vmem:[%s13 + $0x7c8] sm:$0xff]
      %v7847 = vld [vmem:[%s13 + $0x7d0] sm:$0xff]
      %v7848 = vld [vmem:[%s13 + $0x7d8] sm:$0xff]
      %v7849 = vld [vmem:[%s13 + $0x7e0] sm:$0xff]
      %v7850 = vld [vmem:[%s13 + $0x7e8] sm:$0xff]
      %v7851 = vld [vmem:[%s13 + $0x7f0] sm:$0xff]
      %v7852 = vld [vmem:[%s13 + $0x7f8] sm:$0xff]
      %7853 = vmatprep.subr.mxu0 0.0
      %7854 = vmatpush1.msra.mxu0 %v7597
      %7855 = vmatprep.subr.mxu0 0.0
      %7856 = vmatpush1.msra.mxu0 %v7598
      %7857 = vmatprep.subr.mxu0 0.0
      %7858 = vmatpush1.msra.mxu0 %v7599
      %7859 = vmatprep.subr.mxu0 0.0
      %7860 = vmatpush1.msra.mxu0 %v7600
      %7861 = vmatprep.subr.mxu0 0.0
      %7862 = vmatpush1.msra.mxu0 %v7601
      %7863 = vmatprep.subr.mxu0 0.0
      %7864 = vmatpush1.msra.mxu0 %v7602
      %7865 = vmatprep.subr.mxu0 0.0
      %7866 = vmatpush1.msra.mxu0 %v7603
      %7867 = vmatprep.subr.mxu0 0.0
      %7868 = vmatpush1.msra.mxu0 %v7604
      %7869 = vmatprep.subr.mxu0 0.0
      %7870 = vmatpush1.msra.mxu0 %v7605
      %7871 = vmatprep.subr.mxu0 0.0
      %7872 = vmatpush1.msra.mxu0 %v7606
      %7873 = vmatprep.subr.mxu0 0.0
      %7874 = vmatpush1.msra.mxu0 %v7607
      %7875 = vmatprep.subr.mxu0 0.0
      %7876 = vmatpush1.msra.mxu0 %v7608
      %7877 = vmatprep.subr.mxu0 0.0
      %7878 = vmatpush1.msra.mxu0 %v7609
      %7879 = vmatprep.subr.mxu0 0.0
      %7880 = vmatpush1.msra.mxu0 %v7610
      %7881 = vmatprep.subr.mxu0 0.0
      %7882 = vmatpush1.msra.mxu0 %v7611
      %7883 = vmatprep.subr.mxu0 0.0
      %7884 = vmatpush1.msra.mxu0 %v7612
      %7885 = vmatprep.subr.mxu0 0.0
      %7886 = vmatpush1.msra.mxu0 %v7613
      %7887 = vmatprep.subr.mxu0 0.0
      %7888 = vmatpush1.msra.mxu0 %v7614
      %7889 = vmatprep.subr.mxu0 0.0
      %7890 = vmatpush1.msra.mxu0 %v7615
      %7891 = vmatprep.subr.mxu0 0.0
      %7892 = vmatpush1.msra.mxu0 %v7616
      %7893 = vmatprep.subr.mxu0 0.0
      %7894 = vmatpush1.msra.mxu0 %v7617
      %7895 = vmatprep.subr.mxu0 0.0
      %7896 = vmatpush1.msra.mxu0 %v7618
      %7897 = vmatprep.subr.mxu0 0.0
      %7898 = vmatpush1.msra.mxu0 %v7619
      %7899 = vmatprep.subr.mxu0 0.0
      %7900 = vmatpush1.msra.mxu0 %v7620
      %7901 = vmatprep.subr.mxu0 0.0
      %7902 = vmatpush1.msra.mxu0 %v7621
      %7903 = vmatprep.subr.mxu0 0.0
      %7904 = vmatpush1.msra.mxu0 %v7622
      %7905 = vmatprep.subr.mxu0 0.0
      %7906 = vmatpush1.msra.mxu0 %v7623
      %7907 = vmatprep.subr.mxu0 0.0
      %7908 = vmatpush1.msra.mxu0 %v7624
      %7909 = vmatprep.subr.mxu0 0.0
      %7910 = vmatpush1.msra.mxu0 %v7625
      %7911 = vmatprep.subr.mxu0 0.0
      %7912 = vmatpush1.msra.mxu0 %v7626
      %7913 = vmatprep.subr.mxu0 0.0
      %7914 = vmatpush1.msra.mxu0 %v7627
      %7915 = vmatprep.subr.mxu0 0.0
      %7916 = vmatpush1.msra.mxu0 %v7628
      %7917 = vmatprep.mubr.f32.mxu0 %v7098
      %7918 = vmatmul.mubr.f32.gmra.mrb[0].mxu0 %v7096
      %v7919 = vpop.f32.mrb[0].mxu0
      %v7920 = vadd.f32 0.0, %v7919
      %v7921 = vpop.f32.mrb[0].mxu0
      %7922 = vdwg.mxu0
      %7923 = vmatprep.subr.mxu0 0.0
      %7924 = vmatpush1.msra.mxu0 %v7629
      %7925 = vmatprep.subr.mxu0 0.0
      %7926 = vmatpush1.msra.mxu0 %v7630
      %7927 = vmatprep.subr.mxu0 0.0
      %7928 = vmatpush1.msra.mxu0 %v7631
      %7929 = vmatprep.subr.mxu0 0.0
      %7930 = vmatpush1.msra.mxu0 %v7632
      %7931 = vmatprep.subr.mxu0 0.0
      %7932 = vmatpush1.msra.mxu0 %v7633
      %7933 = vmatprep.subr.mxu0 0.0
      %7934 = vmatpush1.msra.mxu0 %v7634
      %7935 = vmatprep.subr.mxu0 0.0
      %7936 = vmatpush1.msra.mxu0 %v7635
      %7937 = vmatprep.subr.mxu0 0.0
      %7938 = vmatpush1.msra.mxu0 %v7636
      %7939 = vmatprep.subr.mxu0 0.0
      %7940 = vmatpush1.msra.mxu0 %v7637
      %7941 = vmatprep.subr.mxu0 0.0
      %7942 = vmatpush1.msra.mxu0 %v7638
      %7943 = vmatprep.subr.mxu0 0.0
      %7944 = vmatpush1.msra.mxu0 %v7639
      %7945 = vmatprep.subr.mxu0 0.0
      %7946 = vmatpush1.msra.mxu0 %v7640
      %7947 = vmatprep.subr.mxu0 0.0
      %7948 = vmatpush1.msra.mxu0 %v7641
      %7949 = vmatprep.subr.mxu0 0.0
      %7950 = vmatpush1.msra.mxu0 %v7642
      %7951 = vmatprep.subr.mxu0 0.0
      %7952 = vmatpush1.msra.mxu0 %v7643
      %7953 = vmatprep.subr.mxu0 0.0
      %7954 = vmatpush1.msra.mxu0 %v7644
      %7955 = vmatprep.subr.mxu0 0.0
      %7956 = vmatpush1.msra.mxu0 %v7645
      %7957 = vmatprep.subr.mxu0 0.0
      %7958 = vmatpush1.msra.mxu0 %v7646
      %7959 = vmatprep.subr.mxu0 0.0
      %7960 = vmatpush1.msra.mxu0 %v7647
      %7961 = vmatprep.subr.mxu0 0.0
      %7962 = vmatpush1.msra.mxu0 %v7648
      %7963 = vmatprep.subr.mxu0 0.0
      %7964 = vmatpush1.msra.mxu0 %v7649
      %7965 = vmatprep.subr.mxu0 0.0
      %7966 = vmatpush1.msra.mxu0 %v7650
      %7967 = vmatprep.subr.mxu0 0.0
      %7968 = vmatpush1.msra.mxu0 %v7651
      %7969 = vmatprep.subr.mxu0 0.0
      %7970 = vmatpush1.msra.mxu0 %v7652
      %7971 = vmatprep.subr.mxu0 0.0
      %7972 = vmatpush1.msra.mxu0 %v7653
      %7973 = vmatprep.subr.mxu0 0.0
      %7974 = vmatpush1.msra.mxu0 %v7654
      %7975 = vmatprep.subr.mxu0 0.0
      %7976 = vmatpush1.msra.mxu0 %v7655
      %7977 = vmatprep.subr.mxu0 0.0
      %7978 = vmatpush1.msra.mxu0 %v7656
      %7979 = vmatprep.subr.mxu0 0.0
      %7980 = vmatpush1.msra.mxu0 %v7657
      %7981 = vmatprep.subr.mxu0 0.0
      %7982 = vmatpush1.msra.mxu0 %v7658
      %7983 = vmatprep.subr.mxu0 0.0
      %7984 = vmatpush1.msra.mxu0 %v7659
      %7985 = vmatprep.subr.mxu0 0.0
      %7986 = vmatpush1.msra.mxu0 %v7660
      %7987 = vmatprep.mubr.f32.mxu0 %v7169
      %7988 = vmatmul.mubr.f32.gmra.mrb[0].mxu0 %v7167
      %v7989 = vpop.f32.mrb[0].mxu0
      %v7990 = vadd.f32 %v7920, %v7989
      %v7991 = vpop.f32.mrb[0].mxu0
      %7992 = vdwg.mxu0
      %7993 = vmatprep.subr.mxu0 0.0
      %7994 = vmatpush1.msra.mxu0 %v7661
      %7995 = vmatprep.subr.mxu0 0.0
      %7996 = vmatpush1.msra.mxu0 %v7662
      %7997 = vmatprep.subr.mxu0 0.0
      %7998 = vmatpush1.msra.mxu0 %v7663
      %7999 = vmatprep.subr.mxu0 0.0
      %8000 = vmatpush1.msra.mxu0 %v7664
      %8001 = vmatprep.subr.mxu0 0.0
      %8002 = vmatpush1.msra.mxu0 %v7665
      %8003 = vmatprep.subr.mxu0 0.0
      %8004 = vmatpush1.msra.mxu0 %v7666
      %8005 = vmatprep.subr.mxu0 0.0
      %8006 = vmatpush1.msra.mxu0 %v7667
      %8007 = vmatprep.subr.mxu0 0.0
      %8008 = vmatpush1.msra.mxu0 %v7668
      %8009 = vmatprep.subr.mxu0 0.0
      %8010 = vmatpush1.msra.mxu0 %v7669
      %8011 = vmatprep.subr.mxu0 0.0
      %8012 = vmatpush1.msra.mxu0 %v7670
      %8013 = vmatprep.subr.mxu0 0.0
      %8014 = vmatpush1.msra.mxu0 %v7671
      %8015 = vmatprep.subr.mxu0 0.0
      %8016 = vmatpush1.msra.mxu0 %v7672
      %8017 = vmatprep.subr.mxu0 0.0
      %8018 = vmatpush1.msra.mxu0 %v7673
      %8019 = vmatprep.subr.mxu0 0.0
      %8020 = vmatpush1.msra.mxu0 %v7674
      %8021 = vmatprep.subr.mxu0 0.0
      %8022 = vmatpush1.msra.mxu0 %v7675
      %8023 = vmatprep.subr.mxu0 0.0
      %8024 = vmatpush1.msra.mxu0 %v7676
      %8025 = vmatprep.subr.mxu0 0.0
      %8026 = vmatpush1.msra.mxu0 %v7677
      %8027 = vmatprep.subr.mxu0 0.0
      %8028 = vmatpush1.msra.mxu0 %v7678
      %8029 = vmatprep.subr.mxu0 0.0
      %8030 = vmatpush1.msra.mxu0 %v7679
      %8031 = vmatprep.subr.mxu0 0.0
      %8032 = vmatpush1.msra.mxu0 %v7680
      %8033 = vmatprep.subr.mxu0 0.0
      %8034 = vmatpush1.msra.mxu0 %v7681
      %8035 = vmatprep.subr.mxu0 0.0
      %8036 = vmatpush1.msra.mxu0 %v7682
      %8037 = vmatprep.subr.mxu0 0.0
      %8038 = vmatpush1.msra.mxu0 %v7683
      %8039 = vmatprep.subr.mxu0 0.0
      %8040 = vmatpush1.msra.mxu0 %v7684
      %8041 = vmatprep.subr.mxu0 0.0
      %8042 = vmatpush1.msra.mxu0 %v7685
      %8043 = vmatprep.subr.mxu0 0.0
      %8044 = vmatpush1.msra.mxu0 %v7686
      %8045 = vmatprep.subr.mxu0 0.0
      %8046 = vmatpush1.msra.mxu0 %v7687
      %8047 = vmatprep.subr.mxu0 0.0
      %8048 = vmatpush1.msra.mxu0 %v7688
      %8049 = vmatprep.subr.mxu0 0.0
      %8050 = vmatpush1.msra.mxu0 %v7689
      %8051 = vmatprep.subr.mxu0 0.0
      %8052 = vmatpush1.msra.mxu0 %v7690
      %8053 = vmatprep.subr.mxu0 0.0
      %8054 = vmatpush1.msra.mxu0 %v7691
      %8055 = vmatprep.subr.mxu0 0.0
      %8056 = vmatpush1.msra.mxu0 %v7692
      %8057 = vmatprep.mubr.f32.mxu0 %v7240
      %8058 = vmatmul.mubr.f32.gmra.mrb[0].mxu0 %v7238
      %v8059 = vpop.f32.mrb[0].mxu0
      %v8060 = vadd.f32 %v7990, %v8059
      %v8061 = vpop.f32.mrb[0].mxu0
      %8062 = vdwg.mxu0
      %8063 = vmatprep.subr.mxu0 0.0
      %8064 = vmatpush1.msra.mxu0 %v7693
      %8065 = vmatprep.subr.mxu0 0.0
      %8066 = vmatpush1.msra.mxu0 %v7694
      %8067 = vmatprep.subr.mxu0 0.0
      %8068 = vmatpush1.msra.mxu0 %v7695
      %8069 = vmatprep.subr.mxu0 0.0
      %8070 = vmatpush1.msra.mxu0 %v7696
      %8071 = vmatprep.subr.mxu0 0.0
      %8072 = vmatpush1.msra.mxu0 %v7697
      %8073 = vmatprep.subr.mxu0 0.0
      %8074 = vmatpush1.msra.mxu0 %v7698
      %8075 = vmatprep.subr.mxu0 0.0
      %8076 = vmatpush1.msra.mxu0 %v7699
      %8077 = vmatprep.subr.mxu0 0.0
      %8078 = vmatpush1.msra.mxu0 %v7700
      %8079 = vmatprep.subr.mxu0 0.0
      %8080 = vmatpush1.msra.mxu0 %v7701
      %8081 = vmatprep.subr.mxu0 0.0
      %8082 = vmatpush1.msra.mxu0 %v7702
      %8083 = vmatprep.subr.mxu0 0.0
      %8084 = vmatpush1.msra.mxu0 %v7703
      %8085 = vmatprep.subr.mxu0 0.0
      %8086 = vmatpush1.msra.mxu0 %v7704
      %8087 = vmatprep.subr.mxu0 0.0
      %8088 = vmatpush1.msra.mxu0 %v7705
      %8089 = vmatprep.subr.mxu0 0.0
      %8090 = vmatpush1.msra.mxu0 %v7706
      %8091 = vmatprep.subr.mxu0 0.0
      %8092 = vmatpush1.msra.mxu0 %v7707
      %8093 = vmatprep.subr.mxu0 0.0
      %8094 = vmatpush1.msra.mxu0 %v7708
      %8095 = vmatprep.subr.mxu0 0.0
      %8096 = vmatpush1.msra.mxu0 %v7709
      %8097 = vmatprep.subr.mxu0 0.0
      %8098 = vmatpush1.msra.mxu0 %v7710
      %8099 = vmatprep.subr.mxu0 0.0
      %8100 = vmatpush1.msra.mxu0 %v7711
      %8101 = vmatprep.subr.mxu0 0.0
      %8102 = vmatpush1.msra.mxu0 %v7712
      %8103 = vmatprep.subr.mxu0 0.0
      %8104 = vmatpush1.msra.mxu0 %v7713
      %8105 = vmatprep.subr.mxu0 0.0
      %8106 = vmatpush1.msra.mxu0 %v7714
      %8107 = vmatprep.subr.mxu0 0.0
      %8108 = vmatpush1.msra.mxu0 %v7715
      %8109 = vmatprep.subr.mxu0 0.0
      %8110 = vmatpush1.msra.mxu0 %v7716
      %8111 = vmatprep.subr.mxu0 0.0
      %8112 = vmatpush1.msra.mxu0 %v7717
      %8113 = vmatprep.subr.mxu0 0.0
      %8114 = vmatpush1.msra.mxu0 %v7718
      %8115 = vmatprep.subr.mxu0 0.0
      %8116 = vmatpush1.msra.mxu0 %v7719
      %8117 = vmatprep.subr.mxu0 0.0
      %8118 = vmatpush1.msra.mxu0 %v7720
      %8119 = vmatprep.subr.mxu0 0.0
      %8120 = vmatpush1.msra.mxu0 %v7721
      %8121 = vmatprep.subr.mxu0 0.0
      %8122 = vmatpush1.msra.mxu0 %v7722
      %8123 = vmatprep.subr.mxu0 0.0
      %8124 = vmatpush1.msra.mxu0 %v7723
      %8125 = vmatprep.subr.mxu0 0.0
      %8126 = vmatpush1.msra.mxu0 %v7724
      %8127 = vmatprep.mubr.f32.mxu0 %v7311
      %8128 = vmatmul.mubr.f32.gmra.mrb[0].mxu0 %v7309
      %v8129 = vpop.f32.mrb[0].mxu0
      %v8130 = vadd.f32 %v8060, %v8129
      %v8131 = vpop.f32.mrb[0].mxu0
      %8132 = vdwg.mxu0
      %8133 = vmatprep.subr.mxu0 0.0
      %8134 = vmatpush1.msra.mxu0 %v7725
      %8135 = vmatprep.subr.mxu0 0.0
      %8136 = vmatpush1.msra.mxu0 %v7726
      %8137 = vmatprep.subr.mxu0 0.0
      %8138 = vmatpush1.msra.mxu0 %v7727
      %8139 = vmatprep.subr.mxu0 0.0
      %8140 = vmatpush1.msra.mxu0 %v7728
      %8141 = vmatprep.subr.mxu0 0.0
      %8142 = vmatpush1.msra.mxu0 %v7729
      %8143 = vmatprep.subr.mxu0 0.0
      %8144 = vmatpush1.msra.mxu0 %v7730
      %8145 = vmatprep.subr.mxu0 0.0
      %8146 = vmatpush1.msra.mxu0 %v7731
      %8147 = vmatprep.subr.mxu0 0.0
      %8148 = vmatpush1.msra.mxu0 %v7732
      %8149 = vmatprep.subr.mxu0 0.0
      %8150 = vmatpush1.msra.mxu0 %v7733
      %8151 = vmatprep.subr.mxu0 0.0
      %8152 = vmatpush1.msra.mxu0 %v7734
      %8153 = vmatprep.subr.mxu0 0.0
      %8154 = vmatpush1.msra.mxu0 %v7735
      %8155 = vmatprep.subr.mxu0 0.0
      %8156 = vmatpush1.msra.mxu0 %v7736
      %8157 = vmatprep.subr.mxu0 0.0
      %8158 = vmatpush1.msra.mxu0 %v7737
      %8159 = vmatprep.subr.mxu0 0.0
      %8160 = vmatpush1.msra.mxu0 %v7738
      %8161 = vmatprep.subr.mxu0 0.0
      %8162 = vmatpush1.msra.mxu0 %v7739
      %8163 = vmatprep.subr.mxu0 0.0
      %8164 = vmatpush1.msra.mxu0 %v7740
      %8165 = vmatprep.subr.mxu0 0.0
      %8166 = vmatpush1.msra.mxu0 %v7741
      %8167 = vmatprep.subr.mxu0 0.0
      %8168 = vmatpush1.msra.mxu0 %v7742
      %8169 = vmatprep.subr.mxu0 0.0
      %8170 = vmatpush1.msra.mxu0 %v7743
      %8171 = vmatprep.subr.mxu0 0.0
      %8172 = vmatpush1.msra.mxu0 %v7744
      %8173 = vmatprep.subr.mxu0 0.0
      %8174 = vmatpush1.msra.mxu0 %v7745
      %8175 = vmatprep.subr.mxu0 0.0
      %8176 = vmatpush1.msra.mxu0 %v7746
      %8177 = vmatprep.subr.mxu0 0.0
      %8178 = vmatpush1.msra.mxu0 %v7747
      %8179 = vmatprep.subr.mxu0 0.0
      %8180 = vmatpush1.msra.mxu0 %v7748
      %8181 = vmatprep.subr.mxu0 0.0
      %8182 = vmatpush1.msra.mxu0 %v7749
      %8183 = vmatprep.subr.mxu0 0.0
      %8184 = vmatpush1.msra.mxu0 %v7750
      %8185 = vmatprep.subr.mxu0 0.0
      %8186 = vmatpush1.msra.mxu0 %v7751
      %8187 = vmatprep.subr.mxu0 0.0
      %8188 = vmatpush1.msra.mxu0 %v7752
      %8189 = vmatprep.subr.mxu0 0.0
      %8190 = vmatpush1.msra.mxu0 %v7753
      %8191 = vmatprep.subr.mxu0 0.0
      %8192 = vmatpush1.msra.mxu0 %v7754
      %8193 = vmatprep.subr.mxu0 0.0
      %8194 = vmatpush1.msra.mxu0 %v7755
      %8195 = vmatprep.subr.mxu0 0.0
      %8196 = vmatpush1.msra.mxu0 %v7756
      %8197 = vmatprep.mubr.f32.mxu0 %v7382
      %8198 = vmatmul.mubr.f32.gmra.mrb[0].mxu0 %v7380
      %v8199 = vpop.f32.mrb[0].mxu0
      %v8200 = vadd.f32 %v8130, %v8199
      %v8201 = vpop.f32.mrb[0].mxu0
      %8202 = vdwg.mxu0
      %8203 = vmatprep.subr.mxu0 0.0
      %8204 = vmatpush1.msra.mxu0 %v7757
      %8205 = vmatprep.subr.mxu0 0.0
      %8206 = vmatpush1.msra.mxu0 %v7758
      %8207 = vmatprep.subr.mxu0 0.0
      %8208 = vmatpush1.msra.mxu0 %v7759
      %8209 = vmatprep.subr.mxu0 0.0
      %8210 = vmatpush1.msra.mxu0 %v7760
      %8211 = vmatprep.subr.mxu0 0.0
      %8212 = vmatpush1.msra.mxu0 %v7761
      %8213 = vmatprep.subr.mxu0 0.0
      %8214 = vmatpush1.msra.mxu0 %v7762
      %8215 = vmatprep.subr.mxu0 0.0
      %8216 = vmatpush1.msra.mxu0 %v7763
      %8217 = vmatprep.subr.mxu0 0.0
      %8218 = vmatpush1.msra.mxu0 %v7764
      %8219 = vmatprep.subr.mxu0 0.0
      %8220 = vmatpush1.msra.mxu0 %v7765
      %8221 = vmatprep.subr.mxu0 0.0
      %8222 = vmatpush1.msra.mxu0 %v7766
      %8223 = vmatprep.subr.mxu0 0.0
      %8224 = vmatpush1.msra.mxu0 %v7767
      %8225 = vmatprep.subr.mxu0 0.0
      %8226 = vmatpush1.msra.mxu0 %v7768
      %8227 = vmatprep.subr.mxu0 0.0
      %8228 = vmatpush1.msra.mxu0 %v7769
      %8229 = vmatprep.subr.mxu0 0.0
      %8230 = vmatpush1.msra.mxu0 %v7770
      %8231 = vmatprep.subr.mxu0 0.0
      %8232 = vmatpush1.msra.mxu0 %v7771
      %8233 = vmatprep.subr.mxu0 0.0
      %8234 = vmatpush1.msra.mxu0 %v7772
      %8235 = vmatprep.subr.mxu0 0.0
      %8236 = vmatpush1.msra.mxu0 %v7773
      %8237 = vmatprep.subr.mxu0 0.0
      %8238 = vmatpush1.msra.mxu0 %v7774
      %8239 = vmatprep.subr.mxu0 0.0
      %8240 = vmatpush1.msra.mxu0 %v7775
      %8241 = vmatprep.subr.mxu0 0.0
      %8242 = vmatpush1.msra.mxu0 %v7776
      %8243 = vmatprep.subr.mxu0 0.0
      %8244 = vmatpush1.msra.mxu0 %v7777
      %8245 = vmatprep.subr.mxu0 0.0
      %8246 = vmatpush1.msra.mxu0 %v7778
      %8247 = vmatprep.subr.mxu0 0.0
      %8248 = vmatpush1.msra.mxu0 %v7779
      %8249 = vmatprep.subr.mxu0 0.0
      %8250 = vmatpush1.msra.mxu0 %v7780
      %8251 = vmatprep.subr.mxu0 0.0
      %8252 = vmatpush1.msra.mxu0 %v7781
      %8253 = vmatprep.subr.mxu0 0.0
      %8254 = vmatpush1.msra.mxu0 %v7782
      %8255 = vmatprep.subr.mxu0 0.0
      %8256 = vmatpush1.msra.mxu0 %v7783
      %8257 = vmatprep.subr.mxu0 0.0
      %8258 = vmatpush1.msra.mxu0 %v7784
      %8259 = vmatprep.subr.mxu0 0.0
      %8260 = vmatpush1.msra.mxu0 %v7785
      %8261 = vmatprep.subr.mxu0 0.0
      %8262 = vmatpush1.msra.mxu0 %v7786
      %8263 = vmatprep.subr.mxu0 0.0
      %8264 = vmatpush1.msra.mxu0 %v7787
      %8265 = vmatprep.subr.mxu0 0.0
      %8266 = vmatpush1.msra.mxu0 %v7788
      %8267 = vmatprep.mubr.f32.mxu0 %v7453
      %8268 = vmatmul.mubr.f32.gmra.mrb[0].mxu0 %v7451
      %v8269 = vpop.f32.mrb[0].mxu0
      %v8270 = vadd.f32 %v8200, %v8269
      %v8271 = vpop.f32.mrb[0].mxu0
      %8272 = vdwg.mxu0
      %8273 = vmatprep.subr.mxu0 0.0
      %8274 = vmatpush1.msra.mxu0 %v7789
      %8275 = vmatprep.subr.mxu0 0.0
      %8276 = vmatpush1.msra.mxu0 %v7790
      %8277 = vmatprep.subr.mxu0 0.0
      %8278 = vmatpush1.msra.mxu0 %v7791
      %8279 = vmatprep.subr.mxu0 0.0
      %8280 = vmatpush1.msra.mxu0 %v7792
      %8281 = vmatprep.subr.mxu0 0.0
      %8282 = vmatpush1.msra.mxu0 %v7793
      %8283 = vmatprep.subr.mxu0 0.0
      %8284 = vmatpush1.msra.mxu0 %v7794
      %8285 = vmatprep.subr.mxu0 0.0
      %8286 = vmatpush1.msra.mxu0 %v7795
      %8287 = vmatprep.subr.mxu0 0.0
      %8288 = vmatpush1.msra.mxu0 %v7796
      %8289 = vmatprep.subr.mxu0 0.0
      %8290 = vmatpush1.msra.mxu0 %v7797
      %8291 = vmatprep.subr.mxu0 0.0
      %8292 = vmatpush1.msra.mxu0 %v7798
      %8293 = vmatprep.subr.mxu0 0.0
      %8294 = vmatpush1.msra.mxu0 %v7799
      %8295 = vmatprep.subr.mxu0 0.0
      %8296 = vmatpush1.msra.mxu0 %v7800
      %8297 = vmatprep.subr.mxu0 0.0
      %8298 = vmatpush1.msra.mxu0 %v7801
      %8299 = vmatprep.subr.mxu0 0.0
      %8300 = vmatpush1.msra.mxu0 %v7802
      %8301 = vmatprep.subr.mxu0 0.0
      %8302 = vmatpush1.msra.mxu0 %v7803
      %8303 = vmatprep.subr.mxu0 0.0
      %8304 = vmatpush1.msra.mxu0 %v7804
      %8305 = vmatprep.subr.mxu0 0.0
      %8306 = vmatpush1.msra.mxu0 %v7805
      %8307 = vmatprep.subr.mxu0 0.0
      %8308 = vmatpush1.msra.mxu0 %v7806
      %8309 = vmatprep.subr.mxu0 0.0
      %8310 = vmatpush1.msra.mxu0 %v7807
      %8311 = vmatprep.subr.mxu0 0.0
      %8312 = vmatpush1.msra.mxu0 %v7808
      %8313 = vmatprep.subr.mxu0 0.0
      %8314 = vmatpush1.msra.mxu0 %v7809
      %8315 = vmatprep.subr.mxu0 0.0
      %8316 = vmatpush1.msra.mxu0 %v7810
      %8317 = vmatprep.subr.mxu0 0.0
      %8318 = vmatpush1.msra.mxu0 %v7811
      %8319 = vmatprep.subr.mxu0 0.0
      %8320 = vmatpush1.msra.mxu0 %v7812
      %8321 = vmatprep.subr.mxu0 0.0
      %8322 = vmatpush1.msra.mxu0 %v7813
      %8323 = vmatprep.subr.mxu0 0.0
      %8324 = vmatpush1.msra.mxu0 %v7814
      %8325 = vmatprep.subr.mxu0 0.0
      %8326 = vmatpush1.msra.mxu0 %v7815
      %8327 = vmatprep.subr.mxu0 0.0
      %8328 = vmatpush1.msra.mxu0 %v7816
      %8329 = vmatprep.subr.mxu0 0.0
      %8330 = vmatpush1.msra.mxu0 %v7817
      %8331 = vmatprep.subr.mxu0 0.0
      %8332 = vmatpush1.msra.mxu0 %v7818
      %8333 = vmatprep.subr.mxu0 0.0
      %8334 = vmatpush1.msra.mxu0 %v7819
      %8335 = vmatprep.subr.mxu0 0.0
      %8336 = vmatpush1.msra.mxu0 %v7820
      %8337 = vmatprep.mubr.f32.mxu0 %v7524
      %8338 = vmatmul.mubr.f32.gmra.mrb[0].mxu0 %v7522
      %v8339 = vpop.f32.mrb[0].mxu0
      %v8340 = vadd.f32 %v8270, %v8339
      %v8341 = vpop.f32.mrb[0].mxu0
      %8342 = vdwg.mxu0
      %8343 = vmatprep.subr.mxu0 0.0
      %8344 = vmatpush1.msra.mxu0 %v7821
      %8345 = vmatprep.subr.mxu0 0.0
      %8346 = vmatpush1.msra.mxu0 %v7822
      %8347 = vmatprep.subr.mxu0 0.0
      %8348 = vmatpush1.msra.mxu0 %v7823
      %8349 = vmatprep.subr.mxu0 0.0
      %8350 = vmatpush1.msra.mxu0 %v7824
      %8351 = vmatprep.subr.mxu0 0.0
      %8352 = vmatpush1.msra.mxu0 %v7825
      %8353 = vmatprep.subr.mxu0 0.0
      %8354 = vmatpush1.msra.mxu0 %v7826
      %8355 = vmatprep.subr.mxu0 0.0
      %8356 = vmatpush1.msra.mxu0 %v7827
      %8357 = vmatprep.subr.mxu0 0.0
      %8358 = vmatpush1.msra.mxu0 %v7828
      %8359 = vmatprep.subr.mxu0 0.0
      %8360 = vmatpush1.msra.mxu0 %v7829
      %8361 = vmatprep.subr.mxu0 0.0
      %8362 = vmatpush1.msra.mxu0 %v7830
      %8363 = vmatprep.subr.mxu0 0.0
      %8364 = vmatpush1.msra.mxu0 %v7831
      %8365 = vmatprep.subr.mxu0 0.0
      %8366 = vmatpush1.msra.mxu0 %v7832
      %8367 = vmatprep.subr.mxu0 0.0
      %8368 = vmatpush1.msra.mxu0 %v7833
      %8369 = vmatprep.subr.mxu0 0.0
      %8370 = vmatpush1.msra.mxu0 %v7834
      %8371 = vmatprep.subr.mxu0 0.0
      %8372 = vmatpush1.msra.mxu0 %v7835
      %8373 = vmatprep.subr.mxu0 0.0
      %8374 = vmatpush1.msra.mxu0 %v7836
      %8375 = vmatprep.subr.mxu0 0.0
      %8376 = vmatpush1.msra.mxu0 %v7837
      %8377 = vmatprep.subr.mxu0 0.0
      %8378 = vmatpush1.msra.mxu0 %v7838
      %8379 = vmatprep.subr.mxu0 0.0
      %8380 = vmatpush1.msra.mxu0 %v7839
      %8381 = vmatprep.subr.mxu0 0.0
      %8382 = vmatpush1.msra.mxu0 %v7840
      %8383 = vmatprep.subr.mxu0 0.0
      %8384 = vmatpush1.msra.mxu0 %v7841
      %8385 = vmatprep.subr.mxu0 0.0
      %8386 = vmatpush1.msra.mxu0 %v7842
      %8387 = vmatprep.subr.mxu0 0.0
      %8388 = vmatpush1.msra.mxu0 %v7843
      %8389 = vmatprep.subr.mxu0 0.0
      %8390 = vmatpush1.msra.mxu0 %v7844
      %8391 = vmatprep.subr.mxu0 0.0
      %8392 = vmatpush1.msra.mxu0 %v7845
      %8393 = vmatprep.subr.mxu0 0.0
      %8394 = vmatpush1.msra.mxu0 %v7846
      %8395 = vmatprep.subr.mxu0 0.0
      %8396 = vmatpush1.msra.mxu0 %v7847
      %8397 = vmatprep.subr.mxu0 0.0
      %8398 = vmatpush1.msra.mxu0 %v7848
      %8399 = vmatprep.subr.mxu0 0.0
      %8400 = vmatpush1.msra.mxu0 %v7849
      %8401 = vmatprep.subr.mxu0 0.0
      %8402 = vmatpush1.msra.mxu0 %v7850
      %8403 = vmatprep.subr.mxu0 0.0
      %8404 = vmatpush1.msra.mxu0 %v7851
      %8405 = vmatprep.subr.mxu0 0.0
      %8406 = vmatpush1.msra.mxu0 %v7852
      %8407 = vmatprep.mubr.f32.mxu0 %v7595
      %8408 = vmatmul.mubr.f32.gmra.mrb[0].mxu0 %v7593
      %v8409 = vpop.f32.mrb[0].mxu0
      %v8410 = vadd.f32 %v8340, %v8409
      %v8411 = vpop.f32.mrb[0].mxu0
      %8412 = vdwg.mxu0
      %v8413 = vmax.f32 %v8410, 0.0
      %v8414 = vld [vmem:[%s11] sm:$0xff]
      %v8415 = vld [vmem:[%s11 + $0x8] sm:$0xff]
      %v8416 = vld [vmem:[%s11 + $0x10] sm:$0xff]
      %v8417 = vld [vmem:[%s11 + $0x18] sm:$0xff]
      %v8418 = vld [vmem:[%s11 + $0x20] sm:$0x1f]
      %v8419 = vld [vmem:[%s12] sm:$0xff]
      %v8420 = vld [vmem:[%s12 + $0x8] sm:$0xff]
      %v8421 = vld [vmem:[%s12 + $0x10] sm:$0xff]
      %v8422 = vld [vmem:[%s12 + $0x18] sm:$0xff]
      %v8423 = vld [vmem:[%s12 + $0x20] sm:$0x1f]
      %8425 = vset.pattern.permute.xlu0 0
      %8426 = vperm.xlu0 %8425, %v8419
      %v8427 = vpop.permute.xlu0 %8426
      %8430 = vset.pattern.permute.xlu0 0
      %8431 = vperm.xlu0 %8430, %v8420
      %v8432 = vpop.permute.xlu0 %8431
      %8435 = vset.pattern.permute.xlu0 0
      %8436 = vperm.xlu0 %8435, %v8421
      %v8437 = vpop.permute.xlu0 %8436
      %8440 = vset.pattern.permute.xlu0 0
      %8441 = vperm.xlu0 %8440, %v8422
      %v8442 = vpop.permute.xlu0 %8441
      %8445 = vset.pattern.permute.xlu0 0
      %8446 = vperm.xlu0 %8445, %v8423
      %v8447 = vpop.permute.xlu0 %8446
      %vm8449 = vcmask 64512
      %v8451 = vsel %vm8449, %v8414, 0
      %v8454 = vsel %vm8449, %v8415, 0
      %v8457 = vsel %vm8449, %v8416, 0
      %v8460 = vsel %vm8449, %v8417, 0
      %v8463 = vsel %vm8449, %v8418, 0
      %8465 = vmatprep.subr.mxu0 0.0
      %8466 = vmatpush1.msra.mxu0 %v8413
      %8467 = vmatprep.subr.mxu0 0.0
      %8468 = vmatpush1.msra.mxu0 0.0
      %8469 = vmatprep.subr.mxu0 0.0
      %8470 = vmatpush1.msra.mxu0 0.0
      %8471 = vmatprep.subr.mxu0 0.0
      %8472 = vmatpush1.msra.mxu0 0.0
      %8473 = vmatprep.subr.mxu0 0.0
      %8474 = vmatpush1.msra.mxu0 0.0
      %8475 = vmatprep.subr.mxu0 0.0
      %8476 = vmatpush1.msra.mxu0 0.0
      %8477 = vmatprep.subr.mxu0 0.0
      %8478 = vmatpush1.msra.mxu0 0.0
      %8479 = vmatprep.subr.mxu0 0.0
      %8480 = vmatpush1.msra.mxu0 0.0
      %8481 = vmatprep.subr.mxu0 0.0
      %8482 = vmatpush1.msra.mxu0 0.0
      %8483 = vmatprep.subr.mxu0 0.0
      %8484 = vmatpush1.msra.mxu0 0.0
      %8485 = vmatprep.subr.mxu0 0.0
      %8486 = vmatpush1.msra.mxu0 0.0
      %8487 = vmatprep.subr.mxu0 0.0
      %8488 = vmatpush1.msra.mxu0 0.0
      %8489 = vmatprep.subr.mxu0 0.0
      %8490 = vmatpush1.msra.mxu0 0.0
      %8491 = vmatprep.subr.mxu0 0.0
      %8492 = vmatpush1.msra.mxu0 0.0
      %8493 = vmatprep.subr.mxu0 0.0
      %8494 = vmatpush1.msra.mxu0 0.0
      %8495 = vmatprep.subr.mxu0 0.0
      %8496 = vmatpush1.msra.mxu0 0.0
      %8497 = vmatprep.subr.mxu0 0.0
      %8498 = vmatpush1.msra.mxu0 0.0
      %8499 = vmatprep.subr.mxu0 0.0
      %8500 = vmatpush1.msra.mxu0 0.0
      %8501 = vmatprep.subr.mxu0 0.0
      %8502 = vmatpush1.msra.mxu0 0.0
      %8503 = vmatprep.subr.mxu0 0.0
      %8504 = vmatpush1.msra.mxu0 0.0
      %8505 = vmatprep.subr.mxu0 0.0
      %8506 = vmatpush1.msra.mxu0 0.0
      %8507 = vmatprep.subr.mxu0 0.0
      %8508 = vmatpush1.msra.mxu0 0.0
      %8509 = vmatprep.subr.mxu0 0.0
      %8510 = vmatpush1.msra.mxu0 0.0
      %8511 = vmatprep.subr.mxu0 0.0
      %8512 = vmatpush1.msra.mxu0 0.0
      %8513 = vmatprep.subr.mxu0 0.0
      %8514 = vmatpush1.msra.mxu0 0.0
      %8515 = vmatprep.subr.mxu0 0.0
      %8516 = vmatpush1.msra.mxu0 0.0
      %8517 = vmatprep.subr.mxu0 0.0
      %8518 = vmatpush1.msra.mxu0 0.0
      %8519 = vmatprep.subr.mxu0 0.0
      %8520 = vmatpush1.msra.mxu0 0.0
      %8521 = vmatprep.subr.mxu0 0.0
      %8522 = vmatpush1.msra.mxu0 0.0
      %8523 = vmatprep.subr.mxu0 0.0
      %8524 = vmatpush1.msra.mxu0 0.0
      %8525 = vmatprep.subr.mxu0 0.0
      %8526 = vmatpush1.msra.mxu0 0.0
      %8527 = vmatprep.subr.mxu0 0.0
      %8528 = vmatpush1.msra.mxu0 0.0
      %8529 = vmatprep.mubr.f32.mxu0 0.0
      %8530 = vmatmul.mubr.f32.gmra.mrb[0].mxu0 %v8451
      %v8531 = vpop.f32.mrb[0].mxu0
      %v8532 = vadd.f32 %v8427, %v8531
      %v8533 = vpop.f32.mrb[0].mxu0
      %8534 = vmatprep.mubr.f32.mxu0 0.0
      %8535 = vmatmul.mubr.f32.gmra.mrb[0].mxu0 %v8454
      %v8536 = vpop.f32.mrb[0].mxu0
      %v8537 = vadd.f32 %v8432, %v8536
      %v8538 = vpop.f32.mrb[0].mxu0
      %8539 = vmatprep.mubr.f32.mxu0 0.0
      %8540 = vmatmul.mubr.f32.gmra.mrb[0].mxu0 %v8457
      %v8541 = vpop.f32.mrb[0].mxu0
      %v8542 = vadd.f32 %v8437, %v8541
      %v8543 = vpop.f32.mrb[0].mxu0
      %8544 = vmatprep.mubr.f32.mxu0 0.0
      %8545 = vmatmul.mubr.f32.gmra.mrb[0].mxu0 %v8460
      %v8546 = vpop.f32.mrb[0].mxu0
      %v8547 = vadd.f32 %v8442, %v8546
      %v8548 = vpop.f32.mrb[0].mxu0
      %8549 = vmatprep.mubr.f32.mxu0 0.0
      %8550 = vmatmul.mubr.f32.gmra.mrb[0].mxu0 %v8463
      %v8551 = vpop.f32.mrb[0].mxu0
      %v8552 = vadd.f32 %v8447, %v8551
      %v8553 = vpop.f32.mrb[0].mxu0
      %8554 = vdwg.mxu0
      %8555 = vst.msk [vmem:[%s469] sm:$0xff] %vm8449, %v8532
      %8556 = vst.msk [vmem:[%s469 + $0x8] sm:$0xff] %vm8449, %v8537
      %8557 = vst.msk [vmem:[%s469 + $0x10] sm:$0xff] %vm8449, %v8542
      %8558 = vst.msk [vmem:[%s469 + $0x18] sm:$0xff] %vm8449, %v8547
      %vm8559 = vcmask 61440
      %8560 = vst.msk [vmem:[%s469 + $0x20] sm:$0x1f] %vm8559, %v8552
      %p8561 = scmp.lt.s32.totalorder %s25, 1
      %s8562 = scalar_select %p8561, %s25, 1
      %s8563 = smul.addr %s8562, 5
      %s8564 = smul.addr %s8563, 8
      %s8565 = scalar_lea.vmem %s14, %s8564
      // Predicated region
      $region77: #{pet_recognizer_forward.1} parent=75 // pred_check
        %p8566 = pneg %p342
      $region78: #{pet_recognizer_forward.1} parent=75 // pred_check_branch
        %8568 = sbr.rel (%p8566) target = $region80
      $region79: #{pet_recognizer_forward.1} parent=75 // pred_region
        _
      $region80: #{pet_recognizer_forward.1} parent=75 // pred_fallthru
        _
    $region76: #{pet_recognizer_forward.1} parent=5 // pred_fallthru
      _
    %p8569 = scmp.le.s32.totalorder 2, %s20
    // Predicated region
    $region81: #{pet_recognizer_forward.1} parent=5 // pred_check
      %p8570 = pneg %p8569
    $region82: #{pet_recognizer_forward.1} parent=5 // pred_check_branch
      %8572 = sbr.rel (%p8570) target = $region84
    $region83: #{pet_recognizer_forward.1} parent=5 // pred_region
      %s8573 = ssub.s32 %s20, 2
      // Predicated region
      $region85: #{pet_recognizer_forward.1} parent=83 // pred_check
        %p8574 = pneg %p348
      $region86: #{pet_recognizer_forward.1} parent=83 // pred_check_branch
        %8576 = sbr.rel (%p8574) target = $region88
      $region87: #{pet_recognizer_forward.1} parent=83 // pred_region
        %p8577 = scmp.lt.s32.totalorder %s26, 1
        %s8578 = scalar_select %p8577, %s26, 1
        %s8579 = smul.addr %s8578, 5
        %s8580 = smul.addr %s8579, 8
        %s8581 = scalar_lea.vmem %s14, %s8580
      $region88: #{pet_recognizer_forward.1} parent=83 // pred_fallthru
        _
    $region84: #{pet_recognizer_forward.1} parent=5 // pred_fallthru
      _
  $region6: #{pet_recognizer_forward.1} parent=0 // loop_footer
    %s24 = sadd.s32 1, %s20
  $region7: #{pet_recognizer_forward.1} parent=0 // loop_footer_branch
    %19 = sbr.rel target = $region3
  $region8: #{pet_recognizer_forward.1} parent=0 // loop_exit
    _

</llo_original>
